<compile_context>
chip_gen: v6e
topology: v6e:2x2x1
jax: 0.10.0
libtpu: 0.0.40
codegen_flags: <defaults>
</compile_context>

<pallas_src>
import functools

import jax
import jax.numpy as jnp
from jax.experimental import pallas as pl
from jax.experimental.pallas import tpu as pltpu

EPS = 1e-5
_VMEM_LIMIT = 32 * 1024 * 1024  # safe headroom on v5e/v6e (128 MiB) and v7x (64 MiB)


def _round_up(a, b):
    return ((a + b - 1) // b) * b


def _cparams(*sem):
    return pltpu.CompilerParams(
        dimension_semantics=tuple(sem), vmem_limit_bytes=_VMEM_LIMIT
    )


# ----------------------------------------------------------------------------
# Pallas kernels
# ----------------------------------------------------------------------------
def _matmul_bias_kernel(x_ref, w_ref, b_ref, o_ref, *, act):
    acc = jnp.dot(x_ref[...], w_ref[...], preferred_element_type=jnp.float32)
    acc = acc + b_ref[...]
    if act == "relu":
        acc = jnp.maximum(acc, 0.0)
    elif act == "tanh":
        acc = jnp.tanh(acc)
    o_ref[...] = acc.astype(o_ref.dtype)


def pallas_matmul_bias(x, wm, b2, act="none"):
    """y = act(x @ wm + b).  x:[M,K]; wm:[Kp,Np] bf16 (pre-packed); b2:[1,O] f32."""
    M, K = x.shape
    Kp, Np = wm.shape
    n_out = b2.shape[1]
    tn = Np if Np <= 128 else 128

    if M <= 1024:
        tm = _round_up(M, 16)
    else:
        tm = 512 if Kp <= 1024 else 256
    Mp = _round_up(M, tm)

    xp = x
    if Mp != M or Kp != K:
        xp = jnp.pad(xp, ((0, Mp - M), (0, Kp - K)))
    if xp.dtype != jnp.bfloat16:
        xp = xp.astype(jnp.bfloat16)
    bm = b2.astype(jnp.float32)
    if Np != n_out:
        bm = jnp.pad(bm, ((0, 0), (0, Np - n_out)))

    out = pl.pallas_call(
        functools.partial(_matmul_bias_kernel, act=act),
        out_shape=jax.ShapeDtypeStruct((Mp, Np), jnp.float32),
        # weight (N) axis outermost so the (Kp, tn) weight tile stays resident
        # across all M steps; both axes parallel for megacore sharding.
        grid=(Np // tn, Mp // tm),
        in_specs=[
            pl.BlockSpec((tm, Kp), lambda j, i: (i, 0)),
            pl.BlockSpec((Kp, tn), lambda j, i: (0, j)),
            pl.BlockSpec((1, tn), lambda j, i: (0, j)),
        ],
        out_specs=pl.BlockSpec((tm, tn), lambda j, i: (i, j)),
        compiler_params=_cparams("parallel", "parallel"),
    )(xp, wm, bm)
    if Mp != M or Np != n_out:
        out = out[:M, :n_out]
    return out


def _conv3x3_flat_kernel(x_ref, w_ref, b_ref, o_ref, *, H, W, act, alpha):
    # x_ref: (1, (H+2)*(W+2)+2, Cin) f32 row-flattened padded input
    # w_ref: (9, Cin, tn) bf16   b_ref: (1, tn) f32   o_ref: (1, H*(W+2), tn) f32
    Wp2 = W + 2
    L = H * Wp2
    tn = w_ref.shape[2]
    acc = jnp.zeros((L, tn), jnp.float32)
    for t in range(9):
        kh, kw = divmod(t, 3)
        win = x_ref[0, pl.ds(kh * Wp2 + kw, L), :].astype(jnp.bfloat16)
        acc = acc + jnp.dot(win, w_ref[t], preferred_element_type=jnp.float32)
    acc = acc + b_ref[...]
    if act == "relu":
        acc = jnp.maximum(acc, 0.0)
    elif act == "leaky":
        acc = jnp.where(acc >= 0.0, acc, alpha * acc)
    o_ref[0] = acc.astype(o_ref.dtype)


def conv3x3_direct(x, pc, act="none", alpha=0.2):
    """Direct 3x3 / stride-1 / pad-1 conv: implicit im2col via 9 shifted windows of
    the row-flattened padded input, accumulated in VMEM (activation read once).
    The W+2 'garbage' columns per row are computed and sliced off afterwards."""
    # TODO(synk): for very large spatial extents this whole-image-per-sample block
    # should additionally be tiled over rows; not needed at these resolutions.
    N, H, W, Cin = x.shape
    wp, b2 = pc["wp"], pc["b"]
    cout = b2.shape[1]
    Coutp = wp.shape[2]
    bp = b2 if Coutp == cout else jnp.pad(b2, ((0, 0), (0, Coutp - cout)))
    Wp2 = W + 2
    L = H * Wp2
    Min = (H + 2) * Wp2 + 2
    xf = jnp.pad(x, ((0, 0), (1, 1), (1, 1), (0, 0))).reshape(N, (H + 2) * Wp2, Cin)
    xf = jnp.pad(xf, ((0, 0), (0, 2), (0, 0)))
    tn = Coutp if Coutp <= 128 else 128

    y = pl.pallas_call(
        functools.partial(_conv3x3_flat_kernel, H=H, W=W, act=act, alpha=alpha),
        out_shape=jax.ShapeDtypeStruct((N, L, Coutp), jnp.float32),
        grid=(N, Coutp // tn),
        in_specs=[
            pl.BlockSpec((1, Min, Cin), lambda n, j: (n, 0, 0)),
            pl.BlockSpec((9, Cin, tn), lambda n, j: (0, 0, j)),
            pl.BlockSpec((1, tn), lambda n, j: (0, j)),
        ],
        out_specs=pl.BlockSpec((1, L, tn), lambda n, j: (n, 0, j)),
        compiler_params=_cparams("parallel", "parallel"),
    )(xf, wp, bp)
    return y.reshape(N, H, Wp2, Coutp)[:, :, :W, :cout]


def _in_mod_kernel(x_ref, g_ref, b_ref, o_ref, *, alpha):
    # fused InstanceNorm (per-(n,c) stats over HW) + SPADE modulation + leaky ReLU
    x = x_ref[0]  # (HW, C)
    mean = jnp.mean(x, axis=0, keepdims=True)
    xc = x - mean
    var = jnp.mean(xc * xc, axis=0, keepdims=True)
    xn = xc * jax.lax.rsqrt(var + EPS)
    v = xn * (1.0 + g_ref[0]) + b_ref[0]
    if alpha is not None:
        v = jnp.where(v >= 0.0, v, alpha * v)
    o_ref[0] = v


def instnorm_modulate_leaky(x, gamma, beta, alpha=0.2):
    N, H, W, C = x.shape
    HW = H * W
    xr = x.reshape(N, HW, C)
    gr = gamma.reshape(N, HW, C)
    br = beta.reshape(N, HW, C)
    y = pl.pallas_call(
        functools.partial(_in_mod_kernel, alpha=alpha),
        out_shape=jax.ShapeDtypeStruct((N, HW, C), jnp.float32),
        grid=(N,),
        in_specs=[
            pl.BlockSpec((1, HW, C), lambda n: (n, 0, 0)),
            pl.BlockSpec((1, HW, C), lambda n: (n, 0, 0)),
            pl.BlockSpec((1, HW, C), lambda n: (n, 0, 0)),
        ],
        out_specs=pl.BlockSpec((1, HW, C), lambda n: (n, 0, 0)),
        compiler_params=_cparams("parallel"),
    )(xr, gr, br)
    return y.reshape(N, H, W, C)


def _bn_stats_kernel(x_ref, g_ref, b_ref, scale_ref, shift_ref, sum_ref, sq_ref, *, count):
    i = pl.program_id(0)

    @pl.when(i == 0)
    def _():
        sum_ref[...] = jnp.zeros_like(sum_ref)
        sq_ref[...] = jnp.zeros_like(sq_ref)

    x = x_ref[...]
    sum_ref[...] += jnp.sum(x, axis=0, keepdims=True)
    sq_ref[...] += jnp.sum(x * x, axis=0, keepdims=True)

    @pl.when(i == pl.num_programs(0) - 1)
    def _():
        inv = 1.0 / count
        mean = sum_ref[...] * inv
        var = sq_ref[...] * inv - mean * mean
        scale = g_ref[...] * jax.lax.rsqrt(var + EPS)
        scale_ref[...] = scale
        shift_ref[...] = b_ref[...] - mean * scale


def _affine_relu_kernel(x_ref, s_ref, t_ref, o_ref):
    o_ref[...] = jnp.maximum(x_ref[...] * s_ref[...] + t_ref[...], 0.0)


def batchnorm_relu_nhwc(x, gamma, beta):
    # TODO(synk): PyTorch BatchNorm2d running-stat tracking (eval mode) is stateful
    # and not modeled; training-mode batch statistics are used (PyTorch default).
    N, H, W, C = x.shape
    M = N * H * W
    xr = x.reshape(M, C)
    tr = min(_round_up(M, 8), 2048)
    Mp = _round_up(M, tr)
    if Mp != M:
        xr = jnp.pad(xr, ((0, Mp - M), (0, 0)))  # zero rows: no effect on sums
    T = Mp // tr

    scale, shift = pl.pallas_call(
        functools.partial(_bn_stats_kernel, count=float(M)),
        out_shape=(
            jax.ShapeDtypeStruct((1, C), jnp.float32),
            jax.ShapeDtypeStruct((1, C), jnp.float32),
        ),
        grid=(T,),
        in_specs=[
            pl.BlockSpec((tr, C), lambda i: (i, 0)),
            pl.BlockSpec((1, C), lambda i: (0, 0)),
            pl.BlockSpec((1, C), lambda i: (0, 0)),
        ],
        out_specs=(
            pl.BlockSpec((1, C), lambda i: (0, 0)),
            pl.BlockSpec((1, C), lambda i: (0, 0)),
        ),
        scratch_shapes=[
            pltpu.VMEM((1, C), jnp.float32),
            pltpu.VMEM((1, C), jnp.float32),
        ],
        compiler_params=_cparams("arbitrary"),
    )(xr, gamma, beta)

    y = pl.pallas_call(
        _affine_relu_kernel,
        out_shape=jax.ShapeDtypeStruct((Mp, C), jnp.float32),
        grid=(T,),
        in_specs=[
            pl.BlockSpec((tr, C), lambda i: (i, 0)),
            pl.BlockSpec((1, C), lambda i: (0, 0)),
            pl.BlockSpec((1, C), lambda i: (0, 0)),
        ],
        out_specs=pl.BlockSpec((tr, C), lambda i: (i, 0)),
        compiler_params=_cparams("parallel"),
    )(xr, scale, shift)
    if Mp != M:
        y = y[:M]
    return y.reshape(N, H, W, C)


# ----------------------------------------------------------------------------
# Conv helpers (im2col / phase glue in JAX, matmuls in Pallas)
# ----------------------------------------------------------------------------
def conv2d_im2col(x, pc, kh, kw, stride=1, padding=0, act="none"):
    """General conv (7x7 / strided): im2col patches + Pallas tiled matmul."""
    if padding > 0:
        x = jnp.pad(x, ((0, 0), (padding, padding), (padding, padding), (0, 0)))
    N, Hp, Wp, Cin = x.shape
    Ho = (Hp - kh) // stride + 1
    Wo = (Wp - kw) // stride + 1
    patches = []
    for i in range(kh):
        for j in range(kw):
            patches.append(
                x[:, i:i + stride * Ho:stride, j:j + stride * Wo:stride, :]
            )
    pm = jnp.concatenate(patches, axis=-1).astype(jnp.bfloat16)
    pm = pm.reshape(N * Ho * Wo, kh * kw * Cin)
    cout = pc["b"].shape[1]
    y = pallas_matmul_bias(pm, pc["wm"], pc["b"], act=act)
    return y.reshape(N, Ho, Wo, cout)


# Phase decomposition of ConvTranspose2d(k=3, s=2, p=1, output_padding=1):
# output (2a+py, 2b+px) only receives the listed ((row/col shift), (ky,kx)) taps,
# so the 75% guaranteed-zero positions of the dilated-input formulation are skipped.
_PHASE_TAPS = {
    (0, 0): (((0, 0), (1, 1)),),
    (0, 1): (((0, 1), (1, 0)), ((0, 0), (1, 2))),
    (1, 0): (((1, 0), (0, 1)), ((0, 0), (2, 1))),
    (1, 1): (((1, 1), (0, 0)), ((1, 0), (0, 2)), ((0, 1), (2, 0)), ((0, 0), (2, 2))),
}


def conv_transpose2d_4phase(x, pt):
    N, H, W, Cin = x.shape
    cout = pt["b"].shape[1]
    xp = jnp.pad(x, ((0, 0), (0, 1), (0, 1), (0, 0)))  # zero row/col for edge taps
    y = jnp.zeros((N, 2 * H, 2 * W, cout), jnp.float32)
    for (py, px), taps in _PHASE_TAPS.items():
        pat = jnp.concatenate(
            [xp[:, dy:dy + H, dx:dx + W, :] for ((dy, dx), _) in taps], axis=-1
        ).astype(jnp.bfloat16)
        pat = pat.reshape(N * H * W, -1)
        out = pallas_matmul_bias(pat, pt["wm"]["p%d%d" % (py, px)], pt["b"])
        y = y.at[:, py::2, px::2, :].set(out.reshape(N, H, W, cout))
    return y


def nearest_resize_nhwc(x, Ho, Wo):
    N, H, W, C = x.shape
    hi = jnp.floor(jnp.arange(Ho) * (H / Ho)).astype(jnp.int32)
    wi = jnp.floor(jnp.arange(Wo) * (W / Wo)).astype(jnp.int32)
    return x[:, hi][:, :, wi]


# ----------------------------------------------------------------------------
# Parameter construction + one-time packing (transpose / pad / bf16 cast)
# ----------------------------------------------------------------------------
def _init_conv(key, o, i, kh, kw):
    wkey, bkey = jax.random.split(key)
    bound = 1.0 / float(i * kh * kw) ** 0.5
    w = jax.random.uniform(wkey, (o, i, kh, kw), jnp.float32, -bound, bound)
    b = jax.random.uniform(bkey, (o,), jnp.float32, -bound, bound)
    return w, b


def _init_convT(key, cin, cout, kh, kw):
    wkey, bkey = jax.random.split(key)
    bound = 1.0 / float(cin * kh * kw) ** 0.5
    w = jax.random.uniform(wkey, (cin, cout, kh, kw), jnp.float32, -bound, bound)
    b = jax.random.uniform(bkey, (cout,), jnp.float32, -bound, bound)
    return w, b


def _out_pad(o):
    return o if o <= 128 else _round_up(o, 128)


def pack_im2col_conv(w_oihw, b):
    O, I, KH, KW = w_oihw.shape
    K = KH * KW * I
    Kp = _round_up(K, 16)
    Np = _out_pad(O)
    wm = jnp.transpose(w_oihw, (2, 3, 1, 0)).reshape(K, O)
    wm = jnp.pad(wm, ((0, Kp - K), (0, Np - O))).astype(jnp.bfloat16)
    return dict(wm=wm, b=b.reshape(1, O).astype(jnp.float32))


def pack_direct_conv(w_oihw, b):
    O, I, KH, KW = w_oihw.shape  # KH = KW = 3
    Np = _out_pad(O)
    wp = jnp.transpose(w_oihw, (2, 3, 1, 0)).reshape(KH * KW, I, O)
    wp = jnp.pad(wp, ((0, 0), (0, 0), (0, Np - O))).astype(jnp.bfloat16)
    return dict(wp=wp, b=b.reshape(1, O).astype(jnp.float32))


def pack_convT(w_iohw, b):
    Cin, Cout, _, _ = w_iohw.shape
    Np = _out_pad(Cout)
    wms = {}
    for (py, px), taps in _PHASE_TAPS.items():
        wm = jnp.concatenate(
            [w_iohw[:, :, ky, kx] for (_, (ky, kx)) in taps], axis=0
        )  # (t*Cin, Cout)
        K = wm.shape[0]
        Kp = _round_up(K, 16)
        wm = jnp.pad(wm, ((0, Kp - K), (0, Np - Cout))).astype(jnp.bfloat16)
        wms["p%d%d" % (py, px)] = wm
    return dict(wm=wms, b=b.reshape(1, Cout).astype(jnp.float32))


def build_params(key, input_nc=3, output_nc=3, ngf=8, n_downsampling=2):
    keys = iter(jax.random.split(key, 64))
    P = {}

    down = []
    w, b = _init_conv(next(keys), ngf, input_nc, 7, 7)
    down.append(dict(conv=pack_im2col_conv(w, b),
                     bn_g=jnp.ones((1, ngf), jnp.float32),
                     bn_b=jnp.zeros((1, ngf), jnp.float32)))
    for i in range(n_downsampling):
        mult = 2 ** i
        ci, co = ngf * mult, ngf * mult * 2
        w, b = _init_conv(next(keys), co, ci, 3, 3)
        down.append(dict(conv=pack_im2col_conv(w, b),
                         bn_g=jnp.ones((1, co), jnp.float32),
                         bn_b=jnp.zeros((1, co), jnp.float32)))
    P["down"] = down

    mult = 2 ** n_downsampling
    ch = ngf * mult
    nhidden = 128  # hardcoded in SPADE

    def spade_pack(norm_nc, label_nc):
        ws, bs = _init_conv(next(keys), nhidden, label_nc, 3, 3)
        wg, bg = _init_conv(next(keys), norm_nc, nhidden, 3, 3)
        wb, bb = _init_conv(next(keys), norm_nc, nhidden, 3, 3)
        # fuse gamma & beta convs into one matmul (concat along output channels)
        w_gb = jnp.concatenate([wg, wb], axis=0)
        b_gb = jnp.concatenate([bg, bb], axis=0)
        return dict(shared=pack_im2col_conv(ws, bs),
                    gamma_beta=pack_direct_conv(w_gb, b_gb))

    w0, b0 = _init_conv(next(keys), ch, ch, 3, 3)
    w1, b1 = _init_conv(next(keys), ch, ch, 3, 3)
    P["block1"] = dict(norm_0=spade_pack(ch, input_nc),
                       norm_1=spade_pack(ch, input_nc),
                       conv_0=pack_direct_conv(w0, b0),
                       conv_1=pack_direct_conv(w1, b1))

    up = []
    for i in range(n_downsampling):
        m = 2 ** (n_downsampling - i)
        cin, cout = ngf * m, ngf * m // 2
        w, b = _init_convT(next(keys), cin, cout, 3, 3)
        up.append(dict(convT=pack_convT(w, b),
                       bn_g=jnp.ones((1, cout), jnp.float32),
                       bn_b=jnp.zeros((1, cout), jnp.float32)))
    P["up"] = up

    wf, bf = _init_conv(next(keys), output_nc, ngf, 7, 7)
    P["final"] = pack_im2col_conv(wf, bf)
    return P


# ----------------------------------------------------------------------------
# Forward pass
# ----------------------------------------------------------------------------
def spade_gamma_beta(seg, sp, norm_nc):
    """Seg-only SPADE branch (mlp_shared + fused gamma/beta conv)."""
    actv = conv2d_im2col(seg, sp["shared"], 3, 3, stride=1, padding=1, act="relu")
    gb = conv3x3_direct(actv, sp["gamma_beta"])
    return gb[..., :norm_nc], gb[..., norm_nc:]


def spade_resnet_block(x, gb0, gb1, blk):
    # fin == fout -> identity shortcut
    h = instnorm_modulate_leaky(x, gb0[0], gb0[1], alpha=0.2)
    dx = conv3x3_direct(h, blk["conv_0"])
    h = instnorm_modulate_leaky(dx, gb1[0], gb1[1], alpha=0.2)
    dx = conv3x3_direct(h, blk["conv_1"])
    return x + dx  # residual add left to XLA (negligible at block resolution)


def spade_resnet_forward(params, x_nchw):
    x = jnp.transpose(x_nchw, (0, 2, 3, 1)).astype(jnp.float32)  # NCHW -> NHWC
    seg_raw = x

    # downsampler: ReflectionPad(3)+Conv7+BN+ReLU, then strided convs + BN + ReLU
    layer0 = params["down"][0]
    h = jnp.pad(x, ((0, 0), (3, 3), (3, 3), (0, 0)), mode="reflect")
    h = conv2d_im2col(h, layer0["conv"], 7, 7, stride=1, padding=0)
    h = batchnorm_relu_nhwc(h, layer0["bn_g"], layer0["bn_b"])
    for layer in params["down"][1:]:
        h = conv2d_im2col(h, layer["conv"], 3, 3, stride=2, padding=1)
        h = batchnorm_relu_nhwc(h, layer["bn_g"], layer["bn_b"])

    # Hoisted seg-only SPADE branch: gamma/beta depend only on the input segmap,
    # so compute them once per norm and reuse across the 5 reused-block calls.
    N, Hb, Wb, Cb = h.shape
    seg = nearest_resize_nhwc(seg_raw, Hb, Wb)
    blk = params["block1"]
    gb0 = spade_gamma_beta(seg, blk["norm_0"], Cb)
    gb1 = spade_gamma_beta(seg, blk["norm_1"], Cb)

    # five applications of resnetblocks1, exactly as the reference forward does
    for _ in range(5):
        h = spade_resnet_block(h, gb0, gb1, blk)

    # upsampler: ConvTranspose + BN + ReLU, then ReflectionPad(3) + Conv7 + Tanh
    for layer in params["up"]:
        h = conv_transpose2d_4phase(h, layer["convT"])
        h = batchnorm_relu_nhwc(h, layer["bn_g"], layer["bn_b"])
    h = jnp.pad(h, ((0, 0), (3, 3), (3, 3), (0, 0)), mode="reflect")
    h = conv2d_im2col(h, params["final"], 7, 7, stride=1, padding=0, act="tanh")

    return jnp.transpose(h, (0, 3, 1, 2))  # NHWC -> NCHW


# ----------------------------------------------------------------------------
if __name__ == "__main__":
    key = jax.random.PRNGKey(0)
    pkey, xkey = jax.random.split(key)

    # Small configuration: input_nc=3, output_nc=3, ngf=8, n_downsampling=2
    params = build_params(pkey, input_nc=3, output_nc=3, ngf=8, n_downsampling=2)
    x = jax.random.normal(xkey, (2, 3, 16, 16), dtype=jnp.float32)

    fwd = jax.jit(spade_resnet_forward)
    out = fwd(params, x)
    jax.block_until_ready(out)

    assert out.shape == (2, 3, 16, 16), out.shape
    assert out.dtype == jnp.float32
    assert bool(jnp.all(jnp.isfinite(out)))
    print("KERNEL_OK")
</pallas_src>

<mosaic_0001>
module attributes {stable_mosaic.version = 11 : i64} {
  func.func @_bn_stats_kernel(%arg0: i32, %arg1: memref<512x8xf32, #tpu.memory_space<vmem>>, %arg2: memref<1x8xf32, #tpu.memory_space<vmem>>, %arg3: memref<1x8xf32, #tpu.memory_space<vmem>>, %arg4: memref<1x8xf32, #tpu.memory_space<vmem>>, %arg5: memref<1x8xf32, #tpu.memory_space<vmem>>, %arg6: memref<1x8xf32, #tpu.memory_space<vmem>>, %arg7: memref<1x8xf32, #tpu.memory_space<vmem>>) attributes {dimension_semantics = [#tpu.dimension_semantics<arbitrary>], iteration_bounds = array<i64: 1>, scalar_prefetch = 0 : i64, scratch_operands = 2 : i64, tpu.core_type = #tpu.core_type<tc>, window_params = [{transform_indices = @transform_0, window_bounds = array<i64: 512, 8>}, {pipeline_mode = #tpu.pipeline_mode<synchronous>, transform_indices = @transform_1, window_bounds = array<i64: 1, 8>}, {pipeline_mode = #tpu.pipeline_mode<synchronous>, transform_indices = @transform_2, window_bounds = array<i64: 1, 8>}, {pipeline_mode = #tpu.pipeline_mode<synchronous>, transform_indices = @transform_3, window_bounds = array<i64: 1, 8>}, {pipeline_mode = #tpu.pipeline_mode<synchronous>, transform_indices = @transform_4, window_bounds = array<i64: 1, 8>}]} {
    %c0_i32 = arith.constant 0 : i32
    %0 = arith.cmpi eq, %arg0, %c0_i32 : i32
    %1 = arith.extui %0 : i1 to i32
    %c0_i32_0 = arith.constant 0 : i32
    %2 = arith.cmpi ne, %1, %c0_i32_0 : i32
    scf.if %2 {
      %cst_13 = arith.constant 0.000000e+00 : f32
      %18 = vector.broadcast %cst_13 : f32 to vector<1x8xf32>
      %c0_14 = arith.constant 0 : index
      %c0_15 = arith.constant 0 : index
      %19 = vector.load %arg6[%c0_14, %c0_15] : memref<1x8xf32, #tpu.memory_space<vmem>>, vector<1x8xf32>
      tpu.vector_store %arg6[%c0_14, %c0_15], %18 {strides = array<i32>} : memref<1x8xf32, #tpu.memory_space<vmem>>, vector<1x8xf32>,
      %cst_16 = arith.constant 0.000000e+00 : f32
      %20 = vector.broadcast %cst_16 : f32 to vector<1x8xf32>
      %c0_17 = arith.constant 0 : index
      %c0_18 = arith.constant 0 : index
      %21 = vector.load %arg7[%c0_17, %c0_18] : memref<1x8xf32, #tpu.memory_space<vmem>>, vector<1x8xf32>
      tpu.vector_store %arg7[%c0_17, %c0_18], %20 {strides = array<i32>} : memref<1x8xf32, #tpu.memory_space<vmem>>, vector<1x8xf32>,
    } else {
    }
    %c0 = arith.constant 0 : index
    %c0_1 = arith.constant 0 : index
    %3 = vector.load %arg1[%c0, %c0_1] : memref<512x8xf32, #tpu.memory_space<vmem>>, vector<512x8xf32>
    %c0_2 = arith.constant 0 : index
    %c0_3 = arith.constant 0 : index
    %4 = vector.load %arg6[%c0_2, %c0_3] : memref<1x8xf32, #tpu.memory_space<vmem>>, vector<1x8xf32>
    %cst = arith.constant dense<0.000000e+00> : vector<8xf32>
    %5 = vector.multi_reduction <add>, %3, %cst [0] : vector<512x8xf32> to vector<8xf32>
    %6 = vector.shape_cast %5 : vector<8xf32> to vector<1x8xf32>
    %7 = arith.addf %4, %6 : vector<1x8xf32>
    %c0_4 = arith.constant 0 : index
    %c0_5 = arith.constant 0 : index
    %8 = vector.load %arg6[%c0_4, %c0_5] : memref<1x8xf32, #tpu.memory_space<vmem>>, vector<1x8xf32>
    tpu.vector_store %arg6[%c0_4, %c0_5], %7 {strides = array<i32>} : memref<1x8xf32, #tpu.memory_space<vmem>>, vector<1x8xf32>,
    %c0_6 = arith.constant 0 : index
    %c0_7 = arith.constant 0 : index
    %9 = vector.load %arg7[%c0_6, %c0_7] : memref<1x8xf32, #tpu.memory_space<vmem>>, vector<1x8xf32>
    %10 = arith.mulf %3, %3 : vector<512x8xf32>
    %cst_8 = arith.constant dense<0.000000e+00> : vector<8xf32>
    %11 = vector.multi_reduction <add>, %10, %cst_8 [0] : vector<512x8xf32> to vector<8xf32>
    %12 = vector.shape_cast %11 : vector<8xf32> to vector<1x8xf32>
    %13 = arith.addf %9, %12 : vector<1x8xf32>
    %c0_9 = arith.constant 0 : index
    %c0_10 = arith.constant 0 : index
    %14 = vector.load %arg7[%c0_9, %c0_10] : memref<1x8xf32, #tpu.memory_space<vmem>>, vector<1x8xf32>
    tpu.vector_store %arg7[%c0_9, %c0_10], %13 {strides = array<i32>} : memref<1x8xf32, #tpu.memory_space<vmem>>, vector<1x8xf32>,
    %c0_i32_11 = arith.constant 0 : i32
    %15 = arith.cmpi eq, %arg0, %c0_i32_11 : i32
    %16 = arith.extui %15 : i1 to i32
    %c0_i32_12 = arith.constant 0 : i32
    %17 = arith.cmpi ne, %16, %c0_i32_12 : i32
    scf.if %17 {
      %c0_13 = arith.constant 0 : index
      %c0_14 = arith.constant 0 : index
      %18 = vector.load %arg6[%c0_13, %c0_14] : memref<1x8xf32, #tpu.memory_space<vmem>>, vector<1x8xf32>
      %cst_15 = arith.constant 0.001953125 : f32
      %19 = vector.broadcast %cst_15 : f32 to vector<1x8xf32>
      %20 = arith.mulf %18, %19 : vector<1x8xf32>
      %c0_16 = arith.constant 0 : index
      %c0_17 = arith.constant 0 : index
      %21 = vector.load %arg7[%c0_16, %c0_17] : memref<1x8xf32, #tpu.memory_space<vmem>>, vector<1x8xf32>
      %cst_18 = arith.constant 0.001953125 : f32
      %22 = vector.broadcast %cst_18 : f32 to vector<1x8xf32>
      %23 = arith.mulf %21, %22 : vector<1x8xf32>
      %24 = arith.mulf %20, %20 : vector<1x8xf32>
      %25 = arith.subf %23, %24 : vector<1x8xf32>
      %c0_19 = arith.constant 0 : index
      %c0_20 = arith.constant 0 : index
      %26 = vector.load %arg2[%c0_19, %c0_20] : memref<1x8xf32, #tpu.memory_space<vmem>>, vector<1x8xf32>
      %cst_21 = arith.constant 9.99999974E-6 : f32
      %27 = vector.broadcast %cst_21 : f32 to vector<1x8xf32>
      %28 = arith.addf %25, %27 : vector<1x8xf32>
      %29 = math.rsqrt %28 : vector<1x8xf32>
      %30 = arith.mulf %26, %29 : vector<1x8xf32>
      %c0_22 = arith.constant 0 : index
      %c0_23 = arith.constant 0 : index
      %31 = vector.load %arg4[%c0_22, %c0_23] : memref<1x8xf32, #tpu.memory_space<vmem>>, vector<1x8xf32>
      tpu.vector_store %arg4[%c0_22, %c0_23], %30 {strides = array<i32>} : memref<1x8xf32, #tpu.memory_space<vmem>>, vector<1x8xf32>,
      %c0_24 = arith.constant 0 : index
      %c0_25 = arith.constant 0 : index
      %32 = vector.load %arg3[%c0_24, %c0_25] : memref<1x8xf32, #tpu.memory_space<vmem>>, vector<1x8xf32>
      %33 = arith.mulf %20, %30 : vector<1x8xf32>
      %34 = arith.subf %32, %33 : vector<1x8xf32>
      %c0_26 = arith.constant 0 : index
      %c0_27 = arith.constant 0 : index
      %35 = vector.load %arg5[%c0_26, %c0_27] : memref<1x8xf32, #tpu.memory_space<vmem>>, vector<1x8xf32>
      tpu.vector_store %arg5[%c0_26, %c0_27], %34 {strides = array<i32>} : memref<1x8xf32, #tpu.memory_space<vmem>>, vector<1x8xf32>,
    } else {
    }
    return
  }
  func.func @transform_0(%arg0: i32) -> (i32, i32) {
    %c0_i32 = arith.constant 0 : i32
    %c0_i32_0 = arith.constant 0 : i32
    return %arg0, %c0_i32 : i32, i32
  }
  func.func @transform_1(%arg0: i32) -> (i32, i32) {
    %c0_i32 = arith.constant 0 : i32
    %c0_i32_0 = arith.constant 0 : i32
    %c0_i32_1 = arith.constant 0 : i32
    return %c0_i32, %c0_i32_0 : i32, i32
  }
  func.func @transform_2(%arg0: i32) -> (i32, i32) {
    %c0_i32 = arith.constant 0 : i32
    %c0_i32_0 = arith.constant 0 : i32
    %c0_i32_1 = arith.constant 0 : i32
    return %c0_i32, %c0_i32_0 : i32, i32
  }
  func.func @transform_3(%arg0: i32) -> (i32, i32) {
    %c0_i32 = arith.constant 0 : i32
    %c0_i32_0 = arith.constant 0 : i32
    %c0_i32_1 = arith.constant 0 : i32
    return %c0_i32, %c0_i32_0 : i32, i32
  }
  func.func @transform_4(%arg0: i32) -> (i32, i32) {
    %c0_i32 = arith.constant 0 : i32
    %c0_i32_0 = arith.constant 0 : i32
    %c0_i32_1 = arith.constant 0 : i32
    return %c0_i32, %c0_i32_0 : i32, i32
  }
}

module attributes {stable_mosaic.version = 11 : i64} {
  func.func @_matmul_bias_kernel(%arg0: i32, %arg1: i32, %arg2: memref<512x160xbf16, #tpu.memory_space<vmem>>, %arg3: memref<160x8xbf16, #tpu.memory_space<vmem>>, %arg4: memref<1x8xf32, #tpu.memory_space<vmem>>, %arg5: memref<512x8xf32, #tpu.memory_space<vmem>>) attributes {dimension_semantics = [#tpu.dimension_semantics<parallel>, #tpu.dimension_semantics<parallel>], iteration_bounds = array<i64: 1, 1>, scalar_prefetch = 0 : i64, scratch_operands = 0 : i64, tpu.core_type = #tpu.core_type<tc>, window_params = [{transform_indices = @transform_0, window_bounds = array<i64: 512, 160>}, {transform_indices = @transform_1, window_bounds = array<i64: 160, 8>}, {transform_indices = @transform_2, window_bounds = array<i64: 1, 8>}, {transform_indices = @transform_3, window_bounds = array<i64: 512, 8>}]} {
    %c0 = arith.constant 0 : index
    %c0_0 = arith.constant 0 : index
    %0 = vector.load %arg2[%c0, %c0_0] : memref<512x160xbf16, #tpu.memory_space<vmem>>, vector<512x160xbf16>
    %c0_1 = arith.constant 0 : index
    %c0_2 = arith.constant 0 : index
    %1 = vector.load %arg3[%c0_1, %c0_2] : memref<160x8xbf16, #tpu.memory_space<vmem>>, vector<160x8xbf16>
    %cst = arith.constant dense<0.000000e+00> : vector<512x8xf32>
    %2 = tpu.matmul %0, %1, %cst {dimension_numbers = #tpu.dot_dimension_numbers<[1], [0], [0], [1], [0, 0, 1, 1], [], []>} : vector<512x160xbf16>, vector<160x8xbf16>, vector<512x8xf32> -> vector<512x8xf32>
    %c0_3 = arith.constant 0 : index
    %c0_4 = arith.constant 0 : index
    %3 = vector.load %arg4[%c0_3, %c0_4] : memref<1x8xf32, #tpu.memory_space<vmem>>, vector<1x8xf32>
    %4 = vector.broadcast %3 : vector<1x8xf32> to vector<512x8xf32>
    %5 = arith.addf %2, %4 : vector<512x8xf32>
    %c0_5 = arith.constant 0 : index
    %c0_6 = arith.constant 0 : index
    %6 = vector.load %arg5[%c0_5, %c0_6] : memref<512x8xf32, #tpu.memory_space<vmem>>, vector<512x8xf32>
    tpu.vector_store %arg5[%c0_5, %c0_6], %5 {strides = array<i32>} : memref<512x8xf32, #tpu.memory_space<vmem>>, vector<512x8xf32>,
    return
  }
  func.func @transform_0(%arg0: i32, %arg1: i32) -> (i32, i32) {
    %c0_i32 = arith.constant 0 : i32
    %c0_i32_0 = arith.constant 0 : i32
    return %arg1, %c0_i32 : i32, i32
  }
  func.func @transform_1(%arg0: i32, %arg1: i32) -> (i32, i32) {
    %c0_i32 = arith.constant 0 : i32
    %c0_i32_0 = arith.constant 0 : i32
    return %c0_i32, %arg0 : i32, i32
  }
  func.func @transform_2(%arg0: i32, %arg1: i32) -> (i32, i32) {
    %c0_i32 = arith.constant 0 : i32
    %c0_i32_0 = arith.constant 0 : i32
    return %c0_i32, %arg0 : i32, i32
  }
  func.func @transform_3(%arg0: i32, %arg1: i32) -> (i32, i32) {
    %c0_i32 = arith.constant 0 : i32
    return %arg1, %arg0 : i32, i32
  }
}

module attributes {stable_mosaic.version = 11 : i64} {
  func.func @_affine_relu_kernel(%arg0: i32, %arg1: memref<512x8xf32, #tpu.memory_space<vmem>>, %arg2: memref<1x8xf32, #tpu.memory_space<vmem>>, %arg3: memref<1x8xf32, #tpu.memory_space<vmem>>, %arg4: memref<512x8xf32, #tpu.memory_space<vmem>>) attributes {dimension_semantics = [#tpu.dimension_semantics<parallel>], iteration_bounds = array<i64: 1>, scalar_prefetch = 0 : i64, scratch_operands = 0 : i64, tpu.core_type = #tpu.core_type<tc>, window_params = [{transform_indices = @transform_0, window_bounds = array<i64: 512, 8>}, {pipeline_mode = #tpu.pipeline_mode<synchronous>, transform_indices = @transform_1, window_bounds = array<i64: 1, 8>}, {pipeline_mode = #tpu.pipeline_mode<synchronous>, transform_indices = @transform_2, window_bounds = array<i64: 1, 8>}, {transform_indices = @transform_3, window_bounds = array<i64: 512, 8>}]} {
    %c0 = arith.constant 0 : index
    %c0_0 = arith.constant 0 : index
    %0 = vector.load %arg1[%c0, %c0_0] : memref<512x8xf32, #tpu.memory_space<vmem>>, vector<512x8xf32>
    %c0_1 = arith.constant 0 : index
    %c0_2 = arith.constant 0 : index
    %1 = vector.load %arg2[%c0_1, %c0_2] : memref<1x8xf32, #tpu.memory_space<vmem>>, vector<1x8xf32>
    %2 = vector.broadcast %1 : vector<1x8xf32> to vector<512x8xf32>
    %3 = arith.mulf %0, %2 : vector<512x8xf32>
    %c0_3 = arith.constant 0 : index
    %c0_4 = arith.constant 0 : index
    %4 = vector.load %arg3[%c0_3, %c0_4] : memref<1x8xf32, #tpu.memory_space<vmem>>, vector<1x8xf32>
    %5 = vector.broadcast %4 : vector<1x8xf32> to vector<512x8xf32>
    %6 = arith.addf %3, %5 : vector<512x8xf32>
    %cst = arith.constant 0.000000e+00 : f32
    %7 = vector.broadcast %cst : f32 to vector<512x8xf32>
    %8 = arith.maximumf %6, %7 : vector<512x8xf32>
    %c0_5 = arith.constant 0 : index
    %c0_6 = arith.constant 0 : index
    %9 = vector.load %arg4[%c0_5, %c0_6] : memref<512x8xf32, #tpu.memory_space<vmem>>, vector<512x8xf32>
    tpu.vector_store %arg4[%c0_5, %c0_6], %8 {strides = array<i32>} : memref<512x8xf32, #tpu.memory_space<vmem>>, vector<512x8xf32>,
    return
  }
  func.func @transform_0(%arg0: i32) -> (i32, i32) {
    %c0_i32 = arith.constant 0 : i32
    %c0_i32_0 = arith.constant 0 : i32
    return %arg0, %c0_i32 : i32, i32
  }
  func.func @transform_1(%arg0: i32) -> (i32, i32) {
    %c0_i32 = arith.constant 0 : i32
    %c0_i32_0 = arith.constant 0 : i32
    %c0_i32_1 = arith.constant 0 : i32
    return %c0_i32, %c0_i32_0 : i32, i32
  }
  func.func @transform_2(%arg0: i32) -> (i32, i32) {
    %c0_i32 = arith.constant 0 : i32
    %c0_i32_0 = arith.constant 0 : i32
    %c0_i32_1 = arith.constant 0 : i32
    return %c0_i32, %c0_i32_0 : i32, i32
  }
  func.func @transform_3(%arg0: i32) -> (i32, i32) {
    %c0_i32 = arith.constant 0 : i32
    %c0_i32_0 = arith.constant 0 : i32
    return %arg0, %c0_i32 : i32, i32
  }
}

module attributes {stable_mosaic.version = 11 : i64} {
  func.func @_bn_stats_kernel(%arg0: i32, %arg1: memref<128x16xf32, #tpu.memory_space<vmem>>, %arg2: memref<1x16xf32, #tpu.memory_space<vmem>>, %arg3: memref<1x16xf32, #tpu.memory_space<vmem>>, %arg4: memref<1x16xf32, #tpu.memory_space<vmem>>, %arg5: memref<1x16xf32, #tpu.memory_space<vmem>>, %arg6: memref<1x16xf32, #tpu.memory_space<vmem>>, %arg7: memref<1x16xf32, #tpu.memory_space<vmem>>) attributes {dimension_semantics = [#tpu.dimension_semantics<arbitrary>], iteration_bounds = array<i64: 1>, scalar_prefetch = 0 : i64, scratch_operands = 2 : i64, tpu.core_type = #tpu.core_type<tc>, window_params = [{transform_indices = @transform_0, window_bounds = array<i64: 128, 16>}, {pipeline_mode = #tpu.pipeline_mode<synchronous>, transform_indices = @transform_1, window_bounds = array<i64: 1, 16>}, {pipeline_mode = #tpu.pipeline_mode<synchronous>, transform_indices = @transform_2, window_bounds = array<i64: 1, 16>}, {pipeline_mode = #tpu.pipeline_mode<synchronous>, transform_indices = @transform_3, window_bounds = array<i64: 1, 16>}, {pipeline_mode = #tpu.pipeline_mode<synchronous>, transform_indices = @transform_4, window_bounds = array<i64: 1, 16>}]} {
    %c0_i32 = arith.constant 0 : i32
    %0 = arith.cmpi eq, %arg0, %c0_i32 : i32
    %1 = arith.extui %0 : i1 to i32
    %c0_i32_0 = arith.constant 0 : i32
    %2 = arith.cmpi ne, %1, %c0_i32_0 : i32
    scf.if %2 {
      %cst_13 = arith.constant 0.000000e+00 : f32
      %18 = vector.broadcast %cst_13 : f32 to vector<1x16xf32>
      %c0_14 = arith.constant 0 : index
      %c0_15 = arith.constant 0 : index
      %19 = vector.load %arg6[%c0_14, %c0_15] : memref<1x16xf32, #tpu.memory_space<vmem>>, vector<1x16xf32>
      tpu.vector_store %arg6[%c0_14, %c0_15], %18 {strides = array<i32>} : memref<1x16xf32, #tpu.memory_space<vmem>>, vector<1x16xf32>,
      %cst_16 = arith.constant 0.000000e+00 : f32
      %20 = vector.broadcast %cst_16 : f32 to vector<1x16xf32>
      %c0_17 = arith.constant 0 : index
      %c0_18 = arith.constant 0 : index
      %21 = vector.load %arg7[%c0_17, %c0_18] : memref<1x16xf32, #tpu.memory_space<vmem>>, vector<1x16xf32>
      tpu.vector_store %arg7[%c0_17, %c0_18], %20 {strides = array<i32>} : memref<1x16xf32, #tpu.memory_space<vmem>>, vector<1x16xf32>,
    } else {
    }
    %c0 = arith.constant 0 : index
    %c0_1 = arith.constant 0 : index
    %3 = vector.load %arg1[%c0, %c0_1] : memref<128x16xf32, #tpu.memory_space<vmem>>, vector<128x16xf32>
    %c0_2 = arith.constant 0 : index
    %c0_3 = arith.constant 0 : index
    %4 = vector.load %arg6[%c0_2, %c0_3] : memref<1x16xf32, #tpu.memory_space<vmem>>, vector<1x16xf32>
    %cst = arith.constant dense<0.000000e+00> : vector<16xf32>
    %5 = vector.multi_reduction <add>, %3, %cst [0] : vector<128x16xf32> to vector<16xf32>
    %6 = vector.shape_cast %5 : vector<16xf32> to vector<1x16xf32>
    %7 = arith.addf %4, %6 : vector<1x16xf32>
    %c0_4 = arith.constant 0 : index
    %c0_5 = arith.constant 0 : index
    %8 = vector.load %arg6[%c0_4, %c0_5] : memref<1x16xf32, #tpu.memory_space<vmem>>, vector<1x16xf32>
    tpu.vector_store %arg6[%c0_4, %c0_5], %7 {strides = array<i32>} : memref<1x16xf32, #tpu.memory_space<vmem>>, vector<1x16xf32>,
    %c0_6 = arith.constant 0 : index
    %c0_7 = arith.constant 0 : index
    %9 = vector.load %arg7[%c0_6, %c0_7] : memref<1x16xf32, #tpu.memory_space<vmem>>, vector<1x16xf32>
    %10 = arith.mulf %3, %3 : vector<128x16xf32>
    %cst_8 = arith.constant dense<0.000000e+00> : vector<16xf32>
    %11 = vector.multi_reduction <add>, %10, %cst_8 [0] : vector<128x16xf32> to vector<16xf32>
    %12 = vector.shape_cast %11 : vector<16xf32> to vector<1x16xf32>
    %13 = arith.addf %9, %12 : vector<1x16xf32>
    %c0_9 = arith.constant 0 : index
    %c0_10 = arith.constant 0 : index
    %14 = vector.load %arg7[%c0_9, %c0_10] : memref<1x16xf32, #tpu.memory_space<vmem>>, vector<1x16xf32>
    tpu.vector_store %arg7[%c0_9, %c0_10], %13 {strides = array<i32>} : memref<1x16xf32, #tpu.memory_space<vmem>>, vector<1x16xf32>,
    %c0_i32_11 = arith.constant 0 : i32
    %15 = arith.cmpi eq, %arg0, %c0_i32_11 : i32
    %16 = arith.extui %15 : i1 to i32
    %c0_i32_12 = arith.constant 0 : i32
    %17 = arith.cmpi ne, %16, %c0_i32_12 : i32
    scf.if %17 {
      %c0_13 = arith.constant 0 : index
      %c0_14 = arith.constant 0 : index
      %18 = vector.load %arg6[%c0_13, %c0_14] : memref<1x16xf32, #tpu.memory_space<vmem>>, vector<1x16xf32>
      %cst_15 = arith.constant 7.812500e-03 : f32
      %19 = vector.broadcast %cst_15 : f32 to vector<1x16xf32>
      %20 = arith.mulf %18, %19 : vector<1x16xf32>
      %c0_16 = arith.constant 0 : index
      %c0_17 = arith.constant 0 : index
      %21 = vector.load %arg7[%c0_16, %c0_17] : memref<1x16xf32, #tpu.memory_space<vmem>>, vector<1x16xf32>
      %cst_18 = arith.constant 7.812500e-03 : f32
      %22 = vector.broadcast %cst_18 : f32 to vector<1x16xf32>
      %23 = arith.mulf %21, %22 : vector<1x16xf32>
      %24 = arith.mulf %20, %20 : vector<1x16xf32>
      %25 = arith.subf %23, %24 : vector<1x16xf32>
      %c0_19 = arith.constant 0 : index
      %c0_20 = arith.constant 0 : index
      %26 = vector.load %arg2[%c0_19, %c0_20] : memref<1x16xf32, #tpu.memory_space<vmem>>, vector<1x16xf32>
      %cst_21 = arith.constant 9.99999974E-6 : f32
      %27 = vector.broadcast %cst_21 : f32 to vector<1x16xf32>
      %28 = arith.addf %25, %27 : vector<1x16xf32>
      %29 = math.rsqrt %28 : vector<1x16xf32>
      %30 = arith.mulf %26, %29 : vector<1x16xf32>
      %c0_22 = arith.constant 0 : index
      %c0_23 = arith.constant 0 : index
      %31 = vector.load %arg4[%c0_22, %c0_23] : memref<1x16xf32, #tpu.memory_space<vmem>>, vector<1x16xf32>
      tpu.vector_store %arg4[%c0_22, %c0_23], %30 {strides = array<i32>} : memref<1x16xf32, #tpu.memory_space<vmem>>, vector<1x16xf32>,
      %c0_24 = arith.constant 0 : index
      %c0_25 = arith.constant 0 : index
      %32 = vector.load %arg3[%c0_24, %c0_25] : memref<1x16xf32, #tpu.memory_space<vmem>>, vector<1x16xf32>
      %33 = arith.mulf %20, %30 : vector<1x16xf32>
      %34 = arith.subf %32, %33 : vector<1x16xf32>
      %c0_26 = arith.constant 0 : index
      %c0_27 = arith.constant 0 : index
      %35 = vector.load %arg5[%c0_26, %c0_27] : memref<1x16xf32, #tpu.memory_space<vmem>>, vector<1x16xf32>
      tpu.vector_store %arg5[%c0_26, %c0_27], %34 {strides = array<i32>} : memref<1x16xf32, #tpu.memory_space<vmem>>, vector<1x16xf32>,
    } else {
    }
    return
  }
  func.func @transform_0(%arg0: i32) -> (i32, i32) {
    %c0_i32 = arith.constant 0 : i32
    %c0_i32_0 = arith.constant 0 : i32
    return %arg0, %c0_i32 : i32, i32
  }
  func.func @transform_1(%arg0: i32) -> (i32, i32) {
    %c0_i32 = arith.constant 0 : i32
    %c0_i32_0 = arith.constant 0 : i32
    %c0_i32_1 = arith.constant 0 : i32
    return %c0_i32, %c0_i32_0 : i32, i32
  }
  func.func @transform_2(%arg0: i32) -> (i32, i32) {
    %c0_i32 = arith.constant 0 : i32
    %c0_i32_0 = arith.constant 0 : i32
    %c0_i32_1 = arith.constant 0 : i32
    return %c0_i32, %c0_i32_0 : i32, i32
  }
  func.func @transform_3(%arg0: i32) -> (i32, i32) {
    %c0_i32 = arith.constant 0 : i32
    %c0_i32_0 = arith.constant 0 : i32
    %c0_i32_1 = arith.constant 0 : i32
    return %c0_i32, %c0_i32_0 : i32, i32
  }
  func.func @transform_4(%arg0: i32) -> (i32, i32) {
    %c0_i32 = arith.constant 0 : i32
    %c0_i32_0 = arith.constant 0 : i32
    %c0_i32_1 = arith.constant 0 : i32
    return %c0_i32, %c0_i32_0 : i32, i32
  }
}

module attributes {stable_mosaic.version = 11 : i64} {
  func.func @_matmul_bias_kernel(%arg0: i32, %arg1: i32, %arg2: memref<128x80xbf16, #tpu.memory_space<vmem>>, %arg3: memref<80x16xbf16, #tpu.memory_space<vmem>>, %arg4: memref<1x16xf32, #tpu.memory_space<vmem>>, %arg5: memref<128x16xf32, #tpu.memory_space<vmem>>) attributes {dimension_semantics = [#tpu.dimension_semantics<parallel>, #tpu.dimension_semantics<parallel>], iteration_bounds = array<i64: 1, 1>, scalar_prefetch = 0 : i64, scratch_operands = 0 : i64, tpu.core_type = #tpu.core_type<tc>, window_params = [{transform_indices = @transform_0, window_bounds = array<i64: 128, 80>}, {transform_indices = @transform_1, window_bounds = array<i64: 80, 16>}, {transform_indices = @transform_2, window_bounds = array<i64: 1, 16>}, {transform_indices = @transform_3, window_bounds = array<i64: 128, 16>}]} {
    %c0 = arith.constant 0 : index
    %c0_0 = arith.constant 0 : index
    %0 = vector.load %arg2[%c0, %c0_0] : memref<128x80xbf16, #tpu.memory_space<vmem>>, vector<128x80xbf16>
    %c0_1 = arith.constant 0 : index
    %c0_2 = arith.constant 0 : index
    %1 = vector.load %arg3[%c0_1, %c0_2] : memref<80x16xbf16, #tpu.memory_space<vmem>>, vector<80x16xbf16>
    %cst = arith.constant dense<0.000000e+00> : vector<128x16xf32>
    %2 = tpu.matmul %0, %1, %cst {dimension_numbers = #tpu.dot_dimension_numbers<[1], [0], [0], [1], [0, 0, 1, 1], [], []>} : vector<128x80xbf16>, vector<80x16xbf16>, vector<128x16xf32> -> vector<128x16xf32>
    %c0_3 = arith.constant 0 : index
    %c0_4 = arith.constant 0 : index
    %3 = vector.load %arg4[%c0_3, %c0_4] : memref<1x16xf32, #tpu.memory_space<vmem>>, vector<1x16xf32>
    %4 = vector.broadcast %3 : vector<1x16xf32> to vector<128x16xf32>
    %5 = arith.addf %2, %4 : vector<128x16xf32>
    %c0_5 = arith.constant 0 : index
    %c0_6 = arith.constant 0 : index
    %6 = vector.load %arg5[%c0_5, %c0_6] : memref<128x16xf32, #tpu.memory_space<vmem>>, vector<128x16xf32>
    tpu.vector_store %arg5[%c0_5, %c0_6], %5 {strides = array<i32>} : memref<128x16xf32, #tpu.memory_space<vmem>>, vector<128x16xf32>,
    return
  }
  func.func @transform_0(%arg0: i32, %arg1: i32) -> (i32, i32) {
    %c0_i32 = arith.constant 0 : i32
    %c0_i32_0 = arith.constant 0 : i32
    return %arg1, %c0_i32 : i32, i32
  }
  func.func @transform_1(%arg0: i32, %arg1: i32) -> (i32, i32) {
    %c0_i32 = arith.constant 0 : i32
    %c0_i32_0 = arith.constant 0 : i32
    return %c0_i32, %arg0 : i32, i32
  }
  func.func @transform_2(%arg0: i32, %arg1: i32) -> (i32, i32) {
    %c0_i32 = arith.constant 0 : i32
    %c0_i32_0 = arith.constant 0 : i32
    return %c0_i32, %arg0 : i32, i32
  }
  func.func @transform_3(%arg0: i32, %arg1: i32) -> (i32, i32) {
    %c0_i32 = arith.constant 0 : i32
    return %arg1, %arg0 : i32, i32
  }
}

module attributes {stable_mosaic.version = 11 : i64} {
  func.func @_affine_relu_kernel(%arg0: i32, %arg1: memref<128x16xf32, #tpu.memory_space<vmem>>, %arg2: memref<1x16xf32, #tpu.memory_space<vmem>>, %arg3: memref<1x16xf32, #tpu.memory_space<vmem>>, %arg4: memref<128x16xf32, #tpu.memory_space<vmem>>) attributes {dimension_semantics = [#tpu.dimension_semantics<parallel>], iteration_bounds = array<i64: 1>, scalar_prefetch = 0 : i64, scratch_operands = 0 : i64, tpu.core_type = #tpu.core_type<tc>, window_params = [{transform_indices = @transform_0, window_bounds = array<i64: 128, 16>}, {pipeline_mode = #tpu.pipeline_mode<synchronous>, transform_indices = @transform_1, window_bounds = array<i64: 1, 16>}, {pipeline_mode = #tpu.pipeline_mode<synchronous>, transform_indices = @transform_2, window_bounds = array<i64: 1, 16>}, {transform_indices = @transform_3, window_bounds = array<i64: 128, 16>}]} {
    %c0 = arith.constant 0 : index
    %c0_0 = arith.constant 0 : index
    %0 = vector.load %arg1[%c0, %c0_0] : memref<128x16xf32, #tpu.memory_space<vmem>>, vector<128x16xf32>
    %c0_1 = arith.constant 0 : index
    %c0_2 = arith.constant 0 : index
    %1 = vector.load %arg2[%c0_1, %c0_2] : memref<1x16xf32, #tpu.memory_space<vmem>>, vector<1x16xf32>
    %2 = vector.broadcast %1 : vector<1x16xf32> to vector<128x16xf32>
    %3 = arith.mulf %0, %2 : vector<128x16xf32>
    %c0_3 = arith.constant 0 : index
    %c0_4 = arith.constant 0 : index
    %4 = vector.load %arg3[%c0_3, %c0_4] : memref<1x16xf32, #tpu.memory_space<vmem>>, vector<1x16xf32>
    %5 = vector.broadcast %4 : vector<1x16xf32> to vector<128x16xf32>
    %6 = arith.addf %3, %5 : vector<128x16xf32>
    %cst = arith.constant 0.000000e+00 : f32
    %7 = vector.broadcast %cst : f32 to vector<128x16xf32>
    %8 = arith.maximumf %6, %7 : vector<128x16xf32>
    %c0_5 = arith.constant 0 : index
    %c0_6 = arith.constant 0 : index
    %9 = vector.load %arg4[%c0_5, %c0_6] : memref<128x16xf32, #tpu.memory_space<vmem>>, vector<128x16xf32>
    tpu.vector_store %arg4[%c0_5, %c0_6], %8 {strides = array<i32>} : memref<128x16xf32, #tpu.memory_space<vmem>>, vector<128x16xf32>,
    return
  }
  func.func @transform_0(%arg0: i32) -> (i32, i32) {
    %c0_i32 = arith.constant 0 : i32
    %c0_i32_0 = arith.constant 0 : i32
    return %arg0, %c0_i32 : i32, i32
  }
  func.func @transform_1(%arg0: i32) -> (i32, i32) {
    %c0_i32 = arith.constant 0 : i32
    %c0_i32_0 = arith.constant 0 : i32
    %c0_i32_1 = arith.constant 0 : i32
    return %c0_i32, %c0_i32_0 : i32, i32
  }
  func.func @transform_2(%arg0: i32) -> (i32, i32) {
    %c0_i32 = arith.constant 0 : i32
    %c0_i32_0 = arith.constant 0 : i32
    %c0_i32_1 = arith.constant 0 : i32
    return %c0_i32, %c0_i32_0 : i32, i32
  }
  func.func @transform_3(%arg0: i32) -> (i32, i32) {
    %c0_i32 = arith.constant 0 : i32
    %c0_i32_0 = arith.constant 0 : i32
    return %arg0, %c0_i32 : i32, i32
  }
}

module attributes {stable_mosaic.version = 11 : i64} {
  func.func @_matmul_bias_kernel(%arg0: i32, %arg1: i32, %arg2: memref<32x144xbf16, #tpu.memory_space<vmem>>, %arg3: memref<144x32xbf16, #tpu.memory_space<vmem>>, %arg4: memref<1x32xf32, #tpu.memory_space<vmem>>, %arg5: memref<32x32xf32, #tpu.memory_space<vmem>>) attributes {dimension_semantics = [#tpu.dimension_semantics<parallel>, #tpu.dimension_semantics<parallel>], iteration_bounds = array<i64: 1, 1>, scalar_prefetch = 0 : i64, scratch_operands = 0 : i64, tpu.core_type = #tpu.core_type<tc>, window_params = [{transform_indices = @transform_0, window_bounds = array<i64: 32, 144>}, {transform_indices = @transform_1, window_bounds = array<i64: 144, 32>}, {transform_indices = @transform_2, window_bounds = array<i64: 1, 32>}, {transform_indices = @transform_3, window_bounds = array<i64: 32, 32>}]} {
    %c0 = arith.constant 0 : index
    %c0_0 = arith.constant 0 : index
    %0 = vector.load %arg2[%c0, %c0_0] : memref<32x144xbf16, #tpu.memory_space<vmem>>, vector<32x144xbf16>
    %c0_1 = arith.constant 0 : index
    %c0_2 = arith.constant 0 : index
    %1 = vector.load %arg3[%c0_1, %c0_2] : memref<144x32xbf16, #tpu.memory_space<vmem>>, vector<144x32xbf16>
    %cst = arith.constant dense<0.000000e+00> : vector<32x32xf32>
    %2 = tpu.matmul %0, %1, %cst {dimension_numbers = #tpu.dot_dimension_numbers<[1], [0], [0], [1], [0, 0, 1, 1], [], []>} : vector<32x144xbf16>, vector<144x32xbf16>, vector<32x32xf32> -> vector<32x32xf32>
    %c0_3 = arith.constant 0 : index
    %c0_4 = arith.constant 0 : index
    %3 = vector.load %arg4[%c0_3, %c0_4] : memref<1x32xf32, #tpu.memory_space<vmem>>, vector<1x32xf32>
    %4 = vector.broadcast %3 : vector<1x32xf32> to vector<32x32xf32>
    %5 = arith.addf %2, %4 : vector<32x32xf32>
    %c0_5 = arith.constant 0 : index
    %c0_6 = arith.constant 0 : index
    %6 = vector.load %arg5[%c0_5, %c0_6] : memref<32x32xf32, #tpu.memory_space<vmem>>, vector<32x32xf32>
    tpu.vector_store %arg5[%c0_5, %c0_6], %5 {strides = array<i32>} : memref<32x32xf32, #tpu.memory_space<vmem>>, vector<32x32xf32>,
    return
  }
  func.func @transform_0(%arg0: i32, %arg1: i32) -> (i32, i32) {
    %c0_i32 = arith.constant 0 : i32
    %c0_i32_0 = arith.constant 0 : i32
    return %arg1, %c0_i32 : i32, i32
  }
  func.func @transform_1(%arg0: i32, %arg1: i32) -> (i32, i32) {
    %c0_i32 = arith.constant 0 : i32
    %c0_i32_0 = arith.constant 0 : i32
    return %c0_i32, %arg0 : i32, i32
  }
  func.func @transform_2(%arg0: i32, %arg1: i32) -> (i32, i32) {
    %c0_i32 = arith.constant 0 : i32
    %c0_i32_0 = arith.constant 0 : i32
    return %c0_i32, %arg0 : i32, i32
  }
  func.func @transform_3(%arg0: i32, %arg1: i32) -> (i32, i32) {
    %c0_i32 = arith.constant 0 : i32
    return %arg1, %arg0 : i32, i32
  }
}

module attributes {stable_mosaic.version = 11 : i64} {
  func.func @_affine_relu_kernel(%arg0: i32, %arg1: memref<32x32xf32, #tpu.memory_space<vmem>>, %arg2: memref<1x32xf32, #tpu.memory_space<vmem>>, %arg3: memref<1x32xf32, #tpu.memory_space<vmem>>, %arg4: memref<32x32xf32, #tpu.memory_space<vmem>>) attributes {dimension_semantics = [#tpu.dimension_semantics<parallel>], iteration_bounds = array<i64: 1>, scalar_prefetch = 0 : i64, scratch_operands = 0 : i64, tpu.core_type = #tpu.core_type<tc>, window_params = [{transform_indices = @transform_0, window_bounds = array<i64: 32, 32>}, {pipeline_mode = #tpu.pipeline_mode<synchronous>, transform_indices = @transform_1, window_bounds = array<i64: 1, 32>}, {pipeline_mode = #tpu.pipeline_mode<synchronous>, transform_indices = @transform_2, window_bounds = array<i64: 1, 32>}, {transform_indices = @transform_3, window_bounds = array<i64: 32, 32>}]} {
    %c0 = arith.constant 0 : index
    %c0_0 = arith.constant 0 : index
    %0 = vector.load %arg1[%c0, %c0_0] : memref<32x32xf32, #tpu.memory_space<vmem>>, vector<32x32xf32>
    %c0_1 = arith.constant 0 : index
    %c0_2 = arith.constant 0 : index
    %1 = vector.load %arg2[%c0_1, %c0_2] : memref<1x32xf32, #tpu.memory_space<vmem>>, vector<1x32xf32>
    %2 = vector.broadcast %1 : vector<1x32xf32> to vector<32x32xf32>
    %3 = arith.mulf %0, %2 : vector<32x32xf32>
    %c0_3 = arith.constant 0 : index
    %c0_4 = arith.constant 0 : index
    %4 = vector.load %arg3[%c0_3, %c0_4] : memref<1x32xf32, #tpu.memory_space<vmem>>, vector<1x32xf32>
    %5 = vector.broadcast %4 : vector<1x32xf32> to vector<32x32xf32>
    %6 = arith.addf %3, %5 : vector<32x32xf32>
    %cst = arith.constant 0.000000e+00 : f32
    %7 = vector.broadcast %cst : f32 to vector<32x32xf32>
    %8 = arith.maximumf %6, %7 : vector<32x32xf32>
    %c0_5 = arith.constant 0 : index
    %c0_6 = arith.constant 0 : index
    %9 = vector.load %arg4[%c0_5, %c0_6] : memref<32x32xf32, #tpu.memory_space<vmem>>, vector<32x32xf32>
    tpu.vector_store %arg4[%c0_5, %c0_6], %8 {strides = array<i32>} : memref<32x32xf32, #tpu.memory_space<vmem>>, vector<32x32xf32>,
    return
  }
  func.func @transform_0(%arg0: i32) -> (i32, i32) {
    %c0_i32 = arith.constant 0 : i32
    %c0_i32_0 = arith.constant 0 : i32
    return %arg0, %c0_i32 : i32, i32
  }
  func.func @transform_1(%arg0: i32) -> (i32, i32) {
    %c0_i32 = arith.constant 0 : i32
    %c0_i32_0 = arith.constant 0 : i32
    %c0_i32_1 = arith.constant 0 : i32
    return %c0_i32, %c0_i32_0 : i32, i32
  }
  func.func @transform_2(%arg0: i32) -> (i32, i32) {
    %c0_i32 = arith.constant 0 : i32
    %c0_i32_0 = arith.constant 0 : i32
    %c0_i32_1 = arith.constant 0 : i32
    return %c0_i32, %c0_i32_0 : i32, i32
  }
  func.func @transform_3(%arg0: i32) -> (i32, i32) {
    %c0_i32 = arith.constant 0 : i32
    %c0_i32_0 = arith.constant 0 : i32
    return %arg0, %c0_i32 : i32, i32
  }
}

module attributes {stable_mosaic.version = 11 : i64} {
  func.func @_bn_stats_kernel(%arg0: i32, %arg1: memref<32x32xf32, #tpu.memory_space<vmem>>, %arg2: memref<1x32xf32, #tpu.memory_space<vmem>>, %arg3: memref<1x32xf32, #tpu.memory_space<vmem>>, %arg4: memref<1x32xf32, #tpu.memory_space<vmem>>, %arg5: memref<1x32xf32, #tpu.memory_space<vmem>>, %arg6: memref<1x32xf32, #tpu.memory_space<vmem>>, %arg7: memref<1x32xf32, #tpu.memory_space<vmem>>) attributes {dimension_semantics = [#tpu.dimension_semantics<arbitrary>], iteration_bounds = array<i64: 1>, scalar_prefetch = 0 : i64, scratch_operands = 2 : i64, tpu.core_type = #tpu.core_type<tc>, window_params = [{transform_indices = @transform_0, window_bounds = array<i64: 32, 32>}, {pipeline_mode = #tpu.pipeline_mode<synchronous>, transform_indices = @transform_1, window_bounds = array<i64: 1, 32>}, {pipeline_mode = #tpu.pipeline_mode<synchronous>, transform_indices = @transform_2, window_bounds = array<i64: 1, 32>}, {pipeline_mode = #tpu.pipeline_mode<synchronous>, transform_indices = @transform_3, window_bounds = array<i64: 1, 32>}, {pipeline_mode = #tpu.pipeline_mode<synchronous>, transform_indices = @transform_4, window_bounds = array<i64: 1, 32>}]} {
    %c0_i32 = arith.constant 0 : i32
    %0 = arith.cmpi eq, %arg0, %c0_i32 : i32
    %1 = arith.extui %0 : i1 to i32
    %c0_i32_0 = arith.constant 0 : i32
    %2 = arith.cmpi ne, %1, %c0_i32_0 : i32
    scf.if %2 {
      %cst_13 = arith.constant 0.000000e+00 : f32
      %18 = vector.broadcast %cst_13 : f32 to vector<1x32xf32>
      %c0_14 = arith.constant 0 : index
      %c0_15 = arith.constant 0 : index
      %19 = vector.load %arg6[%c0_14, %c0_15] : memref<1x32xf32, #tpu.memory_space<vmem>>, vector<1x32xf32>
      tpu.vector_store %arg6[%c0_14, %c0_15], %18 {strides = array<i32>} : memref<1x32xf32, #tpu.memory_space<vmem>>, vector<1x32xf32>,
      %cst_16 = arith.constant 0.000000e+00 : f32
      %20 = vector.broadcast %cst_16 : f32 to vector<1x32xf32>
      %c0_17 = arith.constant 0 : index
      %c0_18 = arith.constant 0 : index
      %21 = vector.load %arg7[%c0_17, %c0_18] : memref<1x32xf32, #tpu.memory_space<vmem>>, vector<1x32xf32>
      tpu.vector_store %arg7[%c0_17, %c0_18], %20 {strides = array<i32>} : memref<1x32xf32, #tpu.memory_space<vmem>>, vector<1x32xf32>,
    } else {
    }
    %c0 = arith.constant 0 : index
    %c0_1 = arith.constant 0 : index
    %3 = vector.load %arg1[%c0, %c0_1] : memref<32x32xf32, #tpu.memory_space<vmem>>, vector<32x32xf32>
    %c0_2 = arith.constant 0 : index
    %c0_3 = arith.constant 0 : index
    %4 = vector.load %arg6[%c0_2, %c0_3] : memref<1x32xf32, #tpu.memory_space<vmem>>, vector<1x32xf32>
    %cst = arith.constant dense<0.000000e+00> : vector<32xf32>
    %5 = vector.multi_reduction <add>, %3, %cst [0] : vector<32x32xf32> to vector<32xf32>
    %6 = vector.shape_cast %5 : vector<32xf32> to vector<1x32xf32>
    %7 = arith.addf %4, %6 : vector<1x32xf32>
    %c0_4 = arith.constant 0 : index
    %c0_5 = arith.constant 0 : index
    %8 = vector.load %arg6[%c0_4, %c0_5] : memref<1x32xf32, #tpu.memory_space<vmem>>, vector<1x32xf32>
    tpu.vector_store %arg6[%c0_4, %c0_5], %7 {strides = array<i32>} : memref<1x32xf32, #tpu.memory_space<vmem>>, vector<1x32xf32>,
    %c0_6 = arith.constant 0 : index
    %c0_7 = arith.constant 0 : index
    %9 = vector.load %arg7[%c0_6, %c0_7] : memref<1x32xf32, #tpu.memory_space<vmem>>, vector<1x32xf32>
    %10 = arith.mulf %3, %3 : vector<32x32xf32>
    %cst_8 = arith.constant dense<0.000000e+00> : vector<32xf32>
    %11 = vector.multi_reduction <add>, %10, %cst_8 [0] : vector<32x32xf32> to vector<32xf32>
    %12 = vector.shape_cast %11 : vector<32xf32> to vector<1x32xf32>
    %13 = arith.addf %9, %12 : vector<1x32xf32>
    %c0_9 = arith.constant 0 : index
    %c0_10 = arith.constant 0 : index
    %14 = vector.load %arg7[%c0_9, %c0_10] : memref<1x32xf32, #tpu.memory_space<vmem>>, vector<1x32xf32>
    tpu.vector_store %arg7[%c0_9, %c0_10], %13 {strides = array<i32>} : memref<1x32xf32, #tpu.memory_space<vmem>>, vector<1x32xf32>,
    %c0_i32_11 = arith.constant 0 : i32
    %15 = arith.cmpi eq, %arg0, %c0_i32_11 : i32
    %16 = arith.extui %15 : i1 to i32
    %c0_i32_12 = arith.constant 0 : i32
    %17 = arith.cmpi ne, %16, %c0_i32_12 : i32
    scf.if %17 {
      %c0_13 = arith.constant 0 : index
      %c0_14 = arith.constant 0 : index
      %18 = vector.load %arg6[%c0_13, %c0_14] : memref<1x32xf32, #tpu.memory_space<vmem>>, vector<1x32xf32>
      %cst_15 = arith.constant 3.125000e-02 : f32
      %19 = vector.broadcast %cst_15 : f32 to vector<1x32xf32>
      %20 = arith.mulf %18, %19 : vector<1x32xf32>
      %c0_16 = arith.constant 0 : index
      %c0_17 = arith.constant 0 : index
      %21 = vector.load %arg7[%c0_16, %c0_17] : memref<1x32xf32, #tpu.memory_space<vmem>>, vector<1x32xf32>
      %cst_18 = arith.constant 3.125000e-02 : f32
      %22 = vector.broadcast %cst_18 : f32 to vector<1x32xf32>
      %23 = arith.mulf %21, %22 : vector<1x32xf32>
      %24 = arith.mulf %20, %20 : vector<1x32xf32>
      %25 = arith.subf %23, %24 : vector<1x32xf32>
      %c0_19 = arith.constant 0 : index
      %c0_20 = arith.constant 0 : index
      %26 = vector.load %arg2[%c0_19, %c0_20] : memref<1x32xf32, #tpu.memory_space<vmem>>, vector<1x32xf32>
      %cst_21 = arith.constant 9.99999974E-6 : f32
      %27 = vector.broadcast %cst_21 : f32 to vector<1x32xf32>
      %28 = arith.addf %25, %27 : vector<1x32xf32>
      %29 = math.rsqrt %28 : vector<1x32xf32>
      %30 = arith.mulf %26, %29 : vector<1x32xf32>
      %c0_22 = arith.constant 0 : index
      %c0_23 = arith.constant 0 : index
      %31 = vector.load %arg4[%c0_22, %c0_23] : memref<1x32xf32, #tpu.memory_space<vmem>>, vector<1x32xf32>
      tpu.vector_store %arg4[%c0_22, %c0_23], %30 {strides = array<i32>} : memref<1x32xf32, #tpu.memory_space<vmem>>, vector<1x32xf32>,
      %c0_24 = arith.constant 0 : index
      %c0_25 = arith.constant 0 : index
      %32 = vector.load %arg3[%c0_24, %c0_25] : memref<1x32xf32, #tpu.memory_space<vmem>>, vector<1x32xf32>
      %33 = arith.mulf %20, %30 : vector<1x32xf32>
      %34 = arith.subf %32, %33 : vector<1x32xf32>
      %c0_26 = arith.constant 0 : index
      %c0_27 = arith.constant 0 : index
      %35 = vector.load %arg5[%c0_26, %c0_27] : memref<1x32xf32, #tpu.memory_space<vmem>>, vector<1x32xf32>
      tpu.vector_store %arg5[%c0_26, %c0_27], %34 {strides = array<i32>} : memref<1x32xf32, #tpu.memory_space<vmem>>, vector<1x32xf32>,
    } else {
    }
    return
  }
  func.func @transform_0(%arg0: i32) -> (i32, i32) {
    %c0_i32 = arith.constant 0 : i32
    %c0_i32_0 = arith.constant 0 : i32
    return %arg0, %c0_i32 : i32, i32
  }
  func.func @transform_1(%arg0: i32) -> (i32, i32) {
    %c0_i32 = arith.constant 0 : i32
    %c0_i32_0 = arith.constant 0 : i32
    %c0_i32_1 = arith.constant 0 : i32
    return %c0_i32, %c0_i32_0 : i32, i32
  }
  func.func @transform_2(%arg0: i32) -> (i32, i32) {
    %c0_i32 = arith.constant 0 : i32
    %c0_i32_0 = arith.constant 0 : i32
    %c0_i32_1 = arith.constant 0 : i32
    return %c0_i32, %c0_i32_0 : i32, i32
  }
  func.func @transform_3(%arg0: i32) -> (i32, i32) {
    %c0_i32 = arith.constant 0 : i32
    %c0_i32_0 = arith.constant 0 : i32
    %c0_i32_1 = arith.constant 0 : i32
    return %c0_i32, %c0_i32_0 : i32, i32
  }
  func.func @transform_4(%arg0: i32) -> (i32, i32) {
    %c0_i32 = arith.constant 0 : i32
    %c0_i32_0 = arith.constant 0 : i32
    %c0_i32_1 = arith.constant 0 : i32
    return %c0_i32, %c0_i32_0 : i32, i32
  }
}

module attributes {stable_mosaic.version = 11 : i64} {
  func.func @_matmul_bias_kernel(%arg0: i32, %arg1: i32, %arg2: memref<32x32xbf16, #tpu.memory_space<vmem>>, %arg3: memref<32x128xbf16, #tpu.memory_space<vmem>>, %arg4: memref<1x128xf32, #tpu.memory_space<vmem>>, %arg5: memref<32x128xf32, #tpu.memory_space<vmem>>) attributes {dimension_semantics = [#tpu.dimension_semantics<parallel>, #tpu.dimension_semantics<parallel>], iteration_bounds = array<i64: 1, 1>, scalar_prefetch = 0 : i64, scratch_operands = 0 : i64, tpu.core_type = #tpu.core_type<tc>, window_params = [{transform_indices = @transform_0, window_bounds = array<i64: 32, 32>}, {transform_indices = @transform_1, window_bounds = array<i64: 32, 128>}, {transform_indices = @transform_2, window_bounds = array<i64: 1, 128>}, {transform_indices = @transform_3, window_bounds = array<i64: 32, 128>}]} {
    %c0 = arith.constant 0 : index
    %c0_0 = arith.constant 0 : index
    %0 = vector.load %arg2[%c0, %c0_0] : memref<32x32xbf16, #tpu.memory_space<vmem>>, vector<32x32xbf16>
    %c0_1 = arith.constant 0 : index
    %c0_2 = arith.constant 0 : index
    %1 = vector.load %arg3[%c0_1, %c0_2] : memref<32x128xbf16, #tpu.memory_space<vmem>>, vector<32x128xbf16>
    %cst = arith.constant dense<0.000000e+00> : vector<32x128xf32>
    %2 = tpu.matmul %0, %1, %cst {dimension_numbers = #tpu.dot_dimension_numbers<[1], [0], [0], [1], [0, 0, 1, 1], [], []>} : vector<32x32xbf16>, vector<32x128xbf16>, vector<32x128xf32> -> vector<32x128xf32>
    %c0_3 = arith.constant 0 : index
    %c0_4 = arith.constant 0 : index
    %3 = vector.load %arg4[%c0_3, %c0_4] : memref<1x128xf32, #tpu.memory_space<vmem>>, vector<1x128xf32>
    %4 = vector.broadcast %3 : vector<1x128xf32> to vector<32x128xf32>
    %5 = arith.addf %2, %4 : vector<32x128xf32>
    %cst_5 = arith.constant 0.000000e+00 : f32
    %6 = vector.broadcast %cst_5 : f32 to vector<32x128xf32>
    %7 = arith.maximumf %5, %6 : vector<32x128xf32>
    %c0_6 = arith.constant 0 : index
    %c0_7 = arith.constant 0 : index
    %8 = vector.load %arg5[%c0_6, %c0_7] : memref<32x128xf32, #tpu.memory_space<vmem>>, vector<32x128xf32>
    tpu.vector_store %arg5[%c0_6, %c0_7], %7 {strides = array<i32>} : memref<32x128xf32, #tpu.memory_space<vmem>>, vector<32x128xf32>,
    return
  }
  func.func @transform_0(%arg0: i32, %arg1: i32) -> (i32, i32) {
    %c0_i32 = arith.constant 0 : i32
    %c0_i32_0 = arith.constant 0 : i32
    return %arg1, %c0_i32 : i32, i32
  }
  func.func @transform_1(%arg0: i32, %arg1: i32) -> (i32, i32) {
    %c0_i32 = arith.constant 0 : i32
    %c0_i32_0 = arith.constant 0 : i32
    return %c0_i32, %arg0 : i32, i32
  }
  func.func @transform_2(%arg0: i32, %arg1: i32) -> (i32, i32) {
    %c0_i32 = arith.constant 0 : i32
    %c0_i32_0 = arith.constant 0 : i32
    return %c0_i32, %arg0 : i32, i32
  }
  func.func @transform_3(%arg0: i32, %arg1: i32) -> (i32, i32) {
    %c0_i32 = arith.constant 0 : i32
    return %arg1, %arg0 : i32, i32
  }
}

module attributes {stable_mosaic.version = 11 : i64} {
  func.func @_conv3x3_flat_kernel(%arg0: i32, %arg1: i32, %arg2: memref<1x38x128xf32, #tpu.memory_space<vmem>>, %arg3: memref<9x128x64xbf16, #tpu.memory_space<vmem>>, %arg4: memref<1x64xf32, #tpu.memory_space<vmem>>, %arg5: memref<1x24x64xf32, #tpu.memory_space<vmem>>) attributes {dimension_semantics = [#tpu.dimension_semantics<parallel>, #tpu.dimension_semantics<parallel>], iteration_bounds = array<i64: 2, 1>, scalar_prefetch = 0 : i64, scratch_operands = 0 : i64, tpu.core_type = #tpu.core_type<tc>, window_params = [{transform_indices = @transform_0, window_bounds = array<i64: 1, 38, 128>}, {transform_indices = @transform_1, window_bounds = array<i64: 9, 128, 64>}, {transform_indices = @transform_2, window_bounds = array<i64: 1, 64>}, {transform_indices = @transform_3, window_bounds = array<i64: 1, 24, 64>}]} {
    %cst = arith.constant 0.000000e+00 : f32
    %0 = vector.broadcast %cst : f32 to vector<24x64xf32>
    %c0 = arith.constant 0 : index
    %c0_0 = arith.constant 0 : index
    %c0_1 = arith.constant 0 : index
    %1 = vector.load %arg2[%c0, %c0_0, %c0_1] : memref<1x38x128xf32, #tpu.memory_space<vmem>>, vector<1x24x128xf32>
    %2 = vector.shape_cast %1 : vector<1x24x128xf32> to vector<24x128xf32>
    %3 = arith.truncf %2 : vector<24x128xf32> to vector<24x128xbf16>
    %c0_2 = arith.constant 0 : index
    %c0_3 = arith.constant 0 : index
    %c0_4 = arith.constant 0 : index
    %4 = vector.load %arg3[%c0_2, %c0_3, %c0_4] : memref<9x128x64xbf16, #tpu.memory_space<vmem>>, vector<1x128x64xbf16>
    %5 = vector.shape_cast %4 : vector<1x128x64xbf16> to vector<128x64xbf16>
    %cst_5 = arith.constant dense<0.000000e+00> : vector<24x64xf32>
    %6 = tpu.matmul %3, %5, %cst_5 {dimension_numbers = #tpu.dot_dimension_numbers<[1], [0], [0], [1], [0, 0, 1, 1], [], []>} : vector<24x128xbf16>, vector<128x64xbf16>, vector<24x64xf32> -> vector<24x64xf32>
    %7 = arith.addf %0, %6 : vector<24x64xf32>
    %c0_6 = arith.constant 0 : index
    %c1 = arith.constant 1 : index
    %c0_7 = arith.constant 0 : index
    %8 = vector.load %arg2[%c0_6, %c1, %c0_7] : memref<1x38x128xf32, #tpu.memory_space<vmem>>, vector<1x24x128xf32>
    %9 = vector.shape_cast %8 : vector<1x24x128xf32> to vector<24x128xf32>
    %10 = arith.truncf %9 : vector<24x128xf32> to vector<24x128xbf16>
    %c1_8 = arith.constant 1 : index
    %c0_9 = arith.constant 0 : index
    %c0_10 = arith.constant 0 : index
    %11 = vector.load %arg3[%c1_8, %c0_9, %c0_10] : memref<9x128x64xbf16, #tpu.memory_space<vmem>>, vector<1x128x64xbf16>
    %12 = vector.shape_cast %11 : vector<1x128x64xbf16> to vector<128x64xbf16>
    %cst_11 = arith.constant dense<0.000000e+00> : vector<24x64xf32>
    %13 = tpu.matmul %10, %12, %cst_11 {dimension_numbers = #tpu.dot_dimension_numbers<[1], [0], [0], [1], [0, 0, 1, 1], [], []>} : vector<24x128xbf16>, vector<128x64xbf16>, vector<24x64xf32> -> vector<24x64xf32>
    %14 = arith.addf %7, %13 : vector<24x64xf32>
    %c0_12 = arith.constant 0 : index
    %c2 = arith.constant 2 : index
    %c0_13 = arith.constant 0 : index
    %15 = vector.load %arg2[%c0_12, %c2, %c0_13] : memref<1x38x128xf32, #tpu.memory_space<vmem>>, vector<1x24x128xf32>
    %16 = vector.shape_cast %15 : vector<1x24x128xf32> to vector<24x128xf32>
    %17 = arith.truncf %16 : vector<24x128xf32> to vector<24x128xbf16>
    %c2_14 = arith.constant 2 : index
    %c0_15 = arith.constant 0 : index
    %c0_16 = arith.constant 0 : index
    %18 = vector.load %arg3[%c2_14, %c0_15, %c0_16] : memref<9x128x64xbf16, #tpu.memory_space<vmem>>, vector<1x128x64xbf16>
    %19 = vector.shape_cast %18 : vector<1x128x64xbf16> to vector<128x64xbf16>
    %cst_17 = arith.constant dense<0.000000e+00> : vector<24x64xf32>
    %20 = tpu.matmul %17, %19, %cst_17 {dimension_numbers = #tpu.dot_dimension_numbers<[1], [0], [0], [1], [0, 0, 1, 1], [], []>} : vector<24x128xbf16>, vector<128x64xbf16>, vector<24x64xf32> -> vector<24x64xf32>
    %21 = arith.addf %14, %20 : vector<24x64xf32>
    %c0_18 = arith.constant 0 : index
    %c6 = arith.constant 6 : index
    %c0_19 = arith.constant 0 : index
    %22 = vector.load %arg2[%c0_18, %c6, %c0_19] : memref<1x38x128xf32, #tpu.memory_space<vmem>>, vector<1x24x128xf32>
    %23 = vector.shape_cast %22 : vector<1x24x128xf32> to vector<24x128xf32>
    %24 = arith.truncf %23 : vector<24x128xf32> to vector<24x128xbf16>
    %c3 = arith.constant 3 : index
    %c0_20 = arith.constant 0 : index
    %c0_21 = arith.constant 0 : index
    %25 = vector.load %arg3[%c3, %c0_20, %c0_21] : memref<9x128x64xbf16, #tpu.memory_space<vmem>>, vector<1x128x64xbf16>
    %26 = vector.shape_cast %25 : vector<1x128x64xbf16> to vector<128x64xbf16>
    %cst_22 = arith.constant dense<0.000000e+00> : vector<24x64xf32>
    %27 = tpu.matmul %24, %26, %cst_22 {dimension_numbers = #tpu.dot_dimension_numbers<[1], [0], [0], [1], [0, 0, 1, 1], [], []>} : vector<24x128xbf16>, vector<128x64xbf16>, vector<24x64xf32> -> vector<24x64xf32>
    %28 = arith.addf %21, %27 : vector<24x64xf32>
    %c0_23 = arith.constant 0 : index
    %c7 = arith.constant 7 : index
    %c0_24 = arith.constant 0 : index
    %29 = vector.load %arg2[%c0_23, %c7, %c0_24] : memref<1x38x128xf32, #tpu.memory_space<vmem>>, vector<1x24x128xf32>
    %30 = vector.shape_cast %29 : vector<1x24x128xf32> to vector<24x128xf32>
    %31 = arith.truncf %30 : vector<24x128xf32> to vector<24x128xbf16>
    %c4 = arith.constant 4 : index
    %c0_25 = arith.constant 0 : index
    %c0_26 = arith.constant 0 : index
    %32 = vector.load %arg3[%c4, %c0_25, %c0_26] : memref<9x128x64xbf16, #tpu.memory_space<vmem>>, vector<1x128x64xbf16>
    %33 = vector.shape_cast %32 : vector<1x128x64xbf16> to vector<128x64xbf16>
    %cst_27 = arith.constant dense<0.000000e+00> : vector<24x64xf32>
    %34 = tpu.matmul %31, %33, %cst_27 {dimension_numbers = #tpu.dot_dimension_numbers<[1], [0], [0], [1], [0, 0, 1, 1], [], []>} : vector<24x128xbf16>, vector<128x64xbf16>, vector<24x64xf32> -> vector<24x64xf32>
    %35 = arith.addf %28, %34 : vector<24x64xf32>
    %c0_28 = arith.constant 0 : index
    %c8 = arith.constant 8 : index
    %c0_29 = arith.constant 0 : index
    %36 = vector.load %arg2[%c0_28, %c8, %c0_29] : memref<1x38x128xf32, #tpu.memory_space<vmem>>, vector<1x24x128xf32>
    %37 = vector.shape_cast %36 : vector<1x24x128xf32> to vector<24x128xf32>
    %38 = arith.truncf %37 : vector<24x128xf32> to vector<24x128xbf16>
    %c5 = arith.constant 5 : index
    %c0_30 = arith.constant 0 : index
    %c0_31 = arith.constant 0 : index
    %39 = vector.load %arg3[%c5, %c0_30, %c0_31] : memref<9x128x64xbf16, #tpu.memory_space<vmem>>, vector<1x128x64xbf16>
    %40 = vector.shape_cast %39 : vector<1x128x64xbf16> to vector<128x64xbf16>
    %cst_32 = arith.constant dense<0.000000e+00> : vector<24x64xf32>
    %41 = tpu.matmul %38, %40, %cst_32 {dimension_numbers = #tpu.dot_dimension_numbers<[1], [0], [0], [1], [0, 0, 1, 1], [], []>} : vector<24x128xbf16>, vector<128x64xbf16>, vector<24x64xf32> -> vector<24x64xf32>
    %42 = arith.addf %35, %41 : vector<24x64xf32>
    %c0_33 = arith.constant 0 : index
    %c12 = arith.constant 12 : index
    %c0_34 = arith.constant 0 : index
    %43 = vector.load %arg2[%c0_33, %c12, %c0_34] : memref<1x38x128xf32, #tpu.memory_space<vmem>>, vector<1x24x128xf32>
    %44 = vector.shape_cast %43 : vector<1x24x128xf32> to vector<24x128xf32>
    %45 = arith.truncf %44 : vector<24x128xf32> to vector<24x128xbf16>
    %c6_35 = arith.constant 6 : index
    %c0_36 = arith.constant 0 : index
    %c0_37 = arith.constant 0 : index
    %46 = vector.load %arg3[%c6_35, %c0_36, %c0_37] : memref<9x128x64xbf16, #tpu.memory_space<vmem>>, vector<1x128x64xbf16>
    %47 = vector.shape_cast %46 : vector<1x128x64xbf16> to vector<128x64xbf16>
    %cst_38 = arith.constant dense<0.000000e+00> : vector<24x64xf32>
    %48 = tpu.matmul %45, %47, %cst_38 {dimension_numbers = #tpu.dot_dimension_numbers<[1], [0], [0], [1], [0, 0, 1, 1], [], []>} : vector<24x128xbf16>, vector<128x64xbf16>, vector<24x64xf32> -> vector<24x64xf32>
    %49 = arith.addf %42, %48 : vector<24x64xf32>
    %c0_39 = arith.constant 0 : index
    %c13 = arith.constant 13 : index
    %c0_40 = arith.constant 0 : index
    %50 = vector.load %arg2[%c0_39, %c13, %c0_40] : memref<1x38x128xf32, #tpu.memory_space<vmem>>, vector<1x24x128xf32>
    %51 = vector.shape_cast %50 : vector<1x24x128xf32> to vector<24x128xf32>
    %52 = arith.truncf %51 : vector<24x128xf32> to vector<24x128xbf16>
    %c7_41 = arith.constant 7 : index
    %c0_42 = arith.constant 0 : index
    %c0_43 = arith.constant 0 : index
    %53 = vector.load %arg3[%c7_41, %c0_42, %c0_43] : memref<9x128x64xbf16, #tpu.memory_space<vmem>>, vector<1x128x64xbf16>
    %54 = vector.shape_cast %53 : vector<1x128x64xbf16> to vector<128x64xbf16>
    %cst_44 = arith.constant dense<0.000000e+00> : vector<24x64xf32>
    %55 = tpu.matmul %52, %54, %cst_44 {dimension_numbers = #tpu.dot_dimension_numbers<[1], [0], [0], [1], [0, 0, 1, 1], [], []>} : vector<24x128xbf16>, vector<128x64xbf16>, vector<24x64xf32> -> vector<24x64xf32>
    %56 = arith.addf %49, %55 : vector<24x64xf32>
    %c0_45 = arith.constant 0 : index
    %c14 = arith.constant 14 : index
    %c0_46 = arith.constant 0 : index
    %57 = vector.load %arg2[%c0_45, %c14, %c0_46] : memref<1x38x128xf32, #tpu.memory_space<vmem>>, vector<1x24x128xf32>
    %58 = vector.shape_cast %57 : vector<1x24x128xf32> to vector<24x128xf32>
    %59 = arith.truncf %58 : vector<24x128xf32> to vector<24x128xbf16>
    %c8_47 = arith.constant 8 : index
    %c0_48 = arith.constant 0 : index
    %c0_49 = arith.constant 0 : index
    %60 = vector.load %arg3[%c8_47, %c0_48, %c0_49] : memref<9x128x64xbf16, #tpu.memory_space<vmem>>, vector<1x128x64xbf16>
    %61 = vector.shape_cast %60 : vector<1x128x64xbf16> to vector<128x64xbf16>
    %cst_50 = arith.constant dense<0.000000e+00> : vector<24x64xf32>
    %62 = tpu.matmul %59, %61, %cst_50 {dimension_numbers = #tpu.dot_dimension_numbers<[1], [0], [0], [1], [0, 0, 1, 1], [], []>} : vector<24x128xbf16>, vector<128x64xbf16>, vector<24x64xf32> -> vector<24x64xf32>
    %63 = arith.addf %56, %62 : vector<24x64xf32>
    %c0_51 = arith.constant 0 : index
    %c0_52 = arith.constant 0 : index
    %64 = vector.load %arg4[%c0_51, %c0_52] : memref<1x64xf32, #tpu.memory_space<vmem>>, vector<1x64xf32>
    %65 = vector.broadcast %64 : vector<1x64xf32> to vector<24x64xf32>
    %66 = arith.addf %63, %65 : vector<24x64xf32>
    %c0_53 = arith.constant 0 : index
    %c0_54 = arith.constant 0 : index
    %c0_55 = arith.constant 0 : index
    %67 = vector.load %arg5[%c0_53, %c0_54, %c0_55] : memref<1x24x64xf32, #tpu.memory_space<vmem>>, vector<1x24x64xf32>
    %68 = vector.shape_cast %67 : vector<1x24x64xf32> to vector<24x64xf32>
    %69 = vector.shape_cast %66 : vector<24x64xf32> to vector<1x24x64xf32>
    tpu.vector_store %arg5[%c0_53, %c0_54, %c0_55], %69 {strides = array<i32>} : memref<1x24x64xf32, #tpu.memory_space<vmem>>, vector<1x24x64xf32>,
    return
  }
  func.func @transform_0(%arg0: i32, %arg1: i32) -> (i32, i32, i32) {
    %c0_i32 = arith.constant 0 : i32
    %c0_i32_0 = arith.constant 0 : i32
    %c0_i32_1 = arith.constant 0 : i32
    return %arg0, %c0_i32, %c0_i32_0 : i32, i32, i32
  }
  func.func @transform_1(%arg0: i32, %arg1: i32) -> (i32, i32, i32) {
    %c0_i32 = arith.constant 0 : i32
    %c0_i32_0 = arith.constant 0 : i32
    %c0_i32_1 = arith.constant 0 : i32
    return %c0_i32, %c0_i32_0, %arg1 : i32, i32, i32
  }
  func.func @transform_2(%arg0: i32, %arg1: i32) -> (i32, i32) {
    %c0_i32 = arith.constant 0 : i32
    %c0_i32_0 = arith.constant 0 : i32
    return %c0_i32, %arg1 : i32, i32
  }
  func.func @transform_3(%arg0: i32, %arg1: i32) -> (i32, i32, i32) {
    %c0_i32 = arith.constant 0 : i32
    %c0_i32_0 = arith.constant 0 : i32
    return %arg0, %c0_i32, %arg1 : i32, i32, i32
  }
}

module attributes {stable_mosaic.version = 11 : i64} {
  func.func @_in_mod_kernel(%arg0: i32, %arg1: memref<1x16x32xf32, #tpu.memory_space<vmem>>, %arg2: memref<1x16x32xf32, #tpu.memory_space<vmem>>, %arg3: memref<1x16x32xf32, #tpu.memory_space<vmem>>, %arg4: memref<1x16x32xf32, #tpu.memory_space<vmem>>) attributes {dimension_semantics = [#tpu.dimension_semantics<parallel>], iteration_bounds = array<i64: 2>, scalar_prefetch = 0 : i64, scratch_operands = 0 : i64, tpu.core_type = #tpu.core_type<tc>, window_params = [{transform_indices = @transform_0, window_bounds = array<i64: 1, 16, 32>}, {transform_indices = @transform_1, window_bounds = array<i64: 1, 16, 32>}, {transform_indices = @transform_2, window_bounds = array<i64: 1, 16, 32>}, {transform_indices = @transform_3, window_bounds = array<i64: 1, 16, 32>}]} {
    %c0 = arith.constant 0 : index
    %c0_0 = arith.constant 0 : index
    %c0_1 = arith.constant 0 : index
    %0 = vector.load %arg1[%c0, %c0_0, %c0_1] : memref<1x16x32xf32, #tpu.memory_space<vmem>>, vector<1x16x32xf32>
    %1 = vector.shape_cast %0 : vector<1x16x32xf32> to vector<16x32xf32>
    %cst = arith.constant dense<0.000000e+00> : vector<32xf32>
    %2 = vector.multi_reduction <add>, %1, %cst [0] : vector<16x32xf32> to vector<32xf32>
    %3 = vector.shape_cast %2 : vector<32xf32> to vector<1x32xf32>
    %cst_2 = arith.constant 1.600000e+01 : f32
    %4 = vector.broadcast %cst_2 : f32 to vector<1x32xf32>
    %5 = arith.divf %3, %4 : vector<1x32xf32>
    %6 = vector.broadcast %5 : vector<1x32xf32> to vector<16x32xf32>
    %7 = arith.subf %1, %6 : vector<16x32xf32>
    %8 = arith.mulf %7, %7 : vector<16x32xf32>
    %cst_3 = arith.constant dense<0.000000e+00> : vector<32xf32>
    %9 = vector.multi_reduction <add>, %8, %cst_3 [0] : vector<16x32xf32> to vector<32xf32>
    %10 = vector.shape_cast %9 : vector<32xf32> to vector<1x32xf32>
    %cst_4 = arith.constant 1.600000e+01 : f32
    %11 = vector.broadcast %cst_4 : f32 to vector<1x32xf32>
    %12 = arith.divf %10, %11 : vector<1x32xf32>
    %cst_5 = arith.constant 9.99999974E-6 : f32
    %13 = vector.broadcast %cst_5 : f32 to vector<1x32xf32>
    %14 = arith.addf %12, %13 : vector<1x32xf32>
    %15 = math.rsqrt %14 : vector<1x32xf32>
    %16 = vector.broadcast %15 : vector<1x32xf32> to vector<16x32xf32>
    %17 = arith.mulf %7, %16 : vector<16x32xf32>
    %c0_6 = arith.constant 0 : index
    %c0_7 = arith.constant 0 : index
    %c0_8 = arith.constant 0 : index
    %18 = vector.load %arg2[%c0_6, %c0_7, %c0_8] : memref<1x16x32xf32, #tpu.memory_space<vmem>>, vector<1x16x32xf32>
    %19 = vector.shape_cast %18 : vector<1x16x32xf32> to vector<16x32xf32>
    %cst_9 = arith.constant 1.000000e+00 : f32
    %20 = vector.broadcast %cst_9 : f32 to vector<16x32xf32>
    %21 = arith.addf %20, %19 : vector<16x32xf32>
    %22 = arith.mulf %17, %21 : vector<16x32xf32>
    %c0_10 = arith.constant 0 : index
    %c0_11 = arith.constant 0 : index
    %c0_12 = arith.constant 0 : index
    %23 = vector.load %arg3[%c0_10, %c0_11, %c0_12] : memref<1x16x32xf32, #tpu.memory_space<vmem>>, vector<1x16x32xf32>
    %24 = vector.shape_cast %23 : vector<1x16x32xf32> to vector<16x32xf32>
    %25 = arith.addf %22, %24 : vector<16x32xf32>
    %cst_13 = arith.constant 0.000000e+00 : f32
    %26 = vector.broadcast %cst_13 : f32 to vector<16x32xf32>
    %27 = arith.cmpf oge, %25, %26 : vector<16x32xf32>
    %cst_14 = arith.constant 2.000000e-01 : f32
    %28 = vector.broadcast %cst_14 : f32 to vector<16x32xf32>
    %29 = arith.mulf %28, %25 : vector<16x32xf32>
    %30 = arith.select %27, %25, %29 : vector<16x32xi1>, vector<16x32xf32>
    %c0_15 = arith.constant 0 : index
    %c0_16 = arith.constant 0 : index
    %c0_17 = arith.constant 0 : index
    %31 = vector.load %arg4[%c0_15, %c0_16, %c0_17] : memref<1x16x32xf32, #tpu.memory_space<vmem>>, vector<1x16x32xf32>
    %32 = vector.shape_cast %31 : vector<1x16x32xf32> to vector<16x32xf32>
    %33 = vector.shape_cast %30 : vector<16x32xf32> to vector<1x16x32xf32>
    tpu.vector_store %arg4[%c0_15, %c0_16, %c0_17], %33 {strides = array<i32>} : memref<1x16x32xf32, #tpu.memory_space<vmem>>, vector<1x16x32xf32>,
    return
  }
  func.func @transform_0(%arg0: i32) -> (i32, i32, i32) {
    %c0_i32 = arith.constant 0 : i32
    %c0_i32_0 = arith.constant 0 : i32
    %c0_i32_1 = arith.constant 0 : i32
    return %arg0, %c0_i32, %c0_i32_0 : i32, i32, i32
  }
  func.func @transform_1(%arg0: i32) -> (i32, i32, i32) {
    %c0_i32 = arith.constant 0 : i32
    %c0_i32_0 = arith.constant 0 : i32
    %c0_i32_1 = arith.constant 0 : i32
    return %arg0, %c0_i32, %c0_i32_0 : i32, i32, i32
  }
  func.func @transform_2(%arg0: i32) -> (i32, i32, i32) {
    %c0_i32 = arith.constant 0 : i32
    %c0_i32_0 = arith.constant 0 : i32
    %c0_i32_1 = arith.constant 0 : i32
    return %arg0, %c0_i32, %c0_i32_0 : i32, i32, i32
  }
  func.func @transform_3(%arg0: i32) -> (i32, i32, i32) {
    %c0_i32 = arith.constant 0 : i32
    %c0_i32_0 = arith.constant 0 : i32
    %c0_i32_1 = arith.constant 0 : i32
    return %arg0, %c0_i32, %c0_i32_0 : i32, i32, i32
  }
}

module attributes {stable_mosaic.version = 11 : i64} {
  func.func @_conv3x3_flat_kernel(%arg0: i32, %arg1: i32, %arg2: memref<1x38x32xf32, #tpu.memory_space<vmem>>, %arg3: memref<9x32x32xbf16, #tpu.memory_space<vmem>>, %arg4: memref<1x32xf32, #tpu.memory_space<vmem>>, %arg5: memref<1x24x32xf32, #tpu.memory_space<vmem>>) attributes {dimension_semantics = [#tpu.dimension_semantics<parallel>, #tpu.dimension_semantics<parallel>], iteration_bounds = array<i64: 2, 1>, scalar_prefetch = 0 : i64, scratch_operands = 0 : i64, tpu.core_type = #tpu.core_type<tc>, window_params = [{transform_indices = @transform_0, window_bounds = array<i64: 1, 38, 32>}, {transform_indices = @transform_1, window_bounds = array<i64: 9, 32, 32>}, {transform_indices = @transform_2, window_bounds = array<i64: 1, 32>}, {transform_indices = @transform_3, window_bounds = array<i64: 1, 24, 32>}]} {
    %cst = arith.constant 0.000000e+00 : f32
    %0 = vector.broadcast %cst : f32 to vector<24x32xf32>
    %c0 = arith.constant 0 : index
    %c0_0 = arith.constant 0 : index
    %c0_1 = arith.constant 0 : index
    %1 = vector.load %arg2[%c0, %c0_0, %c0_1] : memref<1x38x32xf32, #tpu.memory_space<vmem>>, vector<1x24x32xf32>
    %2 = vector.shape_cast %1 : vector<1x24x32xf32> to vector<24x32xf32>
    %3 = arith.truncf %2 : vector<24x32xf32> to vector<24x32xbf16>
    %c0_2 = arith.constant 0 : index
    %c0_3 = arith.constant 0 : index
    %c0_4 = arith.constant 0 : index
    %4 = vector.load %arg3[%c0_2, %c0_3, %c0_4] : memref<9x32x32xbf16, #tpu.memory_space<vmem>>, vector<1x32x32xbf16>
    %5 = vector.shape_cast %4 : vector<1x32x32xbf16> to vector<32x32xbf16>
    %cst_5 = arith.constant dense<0.000000e+00> : vector<24x32xf32>
    %6 = tpu.matmul %3, %5, %cst_5 {dimension_numbers = #tpu.dot_dimension_numbers<[1], [0], [0], [1], [0, 0, 1, 1], [], []>} : vector<24x32xbf16>, vector<32x32xbf16>, vector<24x32xf32> -> vector<24x32xf32>
    %7 = arith.addf %0, %6 : vector<24x32xf32>
    %c0_6 = arith.constant 0 : index
    %c1 = arith.constant 1 : index
    %c0_7 = arith.constant 0 : index
    %8 = vector.load %arg2[%c0_6, %c1, %c0_7] : memref<1x38x32xf32, #tpu.memory_space<vmem>>, vector<1x24x32xf32>
    %9 = vector.shape_cast %8 : vector<1x24x32xf32> to vector<24x32xf32>
    %10 = arith.truncf %9 : vector<24x32xf32> to vector<24x32xbf16>
    %c1_8 = arith.constant 1 : index
    %c0_9 = arith.constant 0 : index
    %c0_10 = arith.constant 0 : index
    %11 = vector.load %arg3[%c1_8, %c0_9, %c0_10] : memref<9x32x32xbf16, #tpu.memory_space<vmem>>, vector<1x32x32xbf16>
    %12 = vector.shape_cast %11 : vector<1x32x32xbf16> to vector<32x32xbf16>
    %cst_11 = arith.constant dense<0.000000e+00> : vector<24x32xf32>
    %13 = tpu.matmul %10, %12, %cst_11 {dimension_numbers = #tpu.dot_dimension_numbers<[1], [0], [0], [1], [0, 0, 1, 1], [], []>} : vector<24x32xbf16>, vector<32x32xbf16>, vector<24x32xf32> -> vector<24x32xf32>
    %14 = arith.addf %7, %13 : vector<24x32xf32>
    %c0_12 = arith.constant 0 : index
    %c2 = arith.constant 2 : index
    %c0_13 = arith.constant 0 : index
    %15 = vector.load %arg2[%c0_12, %c2, %c0_13] : memref<1x38x32xf32, #tpu.memory_space<vmem>>, vector<1x24x32xf32>
    %16 = vector.shape_cast %15 : vector<1x24x32xf32> to vector<24x32xf32>
    %17 = arith.truncf %16 : vector<24x32xf32> to vector<24x32xbf16>
    %c2_14 = arith.constant 2 : index
    %c0_15 = arith.constant 0 : index
    %c0_16 = arith.constant 0 : index
    %18 = vector.load %arg3[%c2_14, %c0_15, %c0_16] : memref<9x32x32xbf16, #tpu.memory_space<vmem>>, vector<1x32x32xbf16>
    %19 = vector.shape_cast %18 : vector<1x32x32xbf16> to vector<32x32xbf16>
    %cst_17 = arith.constant dense<0.000000e+00> : vector<24x32xf32>
    %20 = tpu.matmul %17, %19, %cst_17 {dimension_numbers = #tpu.dot_dimension_numbers<[1], [0], [0], [1], [0, 0, 1, 1], [], []>} : vector<24x32xbf16>, vector<32x32xbf16>, vector<24x32xf32> -> vector<24x32xf32>
    %21 = arith.addf %14, %20 : vector<24x32xf32>
    %c0_18 = arith.constant 0 : index
    %c6 = arith.constant 6 : index
    %c0_19 = arith.constant 0 : index
    %22 = vector.load %arg2[%c0_18, %c6, %c0_19] : memref<1x38x32xf32, #tpu.memory_space<vmem>>, vector<1x24x32xf32>
    %23 = vector.shape_cast %22 : vector<1x24x32xf32> to vector<24x32xf32>
    %24 = arith.truncf %23 : vector<24x32xf32> to vector<24x32xbf16>
    %c3 = arith.constant 3 : index
    %c0_20 = arith.constant 0 : index
    %c0_21 = arith.constant 0 : index
    %25 = vector.load %arg3[%c3, %c0_20, %c0_21] : memref<9x32x32xbf16, #tpu.memory_space<vmem>>, vector<1x32x32xbf16>
    %26 = vector.shape_cast %25 : vector<1x32x32xbf16> to vector<32x32xbf16>
    %cst_22 = arith.constant dense<0.000000e+00> : vector<24x32xf32>
    %27 = tpu.matmul %24, %26, %cst_22 {dimension_numbers = #tpu.dot_dimension_numbers<[1], [0], [0], [1], [0, 0, 1, 1], [], []>} : vector<24x32xbf16>, vector<32x32xbf16>, vector<24x32xf32> -> vector<24x32xf32>
    %28 = arith.addf %21, %27 : vector<24x32xf32>
    %c0_23 = arith.constant 0 : index
    %c7 = arith.constant 7 : index
    %c0_24 = arith.constant 0 : index
    %29 = vector.load %arg2[%c0_23, %c7, %c0_24] : memref<1x38x32xf32, #tpu.memory_space<vmem>>, vector<1x24x32xf32>
    %30 = vector.shape_cast %29 : vector<1x24x32xf32> to vector<24x32xf32>
    %31 = arith.truncf %30 : vector<24x32xf32> to vector<24x32xbf16>
    %c4 = arith.constant 4 : index
    %c0_25 = arith.constant 0 : index
    %c0_26 = arith.constant 0 : index
    %32 = vector.load %arg3[%c4, %c0_25, %c0_26] : memref<9x32x32xbf16, #tpu.memory_space<vmem>>, vector<1x32x32xbf16>
    %33 = vector.shape_cast %32 : vector<1x32x32xbf16> to vector<32x32xbf16>
    %cst_27 = arith.constant dense<0.000000e+00> : vector<24x32xf32>
    %34 = tpu.matmul %31, %33, %cst_27 {dimension_numbers = #tpu.dot_dimension_numbers<[1], [0], [0], [1], [0, 0, 1, 1], [], []>} : vector<24x32xbf16>, vector<32x32xbf16>, vector<24x32xf32> -> vector<24x32xf32>
    %35 = arith.addf %28, %34 : vector<24x32xf32>
    %c0_28 = arith.constant 0 : index
    %c8 = arith.constant 8 : index
    %c0_29 = arith.constant 0 : index
    %36 = vector.load %arg2[%c0_28, %c8, %c0_29] : memref<1x38x32xf32, #tpu.memory_space<vmem>>, vector<1x24x32xf32>
    %37 = vector.shape_cast %36 : vector<1x24x32xf32> to vector<24x32xf32>
    %38 = arith.truncf %37 : vector<24x32xf32> to vector<24x32xbf16>
    %c5 = arith.constant 5 : index
    %c0_30 = arith.constant 0 : index
    %c0_31 = arith.constant 0 : index
    %39 = vector.load %arg3[%c5, %c0_30, %c0_31] : memref<9x32x32xbf16, #tpu.memory_space<vmem>>, vector<1x32x32xbf16>
    %40 = vector.shape_cast %39 : vector<1x32x32xbf16> to vector<32x32xbf16>
    %cst_32 = arith.constant dense<0.000000e+00> : vector<24x32xf32>
    %41 = tpu.matmul %38, %40, %cst_32 {dimension_numbers = #tpu.dot_dimension_numbers<[1], [0], [0], [1], [0, 0, 1, 1], [], []>} : vector<24x32xbf16>, vector<32x32xbf16>, vector<24x32xf32> -> vector<24x32xf32>
    %42 = arith.addf %35, %41 : vector<24x32xf32>
    %c0_33 = arith.constant 0 : index
    %c12 = arith.constant 12 : index
    %c0_34 = arith.constant 0 : index
    %43 = vector.load %arg2[%c0_33, %c12, %c0_34] : memref<1x38x32xf32, #tpu.memory_space<vmem>>, vector<1x24x32xf32>
    %44 = vector.shape_cast %43 : vector<1x24x32xf32> to vector<24x32xf32>
    %45 = arith.truncf %44 : vector<24x32xf32> to vector<24x32xbf16>
    %c6_35 = arith.constant 6 : index
    %c0_36 = arith.constant 0 : index
    %c0_37 = arith.constant 0 : index
    %46 = vector.load %arg3[%c6_35, %c0_36, %c0_37] : memref<9x32x32xbf16, #tpu.memory_space<vmem>>, vector<1x32x32xbf16>
    %47 = vector.shape_cast %46 : vector<1x32x32xbf16> to vector<32x32xbf16>
    %cst_38 = arith.constant dense<0.000000e+00> : vector<24x32xf32>
    %48 = tpu.matmul %45, %47, %cst_38 {dimension_numbers = #tpu.dot_dimension_numbers<[1], [0], [0], [1], [0, 0, 1, 1], [], []>} : vector<24x32xbf16>, vector<32x32xbf16>, vector<24x32xf32> -> vector<24x32xf32>
    %49 = arith.addf %42, %48 : vector<24x32xf32>
    %c0_39 = arith.constant 0 : index
    %c13 = arith.constant 13 : index
    %c0_40 = arith.constant 0 : index
    %50 = vector.load %arg2[%c0_39, %c13, %c0_40] : memref<1x38x32xf32, #tpu.memory_space<vmem>>, vector<1x24x32xf32>
    %51 = vector.shape_cast %50 : vector<1x24x32xf32> to vector<24x32xf32>
    %52 = arith.truncf %51 : vector<24x32xf32> to vector<24x32xbf16>
    %c7_41 = arith.constant 7 : index
    %c0_42 = arith.constant 0 : index
    %c0_43 = arith.constant 0 : index
    %53 = vector.load %arg3[%c7_41, %c0_42, %c0_43] : memref<9x32x32xbf16, #tpu.memory_space<vmem>>, vector<1x32x32xbf16>
    %54 = vector.shape_cast %53 : vector<1x32x32xbf16> to vector<32x32xbf16>
    %cst_44 = arith.constant dense<0.000000e+00> : vector<24x32xf32>
    %55 = tpu.matmul %52, %54, %cst_44 {dimension_numbers = #tpu.dot_dimension_numbers<[1], [0], [0], [1], [0, 0, 1, 1], [], []>} : vector<24x32xbf16>, vector<32x32xbf16>, vector<24x32xf32> -> vector<24x32xf32>
    %56 = arith.addf %49, %55 : vector<24x32xf32>
    %c0_45 = arith.constant 0 : index
    %c14 = arith.constant 14 : index
    %c0_46 = arith.constant 0 : index
    %57 = vector.load %arg2[%c0_45, %c14, %c0_46] : memref<1x38x32xf32, #tpu.memory_space<vmem>>, vector<1x24x32xf32>
    %58 = vector.shape_cast %57 : vector<1x24x32xf32> to vector<24x32xf32>
    %59 = arith.truncf %58 : vector<24x32xf32> to vector<24x32xbf16>
    %c8_47 = arith.constant 8 : index
    %c0_48 = arith.constant 0 : index
    %c0_49 = arith.constant 0 : index
    %60 = vector.load %arg3[%c8_47, %c0_48, %c0_49] : memref<9x32x32xbf16, #tpu.memory_space<vmem>>, vector<1x32x32xbf16>
    %61 = vector.shape_cast %60 : vector<1x32x32xbf16> to vector<32x32xbf16>
    %cst_50 = arith.constant dense<0.000000e+00> : vector<24x32xf32>
    %62 = tpu.matmul %59, %61, %cst_50 {dimension_numbers = #tpu.dot_dimension_numbers<[1], [0], [0], [1], [0, 0, 1, 1], [], []>} : vector<24x32xbf16>, vector<32x32xbf16>, vector<24x32xf32> -> vector<24x32xf32>
    %63 = arith.addf %56, %62 : vector<24x32xf32>
    %c0_51 = arith.constant 0 : index
    %c0_52 = arith.constant 0 : index
    %64 = vector.load %arg4[%c0_51, %c0_52] : memref<1x32xf32, #tpu.memory_space<vmem>>, vector<1x32xf32>
    %65 = vector.broadcast %64 : vector<1x32xf32> to vector<24x32xf32>
    %66 = arith.addf %63, %65 : vector<24x32xf32>
    %c0_53 = arith.constant 0 : index
    %c0_54 = arith.constant 0 : index
    %c0_55 = arith.constant 0 : index
    %67 = vector.load %arg5[%c0_53, %c0_54, %c0_55] : memref<1x24x32xf32, #tpu.memory_space<vmem>>, vector<1x24x32xf32>
    %68 = vector.shape_cast %67 : vector<1x24x32xf32> to vector<24x32xf32>
    %69 = vector.shape_cast %66 : vector<24x32xf32> to vector<1x24x32xf32>
    tpu.vector_store %arg5[%c0_53, %c0_54, %c0_55], %69 {strides = array<i32>} : memref<1x24x32xf32, #tpu.memory_space<vmem>>, vector<1x24x32xf32>,
    return
  }
  func.func @transform_0(%arg0: i32, %arg1: i32) -> (i32, i32, i32) {
    %c0_i32 = arith.constant 0 : i32
    %c0_i32_0 = arith.constant 0 : i32
    %c0_i32_1 = arith.constant 0 : i32
    return %arg0, %c0_i32, %c0_i32_0 : i32, i32, i32
  }
  func.func @transform_1(%arg0: i32, %arg1: i32) -> (i32, i32, i32) {
    %c0_i32 = arith.constant 0 : i32
    %c0_i32_0 = arith.constant 0 : i32
    %c0_i32_1 = arith.constant 0 : i32
    return %c0_i32, %c0_i32_0, %arg1 : i32, i32, i32
  }
  func.func @transform_2(%arg0: i32, %arg1: i32) -> (i32, i32) {
    %c0_i32 = arith.constant 0 : i32
    %c0_i32_0 = arith.constant 0 : i32
    return %c0_i32, %arg1 : i32, i32
  }
  func.func @transform_3(%arg0: i32, %arg1: i32) -> (i32, i32, i32) {
    %c0_i32 = arith.constant 0 : i32
    %c0_i32_0 = arith.constant 0 : i32
    return %arg0, %c0_i32, %arg1 : i32, i32, i32
  }
}

module attributes {stable_mosaic.version = 11 : i64} {
  func.func @_matmul_bias_kernel(%arg0: i32, %arg1: i32, %arg2: memref<32x128xbf16, #tpu.memory_space<vmem>>, %arg3: memref<128x16xbf16, #tpu.memory_space<vmem>>, %arg4: memref<1x16xf32, #tpu.memory_space<vmem>>, %arg5: memref<32x16xf32, #tpu.memory_space<vmem>>) attributes {dimension_semantics = [#tpu.dimension_semantics<parallel>, #tpu.dimension_semantics<parallel>], iteration_bounds = array<i64: 1, 1>, scalar_prefetch = 0 : i64, scratch_operands = 0 : i64, tpu.core_type = #tpu.core_type<tc>, window_params = [{transform_indices = @transform_0, window_bounds = array<i64: 32, 128>}, {transform_indices = @transform_1, window_bounds = array<i64: 128, 16>}, {transform_indices = @transform_2, window_bounds = array<i64: 1, 16>}, {transform_indices = @transform_3, window_bounds = array<i64: 32, 16>}]} {
    %c0 = arith.constant 0 : index
    %c0_0 = arith.constant 0 : index
    %0 = vector.load %arg2[%c0, %c0_0] : memref<32x128xbf16, #tpu.memory_space<vmem>>, vector<32x128xbf16>
    %c0_1 = arith.constant 0 : index
    %c0_2 = arith.constant 0 : index
    %1 = vector.load %arg3[%c0_1, %c0_2] : memref<128x16xbf16, #tpu.memory_space<vmem>>, vector<128x16xbf16>
    %cst = arith.constant dense<0.000000e+00> : vector<32x16xf32>
    %2 = tpu.matmul %0, %1, %cst {dimension_numbers = #tpu.dot_dimension_numbers<[1], [0], [0], [1], [0, 0, 1, 1], [], []>} : vector<32x128xbf16>, vector<128x16xbf16>, vector<32x16xf32> -> vector<32x16xf32>
    %c0_3 = arith.constant 0 : index
    %c0_4 = arith.constant 0 : index
    %3 = vector.load %arg4[%c0_3, %c0_4] : memref<1x16xf32, #tpu.memory_space<vmem>>, vector<1x16xf32>
    %4 = vector.broadcast %3 : vector<1x16xf32> to vector<32x16xf32>
    %5 = arith.addf %2, %4 : vector<32x16xf32>
    %c0_5 = arith.constant 0 : index
    %c0_6 = arith.constant 0 : index
    %6 = vector.load %arg5[%c0_5, %c0_6] : memref<32x16xf32, #tpu.memory_space<vmem>>, vector<32x16xf32>
    tpu.vector_store %arg5[%c0_5, %c0_6], %5 {strides = array<i32>} : memref<32x16xf32, #tpu.memory_space<vmem>>, vector<32x16xf32>,
    return
  }
  func.func @transform_0(%arg0: i32, %arg1: i32) -> (i32, i32) {
    %c0_i32 = arith.constant 0 : i32
    %c0_i32_0 = arith.constant 0 : i32
    return %arg1, %c0_i32 : i32, i32
  }
  func.func @transform_1(%arg0: i32, %arg1: i32) -> (i32, i32) {
    %c0_i32 = arith.constant 0 : i32
    %c0_i32_0 = arith.constant 0 : i32
    return %c0_i32, %arg0 : i32, i32
  }
  func.func @transform_2(%arg0: i32, %arg1: i32) -> (i32, i32) {
    %c0_i32 = arith.constant 0 : i32
    %c0_i32_0 = arith.constant 0 : i32
    return %c0_i32, %arg0 : i32, i32
  }
  func.func @transform_3(%arg0: i32, %arg1: i32) -> (i32, i32) {
    %c0_i32 = arith.constant 0 : i32
    return %arg1, %arg0 : i32, i32
  }
}

module attributes {stable_mosaic.version = 11 : i64} {
  func.func @_matmul_bias_kernel(%arg0: i32, %arg1: i32, %arg2: memref<32x64xbf16, #tpu.memory_space<vmem>>, %arg3: memref<64x16xbf16, #tpu.memory_space<vmem>>, %arg4: memref<1x16xf32, #tpu.memory_space<vmem>>, %arg5: memref<32x16xf32, #tpu.memory_space<vmem>>) attributes {dimension_semantics = [#tpu.dimension_semantics<parallel>, #tpu.dimension_semantics<parallel>], iteration_bounds = array<i64: 1, 1>, scalar_prefetch = 0 : i64, scratch_operands = 0 : i64, tpu.core_type = #tpu.core_type<tc>, window_params = [{transform_indices = @transform_0, window_bounds = array<i64: 32, 64>}, {transform_indices = @transform_1, window_bounds = array<i64: 64, 16>}, {transform_indices = @transform_2, window_bounds = array<i64: 1, 16>}, {transform_indices = @transform_3, window_bounds = array<i64: 32, 16>}]} {
    %c0 = arith.constant 0 : index
    %c0_0 = arith.constant 0 : index
    %0 = vector.load %arg2[%c0, %c0_0] : memref<32x64xbf16, #tpu.memory_space<vmem>>, vector<32x64xbf16>
    %c0_1 = arith.constant 0 : index
    %c0_2 = arith.constant 0 : index
    %1 = vector.load %arg3[%c0_1, %c0_2] : memref<64x16xbf16, #tpu.memory_space<vmem>>, vector<64x16xbf16>
    %cst = arith.constant dense<0.000000e+00> : vector<32x16xf32>
    %2 = tpu.matmul %0, %1, %cst {dimension_numbers = #tpu.dot_dimension_numbers<[1], [0], [0], [1], [0, 0, 1, 1], [], []>} : vector<32x64xbf16>, vector<64x16xbf16>, vector<32x16xf32> -> vector<32x16xf32>
    %c0_3 = arith.constant 0 : index
    %c0_4 = arith.constant 0 : index
    %3 = vector.load %arg4[%c0_3, %c0_4] : memref<1x16xf32, #tpu.memory_space<vmem>>, vector<1x16xf32>
    %4 = vector.broadcast %3 : vector<1x16xf32> to vector<32x16xf32>
    %5 = arith.addf %2, %4 : vector<32x16xf32>
    %c0_5 = arith.constant 0 : index
    %c0_6 = arith.constant 0 : index
    %6 = vector.load %arg5[%c0_5, %c0_6] : memref<32x16xf32, #tpu.memory_space<vmem>>, vector<32x16xf32>
    tpu.vector_store %arg5[%c0_5, %c0_6], %5 {strides = array<i32>} : memref<32x16xf32, #tpu.memory_space<vmem>>, vector<32x16xf32>,
    return
  }
  func.func @transform_0(%arg0: i32, %arg1: i32) -> (i32, i32) {
    %c0_i32 = arith.constant 0 : i32
    %c0_i32_0 = arith.constant 0 : i32
    return %arg1, %c0_i32 : i32, i32
  }
  func.func @transform_1(%arg0: i32, %arg1: i32) -> (i32, i32) {
    %c0_i32 = arith.constant 0 : i32
    %c0_i32_0 = arith.constant 0 : i32
    return %c0_i32, %arg0 : i32, i32
  }
  func.func @transform_2(%arg0: i32, %arg1: i32) -> (i32, i32) {
    %c0_i32 = arith.constant 0 : i32
    %c0_i32_0 = arith.constant 0 : i32
    return %c0_i32, %arg0 : i32, i32
  }
  func.func @transform_3(%arg0: i32, %arg1: i32) -> (i32, i32) {
    %c0_i32 = arith.constant 0 : i32
    return %arg1, %arg0 : i32, i32
  }
}

module attributes {stable_mosaic.version = 11 : i64} {
  func.func @_matmul_bias_kernel(%arg0: i32, %arg1: i32, %arg2: memref<32x32xbf16, #tpu.memory_space<vmem>>, %arg3: memref<32x16xbf16, #tpu.memory_space<vmem>>, %arg4: memref<1x16xf32, #tpu.memory_space<vmem>>, %arg5: memref<32x16xf32, #tpu.memory_space<vmem>>) attributes {dimension_semantics = [#tpu.dimension_semantics<parallel>, #tpu.dimension_semantics<parallel>], iteration_bounds = array<i64: 1, 1>, scalar_prefetch = 0 : i64, scratch_operands = 0 : i64, tpu.core_type = #tpu.core_type<tc>, window_params = [{transform_indices = @transform_0, window_bounds = array<i64: 32, 32>}, {transform_indices = @transform_1, window_bounds = array<i64: 32, 16>}, {transform_indices = @transform_2, window_bounds = array<i64: 1, 16>}, {transform_indices = @transform_3, window_bounds = array<i64: 32, 16>}]} {
    %c0 = arith.constant 0 : index
    %c0_0 = arith.constant 0 : index
    %0 = vector.load %arg2[%c0, %c0_0] : memref<32x32xbf16, #tpu.memory_space<vmem>>, vector<32x32xbf16>
    %c0_1 = arith.constant 0 : index
    %c0_2 = arith.constant 0 : index
    %1 = vector.load %arg3[%c0_1, %c0_2] : memref<32x16xbf16, #tpu.memory_space<vmem>>, vector<32x16xbf16>
    %cst = arith.constant dense<0.000000e+00> : vector<32x16xf32>
    %2 = tpu.matmul %0, %1, %cst {dimension_numbers = #tpu.dot_dimension_numbers<[1], [0], [0], [1], [0, 0, 1, 1], [], []>} : vector<32x32xbf16>, vector<32x16xbf16>, vector<32x16xf32> -> vector<32x16xf32>
    %c0_3 = arith.constant 0 : index
    %c0_4 = arith.constant 0 : index
    %3 = vector.load %arg4[%c0_3, %c0_4] : memref<1x16xf32, #tpu.memory_space<vmem>>, vector<1x16xf32>
    %4 = vector.broadcast %3 : vector<1x16xf32> to vector<32x16xf32>
    %5 = arith.addf %2, %4 : vector<32x16xf32>
    %c0_5 = arith.constant 0 : index
    %c0_6 = arith.constant 0 : index
    %6 = vector.load %arg5[%c0_5, %c0_6] : memref<32x16xf32, #tpu.memory_space<vmem>>, vector<32x16xf32>
    tpu.vector_store %arg5[%c0_5, %c0_6], %5 {strides = array<i32>} : memref<32x16xf32, #tpu.memory_space<vmem>>, vector<32x16xf32>,
    return
  }
  func.func @transform_0(%arg0: i32, %arg1: i32) -> (i32, i32) {
    %c0_i32 = arith.constant 0 : i32
    %c0_i32_0 = arith.constant 0 : i32
    return %arg1, %c0_i32 : i32, i32
  }
  func.func @transform_1(%arg0: i32, %arg1: i32) -> (i32, i32) {
    %c0_i32 = arith.constant 0 : i32
    %c0_i32_0 = arith.constant 0 : i32
    return %c0_i32, %arg0 : i32, i32
  }
  func.func @transform_2(%arg0: i32, %arg1: i32) -> (i32, i32) {
    %c0_i32 = arith.constant 0 : i32
    %c0_i32_0 = arith.constant 0 : i32
    return %c0_i32, %arg0 : i32, i32
  }
  func.func @transform_3(%arg0: i32, %arg1: i32) -> (i32, i32) {
    %c0_i32 = arith.constant 0 : i32
    return %arg1, %arg0 : i32, i32
  }
}

module attributes {stable_mosaic.version = 11 : i64} {
  func.func @_matmul_bias_kernel(%arg0: i32, %arg1: i32, %arg2: memref<128x64xbf16, #tpu.memory_space<vmem>>, %arg3: memref<64x8xbf16, #tpu.memory_space<vmem>>, %arg4: memref<1x8xf32, #tpu.memory_space<vmem>>, %arg5: memref<128x8xf32, #tpu.memory_space<vmem>>) attributes {dimension_semantics = [#tpu.dimension_semantics<parallel>, #tpu.dimension_semantics<parallel>], iteration_bounds = array<i64: 1, 1>, scalar_prefetch = 0 : i64, scratch_operands = 0 : i64, tpu.core_type = #tpu.core_type<tc>, window_params = [{transform_indices = @transform_0, window_bounds = array<i64: 128, 64>}, {transform_indices = @transform_1, window_bounds = array<i64: 64, 8>}, {transform_indices = @transform_2, window_bounds = array<i64: 1, 8>}, {transform_indices = @transform_3, window_bounds = array<i64: 128, 8>}]} {
    %c0 = arith.constant 0 : index
    %c0_0 = arith.constant 0 : index
    %0 = vector.load %arg2[%c0, %c0_0] : memref<128x64xbf16, #tpu.memory_space<vmem>>, vector<128x64xbf16>
    %c0_1 = arith.constant 0 : index
    %c0_2 = arith.constant 0 : index
    %1 = vector.load %arg3[%c0_1, %c0_2] : memref<64x8xbf16, #tpu.memory_space<vmem>>, vector<64x8xbf16>
    %cst = arith.constant dense<0.000000e+00> : vector<128x8xf32>
    %2 = tpu.matmul %0, %1, %cst {dimension_numbers = #tpu.dot_dimension_numbers<[1], [0], [0], [1], [0, 0, 1, 1], [], []>} : vector<128x64xbf16>, vector<64x8xbf16>, vector<128x8xf32> -> vector<128x8xf32>
    %c0_3 = arith.constant 0 : index
    %c0_4 = arith.constant 0 : index
    %3 = vector.load %arg4[%c0_3, %c0_4] : memref<1x8xf32, #tpu.memory_space<vmem>>, vector<1x8xf32>
    %4 = vector.broadcast %3 : vector<1x8xf32> to vector<128x8xf32>
    %5 = arith.addf %2, %4 : vector<128x8xf32>
    %c0_5 = arith.constant 0 : index
    %c0_6 = arith.constant 0 : index
    %6 = vector.load %arg5[%c0_5, %c0_6] : memref<128x8xf32, #tpu.memory_space<vmem>>, vector<128x8xf32>
    tpu.vector_store %arg5[%c0_5, %c0_6], %5 {strides = array<i32>} : memref<128x8xf32, #tpu.memory_space<vmem>>, vector<128x8xf32>,
    return
  }
  func.func @transform_0(%arg0: i32, %arg1: i32) -> (i32, i32) {
    %c0_i32 = arith.constant 0 : i32
    %c0_i32_0 = arith.constant 0 : i32
    return %arg1, %c0_i32 : i32, i32
  }
  func.func @transform_1(%arg0: i32, %arg1: i32) -> (i32, i32) {
    %c0_i32 = arith.constant 0 : i32
    %c0_i32_0 = arith.constant 0 : i32
    return %c0_i32, %arg0 : i32, i32
  }
  func.func @transform_2(%arg0: i32, %arg1: i32) -> (i32, i32) {
    %c0_i32 = arith.constant 0 : i32
    %c0_i32_0 = arith.constant 0 : i32
    return %c0_i32, %arg0 : i32, i32
  }
  func.func @transform_3(%arg0: i32, %arg1: i32) -> (i32, i32) {
    %c0_i32 = arith.constant 0 : i32
    return %arg1, %arg0 : i32, i32
  }
}

module attributes {stable_mosaic.version = 11 : i64} {
  func.func @_matmul_bias_kernel(%arg0: i32, %arg1: i32, %arg2: memref<128x32xbf16, #tpu.memory_space<vmem>>, %arg3: memref<32x8xbf16, #tpu.memory_space<vmem>>, %arg4: memref<1x8xf32, #tpu.memory_space<vmem>>, %arg5: memref<128x8xf32, #tpu.memory_space<vmem>>) attributes {dimension_semantics = [#tpu.dimension_semantics<parallel>, #tpu.dimension_semantics<parallel>], iteration_bounds = array<i64: 1, 1>, scalar_prefetch = 0 : i64, scratch_operands = 0 : i64, tpu.core_type = #tpu.core_type<tc>, window_params = [{transform_indices = @transform_0, window_bounds = array<i64: 128, 32>}, {transform_indices = @transform_1, window_bounds = array<i64: 32, 8>}, {transform_indices = @transform_2, window_bounds = array<i64: 1, 8>}, {transform_indices = @transform_3, window_bounds = array<i64: 128, 8>}]} {
    %c0 = arith.constant 0 : index
    %c0_0 = arith.constant 0 : index
    %0 = vector.load %arg2[%c0, %c0_0] : memref<128x32xbf16, #tpu.memory_space<vmem>>, vector<128x32xbf16>
    %c0_1 = arith.constant 0 : index
    %c0_2 = arith.constant 0 : index
    %1 = vector.load %arg3[%c0_1, %c0_2] : memref<32x8xbf16, #tpu.memory_space<vmem>>, vector<32x8xbf16>
    %cst = arith.constant dense<0.000000e+00> : vector<128x8xf32>
    %2 = tpu.matmul %0, %1, %cst {dimension_numbers = #tpu.dot_dimension_numbers<[1], [0], [0], [1], [0, 0, 1, 1], [], []>} : vector<128x32xbf16>, vector<32x8xbf16>, vector<128x8xf32> -> vector<128x8xf32>
    %c0_3 = arith.constant 0 : index
    %c0_4 = arith.constant 0 : index
    %3 = vector.load %arg4[%c0_3, %c0_4] : memref<1x8xf32, #tpu.memory_space<vmem>>, vector<1x8xf32>
    %4 = vector.broadcast %3 : vector<1x8xf32> to vector<128x8xf32>
    %5 = arith.addf %2, %4 : vector<128x8xf32>
    %c0_5 = arith.constant 0 : index
    %c0_6 = arith.constant 0 : index
    %6 = vector.load %arg5[%c0_5, %c0_6] : memref<128x8xf32, #tpu.memory_space<vmem>>, vector<128x8xf32>
    tpu.vector_store %arg5[%c0_5, %c0_6], %5 {strides = array<i32>} : memref<128x8xf32, #tpu.memory_space<vmem>>, vector<128x8xf32>,
    return
  }
  func.func @transform_0(%arg0: i32, %arg1: i32) -> (i32, i32) {
    %c0_i32 = arith.constant 0 : i32
    %c0_i32_0 = arith.constant 0 : i32
    return %arg1, %c0_i32 : i32, i32
  }
  func.func @transform_1(%arg0: i32, %arg1: i32) -> (i32, i32) {
    %c0_i32 = arith.constant 0 : i32
    %c0_i32_0 = arith.constant 0 : i32
    return %c0_i32, %arg0 : i32, i32
  }
  func.func @transform_2(%arg0: i32, %arg1: i32) -> (i32, i32) {
    %c0_i32 = arith.constant 0 : i32
    %c0_i32_0 = arith.constant 0 : i32
    return %c0_i32, %arg0 : i32, i32
  }
  func.func @transform_3(%arg0: i32, %arg1: i32) -> (i32, i32) {
    %c0_i32 = arith.constant 0 : i32
    return %arg1, %arg0 : i32, i32
  }
}

module attributes {stable_mosaic.version = 11 : i64} {
  func.func @_matmul_bias_kernel(%arg0: i32, %arg1: i32, %arg2: memref<128x16xbf16, #tpu.memory_space<vmem>>, %arg3: memref<16x8xbf16, #tpu.memory_space<vmem>>, %arg4: memref<1x8xf32, #tpu.memory_space<vmem>>, %arg5: memref<128x8xf32, #tpu.memory_space<vmem>>) attributes {dimension_semantics = [#tpu.dimension_semantics<parallel>, #tpu.dimension_semantics<parallel>], iteration_bounds = array<i64: 1, 1>, scalar_prefetch = 0 : i64, scratch_operands = 0 : i64, tpu.core_type = #tpu.core_type<tc>, window_params = [{transform_indices = @transform_0, window_bounds = array<i64: 128, 16>}, {transform_indices = @transform_1, window_bounds = array<i64: 16, 8>}, {transform_indices = @transform_2, window_bounds = array<i64: 1, 8>}, {transform_indices = @transform_3, window_bounds = array<i64: 128, 8>}]} {
    %c0 = arith.constant 0 : index
    %c0_0 = arith.constant 0 : index
    %0 = vector.load %arg2[%c0, %c0_0] : memref<128x16xbf16, #tpu.memory_space<vmem>>, vector<128x16xbf16>
    %c0_1 = arith.constant 0 : index
    %c0_2 = arith.constant 0 : index
    %1 = vector.load %arg3[%c0_1, %c0_2] : memref<16x8xbf16, #tpu.memory_space<vmem>>, vector<16x8xbf16>
    %cst = arith.constant dense<0.000000e+00> : vector<128x8xf32>
    %2 = tpu.matmul %0, %1, %cst {dimension_numbers = #tpu.dot_dimension_numbers<[1], [0], [0], [1], [0, 0, 1, 1], [], []>} : vector<128x16xbf16>, vector<16x8xbf16>, vector<128x8xf32> -> vector<128x8xf32>
    %c0_3 = arith.constant 0 : index
    %c0_4 = arith.constant 0 : index
    %3 = vector.load %arg4[%c0_3, %c0_4] : memref<1x8xf32, #tpu.memory_space<vmem>>, vector<1x8xf32>
    %4 = vector.broadcast %3 : vector<1x8xf32> to vector<128x8xf32>
    %5 = arith.addf %2, %4 : vector<128x8xf32>
    %c0_5 = arith.constant 0 : index
    %c0_6 = arith.constant 0 : index
    %6 = vector.load %arg5[%c0_5, %c0_6] : memref<128x8xf32, #tpu.memory_space<vmem>>, vector<128x8xf32>
    tpu.vector_store %arg5[%c0_5, %c0_6], %5 {strides = array<i32>} : memref<128x8xf32, #tpu.memory_space<vmem>>, vector<128x8xf32>,
    return
  }
  func.func @transform_0(%arg0: i32, %arg1: i32) -> (i32, i32) {
    %c0_i32 = arith.constant 0 : i32
    %c0_i32_0 = arith.constant 0 : i32
    return %arg1, %c0_i32 : i32, i32
  }
  func.func @transform_1(%arg0: i32, %arg1: i32) -> (i32, i32) {
    %c0_i32 = arith.constant 0 : i32
    %c0_i32_0 = arith.constant 0 : i32
    return %c0_i32, %arg0 : i32, i32
  }
  func.func @transform_2(%arg0: i32, %arg1: i32) -> (i32, i32) {
    %c0_i32 = arith.constant 0 : i32
    %c0_i32_0 = arith.constant 0 : i32
    return %c0_i32, %arg0 : i32, i32
  }
  func.func @transform_3(%arg0: i32, %arg1: i32) -> (i32, i32) {
    %c0_i32 = arith.constant 0 : i32
    return %arg1, %arg0 : i32, i32
  }
}

module attributes {stable_mosaic.version = 11 : i64} {
  func.func @_matmul_bias_kernel(%arg0: i32, %arg1: i32, %arg2: memref<512x400xbf16, #tpu.memory_space<vmem>>, %arg3: memref<400x3xbf16, #tpu.memory_space<vmem>>, %arg4: memref<1x3xf32, #tpu.memory_space<vmem>>, %arg5: memref<512x3xf32, #tpu.memory_space<vmem>>) attributes {dimension_semantics = [#tpu.dimension_semantics<parallel>, #tpu.dimension_semantics<parallel>], iteration_bounds = array<i64: 1, 1>, scalar_prefetch = 0 : i64, scratch_operands = 0 : i64, tpu.core_type = #tpu.core_type<tc>, window_params = [{transform_indices = @transform_0, window_bounds = array<i64: 512, 400>}, {transform_indices = @transform_1, window_bounds = array<i64: 400, 3>}, {transform_indices = @transform_2, window_bounds = array<i64: 1, 3>}, {transform_indices = @transform_3, window_bounds = array<i64: 512, 3>}]} {
    %c0 = arith.constant 0 : index
    %c0_0 = arith.constant 0 : index
    %0 = vector.load %arg2[%c0, %c0_0] : memref<512x400xbf16, #tpu.memory_space<vmem>>, vector<512x400xbf16>
    %c0_1 = arith.constant 0 : index
    %c0_2 = arith.constant 0 : index
    %1 = vector.load %arg3[%c0_1, %c0_2] : memref<400x3xbf16, #tpu.memory_space<vmem>>, vector<400x3xbf16>
    %cst = arith.constant dense<0.000000e+00> : vector<512x3xf32>
    %2 = tpu.matmul %0, %1, %cst {dimension_numbers = #tpu.dot_dimension_numbers<[1], [0], [0], [1], [0, 0, 1, 1], [], []>} : vector<512x400xbf16>, vector<400x3xbf16>, vector<512x3xf32> -> vector<512x3xf32>
    %c0_3 = arith.constant 0 : index
    %c0_4 = arith.constant 0 : index
    %3 = vector.load %arg4[%c0_3, %c0_4] : memref<1x3xf32, #tpu.memory_space<vmem>>, vector<1x3xf32>
    %4 = vector.broadcast %3 : vector<1x3xf32> to vector<512x3xf32>
    %5 = arith.addf %2, %4 : vector<512x3xf32>
    %6 = math.tanh %5 : vector<512x3xf32>
    %c0_5 = arith.constant 0 : index
    %c0_6 = arith.constant 0 : index
    %7 = vector.load %arg5[%c0_5, %c0_6] : memref<512x3xf32, #tpu.memory_space<vmem>>, vector<512x3xf32>
    tpu.vector_store %arg5[%c0_5, %c0_6], %6 {strides = array<i32>} : memref<512x3xf32, #tpu.memory_space<vmem>>, vector<512x3xf32>,
    return
  }
  func.func @transform_0(%arg0: i32, %arg1: i32) -> (i32, i32) {
    %c0_i32 = arith.constant 0 : i32
    %c0_i32_0 = arith.constant 0 : i32
    return %arg1, %c0_i32 : i32, i32
  }
  func.func @transform_1(%arg0: i32, %arg1: i32) -> (i32, i32) {
    %c0_i32 = arith.constant 0 : i32
    %c0_i32_0 = arith.constant 0 : i32
    return %c0_i32, %arg0 : i32, i32
  }
  func.func @transform_2(%arg0: i32, %arg1: i32) -> (i32, i32) {
    %c0_i32 = arith.constant 0 : i32
    %c0_i32_0 = arith.constant 0 : i32
    return %c0_i32, %arg0 : i32, i32
  }
  func.func @transform_3(%arg0: i32, %arg1: i32) -> (i32, i32) {
    %c0_i32 = arith.constant 0 : i32
    return %arg1, %arg0 : i32, i32
  }
}

</mosaic_0001>

<llo_original>
// kernel: spade_resnet_forward.47
$region0: #{spade_resnet_forward.47}
  #allocation0 [shape = 'u32[]', space=smem, size = 0x4, offset = 0x4, fixed_abs, tag = 'smem constant byte address 0x4 - core index']
  #allocation1 [shape = 'u32[144,128]{1,0:T(1,128)}', space=vmem, size = 0x12000, scoped, tag = 'internal scratch']
  #allocation2 [shape = 'f32[1,8]{1,0:T(1,128)}', space=vmem, size = 0x200, scoped, tag = 'scratch operand']
  #allocation3 [shape = 'f32[1,8]{1,0:T(1,128)}', space=vmem, size = 0x200, scoped, tag = 'scratch operand']
  %s0 = inlined_call_operand.vmem [shape: f32[512,8], index: 0, kind: input, shape index: {}]
  %s1 = inlined_call_operand.vmem [shape: f32[1,8], index: 1, kind: input, shape index: {}]
  %s2 = inlined_call_operand.vmem [shape: f32[1,8], index: 2, kind: input, shape index: {}]
  %s3 = inlined_call_operand.vmem [shape: f32[1,8], index: 3, kind: output, shape index: {0}]
  %s4 = inlined_call_operand.vmem [shape: f32[1,8], index: 4, kind: output, shape index: {1}]
  %5 = xla_tuple %s3, %s4
  %s6 = sld [smem:[#allocation0]]
  $region38: #{spade_resnet_forward.47} parent=0
    _
  %s8 = ssub.s32 1, %s6
  %s9 = scalar_select 0, %s8, %s6
  // Predicated region
  $region2: #{spade_resnet_forward.47} parent=0 // pred_check
    _
  $region3: #{spade_resnet_forward.47} parent=0 // pred_check_branch
    %11 = sbr.rel (0) target = $region5
  $region4: #{spade_resnet_forward.47} parent=0 // pred_region
    _
  $region5: #{spade_resnet_forward.47} parent=0 // pred_fallthru
    _
  // Predicated region
  $region6: #{spade_resnet_forward.47} parent=0 // pred_check
    _
  $region7: #{spade_resnet_forward.47} parent=0 // pred_check_branch
    %13 = sbr.rel (0) target = $region9
  $region8: #{spade_resnet_forward.47} parent=0 // pred_region
    _
  $region9: #{spade_resnet_forward.47} parent=0 // pred_fallthru
    _
  // Predicated region
  $region10: #{spade_resnet_forward.47} parent=0 // pred_check
    _
  $region11: #{spade_resnet_forward.47} parent=0 // pred_check_branch
    %15 = sbr.rel (0) target = $region13
  $region12: #{spade_resnet_forward.47} parent=0 // pred_region
    _
  $region13: #{spade_resnet_forward.47} parent=0 // pred_fallthru
    _
  %p16 = scmp.eq.s32.totalorder 0, 0
  // Predicated region
  $region14: #{spade_resnet_forward.47} parent=0 // pred_check
    %p17 = pneg %p16
  $region15: #{spade_resnet_forward.47} parent=0 // pred_check_branch
    %19 = sbr.rel (%p17) target = $region17
  $region16: #{spade_resnet_forward.47} parent=0 // pred_region
    %vm20 = vcmask 57344
    %21 = vst.msk [vmem:[#allocation2] sm:$0x1] %vm20, 0.0
    %22 = vst.msk [vmem:[#allocation3] sm:$0x1] %vm20, 0.0
  $region17: #{spade_resnet_forward.47} parent=0 // pred_fallthru
    _
  %v23 = vld [vmem:[%s0] sm:$0xff]
  %v24 = vld [vmem:[%s0 + $0x8] sm:$0xff]
  %v25 = vld [vmem:[%s0 + $0x10] sm:$0xff]
  %v26 = vld [vmem:[%s0 + $0x18] sm:$0xff]
  %v27 = vld [vmem:[%s0 + $0x20] sm:$0xff]
  %v28 = vld [vmem:[%s0 + $0x28] sm:$0xff]
  %v29 = vld [vmem:[%s0 + $0x30] sm:$0xff]
  %v30 = vld [vmem:[%s0 + $0x38] sm:$0xff]
  %v31 = vld [vmem:[%s0 + $0x40] sm:$0xff]
  %v32 = vld [vmem:[%s0 + $0x48] sm:$0xff]
  %v33 = vld [vmem:[%s0 + $0x50] sm:$0xff]
  %v34 = vld [vmem:[%s0 + $0x58] sm:$0xff]
  %v35 = vld [vmem:[%s0 + $0x60] sm:$0xff]
  %v36 = vld [vmem:[%s0 + $0x68] sm:$0xff]
  %v37 = vld [vmem:[%s0 + $0x70] sm:$0xff]
  %v38 = vld [vmem:[%s0 + $0x78] sm:$0xff]
  %v39 = vld [vmem:[%s0 + $0x80] sm:$0xff]
  %v40 = vld [vmem:[%s0 + $0x88] sm:$0xff]
  %v41 = vld [vmem:[%s0 + $0x90] sm:$0xff]
  %v42 = vld [vmem:[%s0 + $0x98] sm:$0xff]
  %v43 = vld [vmem:[%s0 + $0xa0] sm:$0xff]
  %v44 = vld [vmem:[%s0 + $0xa8] sm:$0xff]
  %v45 = vld [vmem:[%s0 + $0xb0] sm:$0xff]
  %v46 = vld [vmem:[%s0 + $0xb8] sm:$0xff]
  %v47 = vld [vmem:[%s0 + $0xc0] sm:$0xff]
  %v48 = vld [vmem:[%s0 + $0xc8] sm:$0xff]
  %v49 = vld [vmem:[%s0 + $0xd0] sm:$0xff]
  %v50 = vld [vmem:[%s0 + $0xd8] sm:$0xff]
  %v51 = vld [vmem:[%s0 + $0xe0] sm:$0xff]
  %v52 = vld [vmem:[%s0 + $0xe8] sm:$0xff]
  %v53 = vld [vmem:[%s0 + $0xf0] sm:$0xff]
  %v54 = vld [vmem:[%s0 + $0xf8] sm:$0xff]
  %v55 = vld [vmem:[%s0 + $0x100] sm:$0xff]
  %v56 = vld [vmem:[%s0 + $0x108] sm:$0xff]
  %v57 = vld [vmem:[%s0 + $0x110] sm:$0xff]
  %v58 = vld [vmem:[%s0 + $0x118] sm:$0xff]
  %v59 = vld [vmem:[%s0 + $0x120] sm:$0xff]
  %v60 = vld [vmem:[%s0 + $0x128] sm:$0xff]
  %v61 = vld [vmem:[%s0 + $0x130] sm:$0xff]
  %v62 = vld [vmem:[%s0 + $0x138] sm:$0xff]
  %v63 = vld [vmem:[%s0 + $0x140] sm:$0xff]
  %v64 = vld [vmem:[%s0 + $0x148] sm:$0xff]
  %v65 = vld [vmem:[%s0 + $0x150] sm:$0xff]
  %v66 = vld [vmem:[%s0 + $0x158] sm:$0xff]
  %v67 = vld [vmem:[%s0 + $0x160] sm:$0xff]
  %v68 = vld [vmem:[%s0 + $0x168] sm:$0xff]
  %v69 = vld [vmem:[%s0 + $0x170] sm:$0xff]
  %v70 = vld [vmem:[%s0 + $0x178] sm:$0xff]
  %v71 = vld [vmem:[%s0 + $0x180] sm:$0xff]
  %v72 = vld [vmem:[%s0 + $0x188] sm:$0xff]
  %v73 = vld [vmem:[%s0 + $0x190] sm:$0xff]
  %v74 = vld [vmem:[%s0 + $0x198] sm:$0xff]
  %v75 = vld [vmem:[%s0 + $0x1a0] sm:$0xff]
  %v76 = vld [vmem:[%s0 + $0x1a8] sm:$0xff]
  %v77 = vld [vmem:[%s0 + $0x1b0] sm:$0xff]
  %v78 = vld [vmem:[%s0 + $0x1b8] sm:$0xff]
  %v79 = vld [vmem:[%s0 + $0x1c0] sm:$0xff]
  %v80 = vld [vmem:[%s0 + $0x1c8] sm:$0xff]
  %v81 = vld [vmem:[%s0 + $0x1d0] sm:$0xff]
  %v82 = vld [vmem:[%s0 + $0x1d8] sm:$0xff]
  %v83 = vld [vmem:[%s0 + $0x1e0] sm:$0xff]
  %v84 = vld [vmem:[%s0 + $0x1e8] sm:$0xff]
  %v85 = vld [vmem:[%s0 + $0x1f0] sm:$0xff]
  %v86 = vld [vmem:[%s0 + $0x1f8] sm:$0xff]
  %v87 = vld [vmem:[#allocation2] sm:$0x1]
  %vm88 = vcmask 64512
  %v89 = vsel %vm88, %v23, 0.0
  %v90 = vsel %vm88, %v24, 0.0
  %v91 = vadd.f32 %v89, %v90
  %v92 = vsel %vm88, %v25, 0.0
  %v93 = vadd.f32 %v91, %v92
  %v94 = vsel %vm88, %v26, 0.0
  %v95 = vadd.f32 %v93, %v94
  %v96 = vsel %vm88, %v27, 0.0
  %v97 = vadd.f32 %v95, %v96
  %v98 = vsel %vm88, %v28, 0.0
  %v99 = vadd.f32 %v97, %v98
  %v100 = vsel %vm88, %v29, 0.0
  %v101 = vadd.f32 %v99, %v100
  %v102 = vsel %vm88, %v30, 0.0
  %v103 = vadd.f32 %v101, %v102
  %v104 = vsel %vm88, %v31, 0.0
  %v105 = vadd.f32 %v103, %v104
  %v106 = vsel %vm88, %v32, 0.0
  %v107 = vadd.f32 %v105, %v106
  %v108 = vsel %vm88, %v33, 0.0
  %v109 = vadd.f32 %v107, %v108
  %v110 = vsel %vm88, %v34, 0.0
  %v111 = vadd.f32 %v109, %v110
  %v112 = vsel %vm88, %v35, 0.0
  %v113 = vadd.f32 %v111, %v112
  %v114 = vsel %vm88, %v36, 0.0
  %v115 = vadd.f32 %v113, %v114
  %v116 = vsel %vm88, %v37, 0.0
  %v117 = vadd.f32 %v115, %v116
  %v118 = vsel %vm88, %v38, 0.0
  %v119 = vadd.f32 %v117, %v118
  %v120 = vsel %vm88, %v39, 0.0
  %v121 = vadd.f32 %v119, %v120
  %v122 = vsel %vm88, %v40, 0.0
  %v123 = vadd.f32 %v121, %v122
  %v124 = vsel %vm88, %v41, 0.0
  %v125 = vadd.f32 %v123, %v124
  %v126 = vsel %vm88, %v42, 0.0
  %v127 = vadd.f32 %v125, %v126
  %v128 = vsel %vm88, %v43, 0.0
  %v129 = vadd.f32 %v127, %v128
  %v130 = vsel %vm88, %v44, 0.0
  %v131 = vadd.f32 %v129, %v130
  %v132 = vsel %vm88, %v45, 0.0
  %v133 = vadd.f32 %v131, %v132
  %v134 = vsel %vm88, %v46, 0.0
  %v135 = vadd.f32 %v133, %v134
  %v136 = vsel %vm88, %v47, 0.0
  %v137 = vadd.f32 %v135, %v136
  %v138 = vsel %vm88, %v48, 0.0
  %v139 = vadd.f32 %v137, %v138
  %v140 = vsel %vm88, %v49, 0.0
  %v141 = vadd.f32 %v139, %v140
  %v142 = vsel %vm88, %v50, 0.0
  %v143 = vadd.f32 %v141, %v142
  %v144 = vsel %vm88, %v51, 0.0
  %v145 = vadd.f32 %v143, %v144
  %v146 = vsel %vm88, %v52, 0.0
  %v147 = vadd.f32 %v145, %v146
  %v148 = vsel %vm88, %v53, 0.0
  %v149 = vadd.f32 %v147, %v148
  %v150 = vsel %vm88, %v54, 0.0
  %v151 = vadd.f32 %v149, %v150
  %v152 = vsel %vm88, %v55, 0.0
  %v153 = vadd.f32 %v151, %v152
  %v154 = vsel %vm88, %v56, 0.0
  %v155 = vadd.f32 %v153, %v154
  %v156 = vsel %vm88, %v57, 0.0
  %v157 = vadd.f32 %v155, %v156
  %v158 = vsel %vm88, %v58, 0.0
  %v159 = vadd.f32 %v157, %v158
  %v160 = vsel %vm88, %v59, 0.0
  %v161 = vadd.f32 %v159, %v160
  %v162 = vsel %vm88, %v60, 0.0
  %v163 = vadd.f32 %v161, %v162
  %v164 = vsel %vm88, %v61, 0.0
  %v165 = vadd.f32 %v163, %v164
  %v166 = vsel %vm88, %v62, 0.0
  %v167 = vadd.f32 %v165, %v166
  %v168 = vsel %vm88, %v63, 0.0
  %v169 = vadd.f32 %v167, %v168
  %v170 = vsel %vm88, %v64, 0.0
  %v171 = vadd.f32 %v169, %v170
  %v172 = vsel %vm88, %v65, 0.0
  %v173 = vadd.f32 %v171, %v172
  %v174 = vsel %vm88, %v66, 0.0
  %v175 = vadd.f32 %v173, %v174
  %v176 = vsel %vm88, %v67, 0.0
  %v177 = vadd.f32 %v175, %v176
  %v178 = vsel %vm88, %v68, 0.0
  %v179 = vadd.f32 %v177, %v178
  %v180 = vsel %vm88, %v69, 0.0
  %v181 = vadd.f32 %v179, %v180
  %v182 = vsel %vm88, %v70, 0.0
  %v183 = vadd.f32 %v181, %v182
  %v184 = vsel %vm88, %v71, 0.0
  %v185 = vadd.f32 %v183, %v184
  %v186 = vsel %vm88, %v72, 0.0
  %v187 = vadd.f32 %v185, %v186
  %v188 = vsel %vm88, %v73, 0.0
  %v189 = vadd.f32 %v187, %v188
  %v190 = vsel %vm88, %v74, 0.0
  %v191 = vadd.f32 %v189, %v190
  %v192 = vsel %vm88, %v75, 0.0
  %v193 = vadd.f32 %v191, %v192
  %v194 = vsel %vm88, %v76, 0.0
  %v195 = vadd.f32 %v193, %v194
  %v196 = vsel %vm88, %v77, 0.0
  %v197 = vadd.f32 %v195, %v196
  %v198 = vsel %vm88, %v78, 0.0
  %v199 = vadd.f32 %v197, %v198
  %v200 = vsel %vm88, %v79, 0.0
  %v201 = vadd.f32 %v199, %v200
  %v202 = vsel %vm88, %v80, 0.0
  %v203 = vadd.f32 %v201, %v202
  %v204 = vsel %vm88, %v81, 0.0
  %v205 = vadd.f32 %v203, %v204
  %v206 = vsel %vm88, %v82, 0.0
  %v207 = vadd.f32 %v205, %v206
  %v208 = vsel %vm88, %v83, 0.0
  %v209 = vadd.f32 %v207, %v208
  %v210 = vsel %vm88, %v84, 0.0
  %v211 = vadd.f32 %v209, %v210
  %v212 = vsel %vm88, %v85, 0.0
  %v213 = vadd.f32 %v211, %v212
  %v214 = vsel %vm88, %v86, 0.0
  %v215 = vadd.f32 %v213, %v214
  %v216 = vrot.slane %v215, 4
  %v217 = vadd.f32 %v215, %v216
  %v218 = vrot.slane %v217, 2
  %v219 = vadd.f32 %v217, %v218
  %v220 = vrot.slane %v219, 1
  %v221 = vadd.f32 %v219, %v220
  %v222 = vadd.f32 %v87, %v221
  %vm223 = vcmask 57344
  %224 = vst.msk [vmem:[#allocation2] sm:$0x1] %vm223, %v222
  %v225 = vld [vmem:[#allocation3] sm:$0x1]
  %v226 = vmul.f32 %v23, %v23
  %v227 = vmul.f32 %v24, %v24
  %v228 = vmul.f32 %v25, %v25
  %v229 = vmul.f32 %v26, %v26
  %v230 = vmul.f32 %v27, %v27
  %v231 = vmul.f32 %v28, %v28
  %v232 = vmul.f32 %v29, %v29
  %v233 = vmul.f32 %v30, %v30
  %v234 = vmul.f32 %v31, %v31
  %v235 = vmul.f32 %v32, %v32
  %v236 = vmul.f32 %v33, %v33
  %v237 = vmul.f32 %v34, %v34
  %v238 = vmul.f32 %v35, %v35
  %v239 = vmul.f32 %v36, %v36
  %v240 = vmul.f32 %v37, %v37
  %v241 = vmul.f32 %v38, %v38
  %v242 = vmul.f32 %v39, %v39
  %v243 = vmul.f32 %v40, %v40
  %v244 = vmul.f32 %v41, %v41
  %v245 = vmul.f32 %v42, %v42
  %v246 = vmul.f32 %v43, %v43
  %v247 = vmul.f32 %v44, %v44
  %v248 = vmul.f32 %v45, %v45
  %v249 = vmul.f32 %v46, %v46
  %v250 = vmul.f32 %v47, %v47
  %v251 = vmul.f32 %v48, %v48
  %v252 = vmul.f32 %v49, %v49
  %v253 = vmul.f32 %v50, %v50
  %v254 = vmul.f32 %v51, %v51
  %v255 = vmul.f32 %v52, %v52
  %v256 = vmul.f32 %v53, %v53
  %v257 = vmul.f32 %v54, %v54
  %v258 = vmul.f32 %v55, %v55
  %v259 = vmul.f32 %v56, %v56
  %v260 = vmul.f32 %v57, %v57
  %v261 = vmul.f32 %v58, %v58
  %v262 = vmul.f32 %v59, %v59
  %v263 = vmul.f32 %v60, %v60
  %v264 = vmul.f32 %v61, %v61
  %v265 = vmul.f32 %v62, %v62
  %v266 = vmul.f32 %v63, %v63
  %v267 = vmul.f32 %v64, %v64
  %v268 = vmul.f32 %v65, %v65
  %v269 = vmul.f32 %v66, %v66
  %v270 = vmul.f32 %v67, %v67
  %v271 = vmul.f32 %v68, %v68
  %v272 = vmul.f32 %v69, %v69
  %v273 = vmul.f32 %v70, %v70
  %v274 = vmul.f32 %v71, %v71
  %v275 = vmul.f32 %v72, %v72
  %v276 = vmul.f32 %v73, %v73
  %v277 = vmul.f32 %v74, %v74
  %v278 = vmul.f32 %v75, %v75
  %v279 = vmul.f32 %v76, %v76
  %v280 = vmul.f32 %v77, %v77
  %v281 = vmul.f32 %v78, %v78
  %v282 = vmul.f32 %v79, %v79
  %v283 = vmul.f32 %v80, %v80
  %v284 = vmul.f32 %v81, %v81
  %v285 = vmul.f32 %v82, %v82
  %v286 = vmul.f32 %v83, %v83
  %v287 = vmul.f32 %v84, %v84
  %v288 = vmul.f32 %v85, %v85
  %v289 = vmul.f32 %v86, %v86
  %v290 = vsel %vm88, %v226, 0.0
  %v291 = vsel %vm88, %v227, 0.0
  %v292 = vadd.f32 %v290, %v291
  %v293 = vsel %vm88, %v228, 0.0
  %v294 = vadd.f32 %v292, %v293
  %v295 = vsel %vm88, %v229, 0.0
  %v296 = vadd.f32 %v294, %v295
  %v297 = vsel %vm88, %v230, 0.0
  %v298 = vadd.f32 %v296, %v297
  %v299 = vsel %vm88, %v231, 0.0
  %v300 = vadd.f32 %v298, %v299
  %v301 = vsel %vm88, %v232, 0.0
  %v302 = vadd.f32 %v300, %v301
  %v303 = vsel %vm88, %v233, 0.0
  %v304 = vadd.f32 %v302, %v303
  %v305 = vsel %vm88, %v234, 0.0
  %v306 = vadd.f32 %v304, %v305
  %v307 = vsel %vm88, %v235, 0.0
  %v308 = vadd.f32 %v306, %v307
  %v309 = vsel %vm88, %v236, 0.0
  %v310 = vadd.f32 %v308, %v309
  %v311 = vsel %vm88, %v237, 0.0
  %v312 = vadd.f32 %v310, %v311
  %v313 = vsel %vm88, %v238, 0.0
  %v314 = vadd.f32 %v312, %v313
  %v315 = vsel %vm88, %v239, 0.0
  %v316 = vadd.f32 %v314, %v315
  %v317 = vsel %vm88, %v240, 0.0
  %v318 = vadd.f32 %v316, %v317
  %v319 = vsel %vm88, %v241, 0.0
  %v320 = vadd.f32 %v318, %v319
  %v321 = vsel %vm88, %v242, 0.0
  %v322 = vadd.f32 %v320, %v321
  %v323 = vsel %vm88, %v243, 0.0
  %v324 = vadd.f32 %v322, %v323
  %v325 = vsel %vm88, %v244, 0.0
  %v326 = vadd.f32 %v324, %v325
  %v327 = vsel %vm88, %v245, 0.0
  %v328 = vadd.f32 %v326, %v327
  %v329 = vsel %vm88, %v246, 0.0
  %v330 = vadd.f32 %v328, %v329
  %v331 = vsel %vm88, %v247, 0.0
  %v332 = vadd.f32 %v330, %v331
  %v333 = vsel %vm88, %v248, 0.0
  %v334 = vadd.f32 %v332, %v333
  %v335 = vsel %vm88, %v249, 0.0
  %v336 = vadd.f32 %v334, %v335
  %v337 = vsel %vm88, %v250, 0.0
  %v338 = vadd.f32 %v336, %v337
  %v339 = vsel %vm88, %v251, 0.0
  %v340 = vadd.f32 %v338, %v339
  %v341 = vsel %vm88, %v252, 0.0
  %v342 = vadd.f32 %v340, %v341
  %v343 = vsel %vm88, %v253, 0.0
  %v344 = vadd.f32 %v342, %v343
  %v345 = vsel %vm88, %v254, 0.0
  %v346 = vadd.f32 %v344, %v345
  %v347 = vsel %vm88, %v255, 0.0
  %v348 = vadd.f32 %v346, %v347
  %v349 = vsel %vm88, %v256, 0.0
  %v350 = vadd.f32 %v348, %v349
  %v351 = vsel %vm88, %v257, 0.0
  %v352 = vadd.f32 %v350, %v351
  %v353 = vsel %vm88, %v258, 0.0
  %v354 = vadd.f32 %v352, %v353
  %v355 = vsel %vm88, %v259, 0.0
  %v356 = vadd.f32 %v354, %v355
  %v357 = vsel %vm88, %v260, 0.0
  %v358 = vadd.f32 %v356, %v357
  %v359 = vsel %vm88, %v261, 0.0
  %v360 = vadd.f32 %v358, %v359
  %v361 = vsel %vm88, %v262, 0.0
  %v362 = vadd.f32 %v360, %v361
  %v363 = vsel %vm88, %v263, 0.0
  %v364 = vadd.f32 %v362, %v363
  %v365 = vsel %vm88, %v264, 0.0
  %v366 = vadd.f32 %v364, %v365
  %v367 = vsel %vm88, %v265, 0.0
  %v368 = vadd.f32 %v366, %v367
  %v369 = vsel %vm88, %v266, 0.0
  %v370 = vadd.f32 %v368, %v369
  %v371 = vsel %vm88, %v267, 0.0
  %v372 = vadd.f32 %v370, %v371
  %v373 = vsel %vm88, %v268, 0.0
  %v374 = vadd.f32 %v372, %v373
  %v375 = vsel %vm88, %v269, 0.0
  %v376 = vadd.f32 %v374, %v375
  %v377 = vsel %vm88, %v270, 0.0
  %v378 = vadd.f32 %v376, %v377
  %v379 = vsel %vm88, %v271, 0.0
  %v380 = vadd.f32 %v378, %v379
  %v381 = vsel %vm88, %v272, 0.0
  %v382 = vadd.f32 %v380, %v381
  %v383 = vsel %vm88, %v273, 0.0
  %v384 = vadd.f32 %v382, %v383
  %v385 = vsel %vm88, %v274, 0.0
  %v386 = vadd.f32 %v384, %v385
  %v387 = vsel %vm88, %v275, 0.0
  %v388 = vadd.f32 %v386, %v387
  %v389 = vsel %vm88, %v276, 0.0
  %v390 = vadd.f32 %v388, %v389
  %v391 = vsel %vm88, %v277, 0.0
  %v392 = vadd.f32 %v390, %v391
  %v393 = vsel %vm88, %v278, 0.0
  %v394 = vadd.f32 %v392, %v393
  %v395 = vsel %vm88, %v279, 0.0
  %v396 = vadd.f32 %v394, %v395
  %v397 = vsel %vm88, %v280, 0.0
  %v398 = vadd.f32 %v396, %v397
  %v399 = vsel %vm88, %v281, 0.0
  %v400 = vadd.f32 %v398, %v399
  %v401 = vsel %vm88, %v282, 0.0
  %v402 = vadd.f32 %v400, %v401
  %v403 = vsel %vm88, %v283, 0.0
  %v404 = vadd.f32 %v402, %v403
  %v405 = vsel %vm88, %v284, 0.0
  %v406 = vadd.f32 %v404, %v405
  %v407 = vsel %vm88, %v285, 0.0
  %v408 = vadd.f32 %v406, %v407
  %v409 = vsel %vm88, %v286, 0.0
  %v410 = vadd.f32 %v408, %v409
  %v411 = vsel %vm88, %v287, 0.0
  %v412 = vadd.f32 %v410, %v411
  %v413 = vsel %vm88, %v288, 0.0
  %v414 = vadd.f32 %v412, %v413
  %v415 = vsel %vm88, %v289, 0.0
  %v416 = vadd.f32 %v414, %v415
  %v417 = vrot.slane %v416, 4
  %v418 = vadd.f32 %v416, %v417
  %v419 = vrot.slane %v418, 2
  %v420 = vadd.f32 %v418, %v419
  %v421 = vrot.slane %v420, 1
  %v422 = vadd.f32 %v420, %v421
  %v423 = vadd.f32 %v225, %v422
  %424 = vst.msk [vmem:[#allocation3] sm:$0x1] %vm223, %v423
  // Predicated region
  $region18: #{spade_resnet_forward.47} parent=0 // pred_check
    %p425 = pneg %p16
  $region19: #{spade_resnet_forward.47} parent=0 // pred_check_branch
    %427 = sbr.rel (%p425) target = $region21
  $region20: #{spade_resnet_forward.47} parent=0 // pred_region
    %v428 = vld [vmem:[#allocation2] sm:$0x1]
    %v429 = vmul.f32 %v428, 0.001953125
    %v430 = vld [vmem:[#allocation3] sm:$0x1]
    %v431 = vmul.f32 %v430, 0.001953125
    %v432 = vmul.f32 %v429, %v429
    %v433 = vsub.f32 %v431, %v432
    %v434 = vld [vmem:[%s1] sm:$0x1]
    %v435 = vadd.f32 %v433, 1e-05
    %v436 = vrsqrt.pop %v435
    %v437 = vmul.f32 %v434, %v436
    %438 = vst.msk [vmem:[%s3] sm:$0x1] %vm223, %v437
    %v439 = vld [vmem:[%s2] sm:$0x1]
    %v440 = vmul.f32 %v429, %v437
    %v441 = vsub.f32 %v439, %v440
    %442 = vst.msk [vmem:[%s4] sm:$0x1] %vm223, %v441
  $region21: #{spade_resnet_forward.47} parent=0 // pred_fallthru
    _
  // Predicated region
  $region22: #{spade_resnet_forward.47} parent=0 // pred_check
    _
  $region23: #{spade_resnet_forward.47} parent=0 // pred_check_branch
    %444 = sbr.rel (0) target = $region25
  $region24: #{spade_resnet_forward.47} parent=0 // pred_region
    _
  $region25: #{spade_resnet_forward.47} parent=0 // pred_fallthru
    _
  // Predicated region
  $region26: #{spade_resnet_forward.47} parent=0 // pred_check
    _
  $region27: #{spade_resnet_forward.47} parent=0 // pred_check_branch
    %446 = sbr.rel (0) target = $region29
  $region28: #{spade_resnet_forward.47} parent=0 // pred_region
    _
  $region29: #{spade_resnet_forward.47} parent=0 // pred_fallthru
    _
  // Predicated region
  $region30: #{spade_resnet_forward.47} parent=0 // pred_check
    _
  $region31: #{spade_resnet_forward.47} parent=0 // pred_check_branch
    %448 = sbr.rel (0) target = $region33
  $region32: #{spade_resnet_forward.47} parent=0 // pred_region
    _
  $region33: #{spade_resnet_forward.47} parent=0 // pred_fallthru
    _
  // Predicated region
  $region34: #{spade_resnet_forward.47} parent=0 // pred_check
    _
  $region35: #{spade_resnet_forward.47} parent=0 // pred_check_branch
    %450 = sbr.rel (0) target = $region37
  $region36: #{spade_resnet_forward.47} parent=0 // pred_region
    _
  $region37: #{spade_resnet_forward.47} parent=0 // pred_fallthru
    _

// kernel: spade_resnet_forward.46
$region0: #{spade_resnet_forward.46}
  #allocation0 [shape = 'u32[]', space=smem, size = 0x4, offset = 0x4, fixed_abs, tag = 'smem constant byte address 0x4 - core index']
  #allocation1 [shape = 'u32[144,128]{1,0:T(1,128)}', space=vmem, size = 0x12000, scoped, tag = 'internal scratch']
  %s0 = inlined_call_operand.vmem [shape: bf16[512,160], index: 0, kind: input, shape index: {}]
  %s1 = inlined_call_operand.vmem [shape: bf16[160,8], index: 1, kind: input, shape index: {}]
  %s2 = inlined_call_operand.vmem [shape: f32[1,8], index: 2, kind: input, shape index: {}]
  %s3 = inlined_call_operand.vmem [shape: f32[512,8], index: 3, kind: output, shape index: {}]
  %s4 = sld [smem:[#allocation0]]
  $region22: #{spade_resnet_forward.46} parent=0
    _
  %s6 = ssub.s32 1, %s4
  %s7 = scalar_select 0, %s6, %s4
  // Predicated region
  $region2: #{spade_resnet_forward.46} parent=0 // pred_check
    _
  $region3: #{spade_resnet_forward.46} parent=0 // pred_check_branch
    %9 = sbr.rel (0) target = $region5
  $region4: #{spade_resnet_forward.46} parent=0 // pred_region
    _
  $region5: #{spade_resnet_forward.46} parent=0 // pred_fallthru
    _
  // Predicated region
  $region6: #{spade_resnet_forward.46} parent=0 // pred_check
    _
  $region7: #{spade_resnet_forward.46} parent=0 // pred_check_branch
    %11 = sbr.rel (0) target = $region9
  $region8: #{spade_resnet_forward.46} parent=0 // pred_region
    _
  $region9: #{spade_resnet_forward.46} parent=0 // pred_fallthru
    _
  // Predicated region
  $region10: #{spade_resnet_forward.46} parent=0 // pred_check
    _
  $region11: #{spade_resnet_forward.46} parent=0 // pred_check_branch
    %13 = sbr.rel (0) target = $region13
  $region12: #{spade_resnet_forward.46} parent=0 // pred_region
    _
  $region13: #{spade_resnet_forward.46} parent=0 // pred_fallthru
    _
  %v15 = vld [vmem:[%s0] sm:$0xff]
  %v16 = vld [vmem:[%s0 + $0x8] sm:$0xff]
  %v17 = vld [vmem:[%s0 + $0x10] sm:$0xff]
  %v18 = vld [vmem:[%s0 + $0x18] sm:$0xff]
  %v19 = vld [vmem:[%s0 + $0x20] sm:$0xff]
  %v20 = vld [vmem:[%s0 + $0x28] sm:$0xff]
  %v21 = vld [vmem:[%s0 + $0x30] sm:$0xff]
  %v22 = vld [vmem:[%s0 + $0x38] sm:$0xff]
  %v23 = vld [vmem:[%s0 + $0x40] sm:$0xff]
  %v24 = vld [vmem:[%s0 + $0x48] sm:$0xff]
  %v25 = vld [vmem:[%s0 + $0x50] sm:$0xff]
  %v26 = vld [vmem:[%s0 + $0x58] sm:$0xff]
  %v27 = vld [vmem:[%s0 + $0x60] sm:$0xff]
  %v28 = vld [vmem:[%s0 + $0x68] sm:$0xff]
  %v29 = vld [vmem:[%s0 + $0x70] sm:$0xff]
  %v30 = vld [vmem:[%s0 + $0x78] sm:$0xff]
  %v31 = vld [vmem:[%s0 + $0x80] sm:$0xff]
  %v32 = vld [vmem:[%s0 + $0x88] sm:$0xff]
  %v33 = vld [vmem:[%s0 + $0x90] sm:$0xff]
  %v34 = vld [vmem:[%s0 + $0x98] sm:$0xff]
  %v35 = vld [vmem:[%s0 + $0xa0] sm:$0xff]
  %v36 = vld [vmem:[%s0 + $0xa8] sm:$0xff]
  %v37 = vld [vmem:[%s0 + $0xb0] sm:$0xff]
  %v38 = vld [vmem:[%s0 + $0xb8] sm:$0xff]
  %v39 = vld [vmem:[%s0 + $0xc0] sm:$0xff]
  %v40 = vld [vmem:[%s0 + $0xc8] sm:$0xff]
  %v41 = vld [vmem:[%s0 + $0xd0] sm:$0xff]
  %v42 = vld [vmem:[%s0 + $0xd8] sm:$0xff]
  %v43 = vld [vmem:[%s0 + $0xe0] sm:$0xff]
  %v44 = vld [vmem:[%s0 + $0xe8] sm:$0xff]
  %v45 = vld [vmem:[%s0 + $0xf0] sm:$0xff]
  %v46 = vld [vmem:[%s0 + $0xf8] sm:$0xff]
  %v47 = vld [vmem:[%s0 + $0x100] sm:$0xff]
  %v48 = vld [vmem:[%s0 + $0x108] sm:$0xff]
  %v49 = vld [vmem:[%s0 + $0x110] sm:$0xff]
  %v50 = vld [vmem:[%s0 + $0x118] sm:$0xff]
  %v51 = vld [vmem:[%s0 + $0x120] sm:$0xff]
  %v52 = vld [vmem:[%s0 + $0x128] sm:$0xff]
  %v53 = vld [vmem:[%s0 + $0x130] sm:$0xff]
  %v54 = vld [vmem:[%s0 + $0x138] sm:$0xff]
  %v55 = vld [vmem:[%s0 + $0x140] sm:$0xff]
  %v56 = vld [vmem:[%s0 + $0x148] sm:$0xff]
  %v57 = vld [vmem:[%s0 + $0x150] sm:$0xff]
  %v58 = vld [vmem:[%s0 + $0x158] sm:$0xff]
  %v59 = vld [vmem:[%s0 + $0x160] sm:$0xff]
  %v60 = vld [vmem:[%s0 + $0x168] sm:$0xff]
  %v61 = vld [vmem:[%s0 + $0x170] sm:$0xff]
  %v62 = vld [vmem:[%s0 + $0x178] sm:$0xff]
  %v63 = vld [vmem:[%s0 + $0x180] sm:$0xff]
  %v64 = vld [vmem:[%s0 + $0x188] sm:$0xff]
  %v65 = vld [vmem:[%s0 + $0x190] sm:$0xff]
  %v66 = vld [vmem:[%s0 + $0x198] sm:$0xff]
  %v67 = vld [vmem:[%s0 + $0x1a0] sm:$0xff]
  %v68 = vld [vmem:[%s0 + $0x1a8] sm:$0xff]
  %v69 = vld [vmem:[%s0 + $0x1b0] sm:$0xff]
  %v70 = vld [vmem:[%s0 + $0x1b8] sm:$0xff]
  %v71 = vld [vmem:[%s0 + $0x1c0] sm:$0xff]
  %v72 = vld [vmem:[%s0 + $0x1c8] sm:$0xff]
  %v73 = vld [vmem:[%s0 + $0x1d0] sm:$0xff]
  %v74 = vld [vmem:[%s0 + $0x1d8] sm:$0xff]
  %v75 = vld [vmem:[%s0 + $0x1e0] sm:$0xff]
  %v76 = vld [vmem:[%s0 + $0x1e8] sm:$0xff]
  %v77 = vld [vmem:[%s0 + $0x1f0] sm:$0xff]
  %v78 = vld [vmem:[%s0 + $0x1f8] sm:$0xff]
  %v79 = vld [vmem:[%s1] sm:$0xf]
  %v80 = vld [vmem:[%s1 + $0x4] sm:$0xf]
  %v81 = vld [vmem:[%s1 + $0x8] sm:$0xf]
  %v82 = vld [vmem:[%s1 + $0xc] sm:$0xf]
  %v83 = vld [vmem:[%s1 + $0x10] sm:$0xf]
  %v84 = vld [vmem:[%s1 + $0x14] sm:$0xf]
  %v85 = vld [vmem:[%s1 + $0x18] sm:$0xf]
  %v86 = vld [vmem:[%s1 + $0x1c] sm:$0xf]
  %v87 = vld [vmem:[%s1 + $0x20] sm:$0xf]
  %v88 = vld [vmem:[%s1 + $0x24] sm:$0xf]
  %v89 = vld [vmem:[%s1 + $0x28] sm:$0xf]
  %v90 = vld [vmem:[%s1 + $0x2c] sm:$0xf]
  %v91 = vld [vmem:[%s1 + $0x30] sm:$0xf]
  %v92 = vld [vmem:[%s1 + $0x34] sm:$0xf]
  %v93 = vld [vmem:[%s1 + $0x38] sm:$0xf]
  %v94 = vld [vmem:[%s1 + $0x3c] sm:$0xf]
  %v95 = vld [vmem:[%s1 + $0x40] sm:$0xf]
  %v96 = vld [vmem:[%s1 + $0x44] sm:$0xf]
  %v97 = vld [vmem:[%s1 + $0x48] sm:$0xf]
  %v98 = vld [vmem:[%s1 + $0x4c] sm:$0xf]
  %v99 = vld [vmem:[%s2] sm:$0x1]
  %v101 = vlaneseq
  %v102 = vshrl.u32 %v101, 7
  %v103 = vsub.s32 0, %v102
  %v104 = vrot.slane %v99, %v103
  %v170 = vunpack.c.l.b16 %v15
  %v171 = vunpack.c.h.b16 %v15
  %v172 = vunpack.c.l.b16 %v16
  %v173 = vunpack.c.h.b16 %v16
  %v174 = vunpack.c.l.b16 %v17
  %v175 = vunpack.c.h.b16 %v17
  %v176 = vunpack.c.l.b16 %v18
  %v177 = vunpack.c.h.b16 %v18
  %v178 = vunpack.c.l.b16 %v19
  %v179 = vunpack.c.h.b16 %v19
  %v180 = vunpack.c.l.b16 %v20
  %v181 = vunpack.c.h.b16 %v20
  %v182 = vunpack.c.l.b16 %v21
  %v183 = vunpack.c.h.b16 %v21
  %v184 = vunpack.c.l.b16 %v22
  %v185 = vunpack.c.h.b16 %v22
  %v186 = vunpack.c.l.b16 %v23
  %v187 = vunpack.c.h.b16 %v23
  %v188 = vunpack.c.l.b16 %v24
  %v189 = vunpack.c.h.b16 %v24
  %v190 = vunpack.c.l.b16 %v25
  %v191 = vunpack.c.h.b16 %v25
  %v192 = vunpack.c.l.b16 %v26
  %v193 = vunpack.c.h.b16 %v26
  %v194 = vunpack.c.l.b16 %v27
  %v195 = vunpack.c.h.b16 %v27
  %v196 = vunpack.c.l.b16 %v28
  %v197 = vunpack.c.h.b16 %v28
  %v198 = vunpack.c.l.b16 %v29
  %v199 = vunpack.c.h.b16 %v29
  %v200 = vunpack.c.l.b16 %v30
  %v201 = vunpack.c.h.b16 %v30
  %v202 = vunpack.c.l.b16 %v31
  %v203 = vunpack.c.h.b16 %v31
  %v204 = vunpack.c.l.b16 %v32
  %v205 = vunpack.c.h.b16 %v32
  %v206 = vunpack.c.l.b16 %v33
  %v207 = vunpack.c.h.b16 %v33
  %v208 = vunpack.c.l.b16 %v34
  %v209 = vunpack.c.h.b16 %v34
  %v210 = vunpack.c.l.b16 %v35
  %v211 = vunpack.c.h.b16 %v35
  %v212 = vunpack.c.l.b16 %v36
  %v213 = vunpack.c.h.b16 %v36
  %v214 = vunpack.c.l.b16 %v37
  %v215 = vunpack.c.h.b16 %v37
  %v216 = vunpack.c.l.b16 %v38
  %v217 = vunpack.c.h.b16 %v38
  %v218 = vunpack.c.l.b16 %v39
  %v219 = vunpack.c.h.b16 %v39
  %v220 = vunpack.c.l.b16 %v40
  %v221 = vunpack.c.h.b16 %v40
  %v222 = vunpack.c.l.b16 %v41
  %v223 = vunpack.c.h.b16 %v41
  %v224 = vunpack.c.l.b16 %v42
  %v225 = vunpack.c.h.b16 %v42
  %v226 = vunpack.c.l.b16 %v43
  %v227 = vunpack.c.h.b16 %v43
  %v228 = vunpack.c.l.b16 %v44
  %v229 = vunpack.c.h.b16 %v44
  %v230 = vunpack.c.l.b16 %v45
  %v231 = vunpack.c.h.b16 %v45
  %v232 = vunpack.c.l.b16 %v46
  %v233 = vunpack.c.h.b16 %v46
  %v234 = vunpack.c.l.b16 %v47
  %v235 = vunpack.c.h.b16 %v47
  %v236 = vunpack.c.l.b16 %v48
  %v237 = vunpack.c.h.b16 %v48
  %v238 = vunpack.c.l.b16 %v49
  %v239 = vunpack.c.h.b16 %v49
  %v240 = vunpack.c.l.b16 %v50
  %v241 = vunpack.c.h.b16 %v50
  %v242 = vunpack.c.l.b16 %v51
  %v243 = vunpack.c.h.b16 %v51
  %v244 = vunpack.c.l.b16 %v52
  %v245 = vunpack.c.h.b16 %v52
  %v246 = vunpack.c.l.b16 %v53
  %v247 = vunpack.c.h.b16 %v53
  %v248 = vunpack.c.l.b16 %v54
  %v249 = vunpack.c.h.b16 %v54
  %v250 = vunpack.c.l.b16 %v55
  %v251 = vunpack.c.h.b16 %v55
  %v252 = vunpack.c.l.b16 %v56
  %v253 = vunpack.c.h.b16 %v56
  %v254 = vunpack.c.l.b16 %v57
  %v255 = vunpack.c.h.b16 %v57
  %v256 = vunpack.c.l.b16 %v58
  %v257 = vunpack.c.h.b16 %v58
  %v258 = vunpack.c.l.b16 %v59
  %v259 = vunpack.c.h.b16 %v59
  %v260 = vunpack.c.l.b16 %v60
  %v261 = vunpack.c.h.b16 %v60
  %v262 = vunpack.c.l.b16 %v61
  %v263 = vunpack.c.h.b16 %v61
  %v264 = vunpack.c.l.b16 %v62
  %v265 = vunpack.c.h.b16 %v62
  %v266 = vunpack.c.l.b16 %v63
  %v267 = vunpack.c.h.b16 %v63
  %v268 = vunpack.c.l.b16 %v64
  %v269 = vunpack.c.h.b16 %v64
  %v270 = vunpack.c.l.b16 %v65
  %v271 = vunpack.c.h.b16 %v65
  %v272 = vunpack.c.l.b16 %v66
  %v273 = vunpack.c.h.b16 %v66
  %v274 = vunpack.c.l.b16 %v67
  %v275 = vunpack.c.h.b16 %v67
  %v276 = vunpack.c.l.b16 %v68
  %v277 = vunpack.c.h.b16 %v68
  %v278 = vunpack.c.l.b16 %v69
  %v279 = vunpack.c.h.b16 %v69
  %v280 = vunpack.c.l.b16 %v70
  %v281 = vunpack.c.h.b16 %v70
  %v282 = vunpack.c.l.b16 %v71
  %v283 = vunpack.c.h.b16 %v71
  %v284 = vunpack.c.l.b16 %v72
  %v285 = vunpack.c.h.b16 %v72
  %v286 = vunpack.c.l.b16 %v73
  %v287 = vunpack.c.h.b16 %v73
  %v288 = vunpack.c.l.b16 %v74
  %v289 = vunpack.c.h.b16 %v74
  %v290 = vunpack.c.l.b16 %v75
  %v291 = vunpack.c.h.b16 %v75
  %v292 = vunpack.c.l.b16 %v76
  %v293 = vunpack.c.h.b16 %v76
  %v294 = vunpack.c.l.b16 %v77
  %v295 = vunpack.c.h.b16 %v77
  %v296 = vunpack.c.l.b16 %v78
  %v297 = vunpack.c.h.b16 %v78
  %v298 = vpack.c.b16 %v172, %v170
  %v299 = vpack.c.b16 %v173, %v171
  %v300 = vpack.c.b16 %v176, %v174
  %v301 = vpack.c.b16 %v177, %v175
  %v302 = vpack.c.b16 %v180, %v178
  %v303 = vpack.c.b16 %v181, %v179
  %v304 = vpack.c.b16 %v184, %v182
  %v305 = vpack.c.b16 %v185, %v183
  %v306 = vpack.c.b16 %v188, %v186
  %v307 = vpack.c.b16 %v189, %v187
  %v308 = vpack.c.b16 %v192, %v190
  %v309 = vpack.c.b16 %v193, %v191
  %v310 = vpack.c.b16 %v196, %v194
  %v311 = vpack.c.b16 %v197, %v195
  %v312 = vpack.c.b16 %v200, %v198
  %v313 = vpack.c.b16 %v201, %v199
  %v314 = vpack.c.b16 %v204, %v202
  %v315 = vpack.c.b16 %v205, %v203
  %v316 = vpack.c.b16 %v208, %v206
  %v317 = vpack.c.b16 %v209, %v207
  %v318 = vpack.c.b16 %v212, %v210
  %v319 = vpack.c.b16 %v213, %v211
  %v320 = vpack.c.b16 %v216, %v214
  %v321 = vpack.c.b16 %v217, %v215
  %v322 = vpack.c.b16 %v220, %v218
  %v323 = vpack.c.b16 %v221, %v219
  %v324 = vpack.c.b16 %v224, %v222
  %v325 = vpack.c.b16 %v225, %v223
  %v326 = vpack.c.b16 %v228, %v226
  %v327 = vpack.c.b16 %v229, %v227
  %v328 = vpack.c.b16 %v232, %v230
  %v329 = vpack.c.b16 %v233, %v231
  %v330 = vpack.c.b16 %v236, %v234
  %v331 = vpack.c.b16 %v237, %v235
  %v332 = vpack.c.b16 %v240, %v238
  %v333 = vpack.c.b16 %v241, %v239
  %v334 = vpack.c.b16 %v244, %v242
  %v335 = vpack.c.b16 %v245, %v243
  %v336 = vpack.c.b16 %v248, %v246
  %v337 = vpack.c.b16 %v249, %v247
  %v338 = vpack.c.b16 %v252, %v250
  %v339 = vpack.c.b16 %v253, %v251
  %v340 = vpack.c.b16 %v256, %v254
  %v341 = vpack.c.b16 %v257, %v255
  %v342 = vpack.c.b16 %v260, %v258
  %v343 = vpack.c.b16 %v261, %v259
  %v344 = vpack.c.b16 %v264, %v262
  %v345 = vpack.c.b16 %v265, %v263
  %v346 = vpack.c.b16 %v268, %v266
  %v347 = vpack.c.b16 %v269, %v267
  %v348 = vpack.c.b16 %v272, %v270
  %v349 = vpack.c.b16 %v273, %v271
  %v350 = vpack.c.b16 %v276, %v274
  %v351 = vpack.c.b16 %v277, %v275
  %v352 = vpack.c.b16 %v280, %v278
  %v353 = vpack.c.b16 %v281, %v279
  %v354 = vpack.c.b16 %v284, %v282
  %v355 = vpack.c.b16 %v285, %v283
  %v356 = vpack.c.b16 %v288, %v286
  %v357 = vpack.c.b16 %v289, %v287
  %v358 = vpack.c.b16 %v292, %v290
  %v359 = vpack.c.b16 %v293, %v291
  %v360 = vpack.c.b16 %v296, %v294
  %v361 = vpack.c.b16 %v297, %v295
  %v414 = vunpack.c.l.b16 %v79
  %v415 = vunpack.c.l.b16 %v80
  %v416 = vunpack.c.l.b16 %v81
  %v417 = vunpack.c.l.b16 %v82
  %v418 = vunpack.c.l.b16 %v83
  %v419 = vunpack.c.l.b16 %v84
  %v420 = vunpack.c.l.b16 %v85
  %v421 = vunpack.c.l.b16 %v86
  %v422 = vunpack.c.l.b16 %v87
  %v423 = vunpack.c.l.b16 %v88
  %v424 = vunpack.c.l.b16 %v89
  %v425 = vunpack.c.l.b16 %v90
  %v426 = vunpack.c.l.b16 %v91
  %v427 = vunpack.c.l.b16 %v92
  %v428 = vunpack.c.l.b16 %v93
  %v429 = vunpack.c.l.b16 %v94
  %v430 = vunpack.c.l.b16 %v95
  %v431 = vunpack.c.l.b16 %v96
  %v432 = vunpack.c.l.b16 %v97
  %v433 = vunpack.c.l.b16 %v98
  %v434 = vpack.c.b16 %v415, %v414
  %v435 = vpack.c.b16 %v417, %v416
  %v436 = vpack.c.b16 %v419, %v418
  %v437 = vpack.c.b16 %v421, %v420
  %v438 = vpack.c.b16 %v423, %v422
  %v439 = vpack.c.b16 %v425, %v424
  %v440 = vpack.c.b16 %v427, %v426
  %v441 = vpack.c.b16 %v429, %v428
  %v442 = vpack.c.b16 %v431, %v430
  %v443 = vpack.c.b16 %v433, %v432
  %vm454 = vcmask 261120
  %v456 = vsel %vm454, %v299, 0
  %v459 = vsel %vm454, %v301, 0
  %v462 = vsel %vm454, %v303, 0
  %v465 = vsel %vm454, %v305, 0
  %v468 = vsel %vm454, %v307, 0
  %v471 = vsel %vm454, %v309, 0
  %v474 = vsel %vm454, %v311, 0
  %v477 = vsel %vm454, %v313, 0
  %v480 = vsel %vm454, %v315, 0
  %v483 = vsel %vm454, %v317, 0
  %v486 = vsel %vm454, %v319, 0
  %v489 = vsel %vm454, %v321, 0
  %v492 = vsel %vm454, %v323, 0
  %v495 = vsel %vm454, %v325, 0
  %v498 = vsel %vm454, %v327, 0
  %v501 = vsel %vm454, %v329, 0
  %v504 = vsel %vm454, %v331, 0
  %v507 = vsel %vm454, %v333, 0
  %v510 = vsel %vm454, %v335, 0
  %v513 = vsel %vm454, %v337, 0
  %v516 = vsel %vm454, %v339, 0
  %v519 = vsel %vm454, %v341, 0
  %v522 = vsel %vm454, %v343, 0
  %v525 = vsel %vm454, %v345, 0
  %v528 = vsel %vm454, %v347, 0
  %v531 = vsel %vm454, %v349, 0
  %v534 = vsel %vm454, %v351, 0
  %v537 = vsel %vm454, %v353, 0
  %v540 = vsel %vm454, %v355, 0
  %v543 = vsel %vm454, %v357, 0
  %v546 = vsel %vm454, %v359, 0
  %v549 = vsel %vm454, %v361, 0
  %551 = vmatprep.subr.bf16.mxu0 0
  %552 = vmatpush1.bf16.msra.mxu0 %v441
  %553 = vmatprep.subr.bf16.mxu0 0
  %554 = vmatpush1.bf16.msra.mxu0 %v440
  %555 = vmatprep.subr.bf16.mxu0 0
  %556 = vmatpush1.bf16.msra.mxu0 %v439
  %557 = vmatprep.subr.bf16.mxu0 0
  %558 = vmatpush1.bf16.msra.mxu0 %v438
  %559 = vmatprep.subr.bf16.mxu0 0
  %560 = vmatpush1.bf16.msra.mxu0 %v437
  %561 = vmatprep.subr.bf16.mxu0 0
  %562 = vmatpush1.bf16.msra.mxu0 %v436
  %563 = vmatprep.subr.bf16.mxu0 0
  %564 = vmatpush1.bf16.msra.mxu0 %v435
  %565 = vmatprep.subr.bf16.mxu0 0
  %566 = vmatpush1.bf16.msra.mxu0 %v434
  %567 = vmatprep.subr.bf16.mxu0 0
  %568 = vmatpush2.bf16.msra.mxu0 0
  %569 = vmatprep.subr.bf16.mxu0 0
  %570 = vmatpush2.bf16.msra.mxu0 0
  %571 = vmatprep.subr.bf16.mxu0 0
  %572 = vmatpush2.bf16.msra.mxu0 0
  %573 = vmatprep.subr.bf16.mxu0 0
  %574 = vmatpush2.bf16.msra.mxu0 0
  %575 = vmatprep.subr.bf16.mxu0 0
  %576 = vmatpush2.bf16.msra.mxu0 0
  %577 = vmatprep.subr.bf16.mxu0 0
  %578 = vmatpush2.bf16.msra.mxu0 0
  %579 = vmatprep.subr.bf16.mxu0 0
  %580 = vmatpush2.bf16.msra.mxu0 %v443
  %581 = vmatprep.subr.bf16.mxu0 0
  %582 = vmatpush2.bf16.msra.mxu0 %v442
  %583 = vmatprep.mubr.bf16.mxu0 %v456
  %584 = vmatmul.mubr.bf16.gmra.mxu0 %v298
  %v585 = vpop.f32.mrf.mxu0
  %v586 = vadd.f32 %v104, %v585
  %v587 = vpop.f32.mrf.mxu0
  %v588 = vpop.f32.mrf.mxu0
  %v589 = vadd.f32 %v104, %v588
  %v590 = vpop.f32.mrf.mxu0
  %591 = vmatprep.mubr.bf16.mxu0 %v459
  %592 = vmatmul.mubr.bf16.gmra.mxu0 %v300
  %v593 = vpop.f32.mrf.mxu0
  %v594 = vadd.f32 %v104, %v593
  %v595 = vpop.f32.mrf.mxu0
  %v596 = vpop.f32.mrf.mxu0
  %v597 = vadd.f32 %v104, %v596
  %v598 = vpop.f32.mrf.mxu0
  %599 = vmatprep.mubr.bf16.mxu0 %v462
  %600 = vmatmul.mubr.bf16.gmra.mxu0 %v302
  %v601 = vpop.f32.mrf.mxu0
  %v602 = vadd.f32 %v104, %v601
  %v603 = vpop.f32.mrf.mxu0
  %v604 = vpop.f32.mrf.mxu0
  %v605 = vadd.f32 %v104, %v604
  %v606 = vpop.f32.mrf.mxu0
  %607 = vmatprep.mubr.bf16.mxu0 %v465
  %608 = vmatmul.mubr.bf16.gmra.mxu0 %v304
  %v609 = vpop.f32.mrf.mxu0
  %v610 = vadd.f32 %v104, %v609
  %v611 = vpop.f32.mrf.mxu0
  %v612 = vpop.f32.mrf.mxu0
  %v613 = vadd.f32 %v104, %v612
  %v614 = vpop.f32.mrf.mxu0
  %615 = vmatprep.mubr.bf16.mxu0 %v468
  %616 = vmatmul.mubr.bf16.gmra.mxu0 %v306
  %v617 = vpop.f32.mrf.mxu0
  %v618 = vadd.f32 %v104, %v617
  %v619 = vpop.f32.mrf.mxu0
  %v620 = vpop.f32.mrf.mxu0
  %v621 = vadd.f32 %v104, %v620
  %v622 = vpop.f32.mrf.mxu0
  %623 = vmatprep.mubr.bf16.mxu0 %v471
  %624 = vmatmul.mubr.bf16.gmra.mxu0 %v308
  %v625 = vpop.f32.mrf.mxu0
  %v626 = vadd.f32 %v104, %v625
  %v627 = vpop.f32.mrf.mxu0
  %v628 = vpop.f32.mrf.mxu0
  %v629 = vadd.f32 %v104, %v628
  %v630 = vpop.f32.mrf.mxu0
  %631 = vmatprep.mubr.bf16.mxu0 %v474
  %632 = vmatmul.mubr.bf16.gmra.mxu0 %v310
  %v633 = vpop.f32.mrf.mxu0
  %v634 = vadd.f32 %v104, %v633
  %v635 = vpop.f32.mrf.mxu0
  %v636 = vpop.f32.mrf.mxu0
  %v637 = vadd.f32 %v104, %v636
  %v638 = vpop.f32.mrf.mxu0
  %639 = vmatprep.mubr.bf16.mxu0 %v477
  %640 = vmatmul.mubr.bf16.gmra.mxu0 %v312
  %v641 = vpop.f32.mrf.mxu0
  %v642 = vadd.f32 %v104, %v641
  %v643 = vpop.f32.mrf.mxu0
  %v644 = vpop.f32.mrf.mxu0
  %v645 = vadd.f32 %v104, %v644
  %v646 = vpop.f32.mrf.mxu0
  %647 = vmatprep.mubr.bf16.mxu0 %v480
  %648 = vmatmul.mubr.bf16.gmra.mxu0 %v314
  %v649 = vpop.f32.mrf.mxu0
  %v650 = vadd.f32 %v104, %v649
  %v651 = vpop.f32.mrf.mxu0
  %v652 = vpop.f32.mrf.mxu0
  %v653 = vadd.f32 %v104, %v652
  %v654 = vpop.f32.mrf.mxu0
  %655 = vmatprep.mubr.bf16.mxu0 %v483
  %656 = vmatmul.mubr.bf16.gmra.mxu0 %v316
  %v657 = vpop.f32.mrf.mxu0
  %v658 = vadd.f32 %v104, %v657
  %v659 = vpop.f32.mrf.mxu0
  %v660 = vpop.f32.mrf.mxu0
  %v661 = vadd.f32 %v104, %v660
  %v662 = vpop.f32.mrf.mxu0
  %663 = vmatprep.mubr.bf16.mxu0 %v486
  %664 = vmatmul.mubr.bf16.gmra.mxu0 %v318
  %v665 = vpop.f32.mrf.mxu0
  %v666 = vadd.f32 %v104, %v665
  %v667 = vpop.f32.mrf.mxu0
  %v668 = vpop.f32.mrf.mxu0
  %v669 = vadd.f32 %v104, %v668
  %v670 = vpop.f32.mrf.mxu0
  %671 = vmatprep.mubr.bf16.mxu0 %v489
  %672 = vmatmul.mubr.bf16.gmra.mxu0 %v320
  %v673 = vpop.f32.mrf.mxu0
  %v674 = vadd.f32 %v104, %v673
  %v675 = vpop.f32.mrf.mxu0
  %v676 = vpop.f32.mrf.mxu0
  %v677 = vadd.f32 %v104, %v676
  %v678 = vpop.f32.mrf.mxu0
  %679 = vmatprep.mubr.bf16.mxu0 %v492
  %680 = vmatmul.mubr.bf16.gmra.mxu0 %v322
  %v681 = vpop.f32.mrf.mxu0
  %v682 = vadd.f32 %v104, %v681
  %v683 = vpop.f32.mrf.mxu0
  %v684 = vpop.f32.mrf.mxu0
  %v685 = vadd.f32 %v104, %v684
  %v686 = vpop.f32.mrf.mxu0
  %687 = vmatprep.mubr.bf16.mxu0 %v495
  %688 = vmatmul.mubr.bf16.gmra.mxu0 %v324
  %v689 = vpop.f32.mrf.mxu0
  %v690 = vadd.f32 %v104, %v689
  %v691 = vpop.f32.mrf.mxu0
  %v692 = vpop.f32.mrf.mxu0
  %v693 = vadd.f32 %v104, %v692
  %v694 = vpop.f32.mrf.mxu0
  %695 = vmatprep.mubr.bf16.mxu0 %v498
  %696 = vmatmul.mubr.bf16.gmra.mxu0 %v326
  %v697 = vpop.f32.mrf.mxu0
  %v698 = vadd.f32 %v104, %v697
  %v699 = vpop.f32.mrf.mxu0
  %v700 = vpop.f32.mrf.mxu0
  %v701 = vadd.f32 %v104, %v700
  %v702 = vpop.f32.mrf.mxu0
  %703 = vmatprep.mubr.bf16.mxu0 %v501
  %704 = vmatmul.mubr.bf16.gmra.mxu0 %v328
  %v705 = vpop.f32.mrf.mxu0
  %v706 = vadd.f32 %v104, %v705
  %v707 = vpop.f32.mrf.mxu0
  %v708 = vpop.f32.mrf.mxu0
  %v709 = vadd.f32 %v104, %v708
  %v710 = vpop.f32.mrf.mxu0
  %711 = vmatprep.mubr.bf16.mxu0 %v504
  %712 = vmatmul.mubr.bf16.gmra.mxu0 %v330
  %v713 = vpop.f32.mrf.mxu0
  %v714 = vadd.f32 %v104, %v713
  %v715 = vpop.f32.mrf.mxu0
  %v716 = vpop.f32.mrf.mxu0
  %v717 = vadd.f32 %v104, %v716
  %v718 = vpop.f32.mrf.mxu0
  %719 = vmatprep.mubr.bf16.mxu0 %v507
  %720 = vmatmul.mubr.bf16.gmra.mxu0 %v332
  %v721 = vpop.f32.mrf.mxu0
  %v722 = vadd.f32 %v104, %v721
  %v723 = vpop.f32.mrf.mxu0
  %v724 = vpop.f32.mrf.mxu0
  %v725 = vadd.f32 %v104, %v724
  %v726 = vpop.f32.mrf.mxu0
  %727 = vmatprep.mubr.bf16.mxu0 %v510
  %728 = vmatmul.mubr.bf16.gmra.mxu0 %v334
  %v729 = vpop.f32.mrf.mxu0
  %v730 = vadd.f32 %v104, %v729
  %v731 = vpop.f32.mrf.mxu0
  %v732 = vpop.f32.mrf.mxu0
  %v733 = vadd.f32 %v104, %v732
  %v734 = vpop.f32.mrf.mxu0
  %735 = vmatprep.mubr.bf16.mxu0 %v513
  %736 = vmatmul.mubr.bf16.gmra.mxu0 %v336
  %v737 = vpop.f32.mrf.mxu0
  %v738 = vadd.f32 %v104, %v737
  %v739 = vpop.f32.mrf.mxu0
  %v740 = vpop.f32.mrf.mxu0
  %v741 = vadd.f32 %v104, %v740
  %v742 = vpop.f32.mrf.mxu0
  %743 = vmatprep.mubr.bf16.mxu0 %v516
  %744 = vmatmul.mubr.bf16.gmra.mxu0 %v338
  %v745 = vpop.f32.mrf.mxu0
  %v746 = vadd.f32 %v104, %v745
  %v747 = vpop.f32.mrf.mxu0
  %v748 = vpop.f32.mrf.mxu0
  %v749 = vadd.f32 %v104, %v748
  %v750 = vpop.f32.mrf.mxu0
  %751 = vmatprep.mubr.bf16.mxu0 %v519
  %752 = vmatmul.mubr.bf16.gmra.mxu0 %v340
  %v753 = vpop.f32.mrf.mxu0
  %v754 = vadd.f32 %v104, %v753
  %v755 = vpop.f32.mrf.mxu0
  %v756 = vpop.f32.mrf.mxu0
  %v757 = vadd.f32 %v104, %v756
  %v758 = vpop.f32.mrf.mxu0
  %759 = vmatprep.mubr.bf16.mxu0 %v522
  %760 = vmatmul.mubr.bf16.gmra.mxu0 %v342
  %v761 = vpop.f32.mrf.mxu0
  %v762 = vadd.f32 %v104, %v761
  %v763 = vpop.f32.mrf.mxu0
  %v764 = vpop.f32.mrf.mxu0
  %v765 = vadd.f32 %v104, %v764
  %v766 = vpop.f32.mrf.mxu0
  %767 = vmatprep.mubr.bf16.mxu0 %v525
  %768 = vmatmul.mubr.bf16.gmra.mxu0 %v344
  %v769 = vpop.f32.mrf.mxu0
  %v770 = vadd.f32 %v104, %v769
  %v771 = vpop.f32.mrf.mxu0
  %v772 = vpop.f32.mrf.mxu0
  %v773 = vadd.f32 %v104, %v772
  %v774 = vpop.f32.mrf.mxu0
  %775 = vmatprep.mubr.bf16.mxu0 %v528
  %776 = vmatmul.mubr.bf16.gmra.mxu0 %v346
  %v777 = vpop.f32.mrf.mxu0
  %v778 = vadd.f32 %v104, %v777
  %v779 = vpop.f32.mrf.mxu0
  %v780 = vpop.f32.mrf.mxu0
  %v781 = vadd.f32 %v104, %v780
  %v782 = vpop.f32.mrf.mxu0
  %783 = vmatprep.mubr.bf16.mxu0 %v531
  %784 = vmatmul.mubr.bf16.gmra.mxu0 %v348
  %v785 = vpop.f32.mrf.mxu0
  %v786 = vadd.f32 %v104, %v785
  %v787 = vpop.f32.mrf.mxu0
  %v788 = vpop.f32.mrf.mxu0
  %v789 = vadd.f32 %v104, %v788
  %v790 = vpop.f32.mrf.mxu0
  %791 = vmatprep.mubr.bf16.mxu0 %v534
  %792 = vmatmul.mubr.bf16.gmra.mxu0 %v350
  %v793 = vpop.f32.mrf.mxu0
  %v794 = vadd.f32 %v104, %v793
  %v795 = vpop.f32.mrf.mxu0
  %v796 = vpop.f32.mrf.mxu0
  %v797 = vadd.f32 %v104, %v796
  %v798 = vpop.f32.mrf.mxu0
  %799 = vmatprep.mubr.bf16.mxu0 %v537
  %800 = vmatmul.mubr.bf16.gmra.mxu0 %v352
  %v801 = vpop.f32.mrf.mxu0
  %v802 = vadd.f32 %v104, %v801
  %v803 = vpop.f32.mrf.mxu0
  %v804 = vpop.f32.mrf.mxu0
  %v805 = vadd.f32 %v104, %v804
  %v806 = vpop.f32.mrf.mxu0
  %807 = vmatprep.mubr.bf16.mxu0 %v540
  %808 = vmatmul.mubr.bf16.gmra.mxu0 %v354
  %v809 = vpop.f32.mrf.mxu0
  %v810 = vadd.f32 %v104, %v809
  %v811 = vpop.f32.mrf.mxu0
  %v812 = vpop.f32.mrf.mxu0
  %v813 = vadd.f32 %v104, %v812
  %v814 = vpop.f32.mrf.mxu0
  %815 = vmatprep.mubr.bf16.mxu0 %v543
  %816 = vmatmul.mubr.bf16.gmra.mxu0 %v356
  %v817 = vpop.f32.mrf.mxu0
  %v818 = vadd.f32 %v104, %v817
  %v819 = vpop.f32.mrf.mxu0
  %v820 = vpop.f32.mrf.mxu0
  %v821 = vadd.f32 %v104, %v820
  %v822 = vpop.f32.mrf.mxu0
  %823 = vmatprep.mubr.bf16.mxu0 %v546
  %824 = vmatmul.mubr.bf16.gmra.mxu0 %v358
  %v825 = vpop.f32.mrf.mxu0
  %v826 = vadd.f32 %v104, %v825
  %v827 = vpop.f32.mrf.mxu0
  %v828 = vpop.f32.mrf.mxu0
  %v829 = vadd.f32 %v104, %v828
  %v830 = vpop.f32.mrf.mxu0
  %831 = vmatprep.mubr.bf16.mxu0 %v549
  %832 = vmatmul.mubr.bf16.gmra.mxu0 %v360
  %v833 = vpop.f32.mrf.mxu0
  %v834 = vadd.f32 %v104, %v833
  %v835 = vpop.f32.mrf.mxu0
  %v836 = vpop.f32.mrf.mxu0
  %v837 = vadd.f32 %v104, %v836
  %v838 = vpop.f32.mrf.mxu0
  %839 = vdwg.mxu0
  %vm840 = vcmask 64512
  %841 = vst.msk [vmem:[%s3] sm:$0xff] %vm840, %v586
  %842 = vst.msk [vmem:[%s3 + $0x8] sm:$0xff] %vm840, %v589
  %843 = vst.msk [vmem:[%s3 + $0x10] sm:$0xff] %vm840, %v594
  %844 = vst.msk [vmem:[%s3 + $0x18] sm:$0xff] %vm840, %v597
  %845 = vst.msk [vmem:[%s3 + $0x20] sm:$0xff] %vm840, %v602
  %846 = vst.msk [vmem:[%s3 + $0x28] sm:$0xff] %vm840, %v605
  %847 = vst.msk [vmem:[%s3 + $0x30] sm:$0xff] %vm840, %v610
  %848 = vst.msk [vmem:[%s3 + $0x38] sm:$0xff] %vm840, %v613
  %849 = vst.msk [vmem:[%s3 + $0x40] sm:$0xff] %vm840, %v618
  %850 = vst.msk [vmem:[%s3 + $0x48] sm:$0xff] %vm840, %v621
  %851 = vst.msk [vmem:[%s3 + $0x50] sm:$0xff] %vm840, %v626
  %852 = vst.msk [vmem:[%s3 + $0x58] sm:$0xff] %vm840, %v629
  %853 = vst.msk [vmem:[%s3 + $0x60] sm:$0xff] %vm840, %v634
  %854 = vst.msk [vmem:[%s3 + $0x68] sm:$0xff] %vm840, %v637
  %855 = vst.msk [vmem:[%s3 + $0x70] sm:$0xff] %vm840, %v642
  %856 = vst.msk [vmem:[%s3 + $0x78] sm:$0xff] %vm840, %v645
  %857 = vst.msk [vmem:[%s3 + $0x80] sm:$0xff] %vm840, %v650
  %858 = vst.msk [vmem:[%s3 + $0x88] sm:$0xff] %vm840, %v653
  %859 = vst.msk [vmem:[%s3 + $0x90] sm:$0xff] %vm840, %v658
  %860 = vst.msk [vmem:[%s3 + $0x98] sm:$0xff] %vm840, %v661
  %861 = vst.msk [vmem:[%s3 + $0xa0] sm:$0xff] %vm840, %v666
  %862 = vst.msk [vmem:[%s3 + $0xa8] sm:$0xff] %vm840, %v669
  %863 = vst.msk [vmem:[%s3 + $0xb0] sm:$0xff] %vm840, %v674
  %864 = vst.msk [vmem:[%s3 + $0xb8] sm:$0xff] %vm840, %v677
  %865 = vst.msk [vmem:[%s3 + $0xc0] sm:$0xff] %vm840, %v682
  %866 = vst.msk [vmem:[%s3 + $0xc8] sm:$0xff] %vm840, %v685
  %867 = vst.msk [vmem:[%s3 + $0xd0] sm:$0xff] %vm840, %v690
  %868 = vst.msk [vmem:[%s3 + $0xd8] sm:$0xff] %vm840, %v693
  %869 = vst.msk [vmem:[%s3 + $0xe0] sm:$0xff] %vm840, %v698
  %870 = vst.msk [vmem:[%s3 + $0xe8] sm:$0xff] %vm840, %v701
  %871 = vst.msk [vmem:[%s3 + $0xf0] sm:$0xff] %vm840, %v706
  %872 = vst.msk [vmem:[%s3 + $0xf8] sm:$0xff] %vm840, %v709
  %873 = vst.msk [vmem:[%s3 + $0x100] sm:$0xff] %vm840, %v714
  %874 = vst.msk [vmem:[%s3 + $0x108] sm:$0xff] %vm840, %v717
  %875 = vst.msk [vmem:[%s3 + $0x110] sm:$0xff] %vm840, %v722
  %876 = vst.msk [vmem:[%s3 + $0x118] sm:$0xff] %vm840, %v725
  %877 = vst.msk [vmem:[%s3 + $0x120] sm:$0xff] %vm840, %v730
  %878 = vst.msk [vmem:[%s3 + $0x128] sm:$0xff] %vm840, %v733
  %879 = vst.msk [vmem:[%s3 + $0x130] sm:$0xff] %vm840, %v738
  %880 = vst.msk [vmem:[%s3 + $0x138] sm:$0xff] %vm840, %v741
  %881 = vst.msk [vmem:[%s3 + $0x140] sm:$0xff] %vm840, %v746
  %882 = vst.msk [vmem:[%s3 + $0x148] sm:$0xff] %vm840, %v749
  %883 = vst.msk [vmem:[%s3 + $0x150] sm:$0xff] %vm840, %v754
  %884 = vst.msk [vmem:[%s3 + $0x158] sm:$0xff] %vm840, %v757
  %885 = vst.msk [vmem:[%s3 + $0x160] sm:$0xff] %vm840, %v762
  %886 = vst.msk [vmem:[%s3 + $0x168] sm:$0xff] %vm840, %v765
  %887 = vst.msk [vmem:[%s3 + $0x170] sm:$0xff] %vm840, %v770
  %888 = vst.msk [vmem:[%s3 + $0x178] sm:$0xff] %vm840, %v773
  %889 = vst.msk [vmem:[%s3 + $0x180] sm:$0xff] %vm840, %v778
  %890 = vst.msk [vmem:[%s3 + $0x188] sm:$0xff] %vm840, %v781
  %891 = vst.msk [vmem:[%s3 + $0x190] sm:$0xff] %vm840, %v786
  %892 = vst.msk [vmem:[%s3 + $0x198] sm:$0xff] %vm840, %v789
  %893 = vst.msk [vmem:[%s3 + $0x1a0] sm:$0xff] %vm840, %v794
  %894 = vst.msk [vmem:[%s3 + $0x1a8] sm:$0xff] %vm840, %v797
  %895 = vst.msk [vmem:[%s3 + $0x1b0] sm:$0xff] %vm840, %v802
  %896 = vst.msk [vmem:[%s3 + $0x1b8] sm:$0xff] %vm840, %v805
  %897 = vst.msk [vmem:[%s3 + $0x1c0] sm:$0xff] %vm840, %v810
  %898 = vst.msk [vmem:[%s3 + $0x1c8] sm:$0xff] %vm840, %v813
  %899 = vst.msk [vmem:[%s3 + $0x1d0] sm:$0xff] %vm840, %v818
  %900 = vst.msk [vmem:[%s3 + $0x1d8] sm:$0xff] %vm840, %v821
  %901 = vst.msk [vmem:[%s3 + $0x1e0] sm:$0xff] %vm840, %v826
  %902 = vst.msk [vmem:[%s3 + $0x1e8] sm:$0xff] %vm840, %v829
  %903 = vst.msk [vmem:[%s3 + $0x1f0] sm:$0xff] %vm840, %v834
  %904 = vst.msk [vmem:[%s3 + $0x1f8] sm:$0xff] %vm840, %v837
  // Predicated region
  $region14: #{spade_resnet_forward.46} parent=0 // pred_check
    _
  $region15: #{spade_resnet_forward.46} parent=0 // pred_check_branch
    %906 = sbr.rel (0) target = $region17
  $region16: #{spade_resnet_forward.46} parent=0 // pred_region
    _
  $region17: #{spade_resnet_forward.46} parent=0 // pred_fallthru
    _
  // Predicated region
  $region18: #{spade_resnet_forward.46} parent=0 // pred_check
    _
  $region19: #{spade_resnet_forward.46} parent=0 // pred_check_branch
    %908 = sbr.rel (0) target = $region21
  $region20: #{spade_resnet_forward.46} parent=0 // pred_region
    _
  $region21: #{spade_resnet_forward.46} parent=0 // pred_fallthru
    _

// kernel: spade_resnet_forward.48
$region0: #{spade_resnet_forward.48}
  #allocation0 [shape = 'u32[]', space=smem, size = 0x4, offset = 0x4, fixed_abs, tag = 'smem constant byte address 0x4 - core index']
  #allocation1 [shape = 'u32[144,128]{1,0:T(1,128)}', space=vmem, size = 0x12000, scoped, tag = 'internal scratch']
  %s0 = inlined_call_operand.vmem [shape: f32[512,8], index: 0, kind: input, shape index: {}]
  %s1 = inlined_call_operand.vmem [shape: f32[1,8], index: 1, kind: input, shape index: {}]
  %s2 = inlined_call_operand.vmem [shape: f32[1,8], index: 2, kind: input, shape index: {}]
  %s3 = inlined_call_operand.vmem [shape: f32[512,8], index: 3, kind: output, shape index: {}]
  %s4 = sld [smem:[#allocation0]]
  $region22: #{spade_resnet_forward.48} parent=0
    _
  %s6 = ssub.s32 1, %s4
  %s7 = scalar_select 0, %s6, %s4
  // Predicated region
  $region2: #{spade_resnet_forward.48} parent=0 // pred_check
    _
  $region3: #{spade_resnet_forward.48} parent=0 // pred_check_branch
    %9 = sbr.rel (0) target = $region5
  $region4: #{spade_resnet_forward.48} parent=0 // pred_region
    _
  $region5: #{spade_resnet_forward.48} parent=0 // pred_fallthru
    _
  // Predicated region
  $region6: #{spade_resnet_forward.48} parent=0 // pred_check
    _
  $region7: #{spade_resnet_forward.48} parent=0 // pred_check_branch
    %11 = sbr.rel (0) target = $region9
  $region8: #{spade_resnet_forward.48} parent=0 // pred_region
    _
  $region9: #{spade_resnet_forward.48} parent=0 // pred_fallthru
    _
  // Predicated region
  $region10: #{spade_resnet_forward.48} parent=0 // pred_check
    _
  $region11: #{spade_resnet_forward.48} parent=0 // pred_check_branch
    %13 = sbr.rel (0) target = $region13
  $region12: #{spade_resnet_forward.48} parent=0 // pred_region
    _
  $region13: #{spade_resnet_forward.48} parent=0 // pred_fallthru
    _
  %v14 = vld [vmem:[%s0] sm:$0xff]
  %v15 = vld [vmem:[%s0 + $0x8] sm:$0xff]
  %v16 = vld [vmem:[%s0 + $0x10] sm:$0xff]
  %v17 = vld [vmem:[%s0 + $0x18] sm:$0xff]
  %v18 = vld [vmem:[%s0 + $0x20] sm:$0xff]
  %v19 = vld [vmem:[%s0 + $0x28] sm:$0xff]
  %v20 = vld [vmem:[%s0 + $0x30] sm:$0xff]
  %v21 = vld [vmem:[%s0 + $0x38] sm:$0xff]
  %v22 = vld [vmem:[%s0 + $0x40] sm:$0xff]
  %v23 = vld [vmem:[%s0 + $0x48] sm:$0xff]
  %v24 = vld [vmem:[%s0 + $0x50] sm:$0xff]
  %v25 = vld [vmem:[%s0 + $0x58] sm:$0xff]
  %v26 = vld [vmem:[%s0 + $0x60] sm:$0xff]
  %v27 = vld [vmem:[%s0 + $0x68] sm:$0xff]
  %v28 = vld [vmem:[%s0 + $0x70] sm:$0xff]
  %v29 = vld [vmem:[%s0 + $0x78] sm:$0xff]
  %v30 = vld [vmem:[%s0 + $0x80] sm:$0xff]
  %v31 = vld [vmem:[%s0 + $0x88] sm:$0xff]
  %v32 = vld [vmem:[%s0 + $0x90] sm:$0xff]
  %v33 = vld [vmem:[%s0 + $0x98] sm:$0xff]
  %v34 = vld [vmem:[%s0 + $0xa0] sm:$0xff]
  %v35 = vld [vmem:[%s0 + $0xa8] sm:$0xff]
  %v36 = vld [vmem:[%s0 + $0xb0] sm:$0xff]
  %v37 = vld [vmem:[%s0 + $0xb8] sm:$0xff]
  %v38 = vld [vmem:[%s0 + $0xc0] sm:$0xff]
  %v39 = vld [vmem:[%s0 + $0xc8] sm:$0xff]
  %v40 = vld [vmem:[%s0 + $0xd0] sm:$0xff]
  %v41 = vld [vmem:[%s0 + $0xd8] sm:$0xff]
  %v42 = vld [vmem:[%s0 + $0xe0] sm:$0xff]
  %v43 = vld [vmem:[%s0 + $0xe8] sm:$0xff]
  %v44 = vld [vmem:[%s0 + $0xf0] sm:$0xff]
  %v45 = vld [vmem:[%s0 + $0xf8] sm:$0xff]
  %v46 = vld [vmem:[%s0 + $0x100] sm:$0xff]
  %v47 = vld [vmem:[%s0 + $0x108] sm:$0xff]
  %v48 = vld [vmem:[%s0 + $0x110] sm:$0xff]
  %v49 = vld [vmem:[%s0 + $0x118] sm:$0xff]
  %v50 = vld [vmem:[%s0 + $0x120] sm:$0xff]
  %v51 = vld [vmem:[%s0 + $0x128] sm:$0xff]
  %v52 = vld [vmem:[%s0 + $0x130] sm:$0xff]
  %v53 = vld [vmem:[%s0 + $0x138] sm:$0xff]
  %v54 = vld [vmem:[%s0 + $0x140] sm:$0xff]
  %v55 = vld [vmem:[%s0 + $0x148] sm:$0xff]
  %v56 = vld [vmem:[%s0 + $0x150] sm:$0xff]
  %v57 = vld [vmem:[%s0 + $0x158] sm:$0xff]
  %v58 = vld [vmem:[%s0 + $0x160] sm:$0xff]
  %v59 = vld [vmem:[%s0 + $0x168] sm:$0xff]
  %v60 = vld [vmem:[%s0 + $0x170] sm:$0xff]
  %v61 = vld [vmem:[%s0 + $0x178] sm:$0xff]
  %v62 = vld [vmem:[%s0 + $0x180] sm:$0xff]
  %v63 = vld [vmem:[%s0 + $0x188] sm:$0xff]
  %v64 = vld [vmem:[%s0 + $0x190] sm:$0xff]
  %v65 = vld [vmem:[%s0 + $0x198] sm:$0xff]
  %v66 = vld [vmem:[%s0 + $0x1a0] sm:$0xff]
  %v67 = vld [vmem:[%s0 + $0x1a8] sm:$0xff]
  %v68 = vld [vmem:[%s0 + $0x1b0] sm:$0xff]
  %v69 = vld [vmem:[%s0 + $0x1b8] sm:$0xff]
  %v70 = vld [vmem:[%s0 + $0x1c0] sm:$0xff]
  %v71 = vld [vmem:[%s0 + $0x1c8] sm:$0xff]
  %v72 = vld [vmem:[%s0 + $0x1d0] sm:$0xff]
  %v73 = vld [vmem:[%s0 + $0x1d8] sm:$0xff]
  %v74 = vld [vmem:[%s0 + $0x1e0] sm:$0xff]
  %v75 = vld [vmem:[%s0 + $0x1e8] sm:$0xff]
  %v76 = vld [vmem:[%s0 + $0x1f0] sm:$0xff]
  %v77 = vld [vmem:[%s0 + $0x1f8] sm:$0xff]
  %v78 = vld [vmem:[%s1] sm:$0x1]
  %v80 = vlaneseq
  %v81 = vshrl.u32 %v80, 7
  %v82 = vsub.s32 0, %v81
  %v83 = vrot.slane %v78, %v82
  %v85 = vmul.f32 %v14, %v83
  %v86 = vmul.f32 %v15, %v83
  %v87 = vmul.f32 %v16, %v83
  %v88 = vmul.f32 %v17, %v83
  %v89 = vmul.f32 %v18, %v83
  %v90 = vmul.f32 %v19, %v83
  %v91 = vmul.f32 %v20, %v83
  %v92 = vmul.f32 %v21, %v83
  %v93 = vmul.f32 %v22, %v83
  %v94 = vmul.f32 %v23, %v83
  %v95 = vmul.f32 %v24, %v83
  %v96 = vmul.f32 %v25, %v83
  %v97 = vmul.f32 %v26, %v83
  %v98 = vmul.f32 %v27, %v83
  %v99 = vmul.f32 %v28, %v83
  %v100 = vmul.f32 %v29, %v83
  %v101 = vmul.f32 %v30, %v83
  %v102 = vmul.f32 %v31, %v83
  %v103 = vmul.f32 %v32, %v83
  %v104 = vmul.f32 %v33, %v83
  %v105 = vmul.f32 %v34, %v83
  %v106 = vmul.f32 %v35, %v83
  %v107 = vmul.f32 %v36, %v83
  %v108 = vmul.f32 %v37, %v83
  %v109 = vmul.f32 %v38, %v83
  %v110 = vmul.f32 %v39, %v83
  %v111 = vmul.f32 %v40, %v83
  %v112 = vmul.f32 %v41, %v83
  %v113 = vmul.f32 %v42, %v83
  %v114 = vmul.f32 %v43, %v83
  %v115 = vmul.f32 %v44, %v83
  %v116 = vmul.f32 %v45, %v83
  %v117 = vmul.f32 %v46, %v83
  %v118 = vmul.f32 %v47, %v83
  %v119 = vmul.f32 %v48, %v83
  %v120 = vmul.f32 %v49, %v83
  %v121 = vmul.f32 %v50, %v83
  %v122 = vmul.f32 %v51, %v83
  %v123 = vmul.f32 %v52, %v83
  %v124 = vmul.f32 %v53, %v83
  %v125 = vmul.f32 %v54, %v83
  %v126 = vmul.f32 %v55, %v83
  %v127 = vmul.f32 %v56, %v83
  %v128 = vmul.f32 %v57, %v83
  %v129 = vmul.f32 %v58, %v83
  %v130 = vmul.f32 %v59, %v83
  %v131 = vmul.f32 %v60, %v83
  %v132 = vmul.f32 %v61, %v83
  %v133 = vmul.f32 %v62, %v83
  %v134 = vmul.f32 %v63, %v83
  %v135 = vmul.f32 %v64, %v83
  %v136 = vmul.f32 %v65, %v83
  %v137 = vmul.f32 %v66, %v83
  %v138 = vmul.f32 %v67, %v83
  %v139 = vmul.f32 %v68, %v83
  %v140 = vmul.f32 %v69, %v83
  %v141 = vmul.f32 %v70, %v83
  %v142 = vmul.f32 %v71, %v83
  %v143 = vmul.f32 %v72, %v83
  %v144 = vmul.f32 %v73, %v83
  %v145 = vmul.f32 %v74, %v83
  %v146 = vmul.f32 %v75, %v83
  %v147 = vmul.f32 %v76, %v83
  %v148 = vmul.f32 %v77, %v83
  %v149 = vld [vmem:[%s2] sm:$0x1]
  %v151 = vlaneseq
  %v152 = vshrl.u32 %v151, 7
  %v153 = vsub.s32 0, %v152
  %v154 = vrot.slane %v149, %v153
  %v156 = vadd.f32 %v85, %v154
  %v157 = vadd.f32 %v86, %v154
  %v158 = vadd.f32 %v87, %v154
  %v159 = vadd.f32 %v88, %v154
  %v160 = vadd.f32 %v89, %v154
  %v161 = vadd.f32 %v90, %v154
  %v162 = vadd.f32 %v91, %v154
  %v163 = vadd.f32 %v92, %v154
  %v164 = vadd.f32 %v93, %v154
  %v165 = vadd.f32 %v94, %v154
  %v166 = vadd.f32 %v95, %v154
  %v167 = vadd.f32 %v96, %v154
  %v168 = vadd.f32 %v97, %v154
  %v169 = vadd.f32 %v98, %v154
  %v170 = vadd.f32 %v99, %v154
  %v171 = vadd.f32 %v100, %v154
  %v172 = vadd.f32 %v101, %v154
  %v173 = vadd.f32 %v102, %v154
  %v174 = vadd.f32 %v103, %v154
  %v175 = vadd.f32 %v104, %v154
  %v176 = vadd.f32 %v105, %v154
  %v177 = vadd.f32 %v106, %v154
  %v178 = vadd.f32 %v107, %v154
  %v179 = vadd.f32 %v108, %v154
  %v180 = vadd.f32 %v109, %v154
  %v181 = vadd.f32 %v110, %v154
  %v182 = vadd.f32 %v111, %v154
  %v183 = vadd.f32 %v112, %v154
  %v184 = vadd.f32 %v113, %v154
  %v185 = vadd.f32 %v114, %v154
  %v186 = vadd.f32 %v115, %v154
  %v187 = vadd.f32 %v116, %v154
  %v188 = vadd.f32 %v117, %v154
  %v189 = vadd.f32 %v118, %v154
  %v190 = vadd.f32 %v119, %v154
  %v191 = vadd.f32 %v120, %v154
  %v192 = vadd.f32 %v121, %v154
  %v193 = vadd.f32 %v122, %v154
  %v194 = vadd.f32 %v123, %v154
  %v195 = vadd.f32 %v124, %v154
  %v196 = vadd.f32 %v125, %v154
  %v197 = vadd.f32 %v126, %v154
  %v198 = vadd.f32 %v127, %v154
  %v199 = vadd.f32 %v128, %v154
  %v200 = vadd.f32 %v129, %v154
  %v201 = vadd.f32 %v130, %v154
  %v202 = vadd.f32 %v131, %v154
  %v203 = vadd.f32 %v132, %v154
  %v204 = vadd.f32 %v133, %v154
  %v205 = vadd.f32 %v134, %v154
  %v206 = vadd.f32 %v135, %v154
  %v207 = vadd.f32 %v136, %v154
  %v208 = vadd.f32 %v137, %v154
  %v209 = vadd.f32 %v138, %v154
  %v210 = vadd.f32 %v139, %v154
  %v211 = vadd.f32 %v140, %v154
  %v212 = vadd.f32 %v141, %v154
  %v213 = vadd.f32 %v142, %v154
  %v214 = vadd.f32 %v143, %v154
  %v215 = vadd.f32 %v144, %v154
  %v216 = vadd.f32 %v145, %v154
  %v217 = vadd.f32 %v146, %v154
  %v218 = vadd.f32 %v147, %v154
  %v219 = vadd.f32 %v148, %v154
  %v220 = vmax.f32 %v156, 0.0
  %v221 = vmax.f32 %v157, 0.0
  %v222 = vmax.f32 %v158, 0.0
  %v223 = vmax.f32 %v159, 0.0
  %v224 = vmax.f32 %v160, 0.0
  %v225 = vmax.f32 %v161, 0.0
  %v226 = vmax.f32 %v162, 0.0
  %v227 = vmax.f32 %v163, 0.0
  %v228 = vmax.f32 %v164, 0.0
  %v229 = vmax.f32 %v165, 0.0
  %v230 = vmax.f32 %v166, 0.0
  %v231 = vmax.f32 %v167, 0.0
  %v232 = vmax.f32 %v168, 0.0
  %v233 = vmax.f32 %v169, 0.0
  %v234 = vmax.f32 %v170, 0.0
  %v235 = vmax.f32 %v171, 0.0
  %v236 = vmax.f32 %v172, 0.0
  %v237 = vmax.f32 %v173, 0.0
  %v238 = vmax.f32 %v174, 0.0
  %v239 = vmax.f32 %v175, 0.0
  %v240 = vmax.f32 %v176, 0.0
  %v241 = vmax.f32 %v177, 0.0
  %v242 = vmax.f32 %v178, 0.0
  %v243 = vmax.f32 %v179, 0.0
  %v244 = vmax.f32 %v180, 0.0
  %v245 = vmax.f32 %v181, 0.0
  %v246 = vmax.f32 %v182, 0.0
  %v247 = vmax.f32 %v183, 0.0
  %v248 = vmax.f32 %v184, 0.0
  %v249 = vmax.f32 %v185, 0.0
  %v250 = vmax.f32 %v186, 0.0
  %v251 = vmax.f32 %v187, 0.0
  %v252 = vmax.f32 %v188, 0.0
  %v253 = vmax.f32 %v189, 0.0
  %v254 = vmax.f32 %v190, 0.0
  %v255 = vmax.f32 %v191, 0.0
  %v256 = vmax.f32 %v192, 0.0
  %v257 = vmax.f32 %v193, 0.0
  %v258 = vmax.f32 %v194, 0.0
  %v259 = vmax.f32 %v195, 0.0
  %v260 = vmax.f32 %v196, 0.0
  %v261 = vmax.f32 %v197, 0.0
  %v262 = vmax.f32 %v198, 0.0
  %v263 = vmax.f32 %v199, 0.0
  %v264 = vmax.f32 %v200, 0.0
  %v265 = vmax.f32 %v201, 0.0
  %v266 = vmax.f32 %v202, 0.0
  %v267 = vmax.f32 %v203, 0.0
  %v268 = vmax.f32 %v204, 0.0
  %v269 = vmax.f32 %v205, 0.0
  %v270 = vmax.f32 %v206, 0.0
  %v271 = vmax.f32 %v207, 0.0
  %v272 = vmax.f32 %v208, 0.0
  %v273 = vmax.f32 %v209, 0.0
  %v274 = vmax.f32 %v210, 0.0
  %v275 = vmax.f32 %v211, 0.0
  %v276 = vmax.f32 %v212, 0.0
  %v277 = vmax.f32 %v213, 0.0
  %v278 = vmax.f32 %v214, 0.0
  %v279 = vmax.f32 %v215, 0.0
  %v280 = vmax.f32 %v216, 0.0
  %v281 = vmax.f32 %v217, 0.0
  %v282 = vmax.f32 %v218, 0.0
  %v283 = vmax.f32 %v219, 0.0
  %vm284 = vcmask 64512
  %285 = vst.msk [vmem:[%s3] sm:$0xff] %vm284, %v220
  %286 = vst.msk [vmem:[%s3 + $0x8] sm:$0xff] %vm284, %v221
  %287 = vst.msk [vmem:[%s3 + $0x10] sm:$0xff] %vm284, %v222
  %288 = vst.msk [vmem:[%s3 + $0x18] sm:$0xff] %vm284, %v223
  %289 = vst.msk [vmem:[%s3 + $0x20] sm:$0xff] %vm284, %v224
  %290 = vst.msk [vmem:[%s3 + $0x28] sm:$0xff] %vm284, %v225
  %291 = vst.msk [vmem:[%s3 + $0x30] sm:$0xff] %vm284, %v226
  %292 = vst.msk [vmem:[%s3 + $0x38] sm:$0xff] %vm284, %v227
  %293 = vst.msk [vmem:[%s3 + $0x40] sm:$0xff] %vm284, %v228
  %294 = vst.msk [vmem:[%s3 + $0x48] sm:$0xff] %vm284, %v229
  %295 = vst.msk [vmem:[%s3 + $0x50] sm:$0xff] %vm284, %v230
  %296 = vst.msk [vmem:[%s3 + $0x58] sm:$0xff] %vm284, %v231
  %297 = vst.msk [vmem:[%s3 + $0x60] sm:$0xff] %vm284, %v232
  %298 = vst.msk [vmem:[%s3 + $0x68] sm:$0xff] %vm284, %v233
  %299 = vst.msk [vmem:[%s3 + $0x70] sm:$0xff] %vm284, %v234
  %300 = vst.msk [vmem:[%s3 + $0x78] sm:$0xff] %vm284, %v235
  %301 = vst.msk [vmem:[%s3 + $0x80] sm:$0xff] %vm284, %v236
  %302 = vst.msk [vmem:[%s3 + $0x88] sm:$0xff] %vm284, %v237
  %303 = vst.msk [vmem:[%s3 + $0x90] sm:$0xff] %vm284, %v238
  %304 = vst.msk [vmem:[%s3 + $0x98] sm:$0xff] %vm284, %v239
  %305 = vst.msk [vmem:[%s3 + $0xa0] sm:$0xff] %vm284, %v240
  %306 = vst.msk [vmem:[%s3 + $0xa8] sm:$0xff] %vm284, %v241
  %307 = vst.msk [vmem:[%s3 + $0xb0] sm:$0xff] %vm284, %v242
  %308 = vst.msk [vmem:[%s3 + $0xb8] sm:$0xff] %vm284, %v243
  %309 = vst.msk [vmem:[%s3 + $0xc0] sm:$0xff] %vm284, %v244
  %310 = vst.msk [vmem:[%s3 + $0xc8] sm:$0xff] %vm284, %v245
  %311 = vst.msk [vmem:[%s3 + $0xd0] sm:$0xff] %vm284, %v246
  %312 = vst.msk [vmem:[%s3 + $0xd8] sm:$0xff] %vm284, %v247
  %313 = vst.msk [vmem:[%s3 + $0xe0] sm:$0xff] %vm284, %v248
  %314 = vst.msk [vmem:[%s3 + $0xe8] sm:$0xff] %vm284, %v249
  %315 = vst.msk [vmem:[%s3 + $0xf0] sm:$0xff] %vm284, %v250
  %316 = vst.msk [vmem:[%s3 + $0xf8] sm:$0xff] %vm284, %v251
  %317 = vst.msk [vmem:[%s3 + $0x100] sm:$0xff] %vm284, %v252
  %318 = vst.msk [vmem:[%s3 + $0x108] sm:$0xff] %vm284, %v253
  %319 = vst.msk [vmem:[%s3 + $0x110] sm:$0xff] %vm284, %v254
  %320 = vst.msk [vmem:[%s3 + $0x118] sm:$0xff] %vm284, %v255
  %321 = vst.msk [vmem:[%s3 + $0x120] sm:$0xff] %vm284, %v256
  %322 = vst.msk [vmem:[%s3 + $0x128] sm:$0xff] %vm284, %v257
  %323 = vst.msk [vmem:[%s3 + $0x130] sm:$0xff] %vm284, %v258
  %324 = vst.msk [vmem:[%s3 + $0x138] sm:$0xff] %vm284, %v259
  %325 = vst.msk [vmem:[%s3 + $0x140] sm:$0xff] %vm284, %v260
  %326 = vst.msk [vmem:[%s3 + $0x148] sm:$0xff] %vm284, %v261
  %327 = vst.msk [vmem:[%s3 + $0x150] sm:$0xff] %vm284, %v262
  %328 = vst.msk [vmem:[%s3 + $0x158] sm:$0xff] %vm284, %v263
  %329 = vst.msk [vmem:[%s3 + $0x160] sm:$0xff] %vm284, %v264
  %330 = vst.msk [vmem:[%s3 + $0x168] sm:$0xff] %vm284, %v265
  %331 = vst.msk [vmem:[%s3 + $0x170] sm:$0xff] %vm284, %v266
  %332 = vst.msk [vmem:[%s3 + $0x178] sm:$0xff] %vm284, %v267
  %333 = vst.msk [vmem:[%s3 + $0x180] sm:$0xff] %vm284, %v268
  %334 = vst.msk [vmem:[%s3 + $0x188] sm:$0xff] %vm284, %v269
  %335 = vst.msk [vmem:[%s3 + $0x190] sm:$0xff] %vm284, %v270
  %336 = vst.msk [vmem:[%s3 + $0x198] sm:$0xff] %vm284, %v271
  %337 = vst.msk [vmem:[%s3 + $0x1a0] sm:$0xff] %vm284, %v272
  %338 = vst.msk [vmem:[%s3 + $0x1a8] sm:$0xff] %vm284, %v273
  %339 = vst.msk [vmem:[%s3 + $0x1b0] sm:$0xff] %vm284, %v274
  %340 = vst.msk [vmem:[%s3 + $0x1b8] sm:$0xff] %vm284, %v275
  %341 = vst.msk [vmem:[%s3 + $0x1c0] sm:$0xff] %vm284, %v276
  %342 = vst.msk [vmem:[%s3 + $0x1c8] sm:$0xff] %vm284, %v277
  %343 = vst.msk [vmem:[%s3 + $0x1d0] sm:$0xff] %vm284, %v278
  %344 = vst.msk [vmem:[%s3 + $0x1d8] sm:$0xff] %vm284, %v279
  %345 = vst.msk [vmem:[%s3 + $0x1e0] sm:$0xff] %vm284, %v280
  %346 = vst.msk [vmem:[%s3 + $0x1e8] sm:$0xff] %vm284, %v281
  %347 = vst.msk [vmem:[%s3 + $0x1f0] sm:$0xff] %vm284, %v282
  %348 = vst.msk [vmem:[%s3 + $0x1f8] sm:$0xff] %vm284, %v283
  // Predicated region
  $region14: #{spade_resnet_forward.48} parent=0 // pred_check
    _
  $region15: #{spade_resnet_forward.48} parent=0 // pred_check_branch
    %350 = sbr.rel (0) target = $region17
  $region16: #{spade_resnet_forward.48} parent=0 // pred_region
    _
  $region17: #{spade_resnet_forward.48} parent=0 // pred_fallthru
    _
  // Predicated region
  $region18: #{spade_resnet_forward.48} parent=0 // pred_check
    _
  $region19: #{spade_resnet_forward.48} parent=0 // pred_check_branch
    %352 = sbr.rel (0) target = $region21
  $region20: #{spade_resnet_forward.48} parent=0 // pred_region
    _
  $region21: #{spade_resnet_forward.48} parent=0 // pred_fallthru
    _

// kernel: spade_resnet_forward.50
$region0: #{spade_resnet_forward.50}
  #allocation0 [shape = 'u32[]', space=smem, size = 0x4, offset = 0x4, fixed_abs, tag = 'smem constant byte address 0x4 - core index']
  #allocation1 [shape = 'u32[144,128]{1,0:T(1,128)}', space=vmem, size = 0x12000, scoped, tag = 'internal scratch']
  #allocation2 [shape = 'f32[1,16]{1,0:T(1,128)}', space=vmem, size = 0x200, scoped, tag = 'scratch operand']
  #allocation3 [shape = 'f32[1,16]{1,0:T(1,128)}', space=vmem, size = 0x200, scoped, tag = 'scratch operand']
  %s0 = inlined_call_operand.vmem [shape: f32[128,16], index: 0, kind: input, shape index: {}]
  %s1 = inlined_call_operand.vmem [shape: f32[1,16], index: 1, kind: input, shape index: {}]
  %s2 = inlined_call_operand.vmem [shape: f32[1,16], index: 2, kind: input, shape index: {}]
  %s3 = inlined_call_operand.vmem [shape: f32[1,16], index: 3, kind: output, shape index: {0}]
  %s4 = inlined_call_operand.vmem [shape: f32[1,16], index: 4, kind: output, shape index: {1}]
  %5 = xla_tuple %s3, %s4
  %s6 = sld [smem:[#allocation0]]
  $region38: #{spade_resnet_forward.50} parent=0
    _
  %s8 = ssub.s32 1, %s6
  %s9 = scalar_select 0, %s8, %s6
  // Predicated region
  $region2: #{spade_resnet_forward.50} parent=0 // pred_check
    _
  $region3: #{spade_resnet_forward.50} parent=0 // pred_check_branch
    %11 = sbr.rel (0) target = $region5
  $region4: #{spade_resnet_forward.50} parent=0 // pred_region
    _
  $region5: #{spade_resnet_forward.50} parent=0 // pred_fallthru
    _
  // Predicated region
  $region6: #{spade_resnet_forward.50} parent=0 // pred_check
    _
  $region7: #{spade_resnet_forward.50} parent=0 // pred_check_branch
    %13 = sbr.rel (0) target = $region9
  $region8: #{spade_resnet_forward.50} parent=0 // pred_region
    _
  $region9: #{spade_resnet_forward.50} parent=0 // pred_fallthru
    _
  // Predicated region
  $region10: #{spade_resnet_forward.50} parent=0 // pred_check
    _
  $region11: #{spade_resnet_forward.50} parent=0 // pred_check_branch
    %15 = sbr.rel (0) target = $region13
  $region12: #{spade_resnet_forward.50} parent=0 // pred_region
    _
  $region13: #{spade_resnet_forward.50} parent=0 // pred_fallthru
    _
  %p16 = scmp.eq.s32.totalorder 0, 0
  // Predicated region
  $region14: #{spade_resnet_forward.50} parent=0 // pred_check
    %p17 = pneg %p16
  $region15: #{spade_resnet_forward.50} parent=0 // pred_check_branch
    %19 = sbr.rel (%p17) target = $region17
  $region16: #{spade_resnet_forward.50} parent=0 // pred_region
    %vm20 = vcmask 122880
    %21 = vst.msk [vmem:[#allocation2] sm:$0x1] %vm20, 0.0
    %22 = vst.msk [vmem:[#allocation3] sm:$0x1] %vm20, 0.0
  $region17: #{spade_resnet_forward.50} parent=0 // pred_fallthru
    _
  %v23 = vld [vmem:[%s0] sm:$0xff]
  %v24 = vld [vmem:[%s0 + $0x8] sm:$0xff]
  %v25 = vld [vmem:[%s0 + $0x10] sm:$0xff]
  %v26 = vld [vmem:[%s0 + $0x18] sm:$0xff]
  %v27 = vld [vmem:[%s0 + $0x20] sm:$0xff]
  %v28 = vld [vmem:[%s0 + $0x28] sm:$0xff]
  %v29 = vld [vmem:[%s0 + $0x30] sm:$0xff]
  %v30 = vld [vmem:[%s0 + $0x38] sm:$0xff]
  %v31 = vld [vmem:[%s0 + $0x40] sm:$0xff]
  %v32 = vld [vmem:[%s0 + $0x48] sm:$0xff]
  %v33 = vld [vmem:[%s0 + $0x50] sm:$0xff]
  %v34 = vld [vmem:[%s0 + $0x58] sm:$0xff]
  %v35 = vld [vmem:[%s0 + $0x60] sm:$0xff]
  %v36 = vld [vmem:[%s0 + $0x68] sm:$0xff]
  %v37 = vld [vmem:[%s0 + $0x70] sm:$0xff]
  %v38 = vld [vmem:[%s0 + $0x78] sm:$0xff]
  %v39 = vld [vmem:[#allocation2] sm:$0x1]
  %vm40 = vcmask 130048
  %v41 = vsel %vm40, %v23, 0.0
  %v42 = vsel %vm40, %v24, 0.0
  %v43 = vadd.f32 %v41, %v42
  %v44 = vsel %vm40, %v25, 0.0
  %v45 = vadd.f32 %v43, %v44
  %v46 = vsel %vm40, %v26, 0.0
  %v47 = vadd.f32 %v45, %v46
  %v48 = vsel %vm40, %v27, 0.0
  %v49 = vadd.f32 %v47, %v48
  %v50 = vsel %vm40, %v28, 0.0
  %v51 = vadd.f32 %v49, %v50
  %v52 = vsel %vm40, %v29, 0.0
  %v53 = vadd.f32 %v51, %v52
  %v54 = vsel %vm40, %v30, 0.0
  %v55 = vadd.f32 %v53, %v54
  %v56 = vsel %vm40, %v31, 0.0
  %v57 = vadd.f32 %v55, %v56
  %v58 = vsel %vm40, %v32, 0.0
  %v59 = vadd.f32 %v57, %v58
  %v60 = vsel %vm40, %v33, 0.0
  %v61 = vadd.f32 %v59, %v60
  %v62 = vsel %vm40, %v34, 0.0
  %v63 = vadd.f32 %v61, %v62
  %v64 = vsel %vm40, %v35, 0.0
  %v65 = vadd.f32 %v63, %v64
  %v66 = vsel %vm40, %v36, 0.0
  %v67 = vadd.f32 %v65, %v66
  %v68 = vsel %vm40, %v37, 0.0
  %v69 = vadd.f32 %v67, %v68
  %v70 = vsel %vm40, %v38, 0.0
  %v71 = vadd.f32 %v69, %v70
  %v72 = vrot.slane %v71, 4
  %v73 = vadd.f32 %v71, %v72
  %v74 = vrot.slane %v73, 2
  %v75 = vadd.f32 %v73, %v74
  %v76 = vrot.slane %v75, 1
  %v77 = vadd.f32 %v75, %v76
  %v78 = vadd.f32 %v39, %v77
  %vm79 = vcmask 122880
  %80 = vst.msk [vmem:[#allocation2] sm:$0x1] %vm79, %v78
  %v81 = vld [vmem:[#allocation3] sm:$0x1]
  %v82 = vmul.f32 %v23, %v23
  %v83 = vmul.f32 %v24, %v24
  %v84 = vmul.f32 %v25, %v25
  %v85 = vmul.f32 %v26, %v26
  %v86 = vmul.f32 %v27, %v27
  %v87 = vmul.f32 %v28, %v28
  %v88 = vmul.f32 %v29, %v29
  %v89 = vmul.f32 %v30, %v30
  %v90 = vmul.f32 %v31, %v31
  %v91 = vmul.f32 %v32, %v32
  %v92 = vmul.f32 %v33, %v33
  %v93 = vmul.f32 %v34, %v34
  %v94 = vmul.f32 %v35, %v35
  %v95 = vmul.f32 %v36, %v36
  %v96 = vmul.f32 %v37, %v37
  %v97 = vmul.f32 %v38, %v38
  %v98 = vsel %vm40, %v82, 0.0
  %v99 = vsel %vm40, %v83, 0.0
  %v100 = vadd.f32 %v98, %v99
  %v101 = vsel %vm40, %v84, 0.0
  %v102 = vadd.f32 %v100, %v101
  %v103 = vsel %vm40, %v85, 0.0
  %v104 = vadd.f32 %v102, %v103
  %v105 = vsel %vm40, %v86, 0.0
  %v106 = vadd.f32 %v104, %v105
  %v107 = vsel %vm40, %v87, 0.0
  %v108 = vadd.f32 %v106, %v107
  %v109 = vsel %vm40, %v88, 0.0
  %v110 = vadd.f32 %v108, %v109
  %v111 = vsel %vm40, %v89, 0.0
  %v112 = vadd.f32 %v110, %v111
  %v113 = vsel %vm40, %v90, 0.0
  %v114 = vadd.f32 %v112, %v113
  %v115 = vsel %vm40, %v91, 0.0
  %v116 = vadd.f32 %v114, %v115
  %v117 = vsel %vm40, %v92, 0.0
  %v118 = vadd.f32 %v116, %v117
  %v119 = vsel %vm40, %v93, 0.0
  %v120 = vadd.f32 %v118, %v119
  %v121 = vsel %vm40, %v94, 0.0
  %v122 = vadd.f32 %v120, %v121
  %v123 = vsel %vm40, %v95, 0.0
  %v124 = vadd.f32 %v122, %v123
  %v125 = vsel %vm40, %v96, 0.0
  %v126 = vadd.f32 %v124, %v125
  %v127 = vsel %vm40, %v97, 0.0
  %v128 = vadd.f32 %v126, %v127
  %v129 = vrot.slane %v128, 4
  %v130 = vadd.f32 %v128, %v129
  %v131 = vrot.slane %v130, 2
  %v132 = vadd.f32 %v130, %v131
  %v133 = vrot.slane %v132, 1
  %v134 = vadd.f32 %v132, %v133
  %v135 = vadd.f32 %v81, %v134
  %136 = vst.msk [vmem:[#allocation3] sm:$0x1] %vm79, %v135
  // Predicated region
  $region18: #{spade_resnet_forward.50} parent=0 // pred_check
    %p137 = pneg %p16
  $region19: #{spade_resnet_forward.50} parent=0 // pred_check_branch
    %139 = sbr.rel (%p137) target = $region21
  $region20: #{spade_resnet_forward.50} parent=0 // pred_region
    %v140 = vld [vmem:[#allocation2] sm:$0x1]
    %v141 = vmul.f32 %v140, 0.0078125
    %v142 = vld [vmem:[#allocation3] sm:$0x1]
    %v143 = vmul.f32 %v142, 0.0078125
    %v144 = vmul.f32 %v141, %v141
    %v145 = vsub.f32 %v143, %v144
    %v146 = vld [vmem:[%s1] sm:$0x1]
    %v147 = vadd.f32 %v145, 1e-05
    %v148 = vrsqrt.pop %v147
    %v149 = vmul.f32 %v146, %v148
    %150 = vst.msk [vmem:[%s3] sm:$0x1] %vm79, %v149
    %v151 = vld [vmem:[%s2] sm:$0x1]
    %v152 = vmul.f32 %v141, %v149
    %v153 = vsub.f32 %v151, %v152
    %154 = vst.msk [vmem:[%s4] sm:$0x1] %vm79, %v153
  $region21: #{spade_resnet_forward.50} parent=0 // pred_fallthru
    _
  // Predicated region
  $region22: #{spade_resnet_forward.50} parent=0 // pred_check
    _
  $region23: #{spade_resnet_forward.50} parent=0 // pred_check_branch
    %156 = sbr.rel (0) target = $region25
  $region24: #{spade_resnet_forward.50} parent=0 // pred_region
    _
  $region25: #{spade_resnet_forward.50} parent=0 // pred_fallthru
    _
  // Predicated region
  $region26: #{spade_resnet_forward.50} parent=0 // pred_check
    _
  $region27: #{spade_resnet_forward.50} parent=0 // pred_check_branch
    %158 = sbr.rel (0) target = $region29
  $region28: #{spade_resnet_forward.50} parent=0 // pred_region
    _
  $region29: #{spade_resnet_forward.50} parent=0 // pred_fallthru
    _
  // Predicated region
  $region30: #{spade_resnet_forward.50} parent=0 // pred_check
    _
  $region31: #{spade_resnet_forward.50} parent=0 // pred_check_branch
    %160 = sbr.rel (0) target = $region33
  $region32: #{spade_resnet_forward.50} parent=0 // pred_region
    _
  $region33: #{spade_resnet_forward.50} parent=0 // pred_fallthru
    _
  // Predicated region
  $region34: #{spade_resnet_forward.50} parent=0 // pred_check
    _
  $region35: #{spade_resnet_forward.50} parent=0 // pred_check_branch
    %162 = sbr.rel (0) target = $region37
  $region36: #{spade_resnet_forward.50} parent=0 // pred_region
    _
  $region37: #{spade_resnet_forward.50} parent=0 // pred_fallthru
    _

// kernel: spade_resnet_forward.49
$region0: #{spade_resnet_forward.49}
  #allocation0 [shape = 'u32[]', space=smem, size = 0x4, offset = 0x4, fixed_abs, tag = 'smem constant byte address 0x4 - core index']
  #allocation1 [shape = 'u32[144,128]{1,0:T(1,128)}', space=vmem, size = 0x12000, scoped, tag = 'internal scratch']
  %s0 = inlined_call_operand.vmem [shape: bf16[128,80], index: 0, kind: input, shape index: {}]
  %s1 = inlined_call_operand.vmem [shape: bf16[80,16], index: 1, kind: input, shape index: {}]
  %s2 = inlined_call_operand.vmem [shape: f32[1,16], index: 2, kind: input, shape index: {}]
  %s3 = inlined_call_operand.vmem [shape: f32[128,16], index: 3, kind: output, shape index: {}]
  %s4 = sld [smem:[#allocation0]]
  $region22: #{spade_resnet_forward.49} parent=0
    _
  %s6 = ssub.s32 1, %s4
  %s7 = scalar_select 0, %s6, %s4
  // Predicated region
  $region2: #{spade_resnet_forward.49} parent=0 // pred_check
    _
  $region3: #{spade_resnet_forward.49} parent=0 // pred_check_branch
    %9 = sbr.rel (0) target = $region5
  $region4: #{spade_resnet_forward.49} parent=0 // pred_region
    _
  $region5: #{spade_resnet_forward.49} parent=0 // pred_fallthru
    _
  // Predicated region
  $region6: #{spade_resnet_forward.49} parent=0 // pred_check
    _
  $region7: #{spade_resnet_forward.49} parent=0 // pred_check_branch
    %11 = sbr.rel (0) target = $region9
  $region8: #{spade_resnet_forward.49} parent=0 // pred_region
    _
  $region9: #{spade_resnet_forward.49} parent=0 // pred_fallthru
    _
  // Predicated region
  $region10: #{spade_resnet_forward.49} parent=0 // pred_check
    _
  $region11: #{spade_resnet_forward.49} parent=0 // pred_check_branch
    %13 = sbr.rel (0) target = $region13
  $region12: #{spade_resnet_forward.49} parent=0 // pred_region
    _
  $region13: #{spade_resnet_forward.49} parent=0 // pred_fallthru
    _
  %v15 = vld [vmem:[%s0] sm:$0xf]
  %v16 = vld [vmem:[%s0 + $0x4] sm:$0xf]
  %v17 = vld [vmem:[%s0 + $0x8] sm:$0xf]
  %v18 = vld [vmem:[%s0 + $0xc] sm:$0xf]
  %v19 = vld [vmem:[%s0 + $0x10] sm:$0xf]
  %v20 = vld [vmem:[%s0 + $0x14] sm:$0xf]
  %v21 = vld [vmem:[%s0 + $0x18] sm:$0xf]
  %v22 = vld [vmem:[%s0 + $0x1c] sm:$0xf]
  %v23 = vld [vmem:[%s0 + $0x20] sm:$0xf]
  %v24 = vld [vmem:[%s0 + $0x24] sm:$0xf]
  %v25 = vld [vmem:[%s0 + $0x28] sm:$0xf]
  %v26 = vld [vmem:[%s0 + $0x2c] sm:$0xf]
  %v27 = vld [vmem:[%s0 + $0x30] sm:$0xf]
  %v28 = vld [vmem:[%s0 + $0x34] sm:$0xf]
  %v29 = vld [vmem:[%s0 + $0x38] sm:$0xf]
  %v30 = vld [vmem:[%s0 + $0x3c] sm:$0xf]
  %v31 = vld [vmem:[%s1] sm:$0xf]
  %v32 = vld [vmem:[%s1 + $0x4] sm:$0xf]
  %v33 = vld [vmem:[%s1 + $0x8] sm:$0xf]
  %v34 = vld [vmem:[%s1 + $0xc] sm:$0xf]
  %v35 = vld [vmem:[%s1 + $0x10] sm:$0xf]
  %v36 = vld [vmem:[%s1 + $0x14] sm:$0xf]
  %v37 = vld [vmem:[%s1 + $0x18] sm:$0xf]
  %v38 = vld [vmem:[%s1 + $0x1c] sm:$0xf]
  %v39 = vld [vmem:[%s1 + $0x20] sm:$0xf]
  %v40 = vld [vmem:[%s1 + $0x24] sm:$0xf]
  %v41 = vld [vmem:[%s2] sm:$0x1]
  %v43 = vlaneseq
  %v44 = vshrl.u32 %v43, 7
  %v45 = vsub.s32 0, %v44
  %v46 = vrot.slane %v41, %v45
  %v64 = vunpack.c.l.b16 %v15
  %v65 = vunpack.c.l.b16 %v16
  %v66 = vunpack.c.l.b16 %v17
  %v67 = vunpack.c.l.b16 %v18
  %v68 = vunpack.c.l.b16 %v19
  %v69 = vunpack.c.l.b16 %v20
  %v70 = vunpack.c.l.b16 %v21
  %v71 = vunpack.c.l.b16 %v22
  %v72 = vunpack.c.l.b16 %v23
  %v73 = vunpack.c.l.b16 %v24
  %v74 = vunpack.c.l.b16 %v25
  %v75 = vunpack.c.l.b16 %v26
  %v76 = vunpack.c.l.b16 %v27
  %v77 = vunpack.c.l.b16 %v28
  %v78 = vunpack.c.l.b16 %v29
  %v79 = vunpack.c.l.b16 %v30
  %v80 = vpack.c.b16 %v65, %v64
  %v81 = vpack.c.b16 %v67, %v66
  %v82 = vpack.c.b16 %v69, %v68
  %v83 = vpack.c.b16 %v71, %v70
  %v84 = vpack.c.b16 %v73, %v72
  %v85 = vpack.c.b16 %v75, %v74
  %v86 = vpack.c.b16 %v77, %v76
  %v87 = vpack.c.b16 %v79, %v78
  %v98 = vunpack.c.l.b16 %v31
  %v99 = vunpack.c.l.b16 %v32
  %v100 = vunpack.c.l.b16 %v33
  %v101 = vunpack.c.l.b16 %v34
  %v102 = vunpack.c.l.b16 %v35
  %v103 = vunpack.c.l.b16 %v36
  %v104 = vunpack.c.l.b16 %v37
  %v105 = vunpack.c.l.b16 %v38
  %v106 = vunpack.c.l.b16 %v39
  %v107 = vunpack.c.l.b16 %v40
  %v108 = vpack.c.b16 %v99, %v98
  %v109 = vpack.c.b16 %v101, %v100
  %v110 = vpack.c.b16 %v103, %v102
  %v111 = vpack.c.b16 %v105, %v104
  %v112 = vpack.c.b16 %v107, %v106
  %vm118 = vcmask 654336
  %v120 = vsel %vm118, %v80, 0
  %v123 = vsel %vm118, %v81, 0
  %v126 = vsel %vm118, %v82, 0
  %v129 = vsel %vm118, %v83, 0
  %v132 = vsel %vm118, %v84, 0
  %v135 = vsel %vm118, %v85, 0
  %v138 = vsel %vm118, %v86, 0
  %v141 = vsel %vm118, %v87, 0
  %143 = vmatprep.subr.bf16.mxu0 0
  %144 = vmatpush1.bf16.msra.mxu0 0
  %145 = vmatprep.subr.bf16.mxu0 0
  %146 = vmatpush1.bf16.msra.mxu0 0
  %147 = vmatprep.subr.bf16.mxu0 0
  %148 = vmatpush1.bf16.msra.mxu0 0
  %149 = vmatprep.subr.bf16.mxu0 0
  %150 = vmatpush1.bf16.msra.mxu0 %v112
  %151 = vmatprep.subr.bf16.mxu0 0
  %152 = vmatpush1.bf16.msra.mxu0 %v111
  %153 = vmatprep.subr.bf16.mxu0 0
  %154 = vmatpush1.bf16.msra.mxu0 %v110
  %155 = vmatprep.subr.bf16.mxu0 0
  %156 = vmatpush1.bf16.msra.mxu0 %v109
  %157 = vmatprep.subr.bf16.mxu0 0
  %158 = vmatpush1.bf16.msra.mxu0 %v108
  %159 = vmatprep.subr.bf16.mxu0 0
  %160 = vmatpush2.bf16.msra.mxu0 0
  %161 = vmatprep.subr.bf16.mxu0 0
  %162 = vmatpush2.bf16.msra.mxu0 0
  %163 = vmatprep.subr.bf16.mxu0 0
  %164 = vmatpush2.bf16.msra.mxu0 0
  %165 = vmatprep.subr.bf16.mxu0 0
  %166 = vmatpush2.bf16.msra.mxu0 0
  %167 = vmatprep.subr.bf16.mxu0 0
  %168 = vmatpush2.bf16.msra.mxu0 0
  %169 = vmatprep.subr.bf16.mxu0 0
  %170 = vmatpush2.bf16.msra.mxu0 0
  %171 = vmatprep.subr.bf16.mxu0 0
  %172 = vmatpush2.bf16.msra.mxu0 0
  %173 = vmatprep.subr.bf16.mxu0 0
  %174 = vmatpush2.bf16.msra.mxu0 0
  %175 = vmatprep.mubr.bf16.mxu0 0
  %176 = vmatmul.mubr.bf16.gmra.mxu0 %v120
  %v177 = vpop.f32.mrf.mxu0
  %v178 = vadd.f32 %v46, %v177
  %v179 = vpop.f32.mrf.mxu0
  %v180 = vpop.f32.mrf.mxu0
  %v181 = vadd.f32 %v46, %v180
  %v182 = vpop.f32.mrf.mxu0
  %183 = vmatprep.mubr.bf16.mxu0 0
  %184 = vmatmul.mubr.bf16.gmra.mxu0 %v123
  %v185 = vpop.f32.mrf.mxu0
  %v186 = vadd.f32 %v46, %v185
  %v187 = vpop.f32.mrf.mxu0
  %v188 = vpop.f32.mrf.mxu0
  %v189 = vadd.f32 %v46, %v188
  %v190 = vpop.f32.mrf.mxu0
  %191 = vmatprep.mubr.bf16.mxu0 0
  %192 = vmatmul.mubr.bf16.gmra.mxu0 %v126
  %v193 = vpop.f32.mrf.mxu0
  %v194 = vadd.f32 %v46, %v193
  %v195 = vpop.f32.mrf.mxu0
  %v196 = vpop.f32.mrf.mxu0
  %v197 = vadd.f32 %v46, %v196
  %v198 = vpop.f32.mrf.mxu0
  %199 = vmatprep.mubr.bf16.mxu0 0
  %200 = vmatmul.mubr.bf16.gmra.mxu0 %v129
  %v201 = vpop.f32.mrf.mxu0
  %v202 = vadd.f32 %v46, %v201
  %v203 = vpop.f32.mrf.mxu0
  %v204 = vpop.f32.mrf.mxu0
  %v205 = vadd.f32 %v46, %v204
  %v206 = vpop.f32.mrf.mxu0
  %207 = vmatprep.mubr.bf16.mxu0 0
  %208 = vmatmul.mubr.bf16.gmra.mxu0 %v132
  %v209 = vpop.f32.mrf.mxu0
  %v210 = vadd.f32 %v46, %v209
  %v211 = vpop.f32.mrf.mxu0
  %v212 = vpop.f32.mrf.mxu0
  %v213 = vadd.f32 %v46, %v212
  %v214 = vpop.f32.mrf.mxu0
  %215 = vmatprep.mubr.bf16.mxu0 0
  %216 = vmatmul.mubr.bf16.gmra.mxu0 %v135
  %v217 = vpop.f32.mrf.mxu0
  %v218 = vadd.f32 %v46, %v217
  %v219 = vpop.f32.mrf.mxu0
  %v220 = vpop.f32.mrf.mxu0
  %v221 = vadd.f32 %v46, %v220
  %v222 = vpop.f32.mrf.mxu0
  %223 = vmatprep.mubr.bf16.mxu0 0
  %224 = vmatmul.mubr.bf16.gmra.mxu0 %v138
  %v225 = vpop.f32.mrf.mxu0
  %v226 = vadd.f32 %v46, %v225
  %v227 = vpop.f32.mrf.mxu0
  %v228 = vpop.f32.mrf.mxu0
  %v229 = vadd.f32 %v46, %v228
  %v230 = vpop.f32.mrf.mxu0
  %231 = vmatprep.mubr.bf16.mxu0 0
  %232 = vmatmul.mubr.bf16.gmra.mxu0 %v141
  %v233 = vpop.f32.mrf.mxu0
  %v234 = vadd.f32 %v46, %v233
  %v235 = vpop.f32.mrf.mxu0
  %v236 = vpop.f32.mrf.mxu0
  %v237 = vadd.f32 %v46, %v236
  %v238 = vpop.f32.mrf.mxu0
  %239 = vdwg.mxu0
  %vm240 = vcmask 130048
  %241 = vst.msk [vmem:[%s3] sm:$0xff] %vm240, %v178
  %242 = vst.msk [vmem:[%s3 + $0x8] sm:$0xff] %vm240, %v181
  %243 = vst.msk [vmem:[%s3 + $0x10] sm:$0xff] %vm240, %v186
  %244 = vst.msk [vmem:[%s3 + $0x18] sm:$0xff] %vm240, %v189
  %245 = vst.msk [vmem:[%s3 + $0x20] sm:$0xff] %vm240, %v194
  %246 = vst.msk [vmem:[%s3 + $0x28] sm:$0xff] %vm240, %v197
  %247 = vst.msk [vmem:[%s3 + $0x30] sm:$0xff] %vm240, %v202
  %248 = vst.msk [vmem:[%s3 + $0x38] sm:$0xff] %vm240, %v205
  %249 = vst.msk [vmem:[%s3 + $0x40] sm:$0xff] %vm240, %v210
  %250 = vst.msk [vmem:[%s3 + $0x48] sm:$0xff] %vm240, %v213
  %251 = vst.msk [vmem:[%s3 + $0x50] sm:$0xff] %vm240, %v218
  %252 = vst.msk [vmem:[%s3 + $0x58] sm:$0xff] %vm240, %v221
  %253 = vst.msk [vmem:[%s3 + $0x60] sm:$0xff] %vm240, %v226
  %254 = vst.msk [vmem:[%s3 + $0x68] sm:$0xff] %vm240, %v229
  %255 = vst.msk [vmem:[%s3 + $0x70] sm:$0xff] %vm240, %v234
  %256 = vst.msk [vmem:[%s3 + $0x78] sm:$0xff] %vm240, %v237
  // Predicated region
  $region14: #{spade_resnet_forward.49} parent=0 // pred_check
    _
  $region15: #{spade_resnet_forward.49} parent=0 // pred_check_branch
    %258 = sbr.rel (0) target = $region17
  $region16: #{spade_resnet_forward.49} parent=0 // pred_region
    _
  $region17: #{spade_resnet_forward.49} parent=0 // pred_fallthru
    _
  // Predicated region
  $region18: #{spade_resnet_forward.49} parent=0 // pred_check
    _
  $region19: #{spade_resnet_forward.49} parent=0 // pred_check_branch
    %260 = sbr.rel (0) target = $region21
  $region20: #{spade_resnet_forward.49} parent=0 // pred_region
    _
  $region21: #{spade_resnet_forward.49} parent=0 // pred_fallthru
    _

// kernel: spade_resnet_forward.51
$region0: #{spade_resnet_forward.51}
  #allocation0 [shape = 'u32[]', space=smem, size = 0x4, offset = 0x4, fixed_abs, tag = 'smem constant byte address 0x4 - core index']
  #allocation1 [shape = 'u32[144,128]{1,0:T(1,128)}', space=vmem, size = 0x12000, scoped, tag = 'internal scratch']
  %s0 = inlined_call_operand.vmem [shape: f32[128,16], index: 0, kind: input, shape index: {}]
  %s1 = inlined_call_operand.vmem [shape: f32[1,16], index: 1, kind: input, shape index: {}]
  %s2 = inlined_call_operand.vmem [shape: f32[1,16], index: 2, kind: input, shape index: {}]
  %s3 = inlined_call_operand.vmem [shape: f32[128,16], index: 3, kind: output, shape index: {}]
  %s4 = sld [smem:[#allocation0]]
  $region22: #{spade_resnet_forward.51} parent=0
    _
  %s6 = ssub.s32 1, %s4
  %s7 = scalar_select 0, %s6, %s4
  // Predicated region
  $region2: #{spade_resnet_forward.51} parent=0 // pred_check
    _
  $region3: #{spade_resnet_forward.51} parent=0 // pred_check_branch
    %9 = sbr.rel (0) target = $region5
  $region4: #{spade_resnet_forward.51} parent=0 // pred_region
    _
  $region5: #{spade_resnet_forward.51} parent=0 // pred_fallthru
    _
  // Predicated region
  $region6: #{spade_resnet_forward.51} parent=0 // pred_check
    _
  $region7: #{spade_resnet_forward.51} parent=0 // pred_check_branch
    %11 = sbr.rel (0) target = $region9
  $region8: #{spade_resnet_forward.51} parent=0 // pred_region
    _
  $region9: #{spade_resnet_forward.51} parent=0 // pred_fallthru
    _
  // Predicated region
  $region10: #{spade_resnet_forward.51} parent=0 // pred_check
    _
  $region11: #{spade_resnet_forward.51} parent=0 // pred_check_branch
    %13 = sbr.rel (0) target = $region13
  $region12: #{spade_resnet_forward.51} parent=0 // pred_region
    _
  $region13: #{spade_resnet_forward.51} parent=0 // pred_fallthru
    _
  %v14 = vld [vmem:[%s0] sm:$0xff]
  %v15 = vld [vmem:[%s0 + $0x8] sm:$0xff]
  %v16 = vld [vmem:[%s0 + $0x10] sm:$0xff]
  %v17 = vld [vmem:[%s0 + $0x18] sm:$0xff]
  %v18 = vld [vmem:[%s0 + $0x20] sm:$0xff]
  %v19 = vld [vmem:[%s0 + $0x28] sm:$0xff]
  %v20 = vld [vmem:[%s0 + $0x30] sm:$0xff]
  %v21 = vld [vmem:[%s0 + $0x38] sm:$0xff]
  %v22 = vld [vmem:[%s0 + $0x40] sm:$0xff]
  %v23 = vld [vmem:[%s0 + $0x48] sm:$0xff]
  %v24 = vld [vmem:[%s0 + $0x50] sm:$0xff]
  %v25 = vld [vmem:[%s0 + $0x58] sm:$0xff]
  %v26 = vld [vmem:[%s0 + $0x60] sm:$0xff]
  %v27 = vld [vmem:[%s0 + $0x68] sm:$0xff]
  %v28 = vld [vmem:[%s0 + $0x70] sm:$0xff]
  %v29 = vld [vmem:[%s0 + $0x78] sm:$0xff]
  %v30 = vld [vmem:[%s1] sm:$0x1]
  %v32 = vlaneseq
  %v33 = vshrl.u32 %v32, 7
  %v34 = vsub.s32 0, %v33
  %v35 = vrot.slane %v30, %v34
  %v37 = vmul.f32 %v14, %v35
  %v38 = vmul.f32 %v15, %v35
  %v39 = vmul.f32 %v16, %v35
  %v40 = vmul.f32 %v17, %v35
  %v41 = vmul.f32 %v18, %v35
  %v42 = vmul.f32 %v19, %v35
  %v43 = vmul.f32 %v20, %v35
  %v44 = vmul.f32 %v21, %v35
  %v45 = vmul.f32 %v22, %v35
  %v46 = vmul.f32 %v23, %v35
  %v47 = vmul.f32 %v24, %v35
  %v48 = vmul.f32 %v25, %v35
  %v49 = vmul.f32 %v26, %v35
  %v50 = vmul.f32 %v27, %v35
  %v51 = vmul.f32 %v28, %v35
  %v52 = vmul.f32 %v29, %v35
  %v53 = vld [vmem:[%s2] sm:$0x1]
  %v55 = vlaneseq
  %v56 = vshrl.u32 %v55, 7
  %v57 = vsub.s32 0, %v56
  %v58 = vrot.slane %v53, %v57
  %v60 = vadd.f32 %v37, %v58
  %v61 = vadd.f32 %v38, %v58
  %v62 = vadd.f32 %v39, %v58
  %v63 = vadd.f32 %v40, %v58
  %v64 = vadd.f32 %v41, %v58
  %v65 = vadd.f32 %v42, %v58
  %v66 = vadd.f32 %v43, %v58
  %v67 = vadd.f32 %v44, %v58
  %v68 = vadd.f32 %v45, %v58
  %v69 = vadd.f32 %v46, %v58
  %v70 = vadd.f32 %v47, %v58
  %v71 = vadd.f32 %v48, %v58
  %v72 = vadd.f32 %v49, %v58
  %v73 = vadd.f32 %v50, %v58
  %v74 = vadd.f32 %v51, %v58
  %v75 = vadd.f32 %v52, %v58
  %v76 = vmax.f32 %v60, 0.0
  %v77 = vmax.f32 %v61, 0.0
  %v78 = vmax.f32 %v62, 0.0
  %v79 = vmax.f32 %v63, 0.0
  %v80 = vmax.f32 %v64, 0.0
  %v81 = vmax.f32 %v65, 0.0
  %v82 = vmax.f32 %v66, 0.0
  %v83 = vmax.f32 %v67, 0.0
  %v84 = vmax.f32 %v68, 0.0
  %v85 = vmax.f32 %v69, 0.0
  %v86 = vmax.f32 %v70, 0.0
  %v87 = vmax.f32 %v71, 0.0
  %v88 = vmax.f32 %v72, 0.0
  %v89 = vmax.f32 %v73, 0.0
  %v90 = vmax.f32 %v74, 0.0
  %v91 = vmax.f32 %v75, 0.0
  %vm92 = vcmask 130048
  %93 = vst.msk [vmem:[%s3] sm:$0xff] %vm92, %v76
  %94 = vst.msk [vmem:[%s3 + $0x8] sm:$0xff] %vm92, %v77
  %95 = vst.msk [vmem:[%s3 + $0x10] sm:$0xff] %vm92, %v78
  %96 = vst.msk [vmem:[%s3 + $0x18] sm:$0xff] %vm92, %v79
  %97 = vst.msk [vmem:[%s3 + $0x20] sm:$0xff] %vm92, %v80
  %98 = vst.msk [vmem:[%s3 + $0x28] sm:$0xff] %vm92, %v81
  %99 = vst.msk [vmem:[%s3 + $0x30] sm:$0xff] %vm92, %v82
  %100 = vst.msk [vmem:[%s3 + $0x38] sm:$0xff] %vm92, %v83
  %101 = vst.msk [vmem:[%s3 + $0x40] sm:$0xff] %vm92, %v84
  %102 = vst.msk [vmem:[%s3 + $0x48] sm:$0xff] %vm92, %v85
  %103 = vst.msk [vmem:[%s3 + $0x50] sm:$0xff] %vm92, %v86
  %104 = vst.msk [vmem:[%s3 + $0x58] sm:$0xff] %vm92, %v87
  %105 = vst.msk [vmem:[%s3 + $0x60] sm:$0xff] %vm92, %v88
  %106 = vst.msk [vmem:[%s3 + $0x68] sm:$0xff] %vm92, %v89
  %107 = vst.msk [vmem:[%s3 + $0x70] sm:$0xff] %vm92, %v90
  %108 = vst.msk [vmem:[%s3 + $0x78] sm:$0xff] %vm92, %v91
  // Predicated region
  $region14: #{spade_resnet_forward.51} parent=0 // pred_check
    _
  $region15: #{spade_resnet_forward.51} parent=0 // pred_check_branch
    %110 = sbr.rel (0) target = $region17
  $region16: #{spade_resnet_forward.51} parent=0 // pred_region
    _
  $region17: #{spade_resnet_forward.51} parent=0 // pred_fallthru
    _
  // Predicated region
  $region18: #{spade_resnet_forward.51} parent=0 // pred_check
    _
  $region19: #{spade_resnet_forward.51} parent=0 // pred_check_branch
    %112 = sbr.rel (0) target = $region21
  $region20: #{spade_resnet_forward.51} parent=0 // pred_region
    _
  $region21: #{spade_resnet_forward.51} parent=0 // pred_fallthru
    _

// kernel: spade_resnet_forward.52
$region0: #{spade_resnet_forward.52}
  #allocation0 [shape = 'u32[]', space=smem, size = 0x4, offset = 0x4, fixed_abs, tag = 'smem constant byte address 0x4 - core index']
  #allocation1 [shape = 'u32[144,128]{1,0:T(1,128)}', space=vmem, size = 0x12000, scoped, tag = 'internal scratch']
  %s0 = inlined_call_operand.vmem [shape: bf16[32,144], index: 0, kind: input, shape index: {}]
  %s1 = inlined_call_operand.vmem [shape: bf16[144,32], index: 1, kind: input, shape index: {}]
  %s2 = inlined_call_operand.vmem [shape: f32[1,32], index: 2, kind: input, shape index: {}]
  %s3 = inlined_call_operand.vmem [shape: f32[32,32], index: 3, kind: output, shape index: {}]
  %s4 = sld [smem:[#allocation0]]
  $region22: #{spade_resnet_forward.52} parent=0
    _
  %s6 = ssub.s32 1, %s4
  %s7 = scalar_select 0, %s6, %s4
  // Predicated region
  $region2: #{spade_resnet_forward.52} parent=0 // pred_check
    _
  $region3: #{spade_resnet_forward.52} parent=0 // pred_check_branch
    %9 = sbr.rel (0) target = $region5
  $region4: #{spade_resnet_forward.52} parent=0 // pred_region
    _
  $region5: #{spade_resnet_forward.52} parent=0 // pred_fallthru
    _
  // Predicated region
  $region6: #{spade_resnet_forward.52} parent=0 // pred_check
    _
  $region7: #{spade_resnet_forward.52} parent=0 // pred_check_branch
    %11 = sbr.rel (0) target = $region9
  $region8: #{spade_resnet_forward.52} parent=0 // pred_region
    _
  $region9: #{spade_resnet_forward.52} parent=0 // pred_fallthru
    _
  // Predicated region
  $region10: #{spade_resnet_forward.52} parent=0 // pred_check
    _
  $region11: #{spade_resnet_forward.52} parent=0 // pred_check_branch
    %13 = sbr.rel (0) target = $region13
  $region12: #{spade_resnet_forward.52} parent=0 // pred_region
    _
  $region13: #{spade_resnet_forward.52} parent=0 // pred_fallthru
    _
  %v15 = vld [vmem:[%s0] sm:$0xff]
  %v16 = vld [vmem:[%s0 + $0x8] sm:$0xff]
  %v17 = vld [vmem:[%s0 + $0x10] sm:$0xff]
  %v18 = vld [vmem:[%s0 + $0x18] sm:$0xff]
  %v19 = vld [vmem:[%s1] sm:$0xf]
  %v20 = vld [vmem:[%s1 + $0x4] sm:$0xf]
  %v21 = vld [vmem:[%s1 + $0x8] sm:$0xf]
  %v22 = vld [vmem:[%s1 + $0xc] sm:$0xf]
  %v23 = vld [vmem:[%s1 + $0x10] sm:$0xf]
  %v24 = vld [vmem:[%s1 + $0x14] sm:$0xf]
  %v25 = vld [vmem:[%s1 + $0x18] sm:$0xf]
  %v26 = vld [vmem:[%s1 + $0x1c] sm:$0xf]
  %v27 = vld [vmem:[%s1 + $0x20] sm:$0xf]
  %v28 = vld [vmem:[%s1 + $0x24] sm:$0xf]
  %v29 = vld [vmem:[%s1 + $0x28] sm:$0xf]
  %v30 = vld [vmem:[%s1 + $0x2c] sm:$0xf]
  %v31 = vld [vmem:[%s1 + $0x30] sm:$0xf]
  %v32 = vld [vmem:[%s1 + $0x34] sm:$0xf]
  %v33 = vld [vmem:[%s1 + $0x38] sm:$0xf]
  %v34 = vld [vmem:[%s1 + $0x3c] sm:$0xf]
  %v35 = vld [vmem:[%s1 + $0x40] sm:$0xf]
  %v36 = vld [vmem:[%s1 + $0x44] sm:$0xf]
  %v37 = vld [vmem:[%s2] sm:$0x1]
  %v39 = vlaneseq
  %v40 = vshrl.u32 %v39, 7
  %v41 = vsub.s32 0, %v40
  %v42 = vrot.slane %v37, %v41
  %v48 = vunpack.c.l.b16 %v15
  %v49 = vunpack.c.h.b16 %v15
  %v50 = vunpack.c.l.b16 %v16
  %v51 = vunpack.c.h.b16 %v16
  %v52 = vunpack.c.l.b16 %v17
  %v53 = vunpack.c.h.b16 %v17
  %v54 = vunpack.c.l.b16 %v18
  %v55 = vunpack.c.h.b16 %v18
  %v56 = vpack.c.b16 %v50, %v48
  %v57 = vpack.c.b16 %v51, %v49
  %v58 = vpack.c.b16 %v54, %v52
  %v59 = vpack.c.b16 %v55, %v53
  %v80 = vunpack.c.l.b16 %v19
  %v81 = vunpack.c.l.b16 %v20
  %v82 = vunpack.c.l.b16 %v21
  %v83 = vunpack.c.l.b16 %v22
  %v84 = vunpack.c.l.b16 %v23
  %v85 = vunpack.c.l.b16 %v24
  %v86 = vunpack.c.l.b16 %v25
  %v87 = vunpack.c.l.b16 %v26
  %v88 = vunpack.c.l.b16 %v27
  %v89 = vunpack.c.l.b16 %v28
  %v90 = vunpack.c.l.b16 %v29
  %v91 = vunpack.c.l.b16 %v30
  %v92 = vunpack.c.l.b16 %v31
  %v93 = vunpack.c.l.b16 %v32
  %v94 = vunpack.c.l.b16 %v33
  %v95 = vunpack.c.l.b16 %v34
  %v96 = vunpack.c.l.b16 %v35
  %v97 = vunpack.c.l.b16 %v36
  %v98 = vpack.c.b16 %v81, %v80
  %v99 = vpack.c.b16 %v83, %v82
  %v100 = vpack.c.b16 %v85, %v84
  %v101 = vpack.c.b16 %v87, %v86
  %v102 = vpack.c.b16 %v89, %v88
  %v103 = vpack.c.b16 %v91, %v90
  %v104 = vpack.c.b16 %v93, %v92
  %v105 = vpack.c.b16 %v95, %v94
  %v106 = vpack.c.b16 %v97, %v96
  %vm116 = vcmask 130048
  %v118 = vsel %vm116, %v57, 0
  %v121 = vsel %vm116, %v59, 0
  %123 = vmatprep.subr.bf16.mxu0 0
  %124 = vmatpush1.bf16.msra.mxu0 %v105
  %125 = vmatprep.subr.bf16.mxu0 0
  %126 = vmatpush1.bf16.msra.mxu0 %v104
  %127 = vmatprep.subr.bf16.mxu0 0
  %128 = vmatpush1.bf16.msra.mxu0 %v103
  %129 = vmatprep.subr.bf16.mxu0 0
  %130 = vmatpush1.bf16.msra.mxu0 %v102
  %131 = vmatprep.subr.bf16.mxu0 0
  %132 = vmatpush1.bf16.msra.mxu0 %v101
  %133 = vmatprep.subr.bf16.mxu0 0
  %134 = vmatpush1.bf16.msra.mxu0 %v100
  %135 = vmatprep.subr.bf16.mxu0 0
  %136 = vmatpush1.bf16.msra.mxu0 %v99
  %137 = vmatprep.subr.bf16.mxu0 0
  %138 = vmatpush1.bf16.msra.mxu0 %v98
  %139 = vmatprep.subr.bf16.mxu0 0
  %140 = vmatpush2.bf16.msra.mxu0 0
  %141 = vmatprep.subr.bf16.mxu0 0
  %142 = vmatpush2.bf16.msra.mxu0 0
  %143 = vmatprep.subr.bf16.mxu0 0
  %144 = vmatpush2.bf16.msra.mxu0 0
  %145 = vmatprep.subr.bf16.mxu0 0
  %146 = vmatpush2.bf16.msra.mxu0 0
  %147 = vmatprep.subr.bf16.mxu0 0
  %148 = vmatpush2.bf16.msra.mxu0 0
  %149 = vmatprep.subr.bf16.mxu0 0
  %150 = vmatpush2.bf16.msra.mxu0 0
  %151 = vmatprep.subr.bf16.mxu0 0
  %152 = vmatpush2.bf16.msra.mxu0 0
  %153 = vmatprep.subr.bf16.mxu0 0
  %154 = vmatpush2.bf16.msra.mxu0 %v106
  %155 = vmatprep.mubr.bf16.mxu0 %v118
  %156 = vmatmul.mubr.bf16.gmra.mxu0 %v56
  %v157 = vpop.f32.mrf.mxu0
  %v158 = vadd.f32 %v42, %v157
  %v159 = vpop.f32.mrf.mxu0
  %v160 = vpop.f32.mrf.mxu0
  %v161 = vadd.f32 %v42, %v160
  %v162 = vpop.f32.mrf.mxu0
  %163 = vmatprep.mubr.bf16.mxu0 %v121
  %164 = vmatmul.mubr.bf16.gmra.mxu0 %v58
  %v165 = vpop.f32.mrf.mxu0
  %v166 = vadd.f32 %v42, %v165
  %v167 = vpop.f32.mrf.mxu0
  %v168 = vpop.f32.mrf.mxu0
  %v169 = vadd.f32 %v42, %v168
  %v170 = vpop.f32.mrf.mxu0
  %171 = vdwg.mxu0
  %vm172 = vcmask 261120
  %173 = vst.msk [vmem:[%s3] sm:$0xff] %vm172, %v158
  %174 = vst.msk [vmem:[%s3 + $0x8] sm:$0xff] %vm172, %v161
  %175 = vst.msk [vmem:[%s3 + $0x10] sm:$0xff] %vm172, %v166
  %176 = vst.msk [vmem:[%s3 + $0x18] sm:$0xff] %vm172, %v169
  // Predicated region
  $region14: #{spade_resnet_forward.52} parent=0 // pred_check
    _
  $region15: #{spade_resnet_forward.52} parent=0 // pred_check_branch
    %178 = sbr.rel (0) target = $region17
  $region16: #{spade_resnet_forward.52} parent=0 // pred_region
    _
  $region17: #{spade_resnet_forward.52} parent=0 // pred_fallthru
    _
  // Predicated region
  $region18: #{spade_resnet_forward.52} parent=0 // pred_check
    _
  $region19: #{spade_resnet_forward.52} parent=0 // pred_check_branch
    %180 = sbr.rel (0) target = $region21
  $region20: #{spade_resnet_forward.52} parent=0 // pred_region
    _
  $region21: #{spade_resnet_forward.52} parent=0 // pred_fallthru
    _

// kernel: spade_resnet_forward.54
$region0: #{spade_resnet_forward.54}
  #allocation0 [shape = 'u32[]', space=smem, size = 0x4, offset = 0x4, fixed_abs, tag = 'smem constant byte address 0x4 - core index']
  #allocation1 [shape = 'u32[144,128]{1,0:T(1,128)}', space=vmem, size = 0x12000, scoped, tag = 'internal scratch']
  %s0 = inlined_call_operand.vmem [shape: f32[32,32], index: 0, kind: input, shape index: {}]
  %s1 = inlined_call_operand.vmem [shape: f32[1,32], index: 1, kind: input, shape index: {}]
  %s2 = inlined_call_operand.vmem [shape: f32[1,32], index: 2, kind: input, shape index: {}]
  %s3 = inlined_call_operand.vmem [shape: f32[32,32], index: 3, kind: output, shape index: {}]
  %s4 = sld [smem:[#allocation0]]
  $region22: #{spade_resnet_forward.54} parent=0
    _
  %s6 = ssub.s32 1, %s4
  %s7 = scalar_select 0, %s6, %s4
  // Predicated region
  $region2: #{spade_resnet_forward.54} parent=0 // pred_check
    _
  $region3: #{spade_resnet_forward.54} parent=0 // pred_check_branch
    %9 = sbr.rel (0) target = $region5
  $region4: #{spade_resnet_forward.54} parent=0 // pred_region
    _
  $region5: #{spade_resnet_forward.54} parent=0 // pred_fallthru
    _
  // Predicated region
  $region6: #{spade_resnet_forward.54} parent=0 // pred_check
    _
  $region7: #{spade_resnet_forward.54} parent=0 // pred_check_branch
    %11 = sbr.rel (0) target = $region9
  $region8: #{spade_resnet_forward.54} parent=0 // pred_region
    _
  $region9: #{spade_resnet_forward.54} parent=0 // pred_fallthru
    _
  // Predicated region
  $region10: #{spade_resnet_forward.54} parent=0 // pred_check
    _
  $region11: #{spade_resnet_forward.54} parent=0 // pred_check_branch
    %13 = sbr.rel (0) target = $region13
  $region12: #{spade_resnet_forward.54} parent=0 // pred_region
    _
  $region13: #{spade_resnet_forward.54} parent=0 // pred_fallthru
    _
  %v14 = vld [vmem:[%s0] sm:$0xff]
  %v15 = vld [vmem:[%s0 + $0x8] sm:$0xff]
  %v16 = vld [vmem:[%s0 + $0x10] sm:$0xff]
  %v17 = vld [vmem:[%s0 + $0x18] sm:$0xff]
  %v18 = vld [vmem:[%s1] sm:$0x1]
  %v20 = vlaneseq
  %v21 = vshrl.u32 %v20, 7
  %v22 = vsub.s32 0, %v21
  %v23 = vrot.slane %v18, %v22
  %v25 = vmul.f32 %v14, %v23
  %v26 = vmul.f32 %v15, %v23
  %v27 = vmul.f32 %v16, %v23
  %v28 = vmul.f32 %v17, %v23
  %v29 = vld [vmem:[%s2] sm:$0x1]
  %v31 = vlaneseq
  %v32 = vshrl.u32 %v31, 7
  %v33 = vsub.s32 0, %v32
  %v34 = vrot.slane %v29, %v33
  %v36 = vadd.f32 %v25, %v34
  %v37 = vadd.f32 %v26, %v34
  %v38 = vadd.f32 %v27, %v34
  %v39 = vadd.f32 %v28, %v34
  %v40 = vmax.f32 %v36, 0.0
  %v41 = vmax.f32 %v37, 0.0
  %v42 = vmax.f32 %v38, 0.0
  %v43 = vmax.f32 %v39, 0.0
  %vm44 = vcmask 261120
  %45 = vst.msk [vmem:[%s3] sm:$0xff] %vm44, %v40
  %46 = vst.msk [vmem:[%s3 + $0x8] sm:$0xff] %vm44, %v41
  %47 = vst.msk [vmem:[%s3 + $0x10] sm:$0xff] %vm44, %v42
  %48 = vst.msk [vmem:[%s3 + $0x18] sm:$0xff] %vm44, %v43
  // Predicated region
  $region14: #{spade_resnet_forward.54} parent=0 // pred_check
    _
  $region15: #{spade_resnet_forward.54} parent=0 // pred_check_branch
    %50 = sbr.rel (0) target = $region17
  $region16: #{spade_resnet_forward.54} parent=0 // pred_region
    _
  $region17: #{spade_resnet_forward.54} parent=0 // pred_fallthru
    _
  // Predicated region
  $region18: #{spade_resnet_forward.54} parent=0 // pred_check
    _
  $region19: #{spade_resnet_forward.54} parent=0 // pred_check_branch
    %52 = sbr.rel (0) target = $region21
  $region20: #{spade_resnet_forward.54} parent=0 // pred_region
    _
  $region21: #{spade_resnet_forward.54} parent=0 // pred_fallthru
    _

// kernel: spade_resnet_forward.53
$region0: #{spade_resnet_forward.53}
  #allocation0 [shape = 'u32[]', space=smem, size = 0x4, offset = 0x4, fixed_abs, tag = 'smem constant byte address 0x4 - core index']
  #allocation1 [shape = 'u32[144,128]{1,0:T(1,128)}', space=vmem, size = 0x12000, scoped, tag = 'internal scratch']
  #allocation2 [shape = 'f32[1,32]{1,0:T(1,128)}', space=vmem, size = 0x200, scoped, tag = 'scratch operand']
  #allocation3 [shape = 'f32[1,32]{1,0:T(1,128)}', space=vmem, size = 0x200, scoped, tag = 'scratch operand']
  %s0 = inlined_call_operand.vmem [shape: f32[32,32], index: 0, kind: input, shape index: {}]
  %s1 = inlined_call_operand.vmem [shape: f32[1,32], index: 1, kind: input, shape index: {}]
  %s2 = inlined_call_operand.vmem [shape: f32[1,32], index: 2, kind: input, shape index: {}]
  %s3 = inlined_call_operand.vmem [shape: f32[1,32], index: 3, kind: output, shape index: {0}]
  %s4 = inlined_call_operand.vmem [shape: f32[1,32], index: 4, kind: output, shape index: {1}]
  %5 = xla_tuple %s3, %s4
  %s6 = sld [smem:[#allocation0]]
  $region38: #{spade_resnet_forward.53} parent=0
    _
  %s8 = ssub.s32 1, %s6
  %s9 = scalar_select 0, %s8, %s6
  // Predicated region
  $region2: #{spade_resnet_forward.53} parent=0 // pred_check
    _
  $region3: #{spade_resnet_forward.53} parent=0 // pred_check_branch
    %11 = sbr.rel (0) target = $region5
  $region4: #{spade_resnet_forward.53} parent=0 // pred_region
    _
  $region5: #{spade_resnet_forward.53} parent=0 // pred_fallthru
    _
  // Predicated region
  $region6: #{spade_resnet_forward.53} parent=0 // pred_check
    _
  $region7: #{spade_resnet_forward.53} parent=0 // pred_check_branch
    %13 = sbr.rel (0) target = $region9
  $region8: #{spade_resnet_forward.53} parent=0 // pred_region
    _
  $region9: #{spade_resnet_forward.53} parent=0 // pred_fallthru
    _
  // Predicated region
  $region10: #{spade_resnet_forward.53} parent=0 // pred_check
    _
  $region11: #{spade_resnet_forward.53} parent=0 // pred_check_branch
    %15 = sbr.rel (0) target = $region13
  $region12: #{spade_resnet_forward.53} parent=0 // pred_region
    _
  $region13: #{spade_resnet_forward.53} parent=0 // pred_fallthru
    _
  %p16 = scmp.eq.s32.totalorder 0, 0
  // Predicated region
  $region14: #{spade_resnet_forward.53} parent=0 // pred_check
    %p17 = pneg %p16
  $region15: #{spade_resnet_forward.53} parent=0 // pred_check_branch
    %19 = sbr.rel (%p17) target = $region17
  $region16: #{spade_resnet_forward.53} parent=0 // pred_region
    %vm20 = vcmask 253952
    %21 = vst.msk [vmem:[#allocation2] sm:$0x1] %vm20, 0.0
    %22 = vst.msk [vmem:[#allocation3] sm:$0x1] %vm20, 0.0
  $region17: #{spade_resnet_forward.53} parent=0 // pred_fallthru
    _
  %v23 = vld [vmem:[%s0] sm:$0xff]
  %v24 = vld [vmem:[%s0 + $0x8] sm:$0xff]
  %v25 = vld [vmem:[%s0 + $0x10] sm:$0xff]
  %v26 = vld [vmem:[%s0 + $0x18] sm:$0xff]
  %v27 = vld [vmem:[#allocation2] sm:$0x1]
  %vm28 = vcmask 261120
  %v29 = vsel %vm28, %v23, 0.0
  %v30 = vsel %vm28, %v24, 0.0
  %v31 = vadd.f32 %v29, %v30
  %v32 = vsel %vm28, %v25, 0.0
  %v33 = vadd.f32 %v31, %v32
  %v34 = vsel %vm28, %v26, 0.0
  %v35 = vadd.f32 %v33, %v34
  %v36 = vrot.slane %v35, 4
  %v37 = vadd.f32 %v35, %v36
  %v38 = vrot.slane %v37, 2
  %v39 = vadd.f32 %v37, %v38
  %v40 = vrot.slane %v39, 1
  %v41 = vadd.f32 %v39, %v40
  %v42 = vadd.f32 %v27, %v41
  %vm43 = vcmask 253952
  %44 = vst.msk [vmem:[#allocation2] sm:$0x1] %vm43, %v42
  %v45 = vld [vmem:[#allocation3] sm:$0x1]
  %v46 = vmul.f32 %v23, %v23
  %v47 = vmul.f32 %v24, %v24
  %v48 = vmul.f32 %v25, %v25
  %v49 = vmul.f32 %v26, %v26
  %v50 = vsel %vm28, %v46, 0.0
  %v51 = vsel %vm28, %v47, 0.0
  %v52 = vadd.f32 %v50, %v51
  %v53 = vsel %vm28, %v48, 0.0
  %v54 = vadd.f32 %v52, %v53
  %v55 = vsel %vm28, %v49, 0.0
  %v56 = vadd.f32 %v54, %v55
  %v57 = vrot.slane %v56, 4
  %v58 = vadd.f32 %v56, %v57
  %v59 = vrot.slane %v58, 2
  %v60 = vadd.f32 %v58, %v59
  %v61 = vrot.slane %v60, 1
  %v62 = vadd.f32 %v60, %v61
  %v63 = vadd.f32 %v45, %v62
  %64 = vst.msk [vmem:[#allocation3] sm:$0x1] %vm43, %v63
  // Predicated region
  $region18: #{spade_resnet_forward.53} parent=0 // pred_check
    %p65 = pneg %p16
  $region19: #{spade_resnet_forward.53} parent=0 // pred_check_branch
    %67 = sbr.rel (%p65) target = $region21
  $region20: #{spade_resnet_forward.53} parent=0 // pred_region
    %v68 = vld [vmem:[#allocation2] sm:$0x1]
    %v69 = vmul.f32 %v68, 0.03125
    %v70 = vld [vmem:[#allocation3] sm:$0x1]
    %v71 = vmul.f32 %v70, 0.03125
    %v72 = vmul.f32 %v69, %v69
    %v73 = vsub.f32 %v71, %v72
    %v74 = vld [vmem:[%s1] sm:$0x1]
    %v75 = vadd.f32 %v73, 1e-05
    %v76 = vrsqrt.pop %v75
    %v77 = vmul.f32 %v74, %v76
    %78 = vst.msk [vmem:[%s3] sm:$0x1] %vm43, %v77
    %v79 = vld [vmem:[%s2] sm:$0x1]
    %v80 = vmul.f32 %v69, %v77
    %v81 = vsub.f32 %v79, %v80
    %82 = vst.msk [vmem:[%s4] sm:$0x1] %vm43, %v81
  $region21: #{spade_resnet_forward.53} parent=0 // pred_fallthru
    _
  // Predicated region
  $region22: #{spade_resnet_forward.53} parent=0 // pred_check
    _
  $region23: #{spade_resnet_forward.53} parent=0 // pred_check_branch
    %84 = sbr.rel (0) target = $region25
  $region24: #{spade_resnet_forward.53} parent=0 // pred_region
    _
  $region25: #{spade_resnet_forward.53} parent=0 // pred_fallthru
    _
  // Predicated region
  $region26: #{spade_resnet_forward.53} parent=0 // pred_check
    _
  $region27: #{spade_resnet_forward.53} parent=0 // pred_check_branch
    %86 = sbr.rel (0) target = $region29
  $region28: #{spade_resnet_forward.53} parent=0 // pred_region
    _
  $region29: #{spade_resnet_forward.53} parent=0 // pred_fallthru
    _
  // Predicated region
  $region30: #{spade_resnet_forward.53} parent=0 // pred_check
    _
  $region31: #{spade_resnet_forward.53} parent=0 // pred_check_branch
    %88 = sbr.rel (0) target = $region33
  $region32: #{spade_resnet_forward.53} parent=0 // pred_region
    _
  $region33: #{spade_resnet_forward.53} parent=0 // pred_fallthru
    _
  // Predicated region
  $region34: #{spade_resnet_forward.53} parent=0 // pred_check
    _
  $region35: #{spade_resnet_forward.53} parent=0 // pred_check_branch
    %90 = sbr.rel (0) target = $region37
  $region36: #{spade_resnet_forward.53} parent=0 // pred_region
    _
  $region37: #{spade_resnet_forward.53} parent=0 // pred_fallthru
    _

// kernel: spade_resnet_forward.55
$region0: #{spade_resnet_forward.55}
  #allocation0 [shape = 'u32[]', space=smem, size = 0x4, offset = 0x4, fixed_abs, tag = 'smem constant byte address 0x4 - core index']
  #allocation1 [shape = 'u32[144,128]{1,0:T(1,128)}', space=vmem, size = 0x12000, scoped, tag = 'internal scratch']
  %s0 = inlined_call_operand.vmem [shape: bf16[32,32], index: 0, kind: input, shape index: {}]
  %s1 = inlined_call_operand.vmem [shape: bf16[32,128], index: 1, kind: input, shape index: {}]
  %s2 = inlined_call_operand.vmem [shape: f32[1,128], index: 2, kind: input, shape index: {}]
  %s3 = inlined_call_operand.vmem [shape: f32[32,128], index: 3, kind: output, shape index: {}]
  %s4 = sld [smem:[#allocation0]]
  $region22: #{spade_resnet_forward.55} parent=0
    _
  %s6 = ssub.s32 1, %s4
  %s7 = scalar_select 0, %s6, %s4
  // Predicated region
  $region2: #{spade_resnet_forward.55} parent=0 // pred_check
    _
  $region3: #{spade_resnet_forward.55} parent=0 // pred_check_branch
    %9 = sbr.rel (0) target = $region5
  $region4: #{spade_resnet_forward.55} parent=0 // pred_region
    _
  $region5: #{spade_resnet_forward.55} parent=0 // pred_fallthru
    _
  // Predicated region
  $region6: #{spade_resnet_forward.55} parent=0 // pred_check
    _
  $region7: #{spade_resnet_forward.55} parent=0 // pred_check_branch
    %11 = sbr.rel (0) target = $region9
  $region8: #{spade_resnet_forward.55} parent=0 // pred_region
    _
  $region9: #{spade_resnet_forward.55} parent=0 // pred_fallthru
    _
  // Predicated region
  $region10: #{spade_resnet_forward.55} parent=0 // pred_check
    _
  $region11: #{spade_resnet_forward.55} parent=0 // pred_check_branch
    %13 = sbr.rel (0) target = $region13
  $region12: #{spade_resnet_forward.55} parent=0 // pred_region
    _
  $region13: #{spade_resnet_forward.55} parent=0 // pred_fallthru
    _
  %v15 = vld [vmem:[%s0] sm:$0xf]
  %v16 = vld [vmem:[%s0 + $0x4] sm:$0xf]
  %v17 = vld [vmem:[%s0 + $0x8] sm:$0xf]
  %v18 = vld [vmem:[%s0 + $0xc] sm:$0xf]
  %v19 = vld [vmem:[%s1] sm:$0xf]
  %v20 = vld [vmem:[%s1 + $0x4] sm:$0xf]
  %v21 = vld [vmem:[%s1 + $0x8] sm:$0xf]
  %v22 = vld [vmem:[%s1 + $0xc] sm:$0xf]
  %v23 = vld [vmem:[%s2] sm:$0x1]
  %v25 = vlaneseq
  %v26 = vshrl.u32 %v25, 7
  %v27 = vsub.s32 0, %v26
  %v28 = vrot.slane %v23, %v27
  %v34 = vunpack.c.l.b16 %v15
  %v35 = vunpack.c.l.b16 %v16
  %v36 = vunpack.c.l.b16 %v17
  %v37 = vunpack.c.l.b16 %v18
  %v38 = vpack.c.b16 %v35, %v34
  %v39 = vpack.c.b16 %v37, %v36
  %v44 = vunpack.c.l.b16 %v19
  %v45 = vunpack.c.l.b16 %v20
  %v46 = vunpack.c.l.b16 %v21
  %v47 = vunpack.c.l.b16 %v22
  %v48 = vpack.c.b16 %v45, %v44
  %v49 = vpack.c.b16 %v47, %v46
  %vm52 = vcmask 261120
  %v54 = vsel %vm52, %v38, 0
  %v57 = vsel %vm52, %v39, 0
  %59 = vmatprep.subr.bf16.mxu0 0
  %60 = vmatpush1.bf16.msra.mxu0 0
  %61 = vmatprep.subr.bf16.mxu0 0
  %62 = vmatpush1.bf16.msra.mxu0 0
  %63 = vmatprep.subr.bf16.mxu0 0
  %64 = vmatpush1.bf16.msra.mxu0 0
  %65 = vmatprep.subr.bf16.mxu0 0
  %66 = vmatpush1.bf16.msra.mxu0 0
  %67 = vmatprep.subr.bf16.mxu0 0
  %68 = vmatpush1.bf16.msra.mxu0 0
  %69 = vmatprep.subr.bf16.mxu0 0
  %70 = vmatpush1.bf16.msra.mxu0 0
  %71 = vmatprep.subr.bf16.mxu0 0
  %72 = vmatpush1.bf16.msra.mxu0 %v49
  %73 = vmatprep.subr.bf16.mxu0 0
  %74 = vmatpush1.bf16.msra.mxu0 %v48
  %75 = vmatprep.subr.bf16.mxu0 0
  %76 = vmatpush2.bf16.msra.mxu0 0
  %77 = vmatprep.subr.bf16.mxu0 0
  %78 = vmatpush2.bf16.msra.mxu0 0
  %79 = vmatprep.subr.bf16.mxu0 0
  %80 = vmatpush2.bf16.msra.mxu0 0
  %81 = vmatprep.subr.bf16.mxu0 0
  %82 = vmatpush2.bf16.msra.mxu0 0
  %83 = vmatprep.subr.bf16.mxu0 0
  %84 = vmatpush2.bf16.msra.mxu0 0
  %85 = vmatprep.subr.bf16.mxu0 0
  %86 = vmatpush2.bf16.msra.mxu0 0
  %87 = vmatprep.subr.bf16.mxu0 0
  %88 = vmatpush2.bf16.msra.mxu0 0
  %89 = vmatprep.subr.bf16.mxu0 0
  %90 = vmatpush2.bf16.msra.mxu0 0
  %91 = vmatprep.mubr.bf16.mxu0 0
  %92 = vmatmul.mubr.bf16.gmra.mxu0 %v54
  %v93 = vpop.f32.mrf.mxu0
  %v94 = vadd.f32 %v28, %v93
  %v95 = vpop.f32.mrf.mxu0
  %v96 = vpop.f32.mrf.mxu0
  %v97 = vadd.f32 %v28, %v96
  %v98 = vpop.f32.mrf.mxu0
  %99 = vmatprep.mubr.bf16.mxu0 0
  %100 = vmatmul.mubr.bf16.gmra.mxu0 %v57
  %v101 = vpop.f32.mrf.mxu0
  %v102 = vadd.f32 %v28, %v101
  %v103 = vpop.f32.mrf.mxu0
  %v104 = vpop.f32.mrf.mxu0
  %v105 = vadd.f32 %v28, %v104
  %v106 = vpop.f32.mrf.mxu0
  %107 = vdwg.mxu0
  %v108 = vmax.f32 %v94, 0.0
  %v109 = vmax.f32 %v97, 0.0
  %v110 = vmax.f32 %v102, 0.0
  %v111 = vmax.f32 %v105, 0.0
  %112 = vst [vmem:[%s3] sm:$0xff] %v108
  %113 = vst [vmem:[%s3 + $0x8] sm:$0xff] %v109
  %114 = vst [vmem:[%s3 + $0x10] sm:$0xff] %v110
  %115 = vst [vmem:[%s3 + $0x18] sm:$0xff] %v111
  // Predicated region
  $region14: #{spade_resnet_forward.55} parent=0 // pred_check
    _
  $region15: #{spade_resnet_forward.55} parent=0 // pred_check_branch
    %117 = sbr.rel (0) target = $region17
  $region16: #{spade_resnet_forward.55} parent=0 // pred_region
    _
  $region17: #{spade_resnet_forward.55} parent=0 // pred_fallthru
    _
  // Predicated region
  $region18: #{spade_resnet_forward.55} parent=0 // pred_check
    _
  $region19: #{spade_resnet_forward.55} parent=0 // pred_check_branch
    %119 = sbr.rel (0) target = $region21
  $region20: #{spade_resnet_forward.55} parent=0 // pred_region
    _
  $region21: #{spade_resnet_forward.55} parent=0 // pred_fallthru
    _

// kernel: spade_resnet_forward.59
$region0: #{spade_resnet_forward.59}
  #allocation0 [shape = 'u32[]', space=smem, size = 0x4, offset = 0x4, fixed_abs, tag = 'smem constant byte address 0x4 - core index']
  #allocation1 [shape = 'u32[144,128]{1,0:T(1,128)}', space=vmem, size = 0x12000, scoped, tag = 'internal scratch']
  %s0 = inlined_call_operand.vmem [shape: f32[2,16,32], index: 0, kind: input, shape index: {}]
  %s1 = inlined_call_operand.vmem [shape: f32[2,16,32], index: 1, kind: input, shape index: {}]
  %s2 = inlined_call_operand.vmem [shape: f32[2,16,32], index: 2, kind: input, shape index: {}]
  %s3 = inlined_call_operand.vmem [shape: f32[2,16,32], index: 3, kind: output, shape index: {}]
  %s4 = sld [smem:[#allocation0]]
  $region45: #{spade_resnet_forward.59} parent=0
    _
  %s6 = ssub.s32 1, %s4
  %s7 = scalar_select 0, %s6, %s4
  loop: start=0, step=1, limit=4
  $region2: #{spade_resnet_forward.59} parent=0 // loop_pre_header
    _
  $region3: #{spade_resnet_forward.59} parent=0 // loop_header
    %s9 = sphi 0, %s13
    %p10 = scmp.ge.s32.totalorder %s9, 4
    %s19 = sphi 0, %s21
    %s22 = sphi 0, %s19
    %s23 = sphi 0, %s22
    %s39 = sphi 0, %s23
    %s45 = sphi 0, %s47
    %s48 = sphi 0, %s45
    %s49 = sphi 0, %s48
    %s65 = sphi 0, %s49
    %s71 = sphi 0, %s73
    %s74 = sphi 0, %s71
    %s75 = sphi 0, %s74
    %s91 = sphi 0, %s75
    %s97 = sphi 0, %s99
    %s100 = sphi 0, %s97
    %s101 = sphi 0, %s100
    %s117 = sphi 0, %s101
  $region4: #{spade_resnet_forward.59} parent=0 // loop_header_branch
    %12 = sbr.rel (%p10) target = $region8
  $region5: #{spade_resnet_forward.59} parent=0 // loop_body
    %s14 = ssub.s32 %s9, 1
    %s15 = ssub.s32 %s9, 2
    %s16 = sadd.s32 %s9, 1
    %s17 = ssub.s32 %s9, %s16
    %p18 = scmp.eq.s32.totalorder %s17, 0
    %s20 = sadd.s32 %s19, 1
    %s21 = scalar_select %p18, %s19, %s20
    %p24 = pneg %p18
    %p25 = scmp.eq.s32.totalorder %s9, 1
    %p26 = por %p24, %p25
    %p27 = scmp.ne.s32.totalorder %s19, %s22
    %p28 = scmp.eq.s32.totalorder %s9, 0
    %p29 = por %p27, %p28
    %p30 = scmp.ne.s32.totalorder %s19, %s22
    %p31 = scmp.eq.s32.totalorder %s14, 1
    %p32 = por %p30, %p31
    %p33 = scmp.ne.s32.totalorder %s22, %s23
    %p34 = scmp.eq.s32.totalorder %s14, 0
    %p35 = por %p33, %p34
    %p36 = scmp.ne.s32.totalorder %s22, %s23
    %p37 = scmp.eq.s32.totalorder %s15, 1
    %p38 = por %p36, %p37
    %p40 = scmp.ne.s32.totalorder %s23, %s39
    %p41 = scmp.eq.s32.totalorder %s15, 0
    %p42 = por %p40, %p41
    %s43 = ssub.s32 %s9, %s16
    %p44 = scmp.eq.s32.totalorder %s43, 0
    %s46 = sadd.s32 %s45, 1
    %s47 = scalar_select %p44, %s45, %s46
    %p50 = pneg %p44
    %p51 = scmp.eq.s32.totalorder %s9, 1
    %p52 = por %p50, %p51
    %p53 = scmp.ne.s32.totalorder %s45, %s48
    %p54 = scmp.eq.s32.totalorder %s9, 0
    %p55 = por %p53, %p54
    %p56 = scmp.ne.s32.totalorder %s45, %s48
    %p57 = scmp.eq.s32.totalorder %s14, 1
    %p58 = por %p56, %p57
    %p59 = scmp.ne.s32.totalorder %s48, %s49
    %p60 = scmp.eq.s32.totalorder %s14, 0
    %p61 = por %p59, %p60
    %p62 = scmp.ne.s32.totalorder %s48, %s49
    %p63 = scmp.eq.s32.totalorder %s15, 1
    %p64 = por %p62, %p63
    %p66 = scmp.ne.s32.totalorder %s49, %s65
    %p67 = scmp.eq.s32.totalorder %s15, 0
    %p68 = por %p66, %p67
    %s69 = ssub.s32 %s9, %s16
    %p70 = scmp.eq.s32.totalorder %s69, 0
    %s72 = sadd.s32 %s71, 1
    %s73 = scalar_select %p70, %s71, %s72
    %p76 = pneg %p70
    %p77 = scmp.eq.s32.totalorder %s9, 1
    %p78 = por %p76, %p77
    %p79 = scmp.ne.s32.totalorder %s71, %s74
    %p80 = scmp.eq.s32.totalorder %s9, 0
    %p81 = por %p79, %p80
    %p82 = scmp.ne.s32.totalorder %s71, %s74
    %p83 = scmp.eq.s32.totalorder %s14, 1
    %p84 = por %p82, %p83
    %p85 = scmp.ne.s32.totalorder %s74, %s75
    %p86 = scmp.eq.s32.totalorder %s14, 0
    %p87 = por %p85, %p86
    %p88 = scmp.ne.s32.totalorder %s74, %s75
    %p89 = scmp.eq.s32.totalorder %s15, 1
    %p90 = por %p88, %p89
    %p92 = scmp.ne.s32.totalorder %s75, %s91
    %p93 = scmp.eq.s32.totalorder %s15, 0
    %p94 = por %p92, %p93
    %s95 = ssub.s32 %s9, %s16
    %p96 = scmp.eq.s32.totalorder %s95, 0
    %s98 = sadd.s32 %s97, 1
    %s99 = scalar_select %p96, %s97, %s98
    %p102 = pneg %p96
    %p103 = scmp.eq.s32.totalorder %s9, 1
    %p104 = por %p102, %p103
    %p105 = scmp.ne.s32.totalorder %s97, %s100
    %p106 = scmp.eq.s32.totalorder %s9, 0
    %p107 = por %p105, %p106
    %p108 = scmp.ne.s32.totalorder %s97, %s100
    %p109 = scmp.eq.s32.totalorder %s14, 1
    %p110 = por %p108, %p109
    %p111 = scmp.ne.s32.totalorder %s100, %s101
    %p112 = scmp.eq.s32.totalorder %s14, 0
    %p113 = por %p111, %p112
    %p114 = scmp.ne.s32.totalorder %s100, %s101
    %p115 = scmp.eq.s32.totalorder %s15, 1
    %p116 = por %p114, %p115
    %p118 = scmp.ne.s32.totalorder %s101, %s117
    %p119 = scmp.eq.s32.totalorder %s15, 0
    %p120 = por %p118, %p119
    %p121 = scmp.le.s32.totalorder 1, %s9
    %p122 = scmp.lt.s32.totalorder %s9, 3
    %p123 = pnand %p121, %p122
    %p124 = pneg %p123
    // Predicated region
    $region9: #{spade_resnet_forward.59} parent=5 // pred_check
      _
    $region10: #{spade_resnet_forward.59} parent=5 // pred_check_branch
      %126 = sbr.rel (%p123) target = $region12
    $region11: #{spade_resnet_forward.59} parent=5 // pred_region
      %s127 = ssub.s32 %s9, 1
    $region12: #{spade_resnet_forward.59} parent=5 // pred_fallthru
      _
    %p128 = scmp.lt.s32.totalorder %s9, 2
    // Predicated region
    $region13: #{spade_resnet_forward.59} parent=5 // pred_check
      %p129 = pneg %p128
    $region14: #{spade_resnet_forward.59} parent=5 // pred_check_branch
      %131 = sbr.rel (%p129) target = $region16
    $region15: #{spade_resnet_forward.59} parent=5 // pred_region
      // Predicated region
      $region17: #{spade_resnet_forward.59} parent=15 // pred_check
        %p132 = pneg %p29
      $region18: #{spade_resnet_forward.59} parent=15 // pred_check_branch
        %134 = sbr.rel (%p132) target = $region20
      $region19: #{spade_resnet_forward.59} parent=15 // pred_region
        %p135 = scmp.lt.s32.totalorder %s9, 1
        %s136 = scalar_select %p135, %s9, 1
        %s137 = smul.addr %s136, 2
        %s138 = smul.addr %s137, 8
        %s139 = scalar_lea.vmem %s0, %s138
      $region20: #{spade_resnet_forward.59} parent=15 // pred_fallthru
        _
      // Predicated region
      $region21: #{spade_resnet_forward.59} parent=15 // pred_check
        %p140 = pneg %p55
      $region22: #{spade_resnet_forward.59} parent=15 // pred_check_branch
        %142 = sbr.rel (%p140) target = $region24
      $region23: #{spade_resnet_forward.59} parent=15 // pred_region
        %p143 = scmp.lt.s32.totalorder %s9, 1
        %s144 = scalar_select %p143, %s9, 1
        %s145 = smul.addr %s144, 2
        %s146 = smul.addr %s145, 8
        %s147 = scalar_lea.vmem %s1, %s146
      $region24: #{spade_resnet_forward.59} parent=15 // pred_fallthru
        _
      // Predicated region
      $region25: #{spade_resnet_forward.59} parent=15 // pred_check
        %p148 = pneg %p81
      $region26: #{spade_resnet_forward.59} parent=15 // pred_check_branch
        %150 = sbr.rel (%p148) target = $region28
      $region27: #{spade_resnet_forward.59} parent=15 // pred_region
        %p151 = scmp.lt.s32.totalorder %s9, 1
        %s152 = scalar_select %p151, %s9, 1
        %s153 = smul.addr %s152, 2
        %s154 = smul.addr %s153, 8
        %s155 = scalar_lea.vmem %s2, %s154
      $region28: #{spade_resnet_forward.59} parent=15 // pred_fallthru
        _
    $region16: #{spade_resnet_forward.59} parent=5 // pred_fallthru
      _
    %p156 = scmp.le.s32.totalorder 1, %s9
    %p157 = scmp.lt.s32.totalorder %s9, 3
    %p158 = pnand %p156, %p157
    %p159 = pneg %p158
    // Predicated region
    $region29: #{spade_resnet_forward.59} parent=5 // pred_check
      _
    $region30: #{spade_resnet_forward.59} parent=5 // pred_check_branch
      %161 = sbr.rel (%p158) target = $region32
    $region31: #{spade_resnet_forward.59} parent=5 // pred_region
      %s162 = ssub.s32 %s9, 1
      %p163 = scmp.lt.s32.totalorder %s14, 1
      %s164 = scalar_select %p163, %s14, 1
      %s165 = smul.addr %s164, 2
      %s166 = smul.addr %s165, 8
      %s167 = scalar_lea.vmem %s0, %s166
      %p168 = pneg %p35
      %p169 = pneg %p32
      %p170 = scmp.lt.s32.totalorder %s14, 1
      %s171 = scalar_select %p170, %s14, 1
      %s172 = smul.addr %s171, 2
      %s173 = smul.addr %s172, 8
      %s174 = scalar_lea.vmem %s1, %s173
      %p175 = pneg %p61
      %p176 = pneg %p58
      %p177 = scmp.lt.s32.totalorder %s14, 1
      %s178 = scalar_select %p177, %s14, 1
      %s179 = smul.addr %s178, 2
      %s180 = smul.addr %s179, 8
      %s181 = scalar_lea.vmem %s2, %s180
      %p182 = pneg %p87
      %p183 = pneg %p84
      %p184 = pneg %p113
      %p185 = pneg %p110
      %p186 = scmp.lt.s32.totalorder %s14, 1
      %s187 = scalar_select %p186, %s14, 1
      %s188 = smul.addr %s187, 2
      %s189 = smul.addr %s188, 8
      %s190 = scalar_lea.vmem %s3, %s189
      %p191 = scmp.lt.s32.totalorder %s14, 1
      %s192 = scalar_select %p191, %s14, 1
      %s193 = smul.addr %s192, 2
      %s194 = smul.addr %s193, 8
      %s195 = scalar_lea.vmem %s0, %s194
      %p196 = scmp.lt.s32.totalorder %s14, 1
      %s197 = scalar_select %p196, %s14, 1
      %s198 = smul.addr %s197, 2
      %s199 = smul.addr %s198, 8
      %s200 = scalar_lea.vmem %s1, %s199
      %p201 = scmp.lt.s32.totalorder %s14, 1
      %s202 = scalar_select %p201, %s14, 1
      %s203 = smul.addr %s202, 2
      %s204 = smul.addr %s203, 8
      %s205 = scalar_lea.vmem %s2, %s204
      %p206 = scmp.lt.s32.totalorder %s14, 1
      %s207 = scalar_select %p206, %s14, 1
      %s208 = smul.addr %s207, 2
      %s209 = smul.addr %s208, 8
      %s210 = scalar_lea.vmem %s3, %s209
      %v211 = vld [vmem:[%s195] sm:$0xff]
      %v212 = vld [vmem:[%s195 + $0x8] sm:$0xff]
      %vm213 = vcmask 261120
      %v214 = vsel %vm213, %v211, 0.0
      %v215 = vsel %vm213, %v212, 0.0
      %v216 = vadd.f32 %v214, %v215
      %v217 = vrot.slane %v216, 4
      %v218 = vadd.f32 %v216, %v217
      %v219 = vrot.slane %v218, 2
      %v220 = vadd.f32 %v218, %v219
      %v221 = vrot.slane %v220, 1
      %v222 = vadd.f32 %v220, %v221
      %v223 = vrcp.pop 16.0
      %v224 = vmul.f32 %v222, %v223
      %v225 = vsub.f32 %v211, %v224
      %v226 = vsub.f32 %v212, %v224
      %v227 = vmul.f32 %v225, %v225
      %v228 = vmul.f32 %v226, %v226
      %v229 = vsel %vm213, %v227, 0.0
      %v230 = vsel %vm213, %v228, 0.0
      %v231 = vadd.f32 %v229, %v230
      %v232 = vrot.slane %v231, 4
      %v233 = vadd.f32 %v231, %v232
      %v234 = vrot.slane %v233, 2
      %v235 = vadd.f32 %v233, %v234
      %v236 = vrot.slane %v235, 1
      %v237 = vadd.f32 %v235, %v236
      %v238 = vmul.f32 %v237, %v223
      %v239 = vadd.f32 %v238, 1e-05
      %v240 = vrsqrt.pop %v239
      %v241 = vmul.f32 %v225, %v240
      %v242 = vmul.f32 %v226, %v240
      %v243 = vld [vmem:[%s200] sm:$0xff]
      %v244 = vld [vmem:[%s200 + $0x8] sm:$0xff]
      %v245 = vadd.f32 %v243, 1.0
      %v246 = vadd.f32 %v244, 1.0
      %v247 = vmul.f32 %v241, %v245
      %v248 = vmul.f32 %v242, %v246
      %v249 = vld [vmem:[%s205] sm:$0xff]
      %v250 = vld [vmem:[%s205 + $0x8] sm:$0xff]
      %v251 = vadd.f32 %v247, %v249
      %v252 = vadd.f32 %v248, %v250
      %vm253 = vcmp.ge.f32.partialorder %v251, 0.0
      %vm254 = vcmp.ge.f32.partialorder %v252, 0.0
      %v255 = vmul.f32 %v251, 0.2
      %v256 = vmul.f32 %v252, 0.2
      %v257 = vsel %vm253, %v251, %v255
      %v258 = vsel %vm254, %v252, %v256
      %259 = vst.msk [vmem:[%s210] sm:$0xff] %vm213, %v257
      %260 = vst.msk [vmem:[%s210 + $0x8] sm:$0xff] %vm213, %v258
      %p261 = scmp.lt.s32.totalorder %s14, 1
      %s262 = scalar_select %p261, %s14, 1
      %s263 = smul.addr %s262, 2
      %s264 = smul.addr %s263, 8
      %s265 = scalar_lea.vmem %s3, %s264
      // Predicated region
      $region33: #{spade_resnet_forward.59} parent=31 // pred_check
        %p266 = pneg %p110
      $region34: #{spade_resnet_forward.59} parent=31 // pred_check_branch
        %268 = sbr.rel (%p266) target = $region36
      $region35: #{spade_resnet_forward.59} parent=31 // pred_region
        _
      $region36: #{spade_resnet_forward.59} parent=31 // pred_fallthru
        _
    $region32: #{spade_resnet_forward.59} parent=5 // pred_fallthru
      _
    %p269 = scmp.le.s32.totalorder 2, %s9
    // Predicated region
    $region37: #{spade_resnet_forward.59} parent=5 // pred_check
      %p270 = pneg %p269
    $region38: #{spade_resnet_forward.59} parent=5 // pred_check_branch
      %272 = sbr.rel (%p270) target = $region40
    $region39: #{spade_resnet_forward.59} parent=5 // pred_region
      %s273 = ssub.s32 %s9, 2
      // Predicated region
      $region41: #{spade_resnet_forward.59} parent=39 // pred_check
        %p274 = pneg %p116
      $region42: #{spade_resnet_forward.59} parent=39 // pred_check_branch
        %276 = sbr.rel (%p274) target = $region44
      $region43: #{spade_resnet_forward.59} parent=39 // pred_region
        %p277 = scmp.lt.s32.totalorder %s15, 1
        %s278 = scalar_select %p277, %s15, 1
        %s279 = smul.addr %s278, 2
        %s280 = smul.addr %s279, 8
        %s281 = scalar_lea.vmem %s3, %s280
      $region44: #{spade_resnet_forward.59} parent=39 // pred_fallthru
        _
    $region40: #{spade_resnet_forward.59} parent=5 // pred_fallthru
      _
  $region6: #{spade_resnet_forward.59} parent=0 // loop_footer
    %s13 = sadd.s32 1, %s9
  $region7: #{spade_resnet_forward.59} parent=0 // loop_footer_branch
    %8 = sbr.rel target = $region3
  $region8: #{spade_resnet_forward.59} parent=0 // loop_exit
    _

// kernel: spade_resnet_forward.60
$region0: #{spade_resnet_forward.60}
  #allocation0 [shape = 'u32[]', space=smem, size = 0x4, offset = 0x4, fixed_abs, tag = 'smem constant byte address 0x4 - core index']
  #allocation1 [shape = 'u32[144,128]{1,0:T(1,128)}', space=vmem, size = 0x12000, scoped, tag = 'internal scratch']
  %s0 = inlined_call_operand.vmem [shape: f32[2,38,32], index: 0, kind: input, shape index: {}]
  %s1 = inlined_call_operand.vmem [shape: bf16[9,32,32], index: 1, kind: input, shape index: {}]
  %s2 = inlined_call_operand.vmem [shape: f32[1,32], index: 2, kind: input, shape index: {}]
  %s3 = inlined_call_operand.vmem [shape: f32[2,24,32], index: 3, kind: output, shape index: {}]
  %s4 = sld [smem:[#allocation0]]
  $region45: #{spade_resnet_forward.60} parent=0
    _
  %s6 = ssub.s32 1, %s4
  %s7 = scalar_select 0, %s6, %s4
  loop: start=0, step=1, limit=4
  $region2: #{spade_resnet_forward.60} parent=0 // loop_pre_header
    _
  $region3: #{spade_resnet_forward.60} parent=0 // loop_header
    %s9 = sphi 0, %s13
    %p10 = scmp.ge.s32.totalorder %s9, 4
    %s16 = sphi 0, %s28
    %s17 = sphi 0, %s24
    %s18 = sphi 0, %s16
    %s19 = sphi 0, %s17
    %s20 = sphi 0, %s18
    %s21 = sphi 0, %s19
    %s31 = sphi 0, %s33
    %s34 = sphi 0, %s31
    %s35 = sphi 0, %s34
    %s51 = sphi 0, %s35
    %s57 = sphi 0, %s59
    %s60 = sphi 0, %s57
    %s61 = sphi 0, %s60
    %s77 = sphi 0, %s61
    %s83 = sphi 0, %s85
    %s86 = sphi 0, %s83
    %s87 = sphi 0, %s86
    %s103 = sphi 0, %s87
    %s111 = sphi 0, %s113
    %s114 = sphi 0, %s111
    %s115 = sphi 0, %s114
    %s131 = sphi 0, %s115
  $region4: #{spade_resnet_forward.60} parent=0 // loop_header_branch
    %12 = sbr.rel (%p10) target = $region8
  $region5: #{spade_resnet_forward.60} parent=0 // loop_body
    %s14 = ssub.s32 %s9, 1
    %s15 = ssub.s32 %s9, 2
    %s22 = sadd.s32 1, %s17
    %p23 = scmp.ge.s32.totalorder %s22, 1
    %s24 = scalar_select %p23, 0, %s22
    %s25 = sadd.s32 1, %s16
    %s26 = scalar_select %p23, %s25, %s16
    %p27 = scmp.ge.s32.totalorder %s26, 2
    %s28 = scalar_select %p27, 0, %s26
    %s29 = ssub.s32 %s16, %s28
    %p30 = scmp.eq.s32.totalorder %s29, 0
    %s32 = sadd.s32 %s31, 1
    %s33 = scalar_select %p30, %s31, %s32
    %p36 = pneg %p30
    %p37 = scmp.eq.s32.totalorder %s9, 1
    %p38 = por %p36, %p37
    %p39 = scmp.ne.s32.totalorder %s31, %s34
    %p40 = scmp.eq.s32.totalorder %s9, 0
    %p41 = por %p39, %p40
    %p42 = scmp.ne.s32.totalorder %s31, %s34
    %p43 = scmp.eq.s32.totalorder %s14, 1
    %p44 = por %p42, %p43
    %p45 = scmp.ne.s32.totalorder %s34, %s35
    %p46 = scmp.eq.s32.totalorder %s14, 0
    %p47 = por %p45, %p46
    %p48 = scmp.ne.s32.totalorder %s34, %s35
    %p49 = scmp.eq.s32.totalorder %s15, 1
    %p50 = por %p48, %p49
    %p52 = scmp.ne.s32.totalorder %s35, %s51
    %p53 = scmp.eq.s32.totalorder %s15, 0
    %p54 = por %p52, %p53
    %s55 = ssub.s32 %s17, %s24
    %p56 = scmp.eq.s32.totalorder %s55, 0
    %s58 = sadd.s32 %s57, 1
    %s59 = scalar_select %p56, %s57, %s58
    %p62 = pneg %p56
    %p63 = scmp.eq.s32.totalorder %s9, 1
    %p64 = por %p62, %p63
    %p65 = scmp.ne.s32.totalorder %s57, %s60
    %p66 = scmp.eq.s32.totalorder %s9, 0
    %p67 = por %p65, %p66
    %p68 = scmp.ne.s32.totalorder %s57, %s60
    %p69 = scmp.eq.s32.totalorder %s14, 1
    %p70 = por %p68, %p69
    %p71 = scmp.ne.s32.totalorder %s60, %s61
    %p72 = scmp.eq.s32.totalorder %s14, 0
    %p73 = por %p71, %p72
    %p74 = scmp.ne.s32.totalorder %s60, %s61
    %p75 = scmp.eq.s32.totalorder %s15, 1
    %p76 = por %p74, %p75
    %p78 = scmp.ne.s32.totalorder %s61, %s77
    %p79 = scmp.eq.s32.totalorder %s15, 0
    %p80 = por %p78, %p79
    %s81 = ssub.s32 %s17, %s24
    %p82 = scmp.eq.s32.totalorder %s81, 0
    %s84 = sadd.s32 %s83, 1
    %s85 = scalar_select %p82, %s83, %s84
    %p88 = pneg %p82
    %p89 = scmp.eq.s32.totalorder %s9, 1
    %p90 = por %p88, %p89
    %p91 = scmp.ne.s32.totalorder %s83, %s86
    %p92 = scmp.eq.s32.totalorder %s9, 0
    %p93 = por %p91, %p92
    %p94 = scmp.ne.s32.totalorder %s83, %s86
    %p95 = scmp.eq.s32.totalorder %s14, 1
    %p96 = por %p94, %p95
    %p97 = scmp.ne.s32.totalorder %s86, %s87
    %p98 = scmp.eq.s32.totalorder %s14, 0
    %p99 = por %p97, %p98
    %p100 = scmp.ne.s32.totalorder %s86, %s87
    %p101 = scmp.eq.s32.totalorder %s15, 1
    %p102 = por %p100, %p101
    %p104 = scmp.ne.s32.totalorder %s87, %s103
    %p105 = scmp.eq.s32.totalorder %s15, 0
    %p106 = por %p104, %p105
    %s107 = ssub.s32 %s16, %s28
    %s108 = ssub.s32 %s17, %s24
    %s109 = sor.u32 %s107, %s108
    %p110 = scmp.eq.s32.totalorder %s109, 0
    %s112 = sadd.s32 %s111, 1
    %s113 = scalar_select %p110, %s111, %s112
    %p116 = pneg %p110
    %p117 = scmp.eq.s32.totalorder %s9, 1
    %p118 = por %p116, %p117
    %p119 = scmp.ne.s32.totalorder %s111, %s114
    %p120 = scmp.eq.s32.totalorder %s9, 0
    %p121 = por %p119, %p120
    %p122 = scmp.ne.s32.totalorder %s111, %s114
    %p123 = scmp.eq.s32.totalorder %s14, 1
    %p124 = por %p122, %p123
    %p125 = scmp.ne.s32.totalorder %s114, %s115
    %p126 = scmp.eq.s32.totalorder %s14, 0
    %p127 = por %p125, %p126
    %p128 = scmp.ne.s32.totalorder %s114, %s115
    %p129 = scmp.eq.s32.totalorder %s15, 1
    %p130 = por %p128, %p129
    %p132 = scmp.ne.s32.totalorder %s115, %s131
    %p133 = scmp.eq.s32.totalorder %s15, 0
    %p134 = por %p132, %p133
    %p135 = scmp.le.s32.totalorder 1, %s9
    %p136 = scmp.lt.s32.totalorder %s9, 3
    %p137 = pnand %p135, %p136
    %p138 = pneg %p137
    // Predicated region
    $region9: #{spade_resnet_forward.60} parent=5 // pred_check
      _
    $region10: #{spade_resnet_forward.60} parent=5 // pred_check_branch
      %140 = sbr.rel (%p137) target = $region12
    $region11: #{spade_resnet_forward.60} parent=5 // pred_region
      %s141 = ssub.s32 %s9, 1
      // Predicated region
      $region13: #{spade_resnet_forward.60} parent=11 // pred_check
        %p142 = pneg %p73
      $region14: #{spade_resnet_forward.60} parent=11 // pred_check_branch
        %144 = sbr.rel (%p142) target = $region16
      $region15: #{spade_resnet_forward.60} parent=11 // pred_region
        %p145 = scmp.lt.s32.totalorder %s19, 0
        %s146 = scalar_select %p145, %s19, 0
        %s147 = smul.addr %s146, 4
        %s148 = scalar_lea.vmem %s1, %s147
      $region16: #{spade_resnet_forward.60} parent=11 // pred_fallthru
        _
      // Predicated region
      $region17: #{spade_resnet_forward.60} parent=11 // pred_check
        %p149 = pneg %p99
      $region18: #{spade_resnet_forward.60} parent=11 // pred_check_branch
        %151 = sbr.rel (%p149) target = $region20
      $region19: #{spade_resnet_forward.60} parent=11 // pred_region
        %p152 = scmp.lt.s32.totalorder %s19, 0
        %s153 = scalar_select %p152, %s19, 0
        %s154 = scalar_lea.vmem %s2, %s153
      $region20: #{spade_resnet_forward.60} parent=11 // pred_fallthru
        _
    $region12: #{spade_resnet_forward.60} parent=5 // pred_fallthru
      _
    %p155 = scmp.lt.s32.totalorder %s9, 2
    // Predicated region
    $region21: #{spade_resnet_forward.60} parent=5 // pred_check
      %p156 = pneg %p155
    $region22: #{spade_resnet_forward.60} parent=5 // pred_check_branch
      %158 = sbr.rel (%p156) target = $region24
    $region23: #{spade_resnet_forward.60} parent=5 // pred_region
      // Predicated region
      $region25: #{spade_resnet_forward.60} parent=23 // pred_check
        %p159 = pneg %p41
      $region26: #{spade_resnet_forward.60} parent=23 // pred_check_branch
        %161 = sbr.rel (%p159) target = $region28
      $region27: #{spade_resnet_forward.60} parent=23 // pred_region
        %p162 = scmp.lt.s32.totalorder %s16, 1
        %s163 = scalar_select %p162, %s16, 1
        %s164 = smul.addr %s163, 5
        %s165 = smul.addr %s164, 8
        %s166 = scalar_lea.vmem %s0, %s165
      $region28: #{spade_resnet_forward.60} parent=23 // pred_fallthru
        _
    $region24: #{spade_resnet_forward.60} parent=5 // pred_fallthru
      _
    %p167 = scmp.le.s32.totalorder 1, %s9
    %p168 = scmp.lt.s32.totalorder %s9, 3
    %p169 = pnand %p167, %p168
    %p170 = pneg %p169
    // Predicated region
    $region29: #{spade_resnet_forward.60} parent=5 // pred_check
      _
    $region30: #{spade_resnet_forward.60} parent=5 // pred_check_branch
      %172 = sbr.rel (%p169) target = $region32
    $region31: #{spade_resnet_forward.60} parent=5 // pred_region
      %s173 = ssub.s32 %s9, 1
      %p174 = scmp.lt.s32.totalorder %s18, 1
      %s175 = scalar_select %p174, %s18, 1
      %s176 = smul.addr %s175, 5
      %s177 = smul.addr %s176, 8
      %s178 = scalar_lea.vmem %s0, %s177
      %p179 = pneg %p47
      %p180 = pneg %p44
      %p181 = scmp.lt.s32.totalorder %s19, 0
      %s182 = scalar_select %p181, %s19, 0
      %s183 = smul.addr %s182, 4
      %s184 = scalar_lea.vmem %s1, %s183
      %p185 = pneg %p73
      %p186 = pneg %p70
      %p187 = scmp.lt.s32.totalorder %s19, 0
      %s188 = scalar_select %p187, %s19, 0
      %s189 = scalar_lea.vmem %s2, %s188
      %p190 = pneg %p99
      %p191 = pneg %p96
      %p192 = pneg %p127
      %p193 = pneg %p124
      %p194 = scmp.lt.s32.totalorder %s18, 1
      %s195 = scalar_select %p194, %s18, 1
      %p196 = scmp.lt.s32.totalorder %s19, 0
      %s197 = scalar_select %p196, %s19, 0
      %s198 = smul.addr %s195, 3
      %s199 = sadd.s32 %s197, %s198
      %s200 = smul.addr %s199, 8
      %s201 = scalar_lea.vmem %s3, %s200
      %p202 = scmp.lt.s32.totalorder %s18, 1
      %s203 = scalar_select %p202, %s18, 1
      %s204 = smul.addr %s203, 5
      %s205 = smul.addr %s204, 8
      %s206 = scalar_lea.vmem %s0, %s205
      %p207 = scmp.lt.s32.totalorder %s19, 0
      %s208 = scalar_select %p207, %s19, 0
      %s209 = smul.addr %s208, 4
      %s210 = scalar_lea.vmem %s1, %s209
      %p211 = scmp.lt.s32.totalorder %s19, 0
      %s212 = scalar_select %p211, %s19, 0
      %s213 = scalar_lea.vmem %s2, %s212
      %p214 = scmp.lt.s32.totalorder %s18, 1
      %s215 = scalar_select %p214, %s18, 1
      %p216 = scmp.lt.s32.totalorder %s19, 0
      %s217 = scalar_select %p216, %s19, 0
      %s218 = smul.addr %s215, 3
      %s219 = sadd.s32 %s217, %s218
      %s220 = smul.addr %s219, 8
      %s221 = scalar_lea.vmem %s3, %s220
      %v223 = vld [vmem:[%s206] sm:$0xff]
      %v224 = vld [vmem:[%s206 + $0x8] sm:$0xff]
      %v225 = vld [vmem:[%s206 + $0x10] sm:$0xff]
      %v226 = vpack.c.bf16 %v224, %v223
      %v227 = vpack.c.bf16 %v225, %v225
      %v228 = vld [vmem:[%s210] sm:$0xf]
      %v229 = vld [vmem:[%s210 + $0x4] sm:$0xf]
      %v230 = vld [vmem:[%s210 + $0x8] sm:$0xf]
      %v231 = vld [vmem:[%s210 + $0xc] sm:$0xf]
      %v232 = vld [vmem:[%s206 + $0x1] sm:$0xff]
      %v233 = vld [vmem:[%s206 + $0x9] sm:$0xff]
      %v234 = vld [vmem:[%s206 + $0x11] sm:$0xff]
      %v235 = vpack.c.bf16 %v233, %v232
      %v236 = vpack.c.bf16 %v234, %v234
      %s237 = scalar_lea.vmem %s210, 16
      %v238 = vld [vmem:[%s237] sm:$0xf]
      %v239 = vld [vmem:[%s237 + $0x4] sm:$0xf]
      %v240 = vld [vmem:[%s237 + $0x8] sm:$0xf]
      %v241 = vld [vmem:[%s237 + $0xc] sm:$0xf]
      %v246 = vunpack.c.l.b16 %v238
      %v247 = vunpack.c.l.b16 %v239
      %v248 = vunpack.c.l.b16 %v240
      %v249 = vunpack.c.l.b16 %v241
      %v250 = vpack.c.b16 %v247, %v246
      %v251 = vpack.c.b16 %v249, %v248
      %vm254 = vcmask 261120
      %v256 = vsel %vm254, %v235, 0
      %v259 = vsel %vm254, %v236, 0
      %261 = vmatprep.subr.bf16.mxu0 0
      %262 = vmatpush1.bf16.msra.mxu0 0
      %263 = vmatprep.subr.bf16.mxu0 0
      %264 = vmatpush1.bf16.msra.mxu0 0
      %265 = vmatprep.subr.bf16.mxu0 0
      %266 = vmatpush1.bf16.msra.mxu0 0
      %267 = vmatprep.subr.bf16.mxu0 0
      %268 = vmatpush1.bf16.msra.mxu0 0
      %269 = vmatprep.subr.bf16.mxu0 0
      %270 = vmatpush1.bf16.msra.mxu0 0
      %271 = vmatprep.subr.bf16.mxu0 0
      %272 = vmatpush1.bf16.msra.mxu0 0
      %273 = vmatprep.subr.bf16.mxu0 0
      %274 = vmatpush1.bf16.msra.mxu0 %v251
      %275 = vmatprep.subr.bf16.mxu0 0
      %276 = vmatpush1.bf16.msra.mxu0 %v250
      %277 = vmatprep.subr.bf16.mxu0 0
      %278 = vmatpush2.bf16.msra.mxu0 0
      %279 = vmatprep.subr.bf16.mxu0 0
      %280 = vmatpush2.bf16.msra.mxu0 0
      %281 = vmatprep.subr.bf16.mxu0 0
      %282 = vmatpush2.bf16.msra.mxu0 0
      %283 = vmatprep.subr.bf16.mxu0 0
      %284 = vmatpush2.bf16.msra.mxu0 0
      %285 = vmatprep.subr.bf16.mxu0 0
      %286 = vmatpush2.bf16.msra.mxu0 0
      %287 = vmatprep.subr.bf16.mxu0 0
      %288 = vmatpush2.bf16.msra.mxu0 0
      %289 = vmatprep.subr.bf16.mxu0 0
      %290 = vmatpush2.bf16.msra.mxu0 0
      %291 = vmatprep.subr.bf16.mxu0 0
      %292 = vmatpush2.bf16.msra.mxu0 0
      %293 = vmatprep.mubr.bf16.mxu0 0
      %294 = vmatmul.mubr.bf16.gmra.mxu0 %v256
      %v295 = vpop.f32.mrf.mxu0
      %v296 = vadd.f32 0.0, %v295
      %v297 = vpop.f32.mrf.mxu0
      %v298 = vpop.f32.mrf.mxu0
      %v299 = vadd.f32 0.0, %v298
      %v300 = vpop.f32.mrf.mxu0
      %301 = vmatprep.mubr.bf16.mxu0 0
      %302 = vmatmul.mubr.bf16.gmra.mxu0 %v259
      %v303 = vpop.f32.mrf.mxu0
      %v304 = vadd.f32 0.0, %v303
      %v305 = vpop.f32.mrf.mxu0
      %v306 = vpop.f32.mrf.mxu0
      %v307 = vpop.f32.mrf.mxu0
      %308 = vdwg.mxu0
      %v313 = vunpack.c.l.b16 %v228
      %v314 = vunpack.c.l.b16 %v229
      %v315 = vunpack.c.l.b16 %v230
      %v316 = vunpack.c.l.b16 %v231
      %v317 = vpack.c.b16 %v314, %v313
      %v318 = vpack.c.b16 %v316, %v315
      %v322 = vsel %vm254, %v226, 0
      %v325 = vsel %vm254, %v227, 0
      %327 = vmatprep.subr.bf16.mxu0 0
      %328 = vmatpush1.bf16.msra.mxu0 0
      %329 = vmatprep.subr.bf16.mxu0 0
      %330 = vmatpush1.bf16.msra.mxu0 0
      %331 = vmatprep.subr.bf16.mxu0 0
      %332 = vmatpush1.bf16.msra.mxu0 0
      %333 = vmatprep.subr.bf16.mxu0 0
      %334 = vmatpush1.bf16.msra.mxu0 0
      %335 = vmatprep.subr.bf16.mxu0 0
      %336 = vmatpush1.bf16.msra.mxu0 0
      %337 = vmatprep.subr.bf16.mxu0 0
      %338 = vmatpush1.bf16.msra.mxu0 0
      %339 = vmatprep.subr.bf16.mxu0 0
      %340 = vmatpush1.bf16.msra.mxu0 %v318
      %341 = vmatprep.subr.bf16.mxu0 0
      %342 = vmatpush1.bf16.msra.mxu0 %v317
      %343 = vmatprep.subr.bf16.mxu0 0
      %344 = vmatpush2.bf16.msra.mxu0 0
      %345 = vmatprep.subr.bf16.mxu0 0
      %346 = vmatpush2.bf16.msra.mxu0 0
      %347 = vmatprep.subr.bf16.mxu0 0
      %348 = vmatpush2.bf16.msra.mxu0 0
      %349 = vmatprep.subr.bf16.mxu0 0
      %350 = vmatpush2.bf16.msra.mxu0 0
      %351 = vmatprep.subr.bf16.mxu0 0
      %352 = vmatpush2.bf16.msra.mxu0 0
      %353 = vmatprep.subr.bf16.mxu0 0
      %354 = vmatpush2.bf16.msra.mxu0 0
      %355 = vmatprep.subr.bf16.mxu0 0
      %356 = vmatpush2.bf16.msra.mxu0 0
      %357 = vmatprep.subr.bf16.mxu0 0
      %358 = vmatpush2.bf16.msra.mxu0 0
      %359 = vmatprep.mubr.bf16.mxu0 0
      %360 = vmatmul.mubr.bf16.gmra.mxu0 %v322
      %v361 = vpop.f32.mrf.mxu0
      %v362 = vadd.f32 %v296, %v361
      %v363 = vpop.f32.mrf.mxu0
      %v364 = vpop.f32.mrf.mxu0
      %v365 = vadd.f32 %v299, %v364
      %v366 = vpop.f32.mrf.mxu0
      %367 = vmatprep.mubr.bf16.mxu0 0
      %368 = vmatmul.mubr.bf16.gmra.mxu0 %v325
      %v369 = vpop.f32.mrf.mxu0
      %v370 = vadd.f32 %v304, %v369
      %v371 = vpop.f32.mrf.mxu0
      %v372 = vpop.f32.mrf.mxu0
      %v373 = vpop.f32.mrf.mxu0
      %374 = vdwg.mxu0
      %v375 = vld [vmem:[%s206 + $0x2] sm:$0xff]
      %v376 = vld [vmem:[%s206 + $0xa] sm:$0xff]
      %v377 = vld [vmem:[%s206 + $0x12] sm:$0xff]
      %v378 = vpack.c.bf16 %v376, %v375
      %v379 = vpack.c.bf16 %v377, %v377
      %s380 = scalar_lea.vmem %s210, 32
      %v381 = vld [vmem:[%s380] sm:$0xf]
      %v382 = vld [vmem:[%s380 + $0x4] sm:$0xf]
      %v383 = vld [vmem:[%s380 + $0x8] sm:$0xf]
      %v384 = vld [vmem:[%s380 + $0xc] sm:$0xf]
      %v389 = vunpack.c.l.b16 %v381
      %v390 = vunpack.c.l.b16 %v382
      %v391 = vunpack.c.l.b16 %v383
      %v392 = vunpack.c.l.b16 %v384
      %v393 = vpack.c.b16 %v390, %v389
      %v394 = vpack.c.b16 %v392, %v391
      %v398 = vsel %vm254, %v378, 0
      %v401 = vsel %vm254, %v379, 0
      %403 = vmatprep.subr.bf16.mxu0 0
      %404 = vmatpush1.bf16.msra.mxu0 0
      %405 = vmatprep.subr.bf16.mxu0 0
      %406 = vmatpush1.bf16.msra.mxu0 0
      %407 = vmatprep.subr.bf16.mxu0 0
      %408 = vmatpush1.bf16.msra.mxu0 0
      %409 = vmatprep.subr.bf16.mxu0 0
      %410 = vmatpush1.bf16.msra.mxu0 0
      %411 = vmatprep.subr.bf16.mxu0 0
      %412 = vmatpush1.bf16.msra.mxu0 0
      %413 = vmatprep.subr.bf16.mxu0 0
      %414 = vmatpush1.bf16.msra.mxu0 0
      %415 = vmatprep.subr.bf16.mxu0 0
      %416 = vmatpush1.bf16.msra.mxu0 %v394
      %417 = vmatprep.subr.bf16.mxu0 0
      %418 = vmatpush1.bf16.msra.mxu0 %v393
      %419 = vmatprep.subr.bf16.mxu0 0
      %420 = vmatpush2.bf16.msra.mxu0 0
      %421 = vmatprep.subr.bf16.mxu0 0
      %422 = vmatpush2.bf16.msra.mxu0 0
      %423 = vmatprep.subr.bf16.mxu0 0
      %424 = vmatpush2.bf16.msra.mxu0 0
      %425 = vmatprep.subr.bf16.mxu0 0
      %426 = vmatpush2.bf16.msra.mxu0 0
      %427 = vmatprep.subr.bf16.mxu0 0
      %428 = vmatpush2.bf16.msra.mxu0 0
      %429 = vmatprep.subr.bf16.mxu0 0
      %430 = vmatpush2.bf16.msra.mxu0 0
      %431 = vmatprep.subr.bf16.mxu0 0
      %432 = vmatpush2.bf16.msra.mxu0 0
      %433 = vmatprep.subr.bf16.mxu0 0
      %434 = vmatpush2.bf16.msra.mxu0 0
      %435 = vmatprep.mubr.bf16.mxu0 0
      %436 = vmatmul.mubr.bf16.gmra.mxu0 %v398
      %v437 = vpop.f32.mrf.mxu0
      %v438 = vadd.f32 0.0, %v437
      %v439 = vpop.f32.mrf.mxu0
      %v440 = vpop.f32.mrf.mxu0
      %v441 = vadd.f32 0.0, %v440
      %v442 = vpop.f32.mrf.mxu0
      %443 = vmatprep.mubr.bf16.mxu0 0
      %444 = vmatmul.mubr.bf16.gmra.mxu0 %v401
      %v445 = vpop.f32.mrf.mxu0
      %v446 = vadd.f32 0.0, %v445
      %v447 = vpop.f32.mrf.mxu0
      %v448 = vpop.f32.mrf.mxu0
      %v449 = vpop.f32.mrf.mxu0
      %450 = vdwg.mxu0
      %v451 = vadd.f32 %v362, %v438
      %v452 = vadd.f32 %v365, %v441
      %v453 = vadd.f32 %v370, %v446
      %v454 = vld [vmem:[%s206 + $0x6] sm:$0xff]
      %v455 = vld [vmem:[%s206 + $0xe] sm:$0xff]
      %v456 = vld [vmem:[%s206 + $0x16] sm:$0xff]
      %v457 = vpack.c.bf16 %v455, %v454
      %v458 = vpack.c.bf16 %v456, %v456
      %s459 = scalar_lea.vmem %s210, 48
      %v460 = vld [vmem:[%s459] sm:$0xf]
      %v461 = vld [vmem:[%s459 + $0x4] sm:$0xf]
      %v462 = vld [vmem:[%s459 + $0x8] sm:$0xf]
      %v463 = vld [vmem:[%s459 + $0xc] sm:$0xf]
      %v468 = vunpack.c.l.b16 %v460
      %v469 = vunpack.c.l.b16 %v461
      %v470 = vunpack.c.l.b16 %v462
      %v471 = vunpack.c.l.b16 %v463
      %v472 = vpack.c.b16 %v469, %v468
      %v473 = vpack.c.b16 %v471, %v470
      %v477 = vsel %vm254, %v457, 0
      %v480 = vsel %vm254, %v458, 0
      %482 = vmatprep.subr.bf16.mxu0 0
      %483 = vmatpush1.bf16.msra.mxu0 0
      %484 = vmatprep.subr.bf16.mxu0 0
      %485 = vmatpush1.bf16.msra.mxu0 0
      %486 = vmatprep.subr.bf16.mxu0 0
      %487 = vmatpush1.bf16.msra.mxu0 0
      %488 = vmatprep.subr.bf16.mxu0 0
      %489 = vmatpush1.bf16.msra.mxu0 0
      %490 = vmatprep.subr.bf16.mxu0 0
      %491 = vmatpush1.bf16.msra.mxu0 0
      %492 = vmatprep.subr.bf16.mxu0 0
      %493 = vmatpush1.bf16.msra.mxu0 0
      %494 = vmatprep.subr.bf16.mxu0 0
      %495 = vmatpush1.bf16.msra.mxu0 %v473
      %496 = vmatprep.subr.bf16.mxu0 0
      %497 = vmatpush1.bf16.msra.mxu0 %v472
      %498 = vmatprep.subr.bf16.mxu0 0
      %499 = vmatpush2.bf16.msra.mxu0 0
      %500 = vmatprep.subr.bf16.mxu0 0
      %501 = vmatpush2.bf16.msra.mxu0 0
      %502 = vmatprep.subr.bf16.mxu0 0
      %503 = vmatpush2.bf16.msra.mxu0 0
      %504 = vmatprep.subr.bf16.mxu0 0
      %505 = vmatpush2.bf16.msra.mxu0 0
      %506 = vmatprep.subr.bf16.mxu0 0
      %507 = vmatpush2.bf16.msra.mxu0 0
      %508 = vmatprep.subr.bf16.mxu0 0
      %509 = vmatpush2.bf16.msra.mxu0 0
      %510 = vmatprep.subr.bf16.mxu0 0
      %511 = vmatpush2.bf16.msra.mxu0 0
      %512 = vmatprep.subr.bf16.mxu0 0
      %513 = vmatpush2.bf16.msra.mxu0 0
      %514 = vmatprep.mubr.bf16.mxu0 0
      %515 = vmatmul.mubr.bf16.gmra.mxu0 %v477
      %v516 = vpop.f32.mrf.mxu0
      %v517 = vadd.f32 0.0, %v516
      %v518 = vpop.f32.mrf.mxu0
      %v519 = vpop.f32.mrf.mxu0
      %v520 = vadd.f32 0.0, %v519
      %v521 = vpop.f32.mrf.mxu0
      %522 = vmatprep.mubr.bf16.mxu0 0
      %523 = vmatmul.mubr.bf16.gmra.mxu0 %v480
      %v524 = vpop.f32.mrf.mxu0
      %v525 = vadd.f32 0.0, %v524
      %v526 = vpop.f32.mrf.mxu0
      %v527 = vpop.f32.mrf.mxu0
      %v528 = vpop.f32.mrf.mxu0
      %529 = vdwg.mxu0
      %v530 = vadd.f32 %v451, %v517
      %v531 = vadd.f32 %v452, %v520
      %v532 = vadd.f32 %v453, %v525
      %v533 = vld [vmem:[%s206 + $0x7] sm:$0xff]
      %v534 = vld [vmem:[%s206 + $0xf] sm:$0xff]
      %v535 = vld [vmem:[%s206 + $0x17] sm:$0xff]
      %v536 = vpack.c.bf16 %v534, %v533
      %v537 = vpack.c.bf16 %v535, %v535
      %s538 = scalar_lea.vmem %s210, 64
      %v539 = vld [vmem:[%s538] sm:$0xf]
      %v540 = vld [vmem:[%s538 + $0x4] sm:$0xf]
      %v541 = vld [vmem:[%s538 + $0x8] sm:$0xf]
      %v542 = vld [vmem:[%s538 + $0xc] sm:$0xf]
      %v547 = vunpack.c.l.b16 %v539
      %v548 = vunpack.c.l.b16 %v540
      %v549 = vunpack.c.l.b16 %v541
      %v550 = vunpack.c.l.b16 %v542
      %v551 = vpack.c.b16 %v548, %v547
      %v552 = vpack.c.b16 %v550, %v549
      %v556 = vsel %vm254, %v536, 0
      %v559 = vsel %vm254, %v537, 0
      %561 = vmatprep.subr.bf16.mxu0 0
      %562 = vmatpush1.bf16.msra.mxu0 0
      %563 = vmatprep.subr.bf16.mxu0 0
      %564 = vmatpush1.bf16.msra.mxu0 0
      %565 = vmatprep.subr.bf16.mxu0 0
      %566 = vmatpush1.bf16.msra.mxu0 0
      %567 = vmatprep.subr.bf16.mxu0 0
      %568 = vmatpush1.bf16.msra.mxu0 0
      %569 = vmatprep.subr.bf16.mxu0 0
      %570 = vmatpush1.bf16.msra.mxu0 0
      %571 = vmatprep.subr.bf16.mxu0 0
      %572 = vmatpush1.bf16.msra.mxu0 0
      %573 = vmatprep.subr.bf16.mxu0 0
      %574 = vmatpush1.bf16.msra.mxu0 %v552
      %575 = vmatprep.subr.bf16.mxu0 0
      %576 = vmatpush1.bf16.msra.mxu0 %v551
      %577 = vmatprep.subr.bf16.mxu0 0
      %578 = vmatpush2.bf16.msra.mxu0 0
      %579 = vmatprep.subr.bf16.mxu0 0
      %580 = vmatpush2.bf16.msra.mxu0 0
      %581 = vmatprep.subr.bf16.mxu0 0
      %582 = vmatpush2.bf16.msra.mxu0 0
      %583 = vmatprep.subr.bf16.mxu0 0
      %584 = vmatpush2.bf16.msra.mxu0 0
      %585 = vmatprep.subr.bf16.mxu0 0
      %586 = vmatpush2.bf16.msra.mxu0 0
      %587 = vmatprep.subr.bf16.mxu0 0
      %588 = vmatpush2.bf16.msra.mxu0 0
      %589 = vmatprep.subr.bf16.mxu0 0
      %590 = vmatpush2.bf16.msra.mxu0 0
      %591 = vmatprep.subr.bf16.mxu0 0
      %592 = vmatpush2.bf16.msra.mxu0 0
      %593 = vmatprep.mubr.bf16.mxu0 0
      %594 = vmatmul.mubr.bf16.gmra.mxu0 %v556
      %v595 = vpop.f32.mrf.mxu0
      %v596 = vadd.f32 0.0, %v595
      %v597 = vpop.f32.mrf.mxu0
      %v598 = vpop.f32.mrf.mxu0
      %v599 = vadd.f32 0.0, %v598
      %v600 = vpop.f32.mrf.mxu0
      %601 = vmatprep.mubr.bf16.mxu0 0
      %602 = vmatmul.mubr.bf16.gmra.mxu0 %v559
      %v603 = vpop.f32.mrf.mxu0
      %v604 = vadd.f32 0.0, %v603
      %v605 = vpop.f32.mrf.mxu0
      %v606 = vpop.f32.mrf.mxu0
      %v607 = vpop.f32.mrf.mxu0
      %608 = vdwg.mxu0
      %v609 = vadd.f32 %v530, %v596
      %v610 = vadd.f32 %v531, %v599
      %v611 = vadd.f32 %v532, %v604
      %v612 = vld [vmem:[%s206 + $0x8] sm:$0xff]
      %v613 = vld [vmem:[%s206 + $0x10] sm:$0xff]
      %v614 = vld [vmem:[%s206 + $0x18] sm:$0xff]
      %v615 = vpack.c.bf16 %v613, %v612
      %v616 = vpack.c.bf16 %v614, %v614
      %s617 = scalar_lea.vmem %s210, 80
      %v618 = vld [vmem:[%s617] sm:$0xf]
      %v619 = vld [vmem:[%s617 + $0x4] sm:$0xf]
      %v620 = vld [vmem:[%s617 + $0x8] sm:$0xf]
      %v621 = vld [vmem:[%s617 + $0xc] sm:$0xf]
      %v626 = vunpack.c.l.b16 %v618
      %v627 = vunpack.c.l.b16 %v619
      %v628 = vunpack.c.l.b16 %v620
      %v629 = vunpack.c.l.b16 %v621
      %v630 = vpack.c.b16 %v627, %v626
      %v631 = vpack.c.b16 %v629, %v628
      %v635 = vsel %vm254, %v615, 0
      %v638 = vsel %vm254, %v616, 0
      %640 = vmatprep.subr.bf16.mxu0 0
      %641 = vmatpush1.bf16.msra.mxu0 0
      %642 = vmatprep.subr.bf16.mxu0 0
      %643 = vmatpush1.bf16.msra.mxu0 0
      %644 = vmatprep.subr.bf16.mxu0 0
      %645 = vmatpush1.bf16.msra.mxu0 0
      %646 = vmatprep.subr.bf16.mxu0 0
      %647 = vmatpush1.bf16.msra.mxu0 0
      %648 = vmatprep.subr.bf16.mxu0 0
      %649 = vmatpush1.bf16.msra.mxu0 0
      %650 = vmatprep.subr.bf16.mxu0 0
      %651 = vmatpush1.bf16.msra.mxu0 0
      %652 = vmatprep.subr.bf16.mxu0 0
      %653 = vmatpush1.bf16.msra.mxu0 %v631
      %654 = vmatprep.subr.bf16.mxu0 0
      %655 = vmatpush1.bf16.msra.mxu0 %v630
      %656 = vmatprep.subr.bf16.mxu0 0
      %657 = vmatpush2.bf16.msra.mxu0 0
      %658 = vmatprep.subr.bf16.mxu0 0
      %659 = vmatpush2.bf16.msra.mxu0 0
      %660 = vmatprep.subr.bf16.mxu0 0
      %661 = vmatpush2.bf16.msra.mxu0 0
      %662 = vmatprep.subr.bf16.mxu0 0
      %663 = vmatpush2.bf16.msra.mxu0 0
      %664 = vmatprep.subr.bf16.mxu0 0
      %665 = vmatpush2.bf16.msra.mxu0 0
      %666 = vmatprep.subr.bf16.mxu0 0
      %667 = vmatpush2.bf16.msra.mxu0 0
      %668 = vmatprep.subr.bf16.mxu0 0
      %669 = vmatpush2.bf16.msra.mxu0 0
      %670 = vmatprep.subr.bf16.mxu0 0
      %671 = vmatpush2.bf16.msra.mxu0 0
      %672 = vmatprep.mubr.bf16.mxu0 0
      %673 = vmatmul.mubr.bf16.gmra.mxu0 %v635
      %v674 = vpop.f32.mrf.mxu0
      %v675 = vadd.f32 0.0, %v674
      %v676 = vpop.f32.mrf.mxu0
      %v677 = vpop.f32.mrf.mxu0
      %v678 = vadd.f32 0.0, %v677
      %v679 = vpop.f32.mrf.mxu0
      %680 = vmatprep.mubr.bf16.mxu0 0
      %681 = vmatmul.mubr.bf16.gmra.mxu0 %v638
      %v682 = vpop.f32.mrf.mxu0
      %v683 = vadd.f32 0.0, %v682
      %v684 = vpop.f32.mrf.mxu0
      %v685 = vpop.f32.mrf.mxu0
      %v686 = vpop.f32.mrf.mxu0
      %687 = vdwg.mxu0
      %v688 = vadd.f32 %v609, %v675
      %v689 = vadd.f32 %v610, %v678
      %v690 = vadd.f32 %v611, %v683
      %v691 = vld [vmem:[%s206 + $0xc] sm:$0xff]
      %v692 = vld [vmem:[%s206 + $0x14] sm:$0xff]
      %v693 = vld [vmem:[%s206 + $0x1c] sm:$0xff]
      %v694 = vpack.c.bf16 %v692, %v691
      %v695 = vpack.c.bf16 %v693, %v693
      %s696 = scalar_lea.vmem %s210, 96
      %v697 = vld [vmem:[%s696] sm:$0xf]
      %v698 = vld [vmem:[%s696 + $0x4] sm:$0xf]
      %v699 = vld [vmem:[%s696 + $0x8] sm:$0xf]
      %v700 = vld [vmem:[%s696 + $0xc] sm:$0xf]
      %v705 = vunpack.c.l.b16 %v697
      %v706 = vunpack.c.l.b16 %v698
      %v707 = vunpack.c.l.b16 %v699
      %v708 = vunpack.c.l.b16 %v700
      %v709 = vpack.c.b16 %v706, %v705
      %v710 = vpack.c.b16 %v708, %v707
      %v714 = vsel %vm254, %v694, 0
      %v717 = vsel %vm254, %v695, 0
      %719 = vmatprep.subr.bf16.mxu0 0
      %720 = vmatpush1.bf16.msra.mxu0 0
      %721 = vmatprep.subr.bf16.mxu0 0
      %722 = vmatpush1.bf16.msra.mxu0 0
      %723 = vmatprep.subr.bf16.mxu0 0
      %724 = vmatpush1.bf16.msra.mxu0 0
      %725 = vmatprep.subr.bf16.mxu0 0
      %726 = vmatpush1.bf16.msra.mxu0 0
      %727 = vmatprep.subr.bf16.mxu0 0
      %728 = vmatpush1.bf16.msra.mxu0 0
      %729 = vmatprep.subr.bf16.mxu0 0
      %730 = vmatpush1.bf16.msra.mxu0 0
      %731 = vmatprep.subr.bf16.mxu0 0
      %732 = vmatpush1.bf16.msra.mxu0 %v710
      %733 = vmatprep.subr.bf16.mxu0 0
      %734 = vmatpush1.bf16.msra.mxu0 %v709
      %735 = vmatprep.subr.bf16.mxu0 0
      %736 = vmatpush2.bf16.msra.mxu0 0
      %737 = vmatprep.subr.bf16.mxu0 0
      %738 = vmatpush2.bf16.msra.mxu0 0
      %739 = vmatprep.subr.bf16.mxu0 0
      %740 = vmatpush2.bf16.msra.mxu0 0
      %741 = vmatprep.subr.bf16.mxu0 0
      %742 = vmatpush2.bf16.msra.mxu0 0
      %743 = vmatprep.subr.bf16.mxu0 0
      %744 = vmatpush2.bf16.msra.mxu0 0
      %745 = vmatprep.subr.bf16.mxu0 0
      %746 = vmatpush2.bf16.msra.mxu0 0
      %747 = vmatprep.subr.bf16.mxu0 0
      %748 = vmatpush2.bf16.msra.mxu0 0
      %749 = vmatprep.subr.bf16.mxu0 0
      %750 = vmatpush2.bf16.msra.mxu0 0
      %751 = vmatprep.mubr.bf16.mxu0 0
      %752 = vmatmul.mubr.bf16.gmra.mxu0 %v714
      %v753 = vpop.f32.mrf.mxu0
      %v754 = vadd.f32 0.0, %v753
      %v755 = vpop.f32.mrf.mxu0
      %v756 = vpop.f32.mrf.mxu0
      %v757 = vadd.f32 0.0, %v756
      %v758 = vpop.f32.mrf.mxu0
      %759 = vmatprep.mubr.bf16.mxu0 0
      %760 = vmatmul.mubr.bf16.gmra.mxu0 %v717
      %v761 = vpop.f32.mrf.mxu0
      %v762 = vadd.f32 0.0, %v761
      %v763 = vpop.f32.mrf.mxu0
      %v764 = vpop.f32.mrf.mxu0
      %v765 = vpop.f32.mrf.mxu0
      %766 = vdwg.mxu0
      %v767 = vadd.f32 %v688, %v754
      %v768 = vadd.f32 %v689, %v757
      %v769 = vadd.f32 %v690, %v762
      %v770 = vld [vmem:[%s206 + $0xd] sm:$0xff]
      %v771 = vld [vmem:[%s206 + $0x15] sm:$0xff]
      %v772 = vld [vmem:[%s206 + $0x1d] sm:$0xff]
      %v773 = vpack.c.bf16 %v771, %v770
      %v774 = vpack.c.bf16 %v772, %v772
      %s775 = scalar_lea.vmem %s210, 112
      %v776 = vld [vmem:[%s775] sm:$0xf]
      %v777 = vld [vmem:[%s775 + $0x4] sm:$0xf]
      %v778 = vld [vmem:[%s775 + $0x8] sm:$0xf]
      %v779 = vld [vmem:[%s775 + $0xc] sm:$0xf]
      %v784 = vunpack.c.l.b16 %v776
      %v785 = vunpack.c.l.b16 %v777
      %v786 = vunpack.c.l.b16 %v778
      %v787 = vunpack.c.l.b16 %v779
      %v788 = vpack.c.b16 %v785, %v784
      %v789 = vpack.c.b16 %v787, %v786
      %v793 = vsel %vm254, %v773, 0
      %v796 = vsel %vm254, %v774, 0
      %798 = vmatprep.subr.bf16.mxu0 0
      %799 = vmatpush1.bf16.msra.mxu0 0
      %800 = vmatprep.subr.bf16.mxu0 0
      %801 = vmatpush1.bf16.msra.mxu0 0
      %802 = vmatprep.subr.bf16.mxu0 0
      %803 = vmatpush1.bf16.msra.mxu0 0
      %804 = vmatprep.subr.bf16.mxu0 0
      %805 = vmatpush1.bf16.msra.mxu0 0
      %806 = vmatprep.subr.bf16.mxu0 0
      %807 = vmatpush1.bf16.msra.mxu0 0
      %808 = vmatprep.subr.bf16.mxu0 0
      %809 = vmatpush1.bf16.msra.mxu0 0
      %810 = vmatprep.subr.bf16.mxu0 0
      %811 = vmatpush1.bf16.msra.mxu0 %v789
      %812 = vmatprep.subr.bf16.mxu0 0
      %813 = vmatpush1.bf16.msra.mxu0 %v788
      %814 = vmatprep.subr.bf16.mxu0 0
      %815 = vmatpush2.bf16.msra.mxu0 0
      %816 = vmatprep.subr.bf16.mxu0 0
      %817 = vmatpush2.bf16.msra.mxu0 0
      %818 = vmatprep.subr.bf16.mxu0 0
      %819 = vmatpush2.bf16.msra.mxu0 0
      %820 = vmatprep.subr.bf16.mxu0 0
      %821 = vmatpush2.bf16.msra.mxu0 0
      %822 = vmatprep.subr.bf16.mxu0 0
      %823 = vmatpush2.bf16.msra.mxu0 0
      %824 = vmatprep.subr.bf16.mxu0 0
      %825 = vmatpush2.bf16.msra.mxu0 0
      %826 = vmatprep.subr.bf16.mxu0 0
      %827 = vmatpush2.bf16.msra.mxu0 0
      %828 = vmatprep.subr.bf16.mxu0 0
      %829 = vmatpush2.bf16.msra.mxu0 0
      %830 = vmatprep.mubr.bf16.mxu0 0
      %831 = vmatmul.mubr.bf16.gmra.mxu0 %v793
      %v832 = vpop.f32.mrf.mxu0
      %v833 = vadd.f32 0.0, %v832
      %v834 = vpop.f32.mrf.mxu0
      %v835 = vpop.f32.mrf.mxu0
      %v836 = vadd.f32 0.0, %v835
      %v837 = vpop.f32.mrf.mxu0
      %838 = vmatprep.mubr.bf16.mxu0 0
      %839 = vmatmul.mubr.bf16.gmra.mxu0 %v796
      %v840 = vpop.f32.mrf.mxu0
      %v841 = vadd.f32 0.0, %v840
      %v842 = vpop.f32.mrf.mxu0
      %v843 = vpop.f32.mrf.mxu0
      %v844 = vpop.f32.mrf.mxu0
      %845 = vdwg.mxu0
      %v846 = vadd.f32 %v767, %v833
      %v847 = vadd.f32 %v768, %v836
      %v848 = vadd.f32 %v769, %v841
      %v849 = vld [vmem:[%s206 + $0xe] sm:$0xff]
      %v850 = vld [vmem:[%s206 + $0x16] sm:$0xff]
      %v851 = vld [vmem:[%s206 + $0x1e] sm:$0xff]
      %v852 = vpack.c.bf16 %v850, %v849
      %v853 = vpack.c.bf16 %v851, %v851
      %s854 = scalar_lea.vmem %s210, 128
      %v855 = vld [vmem:[%s854] sm:$0xf]
      %v856 = vld [vmem:[%s854 + $0x4] sm:$0xf]
      %v857 = vld [vmem:[%s854 + $0x8] sm:$0xf]
      %v858 = vld [vmem:[%s854 + $0xc] sm:$0xf]
      %v863 = vunpack.c.l.b16 %v855
      %v864 = vunpack.c.l.b16 %v856
      %v865 = vunpack.c.l.b16 %v857
      %v866 = vunpack.c.l.b16 %v858
      %v867 = vpack.c.b16 %v864, %v863
      %v868 = vpack.c.b16 %v866, %v865
      %v872 = vsel %vm254, %v852, 0
      %v875 = vsel %vm254, %v853, 0
      %877 = vmatprep.subr.bf16.mxu0 0
      %878 = vmatpush1.bf16.msra.mxu0 0
      %879 = vmatprep.subr.bf16.mxu0 0
      %880 = vmatpush1.bf16.msra.mxu0 0
      %881 = vmatprep.subr.bf16.mxu0 0
      %882 = vmatpush1.bf16.msra.mxu0 0
      %883 = vmatprep.subr.bf16.mxu0 0
      %884 = vmatpush1.bf16.msra.mxu0 0
      %885 = vmatprep.subr.bf16.mxu0 0
      %886 = vmatpush1.bf16.msra.mxu0 0
      %887 = vmatprep.subr.bf16.mxu0 0
      %888 = vmatpush1.bf16.msra.mxu0 0
      %889 = vmatprep.subr.bf16.mxu0 0
      %890 = vmatpush1.bf16.msra.mxu0 %v868
      %891 = vmatprep.subr.bf16.mxu0 0
      %892 = vmatpush1.bf16.msra.mxu0 %v867
      %893 = vmatprep.subr.bf16.mxu0 0
      %894 = vmatpush2.bf16.msra.mxu0 0
      %895 = vmatprep.subr.bf16.mxu0 0
      %896 = vmatpush2.bf16.msra.mxu0 0
      %897 = vmatprep.subr.bf16.mxu0 0
      %898 = vmatpush2.bf16.msra.mxu0 0
      %899 = vmatprep.subr.bf16.mxu0 0
      %900 = vmatpush2.bf16.msra.mxu0 0
      %901 = vmatprep.subr.bf16.mxu0 0
      %902 = vmatpush2.bf16.msra.mxu0 0
      %903 = vmatprep.subr.bf16.mxu0 0
      %904 = vmatpush2.bf16.msra.mxu0 0
      %905 = vmatprep.subr.bf16.mxu0 0
      %906 = vmatpush2.bf16.msra.mxu0 0
      %907 = vmatprep.subr.bf16.mxu0 0
      %908 = vmatpush2.bf16.msra.mxu0 0
      %909 = vmatprep.mubr.bf16.mxu0 0
      %910 = vmatmul.mubr.bf16.gmra.mxu0 %v872
      %v911 = vpop.f32.mrf.mxu0
      %v912 = vadd.f32 0.0, %v911
      %v913 = vpop.f32.mrf.mxu0
      %v914 = vpop.f32.mrf.mxu0
      %v915 = vadd.f32 0.0, %v914
      %v916 = vpop.f32.mrf.mxu0
      %917 = vmatprep.mubr.bf16.mxu0 0
      %918 = vmatmul.mubr.bf16.gmra.mxu0 %v875
      %v919 = vpop.f32.mrf.mxu0
      %v920 = vadd.f32 0.0, %v919
      %v921 = vpop.f32.mrf.mxu0
      %v922 = vpop.f32.mrf.mxu0
      %v923 = vpop.f32.mrf.mxu0
      %924 = vdwg.mxu0
      %v925 = vadd.f32 %v846, %v912
      %v926 = vadd.f32 %v847, %v915
      %v927 = vadd.f32 %v848, %v920
      %v928 = vld [vmem:[%s213] sm:$0x1]
      %v930 = vlaneseq
      %v931 = vshrl.u32 %v930, 7
      %v932 = vsub.s32 0, %v931
      %v933 = vrot.slane %v928, %v932
      %v935 = vadd.f32 %v925, %v933
      %v936 = vadd.f32 %v926, %v933
      %v937 = vadd.f32 %v927, %v933
      %938 = vst.msk [vmem:[%s221] sm:$0xff] %vm254, %v935
      %939 = vst.msk [vmem:[%s221 + $0x8] sm:$0xff] %vm254, %v936
      %940 = vst.msk [vmem:[%s221 + $0x10] sm:$0xff] %vm254, %v937
      %p941 = scmp.lt.s32.totalorder %s18, 1
      %s942 = scalar_select %p941, %s18, 1
      %p943 = scmp.lt.s32.totalorder %s19, 0
      %s944 = scalar_select %p943, %s19, 0
      %s945 = smul.addr %s942, 3
      %s946 = sadd.s32 %s944, %s945
      %s947 = smul.addr %s946, 8
      %s948 = scalar_lea.vmem %s3, %s947
      // Predicated region
      $region33: #{spade_resnet_forward.60} parent=31 // pred_check
        %p949 = pneg %p124
      $region34: #{spade_resnet_forward.60} parent=31 // pred_check_branch
        %951 = sbr.rel (%p949) target = $region36
      $region35: #{spade_resnet_forward.60} parent=31 // pred_region
        _
      $region36: #{spade_resnet_forward.60} parent=31 // pred_fallthru
        _
    $region32: #{spade_resnet_forward.60} parent=5 // pred_fallthru
      _
    %p952 = scmp.le.s32.totalorder 2, %s9
    // Predicated region
    $region37: #{spade_resnet_forward.60} parent=5 // pred_check
      %p953 = pneg %p952
    $region38: #{spade_resnet_forward.60} parent=5 // pred_check_branch
      %955 = sbr.rel (%p953) target = $region40
    $region39: #{spade_resnet_forward.60} parent=5 // pred_region
      %s956 = ssub.s32 %s9, 2
      // Predicated region
      $region41: #{spade_resnet_forward.60} parent=39 // pred_check
        %p957 = pneg %p130
      $region42: #{spade_resnet_forward.60} parent=39 // pred_check_branch
        %959 = sbr.rel (%p957) target = $region44
      $region43: #{spade_resnet_forward.60} parent=39 // pred_region
        %p960 = scmp.lt.s32.totalorder %s20, 1
        %s961 = scalar_select %p960, %s20, 1
        %p962 = scmp.lt.s32.totalorder %s21, 0
        %s963 = scalar_select %p962, %s21, 0
        %s964 = smul.addr %s961, 3
        %s965 = sadd.s32 %s963, %s964
        %s966 = smul.addr %s965, 8
        %s967 = scalar_lea.vmem %s3, %s966
      $region44: #{spade_resnet_forward.60} parent=39 // pred_fallthru
        _
    $region40: #{spade_resnet_forward.60} parent=5 // pred_fallthru
      _
  $region6: #{spade_resnet_forward.60} parent=0 // loop_footer
    %s13 = sadd.s32 1, %s9
  $region7: #{spade_resnet_forward.60} parent=0 // loop_footer_branch
    %8 = sbr.rel target = $region3
  $region8: #{spade_resnet_forward.60} parent=0 // loop_exit
    _

// kernel: spade_resnet_forward.56
$region0: #{spade_resnet_forward.56}
  #allocation0 [shape = 'u32[]', space=smem, size = 0x4, offset = 0x4, fixed_abs, tag = 'smem constant byte address 0x4 - core index']
  #allocation1 [shape = 'u32[144,128]{1,0:T(1,128)}', space=vmem, size = 0x12000, scoped, tag = 'internal scratch']
  %s0 = inlined_call_operand.vmem [shape: f32[2,38,128], index: 0, kind: input, shape index: {}]
  %s1 = inlined_call_operand.vmem [shape: bf16[9,128,64], index: 1, kind: input, shape index: {}]
  %s2 = inlined_call_operand.vmem [shape: f32[1,64], index: 2, kind: input, shape index: {}]
  %s3 = inlined_call_operand.vmem [shape: f32[2,24,64], index: 3, kind: output, shape index: {}]
  %s4 = sld [smem:[#allocation0]]
  $region45: #{spade_resnet_forward.56} parent=0
    _
  %s6 = ssub.s32 1, %s4
  %s7 = scalar_select 0, %s6, %s4
  loop: start=0, step=1, limit=4
  $region2: #{spade_resnet_forward.56} parent=0 // loop_pre_header
    _
  $region3: #{spade_resnet_forward.56} parent=0 // loop_header
    %s9 = sphi 0, %s13
    %p10 = scmp.ge.s32.totalorder %s9, 4
    %s16 = sphi 0, %s28
    %s17 = sphi 0, %s24
    %s18 = sphi 0, %s16
    %s19 = sphi 0, %s17
    %s20 = sphi 0, %s18
    %s21 = sphi 0, %s19
    %s31 = sphi 0, %s33
    %s34 = sphi 0, %s31
    %s35 = sphi 0, %s34
    %s51 = sphi 0, %s35
    %s57 = sphi 0, %s59
    %s60 = sphi 0, %s57
    %s61 = sphi 0, %s60
    %s77 = sphi 0, %s61
    %s83 = sphi 0, %s85
    %s86 = sphi 0, %s83
    %s87 = sphi 0, %s86
    %s103 = sphi 0, %s87
    %s111 = sphi 0, %s113
    %s114 = sphi 0, %s111
    %s115 = sphi 0, %s114
    %s131 = sphi 0, %s115
  $region4: #{spade_resnet_forward.56} parent=0 // loop_header_branch
    %12 = sbr.rel (%p10) target = $region8
  $region5: #{spade_resnet_forward.56} parent=0 // loop_body
    %s14 = ssub.s32 %s9, 1
    %s15 = ssub.s32 %s9, 2
    %s22 = sadd.s32 1, %s17
    %p23 = scmp.ge.s32.totalorder %s22, 1
    %s24 = scalar_select %p23, 0, %s22
    %s25 = sadd.s32 1, %s16
    %s26 = scalar_select %p23, %s25, %s16
    %p27 = scmp.ge.s32.totalorder %s26, 2
    %s28 = scalar_select %p27, 0, %s26
    %s29 = ssub.s32 %s16, %s28
    %p30 = scmp.eq.s32.totalorder %s29, 0
    %s32 = sadd.s32 %s31, 1
    %s33 = scalar_select %p30, %s31, %s32
    %p36 = pneg %p30
    %p37 = scmp.eq.s32.totalorder %s9, 1
    %p38 = por %p36, %p37
    %p39 = scmp.ne.s32.totalorder %s31, %s34
    %p40 = scmp.eq.s32.totalorder %s9, 0
    %p41 = por %p39, %p40
    %p42 = scmp.ne.s32.totalorder %s31, %s34
    %p43 = scmp.eq.s32.totalorder %s14, 1
    %p44 = por %p42, %p43
    %p45 = scmp.ne.s32.totalorder %s34, %s35
    %p46 = scmp.eq.s32.totalorder %s14, 0
    %p47 = por %p45, %p46
    %p48 = scmp.ne.s32.totalorder %s34, %s35
    %p49 = scmp.eq.s32.totalorder %s15, 1
    %p50 = por %p48, %p49
    %p52 = scmp.ne.s32.totalorder %s35, %s51
    %p53 = scmp.eq.s32.totalorder %s15, 0
    %p54 = por %p52, %p53
    %s55 = ssub.s32 %s17, %s24
    %p56 = scmp.eq.s32.totalorder %s55, 0
    %s58 = sadd.s32 %s57, 1
    %s59 = scalar_select %p56, %s57, %s58
    %p62 = pneg %p56
    %p63 = scmp.eq.s32.totalorder %s9, 1
    %p64 = por %p62, %p63
    %p65 = scmp.ne.s32.totalorder %s57, %s60
    %p66 = scmp.eq.s32.totalorder %s9, 0
    %p67 = por %p65, %p66
    %p68 = scmp.ne.s32.totalorder %s57, %s60
    %p69 = scmp.eq.s32.totalorder %s14, 1
    %p70 = por %p68, %p69
    %p71 = scmp.ne.s32.totalorder %s60, %s61
    %p72 = scmp.eq.s32.totalorder %s14, 0
    %p73 = por %p71, %p72
    %p74 = scmp.ne.s32.totalorder %s60, %s61
    %p75 = scmp.eq.s32.totalorder %s15, 1
    %p76 = por %p74, %p75
    %p78 = scmp.ne.s32.totalorder %s61, %s77
    %p79 = scmp.eq.s32.totalorder %s15, 0
    %p80 = por %p78, %p79
    %s81 = ssub.s32 %s17, %s24
    %p82 = scmp.eq.s32.totalorder %s81, 0
    %s84 = sadd.s32 %s83, 1
    %s85 = scalar_select %p82, %s83, %s84
    %p88 = pneg %p82
    %p89 = scmp.eq.s32.totalorder %s9, 1
    %p90 = por %p88, %p89
    %p91 = scmp.ne.s32.totalorder %s83, %s86
    %p92 = scmp.eq.s32.totalorder %s9, 0
    %p93 = por %p91, %p92
    %p94 = scmp.ne.s32.totalorder %s83, %s86
    %p95 = scmp.eq.s32.totalorder %s14, 1
    %p96 = por %p94, %p95
    %p97 = scmp.ne.s32.totalorder %s86, %s87
    %p98 = scmp.eq.s32.totalorder %s14, 0
    %p99 = por %p97, %p98
    %p100 = scmp.ne.s32.totalorder %s86, %s87
    %p101 = scmp.eq.s32.totalorder %s15, 1
    %p102 = por %p100, %p101
    %p104 = scmp.ne.s32.totalorder %s87, %s103
    %p105 = scmp.eq.s32.totalorder %s15, 0
    %p106 = por %p104, %p105
    %s107 = ssub.s32 %s16, %s28
    %s108 = ssub.s32 %s17, %s24
    %s109 = sor.u32 %s107, %s108
    %p110 = scmp.eq.s32.totalorder %s109, 0
    %s112 = sadd.s32 %s111, 1
    %s113 = scalar_select %p110, %s111, %s112
    %p116 = pneg %p110
    %p117 = scmp.eq.s32.totalorder %s9, 1
    %p118 = por %p116, %p117
    %p119 = scmp.ne.s32.totalorder %s111, %s114
    %p120 = scmp.eq.s32.totalorder %s9, 0
    %p121 = por %p119, %p120
    %p122 = scmp.ne.s32.totalorder %s111, %s114
    %p123 = scmp.eq.s32.totalorder %s14, 1
    %p124 = por %p122, %p123
    %p125 = scmp.ne.s32.totalorder %s114, %s115
    %p126 = scmp.eq.s32.totalorder %s14, 0
    %p127 = por %p125, %p126
    %p128 = scmp.ne.s32.totalorder %s114, %s115
    %p129 = scmp.eq.s32.totalorder %s15, 1
    %p130 = por %p128, %p129
    %p132 = scmp.ne.s32.totalorder %s115, %s131
    %p133 = scmp.eq.s32.totalorder %s15, 0
    %p134 = por %p132, %p133
    %p135 = scmp.le.s32.totalorder 1, %s9
    %p136 = scmp.lt.s32.totalorder %s9, 3
    %p137 = pnand %p135, %p136
    %p138 = pneg %p137
    // Predicated region
    $region9: #{spade_resnet_forward.56} parent=5 // pred_check
      _
    $region10: #{spade_resnet_forward.56} parent=5 // pred_check_branch
      %140 = sbr.rel (%p137) target = $region12
    $region11: #{spade_resnet_forward.56} parent=5 // pred_region
      %s141 = ssub.s32 %s9, 1
      // Predicated region
      $region13: #{spade_resnet_forward.56} parent=11 // pred_check
        %p142 = pneg %p73
      $region14: #{spade_resnet_forward.56} parent=11 // pred_check_branch
        %144 = sbr.rel (%p142) target = $region16
      $region15: #{spade_resnet_forward.56} parent=11 // pred_region
        %p145 = scmp.lt.s32.totalorder %s19, 0
        %s146 = scalar_select %p145, %s19, 0
        %s147 = smul.addr %s146, 4
        %s148 = scalar_lea.vmem %s1, %s147
      $region16: #{spade_resnet_forward.56} parent=11 // pred_fallthru
        _
      // Predicated region
      $region17: #{spade_resnet_forward.56} parent=11 // pred_check
        %p149 = pneg %p99
      $region18: #{spade_resnet_forward.56} parent=11 // pred_check_branch
        %151 = sbr.rel (%p149) target = $region20
      $region19: #{spade_resnet_forward.56} parent=11 // pred_region
        %p152 = scmp.lt.s32.totalorder %s19, 0
        %s153 = scalar_select %p152, %s19, 0
        %s154 = scalar_lea.vmem %s2, %s153
      $region20: #{spade_resnet_forward.56} parent=11 // pred_fallthru
        _
    $region12: #{spade_resnet_forward.56} parent=5 // pred_fallthru
      _
    %p155 = scmp.lt.s32.totalorder %s9, 2
    // Predicated region
    $region21: #{spade_resnet_forward.56} parent=5 // pred_check
      %p156 = pneg %p155
    $region22: #{spade_resnet_forward.56} parent=5 // pred_check_branch
      %158 = sbr.rel (%p156) target = $region24
    $region23: #{spade_resnet_forward.56} parent=5 // pred_region
      // Predicated region
      $region25: #{spade_resnet_forward.56} parent=23 // pred_check
        %p159 = pneg %p41
      $region26: #{spade_resnet_forward.56} parent=23 // pred_check_branch
        %161 = sbr.rel (%p159) target = $region28
      $region27: #{spade_resnet_forward.56} parent=23 // pred_region
        %p162 = scmp.lt.s32.totalorder %s16, 1
        %s163 = scalar_select %p162, %s16, 1
        %s164 = smul.addr %s163, 5
        %s165 = smul.addr %s164, 8
        %s166 = scalar_lea.vmem %s0, %s165
      $region28: #{spade_resnet_forward.56} parent=23 // pred_fallthru
        _
    $region24: #{spade_resnet_forward.56} parent=5 // pred_fallthru
      _
    %p167 = scmp.le.s32.totalorder 1, %s9
    %p168 = scmp.lt.s32.totalorder %s9, 3
    %p169 = pnand %p167, %p168
    %p170 = pneg %p169
    // Predicated region
    $region29: #{spade_resnet_forward.56} parent=5 // pred_check
      _
    $region30: #{spade_resnet_forward.56} parent=5 // pred_check_branch
      %172 = sbr.rel (%p169) target = $region32
    $region31: #{spade_resnet_forward.56} parent=5 // pred_region
      %s173 = ssub.s32 %s9, 1
      %p174 = scmp.lt.s32.totalorder %s18, 1
      %s175 = scalar_select %p174, %s18, 1
      %s176 = smul.addr %s175, 5
      %s177 = smul.addr %s176, 8
      %s178 = scalar_lea.vmem %s0, %s177
      %p179 = pneg %p47
      %p180 = pneg %p44
      %p181 = scmp.lt.s32.totalorder %s19, 0
      %s182 = scalar_select %p181, %s19, 0
      %s183 = smul.addr %s182, 4
      %s184 = scalar_lea.vmem %s1, %s183
      %p185 = pneg %p73
      %p186 = pneg %p70
      %p187 = scmp.lt.s32.totalorder %s19, 0
      %s188 = scalar_select %p187, %s19, 0
      %s189 = scalar_lea.vmem %s2, %s188
      %p190 = pneg %p99
      %p191 = pneg %p96
      %p192 = pneg %p127
      %p193 = pneg %p124
      %p194 = scmp.lt.s32.totalorder %s18, 1
      %s195 = scalar_select %p194, %s18, 1
      %p196 = scmp.lt.s32.totalorder %s19, 0
      %s197 = scalar_select %p196, %s19, 0
      %s198 = smul.addr %s195, 3
      %s199 = sadd.s32 %s197, %s198
      %s200 = smul.addr %s199, 8
      %s201 = scalar_lea.vmem %s3, %s200
      %p202 = scmp.lt.s32.totalorder %s18, 1
      %s203 = scalar_select %p202, %s18, 1
      %s204 = smul.addr %s203, 5
      %s205 = smul.addr %s204, 8
      %s206 = scalar_lea.vmem %s0, %s205
      %p207 = scmp.lt.s32.totalorder %s19, 0
      %s208 = scalar_select %p207, %s19, 0
      %s209 = smul.addr %s208, 4
      %s210 = scalar_lea.vmem %s1, %s209
      %p211 = scmp.lt.s32.totalorder %s19, 0
      %s212 = scalar_select %p211, %s19, 0
      %s213 = scalar_lea.vmem %s2, %s212
      %p214 = scmp.lt.s32.totalorder %s18, 1
      %s215 = scalar_select %p214, %s18, 1
      %p216 = scmp.lt.s32.totalorder %s19, 0
      %s217 = scalar_select %p216, %s19, 0
      %s218 = smul.addr %s215, 3
      %s219 = sadd.s32 %s217, %s218
      %s220 = smul.addr %s219, 8
      %s221 = scalar_lea.vmem %s3, %s220
      %v223 = vld [vmem:[%s206] sm:$0xff]
      %v224 = vld [vmem:[%s206 + $0x8] sm:$0xff]
      %v225 = vld [vmem:[%s206 + $0x10] sm:$0xff]
      %v226 = vpack.c.bf16 %v224, %v223
      %v227 = vpack.c.bf16 %v225, %v225
      %v228 = vld [vmem:[%s210] sm:$0xf]
      %v229 = vld [vmem:[%s210 + $0x4] sm:$0xf]
      %v230 = vld [vmem:[%s210 + $0x8] sm:$0xf]
      %v231 = vld [vmem:[%s210 + $0xc] sm:$0xf]
      %v232 = vld [vmem:[%s210 + $0x10] sm:$0xf]
      %v233 = vld [vmem:[%s210 + $0x14] sm:$0xf]
      %v234 = vld [vmem:[%s210 + $0x18] sm:$0xf]
      %v235 = vld [vmem:[%s210 + $0x1c] sm:$0xf]
      %v236 = vld [vmem:[%s210 + $0x20] sm:$0xf]
      %v237 = vld [vmem:[%s210 + $0x24] sm:$0xf]
      %v238 = vld [vmem:[%s210 + $0x28] sm:$0xf]
      %v239 = vld [vmem:[%s210 + $0x2c] sm:$0xf]
      %v240 = vld [vmem:[%s210 + $0x30] sm:$0xf]
      %v241 = vld [vmem:[%s210 + $0x34] sm:$0xf]
      %v242 = vld [vmem:[%s210 + $0x38] sm:$0xf]
      %v243 = vld [vmem:[%s210 + $0x3c] sm:$0xf]
      %v244 = vld [vmem:[%s206 + $0x1] sm:$0xff]
      %v245 = vld [vmem:[%s206 + $0x9] sm:$0xff]
      %v246 = vld [vmem:[%s206 + $0x11] sm:$0xff]
      %v247 = vpack.c.bf16 %v245, %v244
      %v248 = vpack.c.bf16 %v246, %v246
      %s249 = scalar_lea.vmem %s210, 64
      %v250 = vld [vmem:[%s249] sm:$0xf]
      %v251 = vld [vmem:[%s249 + $0x4] sm:$0xf]
      %v252 = vld [vmem:[%s249 + $0x8] sm:$0xf]
      %v253 = vld [vmem:[%s249 + $0xc] sm:$0xf]
      %v254 = vld [vmem:[%s249 + $0x10] sm:$0xf]
      %v255 = vld [vmem:[%s249 + $0x14] sm:$0xf]
      %v256 = vld [vmem:[%s249 + $0x18] sm:$0xf]
      %v257 = vld [vmem:[%s249 + $0x1c] sm:$0xf]
      %v258 = vld [vmem:[%s249 + $0x20] sm:$0xf]
      %v259 = vld [vmem:[%s249 + $0x24] sm:$0xf]
      %v260 = vld [vmem:[%s249 + $0x28] sm:$0xf]
      %v261 = vld [vmem:[%s249 + $0x2c] sm:$0xf]
      %v262 = vld [vmem:[%s249 + $0x30] sm:$0xf]
      %v263 = vld [vmem:[%s249 + $0x34] sm:$0xf]
      %v264 = vld [vmem:[%s249 + $0x38] sm:$0xf]
      %v265 = vld [vmem:[%s249 + $0x3c] sm:$0xf]
      %v282 = vunpack.c.l.b16 %v250
      %v283 = vunpack.c.l.b16 %v251
      %v284 = vunpack.c.l.b16 %v252
      %v285 = vunpack.c.l.b16 %v253
      %v286 = vunpack.c.l.b16 %v254
      %v287 = vunpack.c.l.b16 %v255
      %v288 = vunpack.c.l.b16 %v256
      %v289 = vunpack.c.l.b16 %v257
      %v290 = vunpack.c.l.b16 %v258
      %v291 = vunpack.c.l.b16 %v259
      %v292 = vunpack.c.l.b16 %v260
      %v293 = vunpack.c.l.b16 %v261
      %v294 = vunpack.c.l.b16 %v262
      %v295 = vunpack.c.l.b16 %v263
      %v296 = vunpack.c.l.b16 %v264
      %v297 = vunpack.c.l.b16 %v265
      %v298 = vpack.c.b16 %v283, %v282
      %v299 = vpack.c.b16 %v285, %v284
      %v300 = vpack.c.b16 %v287, %v286
      %v301 = vpack.c.b16 %v289, %v288
      %v302 = vpack.c.b16 %v291, %v290
      %v303 = vpack.c.b16 %v293, %v292
      %v304 = vpack.c.b16 %v295, %v294
      %v305 = vpack.c.b16 %v297, %v296
      %314 = vmatprep.subr.bf16.mxu0 0
      %315 = vmatpush1.bf16.msra.mxu0 %v305
      %316 = vmatprep.subr.bf16.mxu0 0
      %317 = vmatpush1.bf16.msra.mxu0 %v304
      %318 = vmatprep.subr.bf16.mxu0 0
      %319 = vmatpush1.bf16.msra.mxu0 %v303
      %320 = vmatprep.subr.bf16.mxu0 0
      %321 = vmatpush1.bf16.msra.mxu0 %v302
      %322 = vmatprep.subr.bf16.mxu0 0
      %323 = vmatpush1.bf16.msra.mxu0 %v301
      %324 = vmatprep.subr.bf16.mxu0 0
      %325 = vmatpush1.bf16.msra.mxu0 %v300
      %326 = vmatprep.subr.bf16.mxu0 0
      %327 = vmatpush1.bf16.msra.mxu0 %v299
      %328 = vmatprep.subr.bf16.mxu0 0
      %329 = vmatpush1.bf16.msra.mxu0 %v298
      %330 = vmatprep.subr.bf16.mxu0 0
      %331 = vmatpush2.bf16.msra.mxu0 0
      %332 = vmatprep.subr.bf16.mxu0 0
      %333 = vmatpush2.bf16.msra.mxu0 0
      %334 = vmatprep.subr.bf16.mxu0 0
      %335 = vmatpush2.bf16.msra.mxu0 0
      %336 = vmatprep.subr.bf16.mxu0 0
      %337 = vmatpush2.bf16.msra.mxu0 0
      %338 = vmatprep.subr.bf16.mxu0 0
      %339 = vmatpush2.bf16.msra.mxu0 0
      %340 = vmatprep.subr.bf16.mxu0 0
      %341 = vmatpush2.bf16.msra.mxu0 0
      %342 = vmatprep.subr.bf16.mxu0 0
      %343 = vmatpush2.bf16.msra.mxu0 0
      %344 = vmatprep.subr.bf16.mxu0 0
      %345 = vmatpush2.bf16.msra.mxu0 0
      %346 = vmatprep.mubr.bf16.mxu0 0
      %347 = vmatmul.mubr.bf16.gmra.mxu0 %v247
      %v348 = vpop.f32.mrf.mxu0
      %v349 = vadd.f32 0.0, %v348
      %v350 = vpop.f32.mrf.mxu0
      %v351 = vpop.f32.mrf.mxu0
      %v352 = vadd.f32 0.0, %v351
      %v353 = vpop.f32.mrf.mxu0
      %354 = vmatprep.mubr.bf16.mxu0 0
      %355 = vmatmul.mubr.bf16.gmra.mxu0 %v248
      %v356 = vpop.f32.mrf.mxu0
      %v357 = vadd.f32 0.0, %v356
      %v358 = vpop.f32.mrf.mxu0
      %v359 = vpop.f32.mrf.mxu0
      %v360 = vpop.f32.mrf.mxu0
      %361 = vdwg.mxu0
      %v378 = vunpack.c.l.b16 %v228
      %v379 = vunpack.c.l.b16 %v229
      %v380 = vunpack.c.l.b16 %v230
      %v381 = vunpack.c.l.b16 %v231
      %v382 = vunpack.c.l.b16 %v232
      %v383 = vunpack.c.l.b16 %v233
      %v384 = vunpack.c.l.b16 %v234
      %v385 = vunpack.c.l.b16 %v235
      %v386 = vunpack.c.l.b16 %v236
      %v387 = vunpack.c.l.b16 %v237
      %v388 = vunpack.c.l.b16 %v238
      %v389 = vunpack.c.l.b16 %v239
      %v390 = vunpack.c.l.b16 %v240
      %v391 = vunpack.c.l.b16 %v241
      %v392 = vunpack.c.l.b16 %v242
      %v393 = vunpack.c.l.b16 %v243
      %v394 = vpack.c.b16 %v379, %v378
      %v395 = vpack.c.b16 %v381, %v380
      %v396 = vpack.c.b16 %v383, %v382
      %v397 = vpack.c.b16 %v385, %v384
      %v398 = vpack.c.b16 %v387, %v386
      %v399 = vpack.c.b16 %v389, %v388
      %v400 = vpack.c.b16 %v391, %v390
      %v401 = vpack.c.b16 %v393, %v392
      %410 = vmatprep.subr.bf16.mxu0 0
      %411 = vmatpush1.bf16.msra.mxu0 %v401
      %412 = vmatprep.subr.bf16.mxu0 0
      %413 = vmatpush1.bf16.msra.mxu0 %v400
      %414 = vmatprep.subr.bf16.mxu0 0
      %415 = vmatpush1.bf16.msra.mxu0 %v399
      %416 = vmatprep.subr.bf16.mxu0 0
      %417 = vmatpush1.bf16.msra.mxu0 %v398
      %418 = vmatprep.subr.bf16.mxu0 0
      %419 = vmatpush1.bf16.msra.mxu0 %v397
      %420 = vmatprep.subr.bf16.mxu0 0
      %421 = vmatpush1.bf16.msra.mxu0 %v396
      %422 = vmatprep.subr.bf16.mxu0 0
      %423 = vmatpush1.bf16.msra.mxu0 %v395
      %424 = vmatprep.subr.bf16.mxu0 0
      %425 = vmatpush1.bf16.msra.mxu0 %v394
      %426 = vmatprep.subr.bf16.mxu0 0
      %427 = vmatpush2.bf16.msra.mxu0 0
      %428 = vmatprep.subr.bf16.mxu0 0
      %429 = vmatpush2.bf16.msra.mxu0 0
      %430 = vmatprep.subr.bf16.mxu0 0
      %431 = vmatpush2.bf16.msra.mxu0 0
      %432 = vmatprep.subr.bf16.mxu0 0
      %433 = vmatpush2.bf16.msra.mxu0 0
      %434 = vmatprep.subr.bf16.mxu0 0
      %435 = vmatpush2.bf16.msra.mxu0 0
      %436 = vmatprep.subr.bf16.mxu0 0
      %437 = vmatpush2.bf16.msra.mxu0 0
      %438 = vmatprep.subr.bf16.mxu0 0
      %439 = vmatpush2.bf16.msra.mxu0 0
      %440 = vmatprep.subr.bf16.mxu0 0
      %441 = vmatpush2.bf16.msra.mxu0 0
      %442 = vmatprep.mubr.bf16.mxu0 0
      %443 = vmatmul.mubr.bf16.gmra.mxu0 %v226
      %v444 = vpop.f32.mrf.mxu0
      %v445 = vadd.f32 %v349, %v444
      %v446 = vpop.f32.mrf.mxu0
      %v447 = vpop.f32.mrf.mxu0
      %v448 = vadd.f32 %v352, %v447
      %v449 = vpop.f32.mrf.mxu0
      %450 = vmatprep.mubr.bf16.mxu0 0
      %451 = vmatmul.mubr.bf16.gmra.mxu0 %v227
      %v452 = vpop.f32.mrf.mxu0
      %v453 = vadd.f32 %v357, %v452
      %v454 = vpop.f32.mrf.mxu0
      %v455 = vpop.f32.mrf.mxu0
      %v456 = vpop.f32.mrf.mxu0
      %457 = vdwg.mxu0
      %v458 = vld [vmem:[%s206 + $0x2] sm:$0xff]
      %v459 = vld [vmem:[%s206 + $0xa] sm:$0xff]
      %v460 = vld [vmem:[%s206 + $0x12] sm:$0xff]
      %v461 = vpack.c.bf16 %v459, %v458
      %v462 = vpack.c.bf16 %v460, %v460
      %s463 = scalar_lea.vmem %s210, 128
      %v464 = vld [vmem:[%s463] sm:$0xf]
      %v465 = vld [vmem:[%s463 + $0x4] sm:$0xf]
      %v466 = vld [vmem:[%s463 + $0x8] sm:$0xf]
      %v467 = vld [vmem:[%s463 + $0xc] sm:$0xf]
      %v468 = vld [vmem:[%s463 + $0x10] sm:$0xf]
      %v469 = vld [vmem:[%s463 + $0x14] sm:$0xf]
      %v470 = vld [vmem:[%s463 + $0x18] sm:$0xf]
      %v471 = vld [vmem:[%s463 + $0x1c] sm:$0xf]
      %v472 = vld [vmem:[%s463 + $0x20] sm:$0xf]
      %v473 = vld [vmem:[%s463 + $0x24] sm:$0xf]
      %v474 = vld [vmem:[%s463 + $0x28] sm:$0xf]
      %v475 = vld [vmem:[%s463 + $0x2c] sm:$0xf]
      %v476 = vld [vmem:[%s463 + $0x30] sm:$0xf]
      %v477 = vld [vmem:[%s463 + $0x34] sm:$0xf]
      %v478 = vld [vmem:[%s463 + $0x38] sm:$0xf]
      %v479 = vld [vmem:[%s463 + $0x3c] sm:$0xf]
      %v496 = vunpack.c.l.b16 %v464
      %v497 = vunpack.c.l.b16 %v465
      %v498 = vunpack.c.l.b16 %v466
      %v499 = vunpack.c.l.b16 %v467
      %v500 = vunpack.c.l.b16 %v468
      %v501 = vunpack.c.l.b16 %v469
      %v502 = vunpack.c.l.b16 %v470
      %v503 = vunpack.c.l.b16 %v471
      %v504 = vunpack.c.l.b16 %v472
      %v505 = vunpack.c.l.b16 %v473
      %v506 = vunpack.c.l.b16 %v474
      %v507 = vunpack.c.l.b16 %v475
      %v508 = vunpack.c.l.b16 %v476
      %v509 = vunpack.c.l.b16 %v477
      %v510 = vunpack.c.l.b16 %v478
      %v511 = vunpack.c.l.b16 %v479
      %v512 = vpack.c.b16 %v497, %v496
      %v513 = vpack.c.b16 %v499, %v498
      %v514 = vpack.c.b16 %v501, %v500
      %v515 = vpack.c.b16 %v503, %v502
      %v516 = vpack.c.b16 %v505, %v504
      %v517 = vpack.c.b16 %v507, %v506
      %v518 = vpack.c.b16 %v509, %v508
      %v519 = vpack.c.b16 %v511, %v510
      %528 = vmatprep.subr.bf16.mxu0 0
      %529 = vmatpush1.bf16.msra.mxu0 %v519
      %530 = vmatprep.subr.bf16.mxu0 0
      %531 = vmatpush1.bf16.msra.mxu0 %v518
      %532 = vmatprep.subr.bf16.mxu0 0
      %533 = vmatpush1.bf16.msra.mxu0 %v517
      %534 = vmatprep.subr.bf16.mxu0 0
      %535 = vmatpush1.bf16.msra.mxu0 %v516
      %536 = vmatprep.subr.bf16.mxu0 0
      %537 = vmatpush1.bf16.msra.mxu0 %v515
      %538 = vmatprep.subr.bf16.mxu0 0
      %539 = vmatpush1.bf16.msra.mxu0 %v514
      %540 = vmatprep.subr.bf16.mxu0 0
      %541 = vmatpush1.bf16.msra.mxu0 %v513
      %542 = vmatprep.subr.bf16.mxu0 0
      %543 = vmatpush1.bf16.msra.mxu0 %v512
      %544 = vmatprep.subr.bf16.mxu0 0
      %545 = vmatpush2.bf16.msra.mxu0 0
      %546 = vmatprep.subr.bf16.mxu0 0
      %547 = vmatpush2.bf16.msra.mxu0 0
      %548 = vmatprep.subr.bf16.mxu0 0
      %549 = vmatpush2.bf16.msra.mxu0 0
      %550 = vmatprep.subr.bf16.mxu0 0
      %551 = vmatpush2.bf16.msra.mxu0 0
      %552 = vmatprep.subr.bf16.mxu0 0
      %553 = vmatpush2.bf16.msra.mxu0 0
      %554 = vmatprep.subr.bf16.mxu0 0
      %555 = vmatpush2.bf16.msra.mxu0 0
      %556 = vmatprep.subr.bf16.mxu0 0
      %557 = vmatpush2.bf16.msra.mxu0 0
      %558 = vmatprep.subr.bf16.mxu0 0
      %559 = vmatpush2.bf16.msra.mxu0 0
      %560 = vmatprep.mubr.bf16.mxu0 0
      %561 = vmatmul.mubr.bf16.gmra.mxu0 %v461
      %v562 = vpop.f32.mrf.mxu0
      %v563 = vadd.f32 0.0, %v562
      %v564 = vpop.f32.mrf.mxu0
      %v565 = vpop.f32.mrf.mxu0
      %v566 = vadd.f32 0.0, %v565
      %v567 = vpop.f32.mrf.mxu0
      %568 = vmatprep.mubr.bf16.mxu0 0
      %569 = vmatmul.mubr.bf16.gmra.mxu0 %v462
      %v570 = vpop.f32.mrf.mxu0
      %v571 = vadd.f32 0.0, %v570
      %v572 = vpop.f32.mrf.mxu0
      %v573 = vpop.f32.mrf.mxu0
      %v574 = vpop.f32.mrf.mxu0
      %575 = vdwg.mxu0
      %v576 = vadd.f32 %v445, %v563
      %v577 = vadd.f32 %v448, %v566
      %v578 = vadd.f32 %v453, %v571
      %v579 = vld [vmem:[%s206 + $0x6] sm:$0xff]
      %v580 = vld [vmem:[%s206 + $0xe] sm:$0xff]
      %v581 = vld [vmem:[%s206 + $0x16] sm:$0xff]
      %v582 = vpack.c.bf16 %v580, %v579
      %v583 = vpack.c.bf16 %v581, %v581
      %s584 = scalar_lea.vmem %s210, 192
      %v585 = vld [vmem:[%s584] sm:$0xf]
      %v586 = vld [vmem:[%s584 + $0x4] sm:$0xf]
      %v587 = vld [vmem:[%s584 + $0x8] sm:$0xf]
      %v588 = vld [vmem:[%s584 + $0xc] sm:$0xf]
      %v589 = vld [vmem:[%s584 + $0x10] sm:$0xf]
      %v590 = vld [vmem:[%s584 + $0x14] sm:$0xf]
      %v591 = vld [vmem:[%s584 + $0x18] sm:$0xf]
      %v592 = vld [vmem:[%s584 + $0x1c] sm:$0xf]
      %v593 = vld [vmem:[%s584 + $0x20] sm:$0xf]
      %v594 = vld [vmem:[%s584 + $0x24] sm:$0xf]
      %v595 = vld [vmem:[%s584 + $0x28] sm:$0xf]
      %v596 = vld [vmem:[%s584 + $0x2c] sm:$0xf]
      %v597 = vld [vmem:[%s584 + $0x30] sm:$0xf]
      %v598 = vld [vmem:[%s584 + $0x34] sm:$0xf]
      %v599 = vld [vmem:[%s584 + $0x38] sm:$0xf]
      %v600 = vld [vmem:[%s584 + $0x3c] sm:$0xf]
      %v617 = vunpack.c.l.b16 %v585
      %v618 = vunpack.c.l.b16 %v586
      %v619 = vunpack.c.l.b16 %v587
      %v620 = vunpack.c.l.b16 %v588
      %v621 = vunpack.c.l.b16 %v589
      %v622 = vunpack.c.l.b16 %v590
      %v623 = vunpack.c.l.b16 %v591
      %v624 = vunpack.c.l.b16 %v592
      %v625 = vunpack.c.l.b16 %v593
      %v626 = vunpack.c.l.b16 %v594
      %v627 = vunpack.c.l.b16 %v595
      %v628 = vunpack.c.l.b16 %v596
      %v629 = vunpack.c.l.b16 %v597
      %v630 = vunpack.c.l.b16 %v598
      %v631 = vunpack.c.l.b16 %v599
      %v632 = vunpack.c.l.b16 %v600
      %v633 = vpack.c.b16 %v618, %v617
      %v634 = vpack.c.b16 %v620, %v619
      %v635 = vpack.c.b16 %v622, %v621
      %v636 = vpack.c.b16 %v624, %v623
      %v637 = vpack.c.b16 %v626, %v625
      %v638 = vpack.c.b16 %v628, %v627
      %v639 = vpack.c.b16 %v630, %v629
      %v640 = vpack.c.b16 %v632, %v631
      %649 = vmatprep.subr.bf16.mxu0 0
      %650 = vmatpush1.bf16.msra.mxu0 %v640
      %651 = vmatprep.subr.bf16.mxu0 0
      %652 = vmatpush1.bf16.msra.mxu0 %v639
      %653 = vmatprep.subr.bf16.mxu0 0
      %654 = vmatpush1.bf16.msra.mxu0 %v638
      %655 = vmatprep.subr.bf16.mxu0 0
      %656 = vmatpush1.bf16.msra.mxu0 %v637
      %657 = vmatprep.subr.bf16.mxu0 0
      %658 = vmatpush1.bf16.msra.mxu0 %v636
      %659 = vmatprep.subr.bf16.mxu0 0
      %660 = vmatpush1.bf16.msra.mxu0 %v635
      %661 = vmatprep.subr.bf16.mxu0 0
      %662 = vmatpush1.bf16.msra.mxu0 %v634
      %663 = vmatprep.subr.bf16.mxu0 0
      %664 = vmatpush1.bf16.msra.mxu0 %v633
      %665 = vmatprep.subr.bf16.mxu0 0
      %666 = vmatpush2.bf16.msra.mxu0 0
      %667 = vmatprep.subr.bf16.mxu0 0
      %668 = vmatpush2.bf16.msra.mxu0 0
      %669 = vmatprep.subr.bf16.mxu0 0
      %670 = vmatpush2.bf16.msra.mxu0 0
      %671 = vmatprep.subr.bf16.mxu0 0
      %672 = vmatpush2.bf16.msra.mxu0 0
      %673 = vmatprep.subr.bf16.mxu0 0
      %674 = vmatpush2.bf16.msra.mxu0 0
      %675 = vmatprep.subr.bf16.mxu0 0
      %676 = vmatpush2.bf16.msra.mxu0 0
      %677 = vmatprep.subr.bf16.mxu0 0
      %678 = vmatpush2.bf16.msra.mxu0 0
      %679 = vmatprep.subr.bf16.mxu0 0
      %680 = vmatpush2.bf16.msra.mxu0 0
      %681 = vmatprep.mubr.bf16.mxu0 0
      %682 = vmatmul.mubr.bf16.gmra.mxu0 %v582
      %v683 = vpop.f32.mrf.mxu0
      %v684 = vadd.f32 0.0, %v683
      %v685 = vpop.f32.mrf.mxu0
      %v686 = vpop.f32.mrf.mxu0
      %v687 = vadd.f32 0.0, %v686
      %v688 = vpop.f32.mrf.mxu0
      %689 = vmatprep.mubr.bf16.mxu0 0
      %690 = vmatmul.mubr.bf16.gmra.mxu0 %v583
      %v691 = vpop.f32.mrf.mxu0
      %v692 = vadd.f32 0.0, %v691
      %v693 = vpop.f32.mrf.mxu0
      %v694 = vpop.f32.mrf.mxu0
      %v695 = vpop.f32.mrf.mxu0
      %696 = vdwg.mxu0
      %v697 = vadd.f32 %v576, %v684
      %v698 = vadd.f32 %v577, %v687
      %v699 = vadd.f32 %v578, %v692
      %v700 = vld [vmem:[%s206 + $0x7] sm:$0xff]
      %v701 = vld [vmem:[%s206 + $0xf] sm:$0xff]
      %v702 = vld [vmem:[%s206 + $0x17] sm:$0xff]
      %v703 = vpack.c.bf16 %v701, %v700
      %v704 = vpack.c.bf16 %v702, %v702
      %s705 = scalar_lea.vmem %s210, 256
      %v706 = vld [vmem:[%s705] sm:$0xf]
      %v707 = vld [vmem:[%s705 + $0x4] sm:$0xf]
      %v708 = vld [vmem:[%s705 + $0x8] sm:$0xf]
      %v709 = vld [vmem:[%s705 + $0xc] sm:$0xf]
      %v710 = vld [vmem:[%s705 + $0x10] sm:$0xf]
      %v711 = vld [vmem:[%s705 + $0x14] sm:$0xf]
      %v712 = vld [vmem:[%s705 + $0x18] sm:$0xf]
      %v713 = vld [vmem:[%s705 + $0x1c] sm:$0xf]
      %v714 = vld [vmem:[%s705 + $0x20] sm:$0xf]
      %v715 = vld [vmem:[%s705 + $0x24] sm:$0xf]
      %v716 = vld [vmem:[%s705 + $0x28] sm:$0xf]
      %v717 = vld [vmem:[%s705 + $0x2c] sm:$0xf]
      %v718 = vld [vmem:[%s705 + $0x30] sm:$0xf]
      %v719 = vld [vmem:[%s705 + $0x34] sm:$0xf]
      %v720 = vld [vmem:[%s705 + $0x38] sm:$0xf]
      %v721 = vld [vmem:[%s705 + $0x3c] sm:$0xf]
      %v738 = vunpack.c.l.b16 %v706
      %v739 = vunpack.c.l.b16 %v707
      %v740 = vunpack.c.l.b16 %v708
      %v741 = vunpack.c.l.b16 %v709
      %v742 = vunpack.c.l.b16 %v710
      %v743 = vunpack.c.l.b16 %v711
      %v744 = vunpack.c.l.b16 %v712
      %v745 = vunpack.c.l.b16 %v713
      %v746 = vunpack.c.l.b16 %v714
      %v747 = vunpack.c.l.b16 %v715
      %v748 = vunpack.c.l.b16 %v716
      %v749 = vunpack.c.l.b16 %v717
      %v750 = vunpack.c.l.b16 %v718
      %v751 = vunpack.c.l.b16 %v719
      %v752 = vunpack.c.l.b16 %v720
      %v753 = vunpack.c.l.b16 %v721
      %v754 = vpack.c.b16 %v739, %v738
      %v755 = vpack.c.b16 %v741, %v740
      %v756 = vpack.c.b16 %v743, %v742
      %v757 = vpack.c.b16 %v745, %v744
      %v758 = vpack.c.b16 %v747, %v746
      %v759 = vpack.c.b16 %v749, %v748
      %v760 = vpack.c.b16 %v751, %v750
      %v761 = vpack.c.b16 %v753, %v752
      %770 = vmatprep.subr.bf16.mxu0 0
      %771 = vmatpush1.bf16.msra.mxu0 %v761
      %772 = vmatprep.subr.bf16.mxu0 0
      %773 = vmatpush1.bf16.msra.mxu0 %v760
      %774 = vmatprep.subr.bf16.mxu0 0
      %775 = vmatpush1.bf16.msra.mxu0 %v759
      %776 = vmatprep.subr.bf16.mxu0 0
      %777 = vmatpush1.bf16.msra.mxu0 %v758
      %778 = vmatprep.subr.bf16.mxu0 0
      %779 = vmatpush1.bf16.msra.mxu0 %v757
      %780 = vmatprep.subr.bf16.mxu0 0
      %781 = vmatpush1.bf16.msra.mxu0 %v756
      %782 = vmatprep.subr.bf16.mxu0 0
      %783 = vmatpush1.bf16.msra.mxu0 %v755
      %784 = vmatprep.subr.bf16.mxu0 0
      %785 = vmatpush1.bf16.msra.mxu0 %v754
      %786 = vmatprep.subr.bf16.mxu0 0
      %787 = vmatpush2.bf16.msra.mxu0 0
      %788 = vmatprep.subr.bf16.mxu0 0
      %789 = vmatpush2.bf16.msra.mxu0 0
      %790 = vmatprep.subr.bf16.mxu0 0
      %791 = vmatpush2.bf16.msra.mxu0 0
      %792 = vmatprep.subr.bf16.mxu0 0
      %793 = vmatpush2.bf16.msra.mxu0 0
      %794 = vmatprep.subr.bf16.mxu0 0
      %795 = vmatpush2.bf16.msra.mxu0 0
      %796 = vmatprep.subr.bf16.mxu0 0
      %797 = vmatpush2.bf16.msra.mxu0 0
      %798 = vmatprep.subr.bf16.mxu0 0
      %799 = vmatpush2.bf16.msra.mxu0 0
      %800 = vmatprep.subr.bf16.mxu0 0
      %801 = vmatpush2.bf16.msra.mxu0 0
      %802 = vmatprep.mubr.bf16.mxu0 0
      %803 = vmatmul.mubr.bf16.gmra.mxu0 %v703
      %v804 = vpop.f32.mrf.mxu0
      %v805 = vadd.f32 0.0, %v804
      %v806 = vpop.f32.mrf.mxu0
      %v807 = vpop.f32.mrf.mxu0
      %v808 = vadd.f32 0.0, %v807
      %v809 = vpop.f32.mrf.mxu0
      %810 = vmatprep.mubr.bf16.mxu0 0
      %811 = vmatmul.mubr.bf16.gmra.mxu0 %v704
      %v812 = vpop.f32.mrf.mxu0
      %v813 = vadd.f32 0.0, %v812
      %v814 = vpop.f32.mrf.mxu0
      %v815 = vpop.f32.mrf.mxu0
      %v816 = vpop.f32.mrf.mxu0
      %817 = vdwg.mxu0
      %v818 = vadd.f32 %v697, %v805
      %v819 = vadd.f32 %v698, %v808
      %v820 = vadd.f32 %v699, %v813
      %v821 = vld [vmem:[%s206 + $0x8] sm:$0xff]
      %v822 = vld [vmem:[%s206 + $0x10] sm:$0xff]
      %v823 = vld [vmem:[%s206 + $0x18] sm:$0xff]
      %v824 = vpack.c.bf16 %v822, %v821
      %v825 = vpack.c.bf16 %v823, %v823
      %s826 = scalar_lea.vmem %s210, 320
      %v827 = vld [vmem:[%s826] sm:$0xf]
      %v828 = vld [vmem:[%s826 + $0x4] sm:$0xf]
      %v829 = vld [vmem:[%s826 + $0x8] sm:$0xf]
      %v830 = vld [vmem:[%s826 + $0xc] sm:$0xf]
      %v831 = vld [vmem:[%s826 + $0x10] sm:$0xf]
      %v832 = vld [vmem:[%s826 + $0x14] sm:$0xf]
      %v833 = vld [vmem:[%s826 + $0x18] sm:$0xf]
      %v834 = vld [vmem:[%s826 + $0x1c] sm:$0xf]
      %v835 = vld [vmem:[%s826 + $0x20] sm:$0xf]
      %v836 = vld [vmem:[%s826 + $0x24] sm:$0xf]
      %v837 = vld [vmem:[%s826 + $0x28] sm:$0xf]
      %v838 = vld [vmem:[%s826 + $0x2c] sm:$0xf]
      %v839 = vld [vmem:[%s826 + $0x30] sm:$0xf]
      %v840 = vld [vmem:[%s826 + $0x34] sm:$0xf]
      %v841 = vld [vmem:[%s826 + $0x38] sm:$0xf]
      %v842 = vld [vmem:[%s826 + $0x3c] sm:$0xf]
      %v859 = vunpack.c.l.b16 %v827
      %v860 = vunpack.c.l.b16 %v828
      %v861 = vunpack.c.l.b16 %v829
      %v862 = vunpack.c.l.b16 %v830
      %v863 = vunpack.c.l.b16 %v831
      %v864 = vunpack.c.l.b16 %v832
      %v865 = vunpack.c.l.b16 %v833
      %v866 = vunpack.c.l.b16 %v834
      %v867 = vunpack.c.l.b16 %v835
      %v868 = vunpack.c.l.b16 %v836
      %v869 = vunpack.c.l.b16 %v837
      %v870 = vunpack.c.l.b16 %v838
      %v871 = vunpack.c.l.b16 %v839
      %v872 = vunpack.c.l.b16 %v840
      %v873 = vunpack.c.l.b16 %v841
      %v874 = vunpack.c.l.b16 %v842
      %v875 = vpack.c.b16 %v860, %v859
      %v876 = vpack.c.b16 %v862, %v861
      %v877 = vpack.c.b16 %v864, %v863
      %v878 = vpack.c.b16 %v866, %v865
      %v879 = vpack.c.b16 %v868, %v867
      %v880 = vpack.c.b16 %v870, %v869
      %v881 = vpack.c.b16 %v872, %v871
      %v882 = vpack.c.b16 %v874, %v873
      %891 = vmatprep.subr.bf16.mxu0 0
      %892 = vmatpush1.bf16.msra.mxu0 %v882
      %893 = vmatprep.subr.bf16.mxu0 0
      %894 = vmatpush1.bf16.msra.mxu0 %v881
      %895 = vmatprep.subr.bf16.mxu0 0
      %896 = vmatpush1.bf16.msra.mxu0 %v880
      %897 = vmatprep.subr.bf16.mxu0 0
      %898 = vmatpush1.bf16.msra.mxu0 %v879
      %899 = vmatprep.subr.bf16.mxu0 0
      %900 = vmatpush1.bf16.msra.mxu0 %v878
      %901 = vmatprep.subr.bf16.mxu0 0
      %902 = vmatpush1.bf16.msra.mxu0 %v877
      %903 = vmatprep.subr.bf16.mxu0 0
      %904 = vmatpush1.bf16.msra.mxu0 %v876
      %905 = vmatprep.subr.bf16.mxu0 0
      %906 = vmatpush1.bf16.msra.mxu0 %v875
      %907 = vmatprep.subr.bf16.mxu0 0
      %908 = vmatpush2.bf16.msra.mxu0 0
      %909 = vmatprep.subr.bf16.mxu0 0
      %910 = vmatpush2.bf16.msra.mxu0 0
      %911 = vmatprep.subr.bf16.mxu0 0
      %912 = vmatpush2.bf16.msra.mxu0 0
      %913 = vmatprep.subr.bf16.mxu0 0
      %914 = vmatpush2.bf16.msra.mxu0 0
      %915 = vmatprep.subr.bf16.mxu0 0
      %916 = vmatpush2.bf16.msra.mxu0 0
      %917 = vmatprep.subr.bf16.mxu0 0
      %918 = vmatpush2.bf16.msra.mxu0 0
      %919 = vmatprep.subr.bf16.mxu0 0
      %920 = vmatpush2.bf16.msra.mxu0 0
      %921 = vmatprep.subr.bf16.mxu0 0
      %922 = vmatpush2.bf16.msra.mxu0 0
      %923 = vmatprep.mubr.bf16.mxu0 0
      %924 = vmatmul.mubr.bf16.gmra.mxu0 %v824
      %v925 = vpop.f32.mrf.mxu0
      %v926 = vadd.f32 0.0, %v925
      %v927 = vpop.f32.mrf.mxu0
      %v928 = vpop.f32.mrf.mxu0
      %v929 = vadd.f32 0.0, %v928
      %v930 = vpop.f32.mrf.mxu0
      %931 = vmatprep.mubr.bf16.mxu0 0
      %932 = vmatmul.mubr.bf16.gmra.mxu0 %v825
      %v933 = vpop.f32.mrf.mxu0
      %v934 = vadd.f32 0.0, %v933
      %v935 = vpop.f32.mrf.mxu0
      %v936 = vpop.f32.mrf.mxu0
      %v937 = vpop.f32.mrf.mxu0
      %938 = vdwg.mxu0
      %v939 = vadd.f32 %v818, %v926
      %v940 = vadd.f32 %v819, %v929
      %v941 = vadd.f32 %v820, %v934
      %v942 = vld [vmem:[%s206 + $0xc] sm:$0xff]
      %v943 = vld [vmem:[%s206 + $0x14] sm:$0xff]
      %v944 = vld [vmem:[%s206 + $0x1c] sm:$0xff]
      %v945 = vpack.c.bf16 %v943, %v942
      %v946 = vpack.c.bf16 %v944, %v944
      %s947 = scalar_lea.vmem %s210, 384
      %v948 = vld [vmem:[%s947] sm:$0xf]
      %v949 = vld [vmem:[%s947 + $0x4] sm:$0xf]
      %v950 = vld [vmem:[%s947 + $0x8] sm:$0xf]
      %v951 = vld [vmem:[%s947 + $0xc] sm:$0xf]
      %v952 = vld [vmem:[%s947 + $0x10] sm:$0xf]
      %v953 = vld [vmem:[%s947 + $0x14] sm:$0xf]
      %v954 = vld [vmem:[%s947 + $0x18] sm:$0xf]
      %v955 = vld [vmem:[%s947 + $0x1c] sm:$0xf]
      %v956 = vld [vmem:[%s947 + $0x20] sm:$0xf]
      %v957 = vld [vmem:[%s947 + $0x24] sm:$0xf]
      %v958 = vld [vmem:[%s947 + $0x28] sm:$0xf]
      %v959 = vld [vmem:[%s947 + $0x2c] sm:$0xf]
      %v960 = vld [vmem:[%s947 + $0x30] sm:$0xf]
      %v961 = vld [vmem:[%s947 + $0x34] sm:$0xf]
      %v962 = vld [vmem:[%s947 + $0x38] sm:$0xf]
      %v963 = vld [vmem:[%s947 + $0x3c] sm:$0xf]
      %v980 = vunpack.c.l.b16 %v948
      %v981 = vunpack.c.l.b16 %v949
      %v982 = vunpack.c.l.b16 %v950
      %v983 = vunpack.c.l.b16 %v951
      %v984 = vunpack.c.l.b16 %v952
      %v985 = vunpack.c.l.b16 %v953
      %v986 = vunpack.c.l.b16 %v954
      %v987 = vunpack.c.l.b16 %v955
      %v988 = vunpack.c.l.b16 %v956
      %v989 = vunpack.c.l.b16 %v957
      %v990 = vunpack.c.l.b16 %v958
      %v991 = vunpack.c.l.b16 %v959
      %v992 = vunpack.c.l.b16 %v960
      %v993 = vunpack.c.l.b16 %v961
      %v994 = vunpack.c.l.b16 %v962
      %v995 = vunpack.c.l.b16 %v963
      %v996 = vpack.c.b16 %v981, %v980
      %v997 = vpack.c.b16 %v983, %v982
      %v998 = vpack.c.b16 %v985, %v984
      %v999 = vpack.c.b16 %v987, %v986
      %v1000 = vpack.c.b16 %v989, %v988
      %v1001 = vpack.c.b16 %v991, %v990
      %v1002 = vpack.c.b16 %v993, %v992
      %v1003 = vpack.c.b16 %v995, %v994
      %1012 = vmatprep.subr.bf16.mxu0 0
      %1013 = vmatpush1.bf16.msra.mxu0 %v1003
      %1014 = vmatprep.subr.bf16.mxu0 0
      %1015 = vmatpush1.bf16.msra.mxu0 %v1002
      %1016 = vmatprep.subr.bf16.mxu0 0
      %1017 = vmatpush1.bf16.msra.mxu0 %v1001
      %1018 = vmatprep.subr.bf16.mxu0 0
      %1019 = vmatpush1.bf16.msra.mxu0 %v1000
      %1020 = vmatprep.subr.bf16.mxu0 0
      %1021 = vmatpush1.bf16.msra.mxu0 %v999
      %1022 = vmatprep.subr.bf16.mxu0 0
      %1023 = vmatpush1.bf16.msra.mxu0 %v998
      %1024 = vmatprep.subr.bf16.mxu0 0
      %1025 = vmatpush1.bf16.msra.mxu0 %v997
      %1026 = vmatprep.subr.bf16.mxu0 0
      %1027 = vmatpush1.bf16.msra.mxu0 %v996
      %1028 = vmatprep.subr.bf16.mxu0 0
      %1029 = vmatpush2.bf16.msra.mxu0 0
      %1030 = vmatprep.subr.bf16.mxu0 0
      %1031 = vmatpush2.bf16.msra.mxu0 0
      %1032 = vmatprep.subr.bf16.mxu0 0
      %1033 = vmatpush2.bf16.msra.mxu0 0
      %1034 = vmatprep.subr.bf16.mxu0 0
      %1035 = vmatpush2.bf16.msra.mxu0 0
      %1036 = vmatprep.subr.bf16.mxu0 0
      %1037 = vmatpush2.bf16.msra.mxu0 0
      %1038 = vmatprep.subr.bf16.mxu0 0
      %1039 = vmatpush2.bf16.msra.mxu0 0
      %1040 = vmatprep.subr.bf16.mxu0 0
      %1041 = vmatpush2.bf16.msra.mxu0 0
      %1042 = vmatprep.subr.bf16.mxu0 0
      %1043 = vmatpush2.bf16.msra.mxu0 0
      %1044 = vmatprep.mubr.bf16.mxu0 0
      %1045 = vmatmul.mubr.bf16.gmra.mxu0 %v945
      %v1046 = vpop.f32.mrf.mxu0
      %v1047 = vadd.f32 0.0, %v1046
      %v1048 = vpop.f32.mrf.mxu0
      %v1049 = vpop.f32.mrf.mxu0
      %v1050 = vadd.f32 0.0, %v1049
      %v1051 = vpop.f32.mrf.mxu0
      %1052 = vmatprep.mubr.bf16.mxu0 0
      %1053 = vmatmul.mubr.bf16.gmra.mxu0 %v946
      %v1054 = vpop.f32.mrf.mxu0
      %v1055 = vadd.f32 0.0, %v1054
      %v1056 = vpop.f32.mrf.mxu0
      %v1057 = vpop.f32.mrf.mxu0
      %v1058 = vpop.f32.mrf.mxu0
      %1059 = vdwg.mxu0
      %v1060 = vadd.f32 %v939, %v1047
      %v1061 = vadd.f32 %v940, %v1050
      %v1062 = vadd.f32 %v941, %v1055
      %v1063 = vld [vmem:[%s206 + $0xd] sm:$0xff]
      %v1064 = vld [vmem:[%s206 + $0x15] sm:$0xff]
      %v1065 = vld [vmem:[%s206 + $0x1d] sm:$0xff]
      %v1066 = vpack.c.bf16 %v1064, %v1063
      %v1067 = vpack.c.bf16 %v1065, %v1065
      %s1068 = scalar_lea.vmem %s210, 448
      %v1069 = vld [vmem:[%s1068] sm:$0xf]
      %v1070 = vld [vmem:[%s1068 + $0x4] sm:$0xf]
      %v1071 = vld [vmem:[%s1068 + $0x8] sm:$0xf]
      %v1072 = vld [vmem:[%s1068 + $0xc] sm:$0xf]
      %v1073 = vld [vmem:[%s1068 + $0x10] sm:$0xf]
      %v1074 = vld [vmem:[%s1068 + $0x14] sm:$0xf]
      %v1075 = vld [vmem:[%s1068 + $0x18] sm:$0xf]
      %v1076 = vld [vmem:[%s1068 + $0x1c] sm:$0xf]
      %v1077 = vld [vmem:[%s1068 + $0x20] sm:$0xf]
      %v1078 = vld [vmem:[%s1068 + $0x24] sm:$0xf]
      %v1079 = vld [vmem:[%s1068 + $0x28] sm:$0xf]
      %v1080 = vld [vmem:[%s1068 + $0x2c] sm:$0xf]
      %v1081 = vld [vmem:[%s1068 + $0x30] sm:$0xf]
      %v1082 = vld [vmem:[%s1068 + $0x34] sm:$0xf]
      %v1083 = vld [vmem:[%s1068 + $0x38] sm:$0xf]
      %v1084 = vld [vmem:[%s1068 + $0x3c] sm:$0xf]
      %v1101 = vunpack.c.l.b16 %v1069
      %v1102 = vunpack.c.l.b16 %v1070
      %v1103 = vunpack.c.l.b16 %v1071
      %v1104 = vunpack.c.l.b16 %v1072
      %v1105 = vunpack.c.l.b16 %v1073
      %v1106 = vunpack.c.l.b16 %v1074
      %v1107 = vunpack.c.l.b16 %v1075
      %v1108 = vunpack.c.l.b16 %v1076
      %v1109 = vunpack.c.l.b16 %v1077
      %v1110 = vunpack.c.l.b16 %v1078
      %v1111 = vunpack.c.l.b16 %v1079
      %v1112 = vunpack.c.l.b16 %v1080
      %v1113 = vunpack.c.l.b16 %v1081
      %v1114 = vunpack.c.l.b16 %v1082
      %v1115 = vunpack.c.l.b16 %v1083
      %v1116 = vunpack.c.l.b16 %v1084
      %v1117 = vpack.c.b16 %v1102, %v1101
      %v1118 = vpack.c.b16 %v1104, %v1103
      %v1119 = vpack.c.b16 %v1106, %v1105
      %v1120 = vpack.c.b16 %v1108, %v1107
      %v1121 = vpack.c.b16 %v1110, %v1109
      %v1122 = vpack.c.b16 %v1112, %v1111
      %v1123 = vpack.c.b16 %v1114, %v1113
      %v1124 = vpack.c.b16 %v1116, %v1115
      %1133 = vmatprep.subr.bf16.mxu0 0
      %1134 = vmatpush1.bf16.msra.mxu0 %v1124
      %1135 = vmatprep.subr.bf16.mxu0 0
      %1136 = vmatpush1.bf16.msra.mxu0 %v1123
      %1137 = vmatprep.subr.bf16.mxu0 0
      %1138 = vmatpush1.bf16.msra.mxu0 %v1122
      %1139 = vmatprep.subr.bf16.mxu0 0
      %1140 = vmatpush1.bf16.msra.mxu0 %v1121
      %1141 = vmatprep.subr.bf16.mxu0 0
      %1142 = vmatpush1.bf16.msra.mxu0 %v1120
      %1143 = vmatprep.subr.bf16.mxu0 0
      %1144 = vmatpush1.bf16.msra.mxu0 %v1119
      %1145 = vmatprep.subr.bf16.mxu0 0
      %1146 = vmatpush1.bf16.msra.mxu0 %v1118
      %1147 = vmatprep.subr.bf16.mxu0 0
      %1148 = vmatpush1.bf16.msra.mxu0 %v1117
      %1149 = vmatprep.subr.bf16.mxu0 0
      %1150 = vmatpush2.bf16.msra.mxu0 0
      %1151 = vmatprep.subr.bf16.mxu0 0
      %1152 = vmatpush2.bf16.msra.mxu0 0
      %1153 = vmatprep.subr.bf16.mxu0 0
      %1154 = vmatpush2.bf16.msra.mxu0 0
      %1155 = vmatprep.subr.bf16.mxu0 0
      %1156 = vmatpush2.bf16.msra.mxu0 0
      %1157 = vmatprep.subr.bf16.mxu0 0
      %1158 = vmatpush2.bf16.msra.mxu0 0
      %1159 = vmatprep.subr.bf16.mxu0 0
      %1160 = vmatpush2.bf16.msra.mxu0 0
      %1161 = vmatprep.subr.bf16.mxu0 0
      %1162 = vmatpush2.bf16.msra.mxu0 0
      %1163 = vmatprep.subr.bf16.mxu0 0
      %1164 = vmatpush2.bf16.msra.mxu0 0
      %1165 = vmatprep.mubr.bf16.mxu0 0
      %1166 = vmatmul.mubr.bf16.gmra.mxu0 %v1066
      %v1167 = vpop.f32.mrf.mxu0
      %v1168 = vadd.f32 0.0, %v1167
      %v1169 = vpop.f32.mrf.mxu0
      %v1170 = vpop.f32.mrf.mxu0
      %v1171 = vadd.f32 0.0, %v1170
      %v1172 = vpop.f32.mrf.mxu0
      %1173 = vmatprep.mubr.bf16.mxu0 0
      %1174 = vmatmul.mubr.bf16.gmra.mxu0 %v1067
      %v1175 = vpop.f32.mrf.mxu0
      %v1176 = vadd.f32 0.0, %v1175
      %v1177 = vpop.f32.mrf.mxu0
      %v1178 = vpop.f32.mrf.mxu0
      %v1179 = vpop.f32.mrf.mxu0
      %1180 = vdwg.mxu0
      %v1181 = vadd.f32 %v1060, %v1168
      %v1182 = vadd.f32 %v1061, %v1171
      %v1183 = vadd.f32 %v1062, %v1176
      %v1184 = vld [vmem:[%s206 + $0xe] sm:$0xff]
      %v1185 = vld [vmem:[%s206 + $0x16] sm:$0xff]
      %v1186 = vld [vmem:[%s206 + $0x1e] sm:$0xff]
      %v1187 = vpack.c.bf16 %v1185, %v1184
      %v1188 = vpack.c.bf16 %v1186, %v1186
      %s1189 = scalar_lea.vmem %s210, 512
      %v1190 = vld [vmem:[%s1189] sm:$0xf]
      %v1191 = vld [vmem:[%s1189 + $0x4] sm:$0xf]
      %v1192 = vld [vmem:[%s1189 + $0x8] sm:$0xf]
      %v1193 = vld [vmem:[%s1189 + $0xc] sm:$0xf]
      %v1194 = vld [vmem:[%s1189 + $0x10] sm:$0xf]
      %v1195 = vld [vmem:[%s1189 + $0x14] sm:$0xf]
      %v1196 = vld [vmem:[%s1189 + $0x18] sm:$0xf]
      %v1197 = vld [vmem:[%s1189 + $0x1c] sm:$0xf]
      %v1198 = vld [vmem:[%s1189 + $0x20] sm:$0xf]
      %v1199 = vld [vmem:[%s1189 + $0x24] sm:$0xf]
      %v1200 = vld [vmem:[%s1189 + $0x28] sm:$0xf]
      %v1201 = vld [vmem:[%s1189 + $0x2c] sm:$0xf]
      %v1202 = vld [vmem:[%s1189 + $0x30] sm:$0xf]
      %v1203 = vld [vmem:[%s1189 + $0x34] sm:$0xf]
      %v1204 = vld [vmem:[%s1189 + $0x38] sm:$0xf]
      %v1205 = vld [vmem:[%s1189 + $0x3c] sm:$0xf]
      %v1222 = vunpack.c.l.b16 %v1190
      %v1223 = vunpack.c.l.b16 %v1191
      %v1224 = vunpack.c.l.b16 %v1192
      %v1225 = vunpack.c.l.b16 %v1193
      %v1226 = vunpack.c.l.b16 %v1194
      %v1227 = vunpack.c.l.b16 %v1195
      %v1228 = vunpack.c.l.b16 %v1196
      %v1229 = vunpack.c.l.b16 %v1197
      %v1230 = vunpack.c.l.b16 %v1198
      %v1231 = vunpack.c.l.b16 %v1199
      %v1232 = vunpack.c.l.b16 %v1200
      %v1233 = vunpack.c.l.b16 %v1201
      %v1234 = vunpack.c.l.b16 %v1202
      %v1235 = vunpack.c.l.b16 %v1203
      %v1236 = vunpack.c.l.b16 %v1204
      %v1237 = vunpack.c.l.b16 %v1205
      %v1238 = vpack.c.b16 %v1223, %v1222
      %v1239 = vpack.c.b16 %v1225, %v1224
      %v1240 = vpack.c.b16 %v1227, %v1226
      %v1241 = vpack.c.b16 %v1229, %v1228
      %v1242 = vpack.c.b16 %v1231, %v1230
      %v1243 = vpack.c.b16 %v1233, %v1232
      %v1244 = vpack.c.b16 %v1235, %v1234
      %v1245 = vpack.c.b16 %v1237, %v1236
      %1254 = vmatprep.subr.bf16.mxu0 0
      %1255 = vmatpush1.bf16.msra.mxu0 %v1245
      %1256 = vmatprep.subr.bf16.mxu0 0
      %1257 = vmatpush1.bf16.msra.mxu0 %v1244
      %1258 = vmatprep.subr.bf16.mxu0 0
      %1259 = vmatpush1.bf16.msra.mxu0 %v1243
      %1260 = vmatprep.subr.bf16.mxu0 0
      %1261 = vmatpush1.bf16.msra.mxu0 %v1242
      %1262 = vmatprep.subr.bf16.mxu0 0
      %1263 = vmatpush1.bf16.msra.mxu0 %v1241
      %1264 = vmatprep.subr.bf16.mxu0 0
      %1265 = vmatpush1.bf16.msra.mxu0 %v1240
      %1266 = vmatprep.subr.bf16.mxu0 0
      %1267 = vmatpush1.bf16.msra.mxu0 %v1239
      %1268 = vmatprep.subr.bf16.mxu0 0
      %1269 = vmatpush1.bf16.msra.mxu0 %v1238
      %1270 = vmatprep.subr.bf16.mxu0 0
      %1271 = vmatpush2.bf16.msra.mxu0 0
      %1272 = vmatprep.subr.bf16.mxu0 0
      %1273 = vmatpush2.bf16.msra.mxu0 0
      %1274 = vmatprep.subr.bf16.mxu0 0
      %1275 = vmatpush2.bf16.msra.mxu0 0
      %1276 = vmatprep.subr.bf16.mxu0 0
      %1277 = vmatpush2.bf16.msra.mxu0 0
      %1278 = vmatprep.subr.bf16.mxu0 0
      %1279 = vmatpush2.bf16.msra.mxu0 0
      %1280 = vmatprep.subr.bf16.mxu0 0
      %1281 = vmatpush2.bf16.msra.mxu0 0
      %1282 = vmatprep.subr.bf16.mxu0 0
      %1283 = vmatpush2.bf16.msra.mxu0 0
      %1284 = vmatprep.subr.bf16.mxu0 0
      %1285 = vmatpush2.bf16.msra.mxu0 0
      %1286 = vmatprep.mubr.bf16.mxu0 0
      %1287 = vmatmul.mubr.bf16.gmra.mxu0 %v1187
      %v1288 = vpop.f32.mrf.mxu0
      %v1289 = vadd.f32 0.0, %v1288
      %v1290 = vpop.f32.mrf.mxu0
      %v1291 = vpop.f32.mrf.mxu0
      %v1292 = vadd.f32 0.0, %v1291
      %v1293 = vpop.f32.mrf.mxu0
      %1294 = vmatprep.mubr.bf16.mxu0 0
      %1295 = vmatmul.mubr.bf16.gmra.mxu0 %v1188
      %v1296 = vpop.f32.mrf.mxu0
      %v1297 = vadd.f32 0.0, %v1296
      %v1298 = vpop.f32.mrf.mxu0
      %v1299 = vpop.f32.mrf.mxu0
      %v1300 = vpop.f32.mrf.mxu0
      %1301 = vdwg.mxu0
      %v1302 = vadd.f32 %v1181, %v1289
      %v1303 = vadd.f32 %v1182, %v1292
      %v1304 = vadd.f32 %v1183, %v1297
      %v1305 = vld [vmem:[%s213] sm:$0x1]
      %v1307 = vlaneseq
      %v1308 = vshrl.u32 %v1307, 7
      %v1309 = vsub.s32 0, %v1308
      %v1310 = vrot.slane %v1305, %v1309
      %v1312 = vadd.f32 %v1302, %v1310
      %v1313 = vadd.f32 %v1303, %v1310
      %v1314 = vadd.f32 %v1304, %v1310
      %vm1315 = vcmask 523264
      %1316 = vst.msk [vmem:[%s221] sm:$0xff] %vm1315, %v1312
      %1317 = vst.msk [vmem:[%s221 + $0x8] sm:$0xff] %vm1315, %v1313
      %1318 = vst.msk [vmem:[%s221 + $0x10] sm:$0xff] %vm1315, %v1314
      %p1319 = scmp.lt.s32.totalorder %s18, 1
      %s1320 = scalar_select %p1319, %s18, 1
      %p1321 = scmp.lt.s32.totalorder %s19, 0
      %s1322 = scalar_select %p1321, %s19, 0
      %s1323 = smul.addr %s1320, 3
      %s1324 = sadd.s32 %s1322, %s1323
      %s1325 = smul.addr %s1324, 8
      %s1326 = scalar_lea.vmem %s3, %s1325
      // Predicated region
      $region33: #{spade_resnet_forward.56} parent=31 // pred_check
        %p1327 = pneg %p124
      $region34: #{spade_resnet_forward.56} parent=31 // pred_check_branch
        %1329 = sbr.rel (%p1327) target = $region36
      $region35: #{spade_resnet_forward.56} parent=31 // pred_region
        _
      $region36: #{spade_resnet_forward.56} parent=31 // pred_fallthru
        _
    $region32: #{spade_resnet_forward.56} parent=5 // pred_fallthru
      _
    %p1330 = scmp.le.s32.totalorder 2, %s9
    // Predicated region
    $region37: #{spade_resnet_forward.56} parent=5 // pred_check
      %p1331 = pneg %p1330
    $region38: #{spade_resnet_forward.56} parent=5 // pred_check_branch
      %1333 = sbr.rel (%p1331) target = $region40
    $region39: #{spade_resnet_forward.56} parent=5 // pred_region
      %s1334 = ssub.s32 %s9, 2
      // Predicated region
      $region41: #{spade_resnet_forward.56} parent=39 // pred_check
        %p1335 = pneg %p130
      $region42: #{spade_resnet_forward.56} parent=39 // pred_check_branch
        %1337 = sbr.rel (%p1335) target = $region44
      $region43: #{spade_resnet_forward.56} parent=39 // pred_region
        %p1338 = scmp.lt.s32.totalorder %s20, 1
        %s1339 = scalar_select %p1338, %s20, 1
        %p1340 = scmp.lt.s32.totalorder %s21, 0
        %s1341 = scalar_select %p1340, %s21, 0
        %s1342 = smul.addr %s1339, 3
        %s1343 = sadd.s32 %s1341, %s1342
        %s1344 = smul.addr %s1343, 8
        %s1345 = scalar_lea.vmem %s3, %s1344
      $region44: #{spade_resnet_forward.56} parent=39 // pred_fallthru
        _
    $region40: #{spade_resnet_forward.56} parent=5 // pred_fallthru
      _
  $region6: #{spade_resnet_forward.56} parent=0 // loop_footer
    %s13 = sadd.s32 1, %s9
  $region7: #{spade_resnet_forward.56} parent=0 // loop_footer_branch
    %8 = sbr.rel target = $region3
  $region8: #{spade_resnet_forward.56} parent=0 // loop_exit
    _

// kernel: spade_resnet_forward.82
$region0: #{spade_resnet_forward.82}
  #allocation0 [shape = 'u32[]', space=smem, size = 0x4, offset = 0x4, fixed_abs, tag = 'smem constant byte address 0x4 - core index']
  #allocation1 [shape = 'u32[144,128]{1,0:T(1,128)}', space=vmem, size = 0x12000, scoped, tag = 'internal scratch']
  %s0 = inlined_call_operand.vmem [shape: bf16[32,128], index: 0, kind: input, shape index: {}]
  %s1 = inlined_call_operand.vmem [shape: bf16[128,16], index: 1, kind: input, shape index: {}]
  %s2 = inlined_call_operand.vmem [shape: f32[1,16], index: 2, kind: input, shape index: {}]
  %s3 = inlined_call_operand.vmem [shape: f32[32,16], index: 3, kind: output, shape index: {}]
  %s4 = sld [smem:[#allocation0]]
  $region22: #{spade_resnet_forward.82} parent=0
    _
  %s6 = ssub.s32 1, %s4
  %s7 = scalar_select 0, %s6, %s4
  // Predicated region
  $region2: #{spade_resnet_forward.82} parent=0 // pred_check
    _
  $region3: #{spade_resnet_forward.82} parent=0 // pred_check_branch
    %9 = sbr.rel (0) target = $region5
  $region4: #{spade_resnet_forward.82} parent=0 // pred_region
    _
  $region5: #{spade_resnet_forward.82} parent=0 // pred_fallthru
    _
  // Predicated region
  $region6: #{spade_resnet_forward.82} parent=0 // pred_check
    _
  $region7: #{spade_resnet_forward.82} parent=0 // pred_check_branch
    %11 = sbr.rel (0) target = $region9
  $region8: #{spade_resnet_forward.82} parent=0 // pred_region
    _
  $region9: #{spade_resnet_forward.82} parent=0 // pred_fallthru
    _
  // Predicated region
  $region10: #{spade_resnet_forward.82} parent=0 // pred_check
    _
  $region11: #{spade_resnet_forward.82} parent=0 // pred_check_branch
    %13 = sbr.rel (0) target = $region13
  $region12: #{spade_resnet_forward.82} parent=0 // pred_region
    _
  $region13: #{spade_resnet_forward.82} parent=0 // pred_fallthru
    _
  %v15 = vld [vmem:[%s0] sm:$0xf]
  %v16 = vld [vmem:[%s0 + $0x4] sm:$0xf]
  %v17 = vld [vmem:[%s0 + $0x8] sm:$0xf]
  %v18 = vld [vmem:[%s0 + $0xc] sm:$0xf]
  %v19 = vld [vmem:[%s1] sm:$0xf]
  %v20 = vld [vmem:[%s1 + $0x4] sm:$0xf]
  %v21 = vld [vmem:[%s1 + $0x8] sm:$0xf]
  %v22 = vld [vmem:[%s1 + $0xc] sm:$0xf]
  %v23 = vld [vmem:[%s1 + $0x10] sm:$0xf]
  %v24 = vld [vmem:[%s1 + $0x14] sm:$0xf]
  %v25 = vld [vmem:[%s1 + $0x18] sm:$0xf]
  %v26 = vld [vmem:[%s1 + $0x1c] sm:$0xf]
  %v27 = vld [vmem:[%s1 + $0x20] sm:$0xf]
  %v28 = vld [vmem:[%s1 + $0x24] sm:$0xf]
  %v29 = vld [vmem:[%s1 + $0x28] sm:$0xf]
  %v30 = vld [vmem:[%s1 + $0x2c] sm:$0xf]
  %v31 = vld [vmem:[%s1 + $0x30] sm:$0xf]
  %v32 = vld [vmem:[%s1 + $0x34] sm:$0xf]
  %v33 = vld [vmem:[%s1 + $0x38] sm:$0xf]
  %v34 = vld [vmem:[%s1 + $0x3c] sm:$0xf]
  %v35 = vld [vmem:[%s2] sm:$0x1]
  %v37 = vlaneseq
  %v38 = vshrl.u32 %v37, 7
  %v39 = vsub.s32 0, %v38
  %v40 = vrot.slane %v35, %v39
  %v46 = vunpack.c.l.b16 %v15
  %v47 = vunpack.c.l.b16 %v16
  %v48 = vunpack.c.l.b16 %v17
  %v49 = vunpack.c.l.b16 %v18
  %v50 = vpack.c.b16 %v47, %v46
  %v51 = vpack.c.b16 %v49, %v48
  %v70 = vunpack.c.l.b16 %v19
  %v71 = vunpack.c.l.b16 %v20
  %v72 = vunpack.c.l.b16 %v21
  %v73 = vunpack.c.l.b16 %v22
  %v74 = vunpack.c.l.b16 %v23
  %v75 = vunpack.c.l.b16 %v24
  %v76 = vunpack.c.l.b16 %v25
  %v77 = vunpack.c.l.b16 %v26
  %v78 = vunpack.c.l.b16 %v27
  %v79 = vunpack.c.l.b16 %v28
  %v80 = vunpack.c.l.b16 %v29
  %v81 = vunpack.c.l.b16 %v30
  %v82 = vunpack.c.l.b16 %v31
  %v83 = vunpack.c.l.b16 %v32
  %v84 = vunpack.c.l.b16 %v33
  %v85 = vunpack.c.l.b16 %v34
  %v86 = vpack.c.b16 %v71, %v70
  %v87 = vpack.c.b16 %v73, %v72
  %v88 = vpack.c.b16 %v75, %v74
  %v89 = vpack.c.b16 %v77, %v76
  %v90 = vpack.c.b16 %v79, %v78
  %v91 = vpack.c.b16 %v81, %v80
  %v92 = vpack.c.b16 %v83, %v82
  %v93 = vpack.c.b16 %v85, %v84
  %102 = vmatprep.subr.bf16.mxu0 0
  %103 = vmatpush1.bf16.msra.mxu0 %v93
  %104 = vmatprep.subr.bf16.mxu0 0
  %105 = vmatpush1.bf16.msra.mxu0 %v92
  %106 = vmatprep.subr.bf16.mxu0 0
  %107 = vmatpush1.bf16.msra.mxu0 %v91
  %108 = vmatprep.subr.bf16.mxu0 0
  %109 = vmatpush1.bf16.msra.mxu0 %v90
  %110 = vmatprep.subr.bf16.mxu0 0
  %111 = vmatpush1.bf16.msra.mxu0 %v89
  %112 = vmatprep.subr.bf16.mxu0 0
  %113 = vmatpush1.bf16.msra.mxu0 %v88
  %114 = vmatprep.subr.bf16.mxu0 0
  %115 = vmatpush1.bf16.msra.mxu0 %v87
  %116 = vmatprep.subr.bf16.mxu0 0
  %117 = vmatpush1.bf16.msra.mxu0 %v86
  %118 = vmatprep.subr.bf16.mxu0 0
  %119 = vmatpush2.bf16.msra.mxu0 0
  %120 = vmatprep.subr.bf16.mxu0 0
  %121 = vmatpush2.bf16.msra.mxu0 0
  %122 = vmatprep.subr.bf16.mxu0 0
  %123 = vmatpush2.bf16.msra.mxu0 0
  %124 = vmatprep.subr.bf16.mxu0 0
  %125 = vmatpush2.bf16.msra.mxu0 0
  %126 = vmatprep.subr.bf16.mxu0 0
  %127 = vmatpush2.bf16.msra.mxu0 0
  %128 = vmatprep.subr.bf16.mxu0 0
  %129 = vmatpush2.bf16.msra.mxu0 0
  %130 = vmatprep.subr.bf16.mxu0 0
  %131 = vmatpush2.bf16.msra.mxu0 0
  %132 = vmatprep.subr.bf16.mxu0 0
  %133 = vmatpush2.bf16.msra.mxu0 0
  %134 = vmatprep.mubr.bf16.mxu0 0
  %135 = vmatmul.mubr.bf16.gmra.mxu0 %v50
  %v136 = vpop.f32.mrf.mxu0
  %v137 = vadd.f32 %v40, %v136
  %v138 = vpop.f32.mrf.mxu0
  %v139 = vpop.f32.mrf.mxu0
  %v140 = vadd.f32 %v40, %v139
  %v141 = vpop.f32.mrf.mxu0
  %142 = vmatprep.mubr.bf16.mxu0 0
  %143 = vmatmul.mubr.bf16.gmra.mxu0 %v51
  %v144 = vpop.f32.mrf.mxu0
  %v145 = vadd.f32 %v40, %v144
  %v146 = vpop.f32.mrf.mxu0
  %v147 = vpop.f32.mrf.mxu0
  %v148 = vadd.f32 %v40, %v147
  %v149 = vpop.f32.mrf.mxu0
  %150 = vdwg.mxu0
  %vm151 = vcmask 130048
  %152 = vst.msk [vmem:[%s3] sm:$0xff] %vm151, %v137
  %153 = vst.msk [vmem:[%s3 + $0x8] sm:$0xff] %vm151, %v140
  %154 = vst.msk [vmem:[%s3 + $0x10] sm:$0xff] %vm151, %v145
  %155 = vst.msk [vmem:[%s3 + $0x18] sm:$0xff] %vm151, %v148
  // Predicated region
  $region14: #{spade_resnet_forward.82} parent=0 // pred_check
    _
  $region15: #{spade_resnet_forward.82} parent=0 // pred_check_branch
    %157 = sbr.rel (0) target = $region17
  $region16: #{spade_resnet_forward.82} parent=0 // pred_region
    _
  $region17: #{spade_resnet_forward.82} parent=0 // pred_fallthru
    _
  // Predicated region
  $region18: #{spade_resnet_forward.82} parent=0 // pred_check
    _
  $region19: #{spade_resnet_forward.82} parent=0 // pred_check_branch
    %159 = sbr.rel (0) target = $region21
  $region20: #{spade_resnet_forward.82} parent=0 // pred_region
    _
  $region21: #{spade_resnet_forward.82} parent=0 // pred_fallthru
    _

// kernel: spade_resnet_forward.80
$region0: #{spade_resnet_forward.80}
  #allocation0 [shape = 'u32[]', space=smem, size = 0x4, offset = 0x4, fixed_abs, tag = 'smem constant byte address 0x4 - core index']
  #allocation1 [shape = 'u32[144,128]{1,0:T(1,128)}', space=vmem, size = 0x12000, scoped, tag = 'internal scratch']
  %s0 = inlined_call_operand.vmem [shape: bf16[32,64], index: 0, kind: input, shape index: {}]
  %s1 = inlined_call_operand.vmem [shape: bf16[64,16], index: 1, kind: input, shape index: {}]
  %s2 = inlined_call_operand.vmem [shape: f32[1,16], index: 2, kind: input, shape index: {}]
  %s3 = inlined_call_operand.vmem [shape: f32[32,16], index: 3, kind: output, shape index: {}]
  %s4 = sld [smem:[#allocation0]]
  $region22: #{spade_resnet_forward.80} parent=0
    _
  %s6 = ssub.s32 1, %s4
  %s7 = scalar_select 0, %s6, %s4
  // Predicated region
  $region2: #{spade_resnet_forward.80} parent=0 // pred_check
    _
  $region3: #{spade_resnet_forward.80} parent=0 // pred_check_branch
    %9 = sbr.rel (0) target = $region5
  $region4: #{spade_resnet_forward.80} parent=0 // pred_region
    _
  $region5: #{spade_resnet_forward.80} parent=0 // pred_fallthru
    _
  // Predicated region
  $region6: #{spade_resnet_forward.80} parent=0 // pred_check
    _
  $region7: #{spade_resnet_forward.80} parent=0 // pred_check_branch
    %11 = sbr.rel (0) target = $region9
  $region8: #{spade_resnet_forward.80} parent=0 // pred_region
    _
  $region9: #{spade_resnet_forward.80} parent=0 // pred_fallthru
    _
  // Predicated region
  $region10: #{spade_resnet_forward.80} parent=0 // pred_check
    _
  $region11: #{spade_resnet_forward.80} parent=0 // pred_check_branch
    %13 = sbr.rel (0) target = $region13
  $region12: #{spade_resnet_forward.80} parent=0 // pred_region
    _
  $region13: #{spade_resnet_forward.80} parent=0 // pred_fallthru
    _
  %v15 = vld [vmem:[%s0] sm:$0xf]
  %v16 = vld [vmem:[%s0 + $0x4] sm:$0xf]
  %v17 = vld [vmem:[%s0 + $0x8] sm:$0xf]
  %v18 = vld [vmem:[%s0 + $0xc] sm:$0xf]
  %v19 = vld [vmem:[%s1] sm:$0xf]
  %v20 = vld [vmem:[%s1 + $0x4] sm:$0xf]
  %v21 = vld [vmem:[%s1 + $0x8] sm:$0xf]
  %v22 = vld [vmem:[%s1 + $0xc] sm:$0xf]
  %v23 = vld [vmem:[%s1 + $0x10] sm:$0xf]
  %v24 = vld [vmem:[%s1 + $0x14] sm:$0xf]
  %v25 = vld [vmem:[%s1 + $0x18] sm:$0xf]
  %v26 = vld [vmem:[%s1 + $0x1c] sm:$0xf]
  %v27 = vld [vmem:[%s2] sm:$0x1]
  %v29 = vlaneseq
  %v30 = vshrl.u32 %v29, 7
  %v31 = vsub.s32 0, %v30
  %v32 = vrot.slane %v27, %v31
  %v38 = vunpack.c.l.b16 %v15
  %v39 = vunpack.c.l.b16 %v16
  %v40 = vunpack.c.l.b16 %v17
  %v41 = vunpack.c.l.b16 %v18
  %v42 = vpack.c.b16 %v39, %v38
  %v43 = vpack.c.b16 %v41, %v40
  %v52 = vunpack.c.l.b16 %v19
  %v53 = vunpack.c.l.b16 %v20
  %v54 = vunpack.c.l.b16 %v21
  %v55 = vunpack.c.l.b16 %v22
  %v56 = vunpack.c.l.b16 %v23
  %v57 = vunpack.c.l.b16 %v24
  %v58 = vunpack.c.l.b16 %v25
  %v59 = vunpack.c.l.b16 %v26
  %v60 = vpack.c.b16 %v53, %v52
  %v61 = vpack.c.b16 %v55, %v54
  %v62 = vpack.c.b16 %v57, %v56
  %v63 = vpack.c.b16 %v59, %v58
  %vm68 = vcmask 523264
  %v70 = vsel %vm68, %v42, 0
  %v73 = vsel %vm68, %v43, 0
  %75 = vmatprep.subr.bf16.mxu0 0
  %76 = vmatpush1.bf16.msra.mxu0 0
  %77 = vmatprep.subr.bf16.mxu0 0
  %78 = vmatpush1.bf16.msra.mxu0 0
  %79 = vmatprep.subr.bf16.mxu0 0
  %80 = vmatpush1.bf16.msra.mxu0 0
  %81 = vmatprep.subr.bf16.mxu0 0
  %82 = vmatpush1.bf16.msra.mxu0 0
  %83 = vmatprep.subr.bf16.mxu0 0
  %84 = vmatpush1.bf16.msra.mxu0 %v63
  %85 = vmatprep.subr.bf16.mxu0 0
  %86 = vmatpush1.bf16.msra.mxu0 %v62
  %87 = vmatprep.subr.bf16.mxu0 0
  %88 = vmatpush1.bf16.msra.mxu0 %v61
  %89 = vmatprep.subr.bf16.mxu0 0
  %90 = vmatpush1.bf16.msra.mxu0 %v60
  %91 = vmatprep.subr.bf16.mxu0 0
  %92 = vmatpush2.bf16.msra.mxu0 0
  %93 = vmatprep.subr.bf16.mxu0 0
  %94 = vmatpush2.bf16.msra.mxu0 0
  %95 = vmatprep.subr.bf16.mxu0 0
  %96 = vmatpush2.bf16.msra.mxu0 0
  %97 = vmatprep.subr.bf16.mxu0 0
  %98 = vmatpush2.bf16.msra.mxu0 0
  %99 = vmatprep.subr.bf16.mxu0 0
  %100 = vmatpush2.bf16.msra.mxu0 0
  %101 = vmatprep.subr.bf16.mxu0 0
  %102 = vmatpush2.bf16.msra.mxu0 0
  %103 = vmatprep.subr.bf16.mxu0 0
  %104 = vmatpush2.bf16.msra.mxu0 0
  %105 = vmatprep.subr.bf16.mxu0 0
  %106 = vmatpush2.bf16.msra.mxu0 0
  %107 = vmatprep.mubr.bf16.mxu0 0
  %108 = vmatmul.mubr.bf16.gmra.mxu0 %v70
  %v109 = vpop.f32.mrf.mxu0
  %v110 = vadd.f32 %v32, %v109
  %v111 = vpop.f32.mrf.mxu0
  %v112 = vpop.f32.mrf.mxu0
  %v113 = vadd.f32 %v32, %v112
  %v114 = vpop.f32.mrf.mxu0
  %115 = vmatprep.mubr.bf16.mxu0 0
  %116 = vmatmul.mubr.bf16.gmra.mxu0 %v73
  %v117 = vpop.f32.mrf.mxu0
  %v118 = vadd.f32 %v32, %v117
  %v119 = vpop.f32.mrf.mxu0
  %v120 = vpop.f32.mrf.mxu0
  %v121 = vadd.f32 %v32, %v120
  %v122 = vpop.f32.mrf.mxu0
  %123 = vdwg.mxu0
  %vm124 = vcmask 130048
  %125 = vst.msk [vmem:[%s3] sm:$0xff] %vm124, %v110
  %126 = vst.msk [vmem:[%s3 + $0x8] sm:$0xff] %vm124, %v113
  %127 = vst.msk [vmem:[%s3 + $0x10] sm:$0xff] %vm124, %v118
  %128 = vst.msk [vmem:[%s3 + $0x18] sm:$0xff] %vm124, %v121
  // Predicated region
  $region14: #{spade_resnet_forward.80} parent=0 // pred_check
    _
  $region15: #{spade_resnet_forward.80} parent=0 // pred_check_branch
    %130 = sbr.rel (0) target = $region17
  $region16: #{spade_resnet_forward.80} parent=0 // pred_region
    _
  $region17: #{spade_resnet_forward.80} parent=0 // pred_fallthru
    _
  // Predicated region
  $region18: #{spade_resnet_forward.80} parent=0 // pred_check
    _
  $region19: #{spade_resnet_forward.80} parent=0 // pred_check_branch
    %132 = sbr.rel (0) target = $region21
  $region20: #{spade_resnet_forward.80} parent=0 // pred_region
    _
  $region21: #{spade_resnet_forward.80} parent=0 // pred_fallthru
    _

// kernel: spade_resnet_forward.79
$region0: #{spade_resnet_forward.79}
  #allocation0 [shape = 'u32[]', space=smem, size = 0x4, offset = 0x4, fixed_abs, tag = 'smem constant byte address 0x4 - core index']
  #allocation1 [shape = 'u32[144,128]{1,0:T(1,128)}', space=vmem, size = 0x12000, scoped, tag = 'internal scratch']
  %s0 = inlined_call_operand.vmem [shape: bf16[32,32], index: 0, kind: input, shape index: {}]
  %s1 = inlined_call_operand.vmem [shape: bf16[32,16], index: 1, kind: input, shape index: {}]
  %s2 = inlined_call_operand.vmem [shape: f32[1,16], index: 2, kind: input, shape index: {}]
  %s3 = inlined_call_operand.vmem [shape: f32[32,16], index: 3, kind: output, shape index: {}]
  %s4 = sld [smem:[#allocation0]]
  $region22: #{spade_resnet_forward.79} parent=0
    _
  %s6 = ssub.s32 1, %s4
  %s7 = scalar_select 0, %s6, %s4
  // Predicated region
  $region2: #{spade_resnet_forward.79} parent=0 // pred_check
    _
  $region3: #{spade_resnet_forward.79} parent=0 // pred_check_branch
    %9 = sbr.rel (0) target = $region5
  $region4: #{spade_resnet_forward.79} parent=0 // pred_region
    _
  $region5: #{spade_resnet_forward.79} parent=0 // pred_fallthru
    _
  // Predicated region
  $region6: #{spade_resnet_forward.79} parent=0 // pred_check
    _
  $region7: #{spade_resnet_forward.79} parent=0 // pred_check_branch
    %11 = sbr.rel (0) target = $region9
  $region8: #{spade_resnet_forward.79} parent=0 // pred_region
    _
  $region9: #{spade_resnet_forward.79} parent=0 // pred_fallthru
    _
  // Predicated region
  $region10: #{spade_resnet_forward.79} parent=0 // pred_check
    _
  $region11: #{spade_resnet_forward.79} parent=0 // pred_check_branch
    %13 = sbr.rel (0) target = $region13
  $region12: #{spade_resnet_forward.79} parent=0 // pred_region
    _
  $region13: #{spade_resnet_forward.79} parent=0 // pred_fallthru
    _
  %v15 = vld [vmem:[%s0] sm:$0xf]
  %v16 = vld [vmem:[%s0 + $0x4] sm:$0xf]
  %v17 = vld [vmem:[%s0 + $0x8] sm:$0xf]
  %v18 = vld [vmem:[%s0 + $0xc] sm:$0xf]
  %v19 = vld [vmem:[%s1] sm:$0xf]
  %v20 = vld [vmem:[%s1 + $0x4] sm:$0xf]
  %v21 = vld [vmem:[%s1 + $0x8] sm:$0xf]
  %v22 = vld [vmem:[%s1 + $0xc] sm:$0xf]
  %v23 = vld [vmem:[%s2] sm:$0x1]
  %v25 = vlaneseq
  %v26 = vshrl.u32 %v25, 7
  %v27 = vsub.s32 0, %v26
  %v28 = vrot.slane %v23, %v27
  %v34 = vunpack.c.l.b16 %v15
  %v35 = vunpack.c.l.b16 %v16
  %v36 = vunpack.c.l.b16 %v17
  %v37 = vunpack.c.l.b16 %v18
  %v38 = vpack.c.b16 %v35, %v34
  %v39 = vpack.c.b16 %v37, %v36
  %v44 = vunpack.c.l.b16 %v19
  %v45 = vunpack.c.l.b16 %v20
  %v46 = vunpack.c.l.b16 %v21
  %v47 = vunpack.c.l.b16 %v22
  %v48 = vpack.c.b16 %v45, %v44
  %v49 = vpack.c.b16 %v47, %v46
  %vm52 = vcmask 261120
  %v54 = vsel %vm52, %v38, 0
  %v57 = vsel %vm52, %v39, 0
  %59 = vmatprep.subr.bf16.mxu0 0
  %60 = vmatpush1.bf16.msra.mxu0 0
  %61 = vmatprep.subr.bf16.mxu0 0
  %62 = vmatpush1.bf16.msra.mxu0 0
  %63 = vmatprep.subr.bf16.mxu0 0
  %64 = vmatpush1.bf16.msra.mxu0 0
  %65 = vmatprep.subr.bf16.mxu0 0
  %66 = vmatpush1.bf16.msra.mxu0 0
  %67 = vmatprep.subr.bf16.mxu0 0
  %68 = vmatpush1.bf16.msra.mxu0 0
  %69 = vmatprep.subr.bf16.mxu0 0
  %70 = vmatpush1.bf16.msra.mxu0 0
  %71 = vmatprep.subr.bf16.mxu0 0
  %72 = vmatpush1.bf16.msra.mxu0 %v49
  %73 = vmatprep.subr.bf16.mxu0 0
  %74 = vmatpush1.bf16.msra.mxu0 %v48
  %75 = vmatprep.subr.bf16.mxu0 0
  %76 = vmatpush2.bf16.msra.mxu0 0
  %77 = vmatprep.subr.bf16.mxu0 0
  %78 = vmatpush2.bf16.msra.mxu0 0
  %79 = vmatprep.subr.bf16.mxu0 0
  %80 = vmatpush2.bf16.msra.mxu0 0
  %81 = vmatprep.subr.bf16.mxu0 0
  %82 = vmatpush2.bf16.msra.mxu0 0
  %83 = vmatprep.subr.bf16.mxu0 0
  %84 = vmatpush2.bf16.msra.mxu0 0
  %85 = vmatprep.subr.bf16.mxu0 0
  %86 = vmatpush2.bf16.msra.mxu0 0
  %87 = vmatprep.subr.bf16.mxu0 0
  %88 = vmatpush2.bf16.msra.mxu0 0
  %89 = vmatprep.subr.bf16.mxu0 0
  %90 = vmatpush2.bf16.msra.mxu0 0
  %91 = vmatprep.mubr.bf16.mxu0 0
  %92 = vmatmul.mubr.bf16.gmra.mxu0 %v54
  %v93 = vpop.f32.mrf.mxu0
  %v94 = vadd.f32 %v28, %v93
  %v95 = vpop.f32.mrf.mxu0
  %v96 = vpop.f32.mrf.mxu0
  %v97 = vadd.f32 %v28, %v96
  %v98 = vpop.f32.mrf.mxu0
  %99 = vmatprep.mubr.bf16.mxu0 0
  %100 = vmatmul.mubr.bf16.gmra.mxu0 %v57
  %v101 = vpop.f32.mrf.mxu0
  %v102 = vadd.f32 %v28, %v101
  %v103 = vpop.f32.mrf.mxu0
  %v104 = vpop.f32.mrf.mxu0
  %v105 = vadd.f32 %v28, %v104
  %v106 = vpop.f32.mrf.mxu0
  %107 = vdwg.mxu0
  %vm108 = vcmask 130048
  %109 = vst.msk [vmem:[%s3] sm:$0xff] %vm108, %v94
  %110 = vst.msk [vmem:[%s3 + $0x8] sm:$0xff] %vm108, %v97
  %111 = vst.msk [vmem:[%s3 + $0x10] sm:$0xff] %vm108, %v102
  %112 = vst.msk [vmem:[%s3 + $0x18] sm:$0xff] %vm108, %v105
  // Predicated region
  $region14: #{spade_resnet_forward.79} parent=0 // pred_check
    _
  $region15: #{spade_resnet_forward.79} parent=0 // pred_check_branch
    %114 = sbr.rel (0) target = $region17
  $region16: #{spade_resnet_forward.79} parent=0 // pred_region
    _
  $region17: #{spade_resnet_forward.79} parent=0 // pred_fallthru
    _
  // Predicated region
  $region18: #{spade_resnet_forward.79} parent=0 // pred_check
    _
  $region19: #{spade_resnet_forward.79} parent=0 // pred_check_branch
    %116 = sbr.rel (0) target = $region21
  $region20: #{spade_resnet_forward.79} parent=0 // pred_region
    _
  $region21: #{spade_resnet_forward.79} parent=0 // pred_fallthru
    _

// kernel: spade_resnet_forward.88
$region0: #{spade_resnet_forward.88}
  #allocation0 [shape = 'u32[]', space=smem, size = 0x4, offset = 0x4, fixed_abs, tag = 'smem constant byte address 0x4 - core index']
  #allocation1 [shape = 'u32[144,128]{1,0:T(1,128)}', space=vmem, size = 0x12000, scoped, tag = 'internal scratch']
  %s0 = inlined_call_operand.vmem [shape: bf16[128,64], index: 0, kind: input, shape index: {}]
  %s1 = inlined_call_operand.vmem [shape: bf16[64,8], index: 1, kind: input, shape index: {}]
  %s2 = inlined_call_operand.vmem [shape: f32[1,8], index: 2, kind: input, shape index: {}]
  %s3 = inlined_call_operand.vmem [shape: f32[128,8], index: 3, kind: output, shape index: {}]
  %s4 = sld [smem:[#allocation0]]
  $region22: #{spade_resnet_forward.88} parent=0
    _
  %s6 = ssub.s32 1, %s4
  %s7 = scalar_select 0, %s6, %s4
  // Predicated region
  $region2: #{spade_resnet_forward.88} parent=0 // pred_check
    _
  $region3: #{spade_resnet_forward.88} parent=0 // pred_check_branch
    %9 = sbr.rel (0) target = $region5
  $region4: #{spade_resnet_forward.88} parent=0 // pred_region
    _
  $region5: #{spade_resnet_forward.88} parent=0 // pred_fallthru
    _
  // Predicated region
  $region6: #{spade_resnet_forward.88} parent=0 // pred_check
    _
  $region7: #{spade_resnet_forward.88} parent=0 // pred_check_branch
    %11 = sbr.rel (0) target = $region9
  $region8: #{spade_resnet_forward.88} parent=0 // pred_region
    _
  $region9: #{spade_resnet_forward.88} parent=0 // pred_fallthru
    _
  // Predicated region
  $region10: #{spade_resnet_forward.88} parent=0 // pred_check
    _
  $region11: #{spade_resnet_forward.88} parent=0 // pred_check_branch
    %13 = sbr.rel (0) target = $region13
  $region12: #{spade_resnet_forward.88} parent=0 // pred_region
    _
  $region13: #{spade_resnet_forward.88} parent=0 // pred_fallthru
    _
  %v15 = vld [vmem:[%s0] sm:$0xf]
  %v16 = vld [vmem:[%s0 + $0x4] sm:$0xf]
  %v17 = vld [vmem:[%s0 + $0x8] sm:$0xf]
  %v18 = vld [vmem:[%s0 + $0xc] sm:$0xf]
  %v19 = vld [vmem:[%s0 + $0x10] sm:$0xf]
  %v20 = vld [vmem:[%s0 + $0x14] sm:$0xf]
  %v21 = vld [vmem:[%s0 + $0x18] sm:$0xf]
  %v22 = vld [vmem:[%s0 + $0x1c] sm:$0xf]
  %v23 = vld [vmem:[%s0 + $0x20] sm:$0xf]
  %v24 = vld [vmem:[%s0 + $0x24] sm:$0xf]
  %v25 = vld [vmem:[%s0 + $0x28] sm:$0xf]
  %v26 = vld [vmem:[%s0 + $0x2c] sm:$0xf]
  %v27 = vld [vmem:[%s0 + $0x30] sm:$0xf]
  %v28 = vld [vmem:[%s0 + $0x34] sm:$0xf]
  %v29 = vld [vmem:[%s0 + $0x38] sm:$0xf]
  %v30 = vld [vmem:[%s0 + $0x3c] sm:$0xf]
  %v31 = vld [vmem:[%s1] sm:$0xf]
  %v32 = vld [vmem:[%s1 + $0x4] sm:$0xf]
  %v33 = vld [vmem:[%s1 + $0x8] sm:$0xf]
  %v34 = vld [vmem:[%s1 + $0xc] sm:$0xf]
  %v35 = vld [vmem:[%s1 + $0x10] sm:$0xf]
  %v36 = vld [vmem:[%s1 + $0x14] sm:$0xf]
  %v37 = vld [vmem:[%s1 + $0x18] sm:$0xf]
  %v38 = vld [vmem:[%s1 + $0x1c] sm:$0xf]
  %v39 = vld [vmem:[%s2] sm:$0x1]
  %v41 = vlaneseq
  %v42 = vshrl.u32 %v41, 7
  %v43 = vsub.s32 0, %v42
  %v44 = vrot.slane %v39, %v43
  %v62 = vunpack.c.l.b16 %v15
  %v63 = vunpack.c.l.b16 %v16
  %v64 = vunpack.c.l.b16 %v17
  %v65 = vunpack.c.l.b16 %v18
  %v66 = vunpack.c.l.b16 %v19
  %v67 = vunpack.c.l.b16 %v20
  %v68 = vunpack.c.l.b16 %v21
  %v69 = vunpack.c.l.b16 %v22
  %v70 = vunpack.c.l.b16 %v23
  %v71 = vunpack.c.l.b16 %v24
  %v72 = vunpack.c.l.b16 %v25
  %v73 = vunpack.c.l.b16 %v26
  %v74 = vunpack.c.l.b16 %v27
  %v75 = vunpack.c.l.b16 %v28
  %v76 = vunpack.c.l.b16 %v29
  %v77 = vunpack.c.l.b16 %v30
  %v78 = vpack.c.b16 %v63, %v62
  %v79 = vpack.c.b16 %v65, %v64
  %v80 = vpack.c.b16 %v67, %v66
  %v81 = vpack.c.b16 %v69, %v68
  %v82 = vpack.c.b16 %v71, %v70
  %v83 = vpack.c.b16 %v73, %v72
  %v84 = vpack.c.b16 %v75, %v74
  %v85 = vpack.c.b16 %v77, %v76
  %v94 = vunpack.c.l.b16 %v31
  %v95 = vunpack.c.l.b16 %v32
  %v96 = vunpack.c.l.b16 %v33
  %v97 = vunpack.c.l.b16 %v34
  %v98 = vunpack.c.l.b16 %v35
  %v99 = vunpack.c.l.b16 %v36
  %v100 = vunpack.c.l.b16 %v37
  %v101 = vunpack.c.l.b16 %v38
  %v102 = vpack.c.b16 %v95, %v94
  %v103 = vpack.c.b16 %v97, %v96
  %v104 = vpack.c.b16 %v99, %v98
  %v105 = vpack.c.b16 %v101, %v100
  %vm110 = vcmask 523264
  %v112 = vsel %vm110, %v78, 0
  %v115 = vsel %vm110, %v79, 0
  %v118 = vsel %vm110, %v80, 0
  %v121 = vsel %vm110, %v81, 0
  %v124 = vsel %vm110, %v82, 0
  %v127 = vsel %vm110, %v83, 0
  %v130 = vsel %vm110, %v84, 0
  %v133 = vsel %vm110, %v85, 0
  %135 = vmatprep.subr.bf16.mxu0 0
  %136 = vmatpush1.bf16.msra.mxu0 0
  %137 = vmatprep.subr.bf16.mxu0 0
  %138 = vmatpush1.bf16.msra.mxu0 0
  %139 = vmatprep.subr.bf16.mxu0 0
  %140 = vmatpush1.bf16.msra.mxu0 0
  %141 = vmatprep.subr.bf16.mxu0 0
  %142 = vmatpush1.bf16.msra.mxu0 0
  %143 = vmatprep.subr.bf16.mxu0 0
  %144 = vmatpush1.bf16.msra.mxu0 %v105
  %145 = vmatprep.subr.bf16.mxu0 0
  %146 = vmatpush1.bf16.msra.mxu0 %v104
  %147 = vmatprep.subr.bf16.mxu0 0
  %148 = vmatpush1.bf16.msra.mxu0 %v103
  %149 = vmatprep.subr.bf16.mxu0 0
  %150 = vmatpush1.bf16.msra.mxu0 %v102
  %151 = vmatprep.subr.bf16.mxu0 0
  %152 = vmatpush2.bf16.msra.mxu0 0
  %153 = vmatprep.subr.bf16.mxu0 0
  %154 = vmatpush2.bf16.msra.mxu0 0
  %155 = vmatprep.subr.bf16.mxu0 0
  %156 = vmatpush2.bf16.msra.mxu0 0
  %157 = vmatprep.subr.bf16.mxu0 0
  %158 = vmatpush2.bf16.msra.mxu0 0
  %159 = vmatprep.subr.bf16.mxu0 0
  %160 = vmatpush2.bf16.msra.mxu0 0
  %161 = vmatprep.subr.bf16.mxu0 0
  %162 = vmatpush2.bf16.msra.mxu0 0
  %163 = vmatprep.subr.bf16.mxu0 0
  %164 = vmatpush2.bf16.msra.mxu0 0
  %165 = vmatprep.subr.bf16.mxu0 0
  %166 = vmatpush2.bf16.msra.mxu0 0
  %167 = vmatprep.mubr.bf16.mxu0 0
  %168 = vmatmul.mubr.bf16.gmra.mxu0 %v112
  %v169 = vpop.f32.mrf.mxu0
  %v170 = vadd.f32 %v44, %v169
  %v171 = vpop.f32.mrf.mxu0
  %v172 = vpop.f32.mrf.mxu0
  %v173 = vadd.f32 %v44, %v172
  %v174 = vpop.f32.mrf.mxu0
  %175 = vmatprep.mubr.bf16.mxu0 0
  %176 = vmatmul.mubr.bf16.gmra.mxu0 %v115
  %v177 = vpop.f32.mrf.mxu0
  %v178 = vadd.f32 %v44, %v177
  %v179 = vpop.f32.mrf.mxu0
  %v180 = vpop.f32.mrf.mxu0
  %v181 = vadd.f32 %v44, %v180
  %v182 = vpop.f32.mrf.mxu0
  %183 = vmatprep.mubr.bf16.mxu0 0
  %184 = vmatmul.mubr.bf16.gmra.mxu0 %v118
  %v185 = vpop.f32.mrf.mxu0
  %v186 = vadd.f32 %v44, %v185
  %v187 = vpop.f32.mrf.mxu0
  %v188 = vpop.f32.mrf.mxu0
  %v189 = vadd.f32 %v44, %v188
  %v190 = vpop.f32.mrf.mxu0
  %191 = vmatprep.mubr.bf16.mxu0 0
  %192 = vmatmul.mubr.bf16.gmra.mxu0 %v121
  %v193 = vpop.f32.mrf.mxu0
  %v194 = vadd.f32 %v44, %v193
  %v195 = vpop.f32.mrf.mxu0
  %v196 = vpop.f32.mrf.mxu0
  %v197 = vadd.f32 %v44, %v196
  %v198 = vpop.f32.mrf.mxu0
  %199 = vmatprep.mubr.bf16.mxu0 0
  %200 = vmatmul.mubr.bf16.gmra.mxu0 %v124
  %v201 = vpop.f32.mrf.mxu0
  %v202 = vadd.f32 %v44, %v201
  %v203 = vpop.f32.mrf.mxu0
  %v204 = vpop.f32.mrf.mxu0
  %v205 = vadd.f32 %v44, %v204
  %v206 = vpop.f32.mrf.mxu0
  %207 = vmatprep.mubr.bf16.mxu0 0
  %208 = vmatmul.mubr.bf16.gmra.mxu0 %v127
  %v209 = vpop.f32.mrf.mxu0
  %v210 = vadd.f32 %v44, %v209
  %v211 = vpop.f32.mrf.mxu0
  %v212 = vpop.f32.mrf.mxu0
  %v213 = vadd.f32 %v44, %v212
  %v214 = vpop.f32.mrf.mxu0
  %215 = vmatprep.mubr.bf16.mxu0 0
  %216 = vmatmul.mubr.bf16.gmra.mxu0 %v130
  %v217 = vpop.f32.mrf.mxu0
  %v218 = vadd.f32 %v44, %v217
  %v219 = vpop.f32.mrf.mxu0
  %v220 = vpop.f32.mrf.mxu0
  %v221 = vadd.f32 %v44, %v220
  %v222 = vpop.f32.mrf.mxu0
  %223 = vmatprep.mubr.bf16.mxu0 0
  %224 = vmatmul.mubr.bf16.gmra.mxu0 %v133
  %v225 = vpop.f32.mrf.mxu0
  %v226 = vadd.f32 %v44, %v225
  %v227 = vpop.f32.mrf.mxu0
  %v228 = vpop.f32.mrf.mxu0
  %v229 = vadd.f32 %v44, %v228
  %v230 = vpop.f32.mrf.mxu0
  %231 = vdwg.mxu0
  %vm232 = vcmask 64512
  %233 = vst.msk [vmem:[%s3] sm:$0xff] %vm232, %v170
  %234 = vst.msk [vmem:[%s3 + $0x8] sm:$0xff] %vm232, %v173
  %235 = vst.msk [vmem:[%s3 + $0x10] sm:$0xff] %vm232, %v178
  %236 = vst.msk [vmem:[%s3 + $0x18] sm:$0xff] %vm232, %v181
  %237 = vst.msk [vmem:[%s3 + $0x20] sm:$0xff] %vm232, %v186
  %238 = vst.msk [vmem:[%s3 + $0x28] sm:$0xff] %vm232, %v189
  %239 = vst.msk [vmem:[%s3 + $0x30] sm:$0xff] %vm232, %v194
  %240 = vst.msk [vmem:[%s3 + $0x38] sm:$0xff] %vm232, %v197
  %241 = vst.msk [vmem:[%s3 + $0x40] sm:$0xff] %vm232, %v202
  %242 = vst.msk [vmem:[%s3 + $0x48] sm:$0xff] %vm232, %v205
  %243 = vst.msk [vmem:[%s3 + $0x50] sm:$0xff] %vm232, %v210
  %244 = vst.msk [vmem:[%s3 + $0x58] sm:$0xff] %vm232, %v213
  %245 = vst.msk [vmem:[%s3 + $0x60] sm:$0xff] %vm232, %v218
  %246 = vst.msk [vmem:[%s3 + $0x68] sm:$0xff] %vm232, %v221
  %247 = vst.msk [vmem:[%s3 + $0x70] sm:$0xff] %vm232, %v226
  %248 = vst.msk [vmem:[%s3 + $0x78] sm:$0xff] %vm232, %v229
  // Predicated region
  $region14: #{spade_resnet_forward.88} parent=0 // pred_check
    _
  $region15: #{spade_resnet_forward.88} parent=0 // pred_check_branch
    %250 = sbr.rel (0) target = $region17
  $region16: #{spade_resnet_forward.88} parent=0 // pred_region
    _
  $region17: #{spade_resnet_forward.88} parent=0 // pred_fallthru
    _
  // Predicated region
  $region18: #{spade_resnet_forward.88} parent=0 // pred_check
    _
  $region19: #{spade_resnet_forward.88} parent=0 // pred_check_branch
    %252 = sbr.rel (0) target = $region21
  $region20: #{spade_resnet_forward.88} parent=0 // pred_region
    _
  $region21: #{spade_resnet_forward.88} parent=0 // pred_fallthru
    _

// kernel: spade_resnet_forward.86
$region0: #{spade_resnet_forward.86}
  #allocation0 [shape = 'u32[]', space=smem, size = 0x4, offset = 0x4, fixed_abs, tag = 'smem constant byte address 0x4 - core index']
  #allocation1 [shape = 'u32[144,128]{1,0:T(1,128)}', space=vmem, size = 0x12000, scoped, tag = 'internal scratch']
  %s0 = inlined_call_operand.vmem [shape: bf16[128,32], index: 0, kind: input, shape index: {}]
  %s1 = inlined_call_operand.vmem [shape: bf16[32,8], index: 1, kind: input, shape index: {}]
  %s2 = inlined_call_operand.vmem [shape: f32[1,8], index: 2, kind: input, shape index: {}]
  %s3 = inlined_call_operand.vmem [shape: f32[128,8], index: 3, kind: output, shape index: {}]
  %s4 = sld [smem:[#allocation0]]
  $region22: #{spade_resnet_forward.86} parent=0
    _
  %s6 = ssub.s32 1, %s4
  %s7 = scalar_select 0, %s6, %s4
  // Predicated region
  $region2: #{spade_resnet_forward.86} parent=0 // pred_check
    _
  $region3: #{spade_resnet_forward.86} parent=0 // pred_check_branch
    %9 = sbr.rel (0) target = $region5
  $region4: #{spade_resnet_forward.86} parent=0 // pred_region
    _
  $region5: #{spade_resnet_forward.86} parent=0 // pred_fallthru
    _
  // Predicated region
  $region6: #{spade_resnet_forward.86} parent=0 // pred_check
    _
  $region7: #{spade_resnet_forward.86} parent=0 // pred_check_branch
    %11 = sbr.rel (0) target = $region9
  $region8: #{spade_resnet_forward.86} parent=0 // pred_region
    _
  $region9: #{spade_resnet_forward.86} parent=0 // pred_fallthru
    _
  // Predicated region
  $region10: #{spade_resnet_forward.86} parent=0 // pred_check
    _
  $region11: #{spade_resnet_forward.86} parent=0 // pred_check_branch
    %13 = sbr.rel (0) target = $region13
  $region12: #{spade_resnet_forward.86} parent=0 // pred_region
    _
  $region13: #{spade_resnet_forward.86} parent=0 // pred_fallthru
    _
  %v15 = vld [vmem:[%s0] sm:$0xf]
  %v16 = vld [vmem:[%s0 + $0x4] sm:$0xf]
  %v17 = vld [vmem:[%s0 + $0x8] sm:$0xf]
  %v18 = vld [vmem:[%s0 + $0xc] sm:$0xf]
  %v19 = vld [vmem:[%s0 + $0x10] sm:$0xf]
  %v20 = vld [vmem:[%s0 + $0x14] sm:$0xf]
  %v21 = vld [vmem:[%s0 + $0x18] sm:$0xf]
  %v22 = vld [vmem:[%s0 + $0x1c] sm:$0xf]
  %v23 = vld [vmem:[%s0 + $0x20] sm:$0xf]
  %v24 = vld [vmem:[%s0 + $0x24] sm:$0xf]
  %v25 = vld [vmem:[%s0 + $0x28] sm:$0xf]
  %v26 = vld [vmem:[%s0 + $0x2c] sm:$0xf]
  %v27 = vld [vmem:[%s0 + $0x30] sm:$0xf]
  %v28 = vld [vmem:[%s0 + $0x34] sm:$0xf]
  %v29 = vld [vmem:[%s0 + $0x38] sm:$0xf]
  %v30 = vld [vmem:[%s0 + $0x3c] sm:$0xf]
  %v31 = vld [vmem:[%s1] sm:$0xf]
  %v32 = vld [vmem:[%s1 + $0x4] sm:$0xf]
  %v33 = vld [vmem:[%s1 + $0x8] sm:$0xf]
  %v34 = vld [vmem:[%s1 + $0xc] sm:$0xf]
  %v35 = vld [vmem:[%s2] sm:$0x1]
  %v37 = vlaneseq
  %v38 = vshrl.u32 %v37, 7
  %v39 = vsub.s32 0, %v38
  %v40 = vrot.slane %v35, %v39
  %v58 = vunpack.c.l.b16 %v15
  %v59 = vunpack.c.l.b16 %v16
  %v60 = vunpack.c.l.b16 %v17
  %v61 = vunpack.c.l.b16 %v18
  %v62 = vunpack.c.l.b16 %v19
  %v63 = vunpack.c.l.b16 %v20
  %v64 = vunpack.c.l.b16 %v21
  %v65 = vunpack.c.l.b16 %v22
  %v66 = vunpack.c.l.b16 %v23
  %v67 = vunpack.c.l.b16 %v24
  %v68 = vunpack.c.l.b16 %v25
  %v69 = vunpack.c.l.b16 %v26
  %v70 = vunpack.c.l.b16 %v27
  %v71 = vunpack.c.l.b16 %v28
  %v72 = vunpack.c.l.b16 %v29
  %v73 = vunpack.c.l.b16 %v30
  %v74 = vpack.c.b16 %v59, %v58
  %v75 = vpack.c.b16 %v61, %v60
  %v76 = vpack.c.b16 %v63, %v62
  %v77 = vpack.c.b16 %v65, %v64
  %v78 = vpack.c.b16 %v67, %v66
  %v79 = vpack.c.b16 %v69, %v68
  %v80 = vpack.c.b16 %v71, %v70
  %v81 = vpack.c.b16 %v73, %v72
  %v86 = vunpack.c.l.b16 %v31
  %v87 = vunpack.c.l.b16 %v32
  %v88 = vunpack.c.l.b16 %v33
  %v89 = vunpack.c.l.b16 %v34
  %v90 = vpack.c.b16 %v87, %v86
  %v91 = vpack.c.b16 %v89, %v88
  %vm94 = vcmask 261120
  %v96 = vsel %vm94, %v74, 0
  %v99 = vsel %vm94, %v75, 0
  %v102 = vsel %vm94, %v76, 0
  %v105 = vsel %vm94, %v77, 0
  %v108 = vsel %vm94, %v78, 0
  %v111 = vsel %vm94, %v79, 0
  %v114 = vsel %vm94, %v80, 0
  %v117 = vsel %vm94, %v81, 0
  %119 = vmatprep.subr.bf16.mxu0 0
  %120 = vmatpush1.bf16.msra.mxu0 0
  %121 = vmatprep.subr.bf16.mxu0 0
  %122 = vmatpush1.bf16.msra.mxu0 0
  %123 = vmatprep.subr.bf16.mxu0 0
  %124 = vmatpush1.bf16.msra.mxu0 0
  %125 = vmatprep.subr.bf16.mxu0 0
  %126 = vmatpush1.bf16.msra.mxu0 0
  %127 = vmatprep.subr.bf16.mxu0 0
  %128 = vmatpush1.bf16.msra.mxu0 0
  %129 = vmatprep.subr.bf16.mxu0 0
  %130 = vmatpush1.bf16.msra.mxu0 0
  %131 = vmatprep.subr.bf16.mxu0 0
  %132 = vmatpush1.bf16.msra.mxu0 %v91
  %133 = vmatprep.subr.bf16.mxu0 0
  %134 = vmatpush1.bf16.msra.mxu0 %v90
  %135 = vmatprep.subr.bf16.mxu0 0
  %136 = vmatpush2.bf16.msra.mxu0 0
  %137 = vmatprep.subr.bf16.mxu0 0
  %138 = vmatpush2.bf16.msra.mxu0 0
  %139 = vmatprep.subr.bf16.mxu0 0
  %140 = vmatpush2.bf16.msra.mxu0 0
  %141 = vmatprep.subr.bf16.mxu0 0
  %142 = vmatpush2.bf16.msra.mxu0 0
  %143 = vmatprep.subr.bf16.mxu0 0
  %144 = vmatpush2.bf16.msra.mxu0 0
  %145 = vmatprep.subr.bf16.mxu0 0
  %146 = vmatpush2.bf16.msra.mxu0 0
  %147 = vmatprep.subr.bf16.mxu0 0
  %148 = vmatpush2.bf16.msra.mxu0 0
  %149 = vmatprep.subr.bf16.mxu0 0
  %150 = vmatpush2.bf16.msra.mxu0 0
  %151 = vmatprep.mubr.bf16.mxu0 0
  %152 = vmatmul.mubr.bf16.gmra.mxu0 %v96
  %v153 = vpop.f32.mrf.mxu0
  %v154 = vadd.f32 %v40, %v153
  %v155 = vpop.f32.mrf.mxu0
  %v156 = vpop.f32.mrf.mxu0
  %v157 = vadd.f32 %v40, %v156
  %v158 = vpop.f32.mrf.mxu0
  %159 = vmatprep.mubr.bf16.mxu0 0
  %160 = vmatmul.mubr.bf16.gmra.mxu0 %v99
  %v161 = vpop.f32.mrf.mxu0
  %v162 = vadd.f32 %v40, %v161
  %v163 = vpop.f32.mrf.mxu0
  %v164 = vpop.f32.mrf.mxu0
  %v165 = vadd.f32 %v40, %v164
  %v166 = vpop.f32.mrf.mxu0
  %167 = vmatprep.mubr.bf16.mxu0 0
  %168 = vmatmul.mubr.bf16.gmra.mxu0 %v102
  %v169 = vpop.f32.mrf.mxu0
  %v170 = vadd.f32 %v40, %v169
  %v171 = vpop.f32.mrf.mxu0
  %v172 = vpop.f32.mrf.mxu0
  %v173 = vadd.f32 %v40, %v172
  %v174 = vpop.f32.mrf.mxu0
  %175 = vmatprep.mubr.bf16.mxu0 0
  %176 = vmatmul.mubr.bf16.gmra.mxu0 %v105
  %v177 = vpop.f32.mrf.mxu0
  %v178 = vadd.f32 %v40, %v177
  %v179 = vpop.f32.mrf.mxu0
  %v180 = vpop.f32.mrf.mxu0
  %v181 = vadd.f32 %v40, %v180
  %v182 = vpop.f32.mrf.mxu0
  %183 = vmatprep.mubr.bf16.mxu0 0
  %184 = vmatmul.mubr.bf16.gmra.mxu0 %v108
  %v185 = vpop.f32.mrf.mxu0
  %v186 = vadd.f32 %v40, %v185
  %v187 = vpop.f32.mrf.mxu0
  %v188 = vpop.f32.mrf.mxu0
  %v189 = vadd.f32 %v40, %v188
  %v190 = vpop.f32.mrf.mxu0
  %191 = vmatprep.mubr.bf16.mxu0 0
  %192 = vmatmul.mubr.bf16.gmra.mxu0 %v111
  %v193 = vpop.f32.mrf.mxu0
  %v194 = vadd.f32 %v40, %v193
  %v195 = vpop.f32.mrf.mxu0
  %v196 = vpop.f32.mrf.mxu0
  %v197 = vadd.f32 %v40, %v196
  %v198 = vpop.f32.mrf.mxu0
  %199 = vmatprep.mubr.bf16.mxu0 0
  %200 = vmatmul.mubr.bf16.gmra.mxu0 %v114
  %v201 = vpop.f32.mrf.mxu0
  %v202 = vadd.f32 %v40, %v201
  %v203 = vpop.f32.mrf.mxu0
  %v204 = vpop.f32.mrf.mxu0
  %v205 = vadd.f32 %v40, %v204
  %v206 = vpop.f32.mrf.mxu0
  %207 = vmatprep.mubr.bf16.mxu0 0
  %208 = vmatmul.mubr.bf16.gmra.mxu0 %v117
  %v209 = vpop.f32.mrf.mxu0
  %v210 = vadd.f32 %v40, %v209
  %v211 = vpop.f32.mrf.mxu0
  %v212 = vpop.f32.mrf.mxu0
  %v213 = vadd.f32 %v40, %v212
  %v214 = vpop.f32.mrf.mxu0
  %215 = vdwg.mxu0
  %vm216 = vcmask 64512
  %217 = vst.msk [vmem:[%s3] sm:$0xff] %vm216, %v154
  %218 = vst.msk [vmem:[%s3 + $0x8] sm:$0xff] %vm216, %v157
  %219 = vst.msk [vmem:[%s3 + $0x10] sm:$0xff] %vm216, %v162
  %220 = vst.msk [vmem:[%s3 + $0x18] sm:$0xff] %vm216, %v165
  %221 = vst.msk [vmem:[%s3 + $0x20] sm:$0xff] %vm216, %v170
  %222 = vst.msk [vmem:[%s3 + $0x28] sm:$0xff] %vm216, %v173
  %223 = vst.msk [vmem:[%s3 + $0x30] sm:$0xff] %vm216, %v178
  %224 = vst.msk [vmem:[%s3 + $0x38] sm:$0xff] %vm216, %v181
  %225 = vst.msk [vmem:[%s3 + $0x40] sm:$0xff] %vm216, %v186
  %226 = vst.msk [vmem:[%s3 + $0x48] sm:$0xff] %vm216, %v189
  %227 = vst.msk [vmem:[%s3 + $0x50] sm:$0xff] %vm216, %v194
  %228 = vst.msk [vmem:[%s3 + $0x58] sm:$0xff] %vm216, %v197
  %229 = vst.msk [vmem:[%s3 + $0x60] sm:$0xff] %vm216, %v202
  %230 = vst.msk [vmem:[%s3 + $0x68] sm:$0xff] %vm216, %v205
  %231 = vst.msk [vmem:[%s3 + $0x70] sm:$0xff] %vm216, %v210
  %232 = vst.msk [vmem:[%s3 + $0x78] sm:$0xff] %vm216, %v213
  // Predicated region
  $region14: #{spade_resnet_forward.86} parent=0 // pred_check
    _
  $region15: #{spade_resnet_forward.86} parent=0 // pred_check_branch
    %234 = sbr.rel (0) target = $region17
  $region16: #{spade_resnet_forward.86} parent=0 // pred_region
    _
  $region17: #{spade_resnet_forward.86} parent=0 // pred_fallthru
    _
  // Predicated region
  $region18: #{spade_resnet_forward.86} parent=0 // pred_check
    _
  $region19: #{spade_resnet_forward.86} parent=0 // pred_check_branch
    %236 = sbr.rel (0) target = $region21
  $region20: #{spade_resnet_forward.86} parent=0 // pred_region
    _
  $region21: #{spade_resnet_forward.86} parent=0 // pred_fallthru
    _

// kernel: spade_resnet_forward.85
$region0: #{spade_resnet_forward.85}
  #allocation0 [shape = 'u32[]', space=smem, size = 0x4, offset = 0x4, fixed_abs, tag = 'smem constant byte address 0x4 - core index']
  #allocation1 [shape = 'u32[144,128]{1,0:T(1,128)}', space=vmem, size = 0x12000, scoped, tag = 'internal scratch']
  %s0 = inlined_call_operand.vmem [shape: bf16[128,16], index: 0, kind: input, shape index: {}]
  %s1 = inlined_call_operand.vmem [shape: bf16[16,8], index: 1, kind: input, shape index: {}]
  %s2 = inlined_call_operand.vmem [shape: f32[1,8], index: 2, kind: input, shape index: {}]
  %s3 = inlined_call_operand.vmem [shape: f32[128,8], index: 3, kind: output, shape index: {}]
  %s4 = sld [smem:[#allocation0]]
  $region22: #{spade_resnet_forward.85} parent=0
    _
  %s6 = ssub.s32 1, %s4
  %s7 = scalar_select 0, %s6, %s4
  // Predicated region
  $region2: #{spade_resnet_forward.85} parent=0 // pred_check
    _
  $region3: #{spade_resnet_forward.85} parent=0 // pred_check_branch
    %9 = sbr.rel (0) target = $region5
  $region4: #{spade_resnet_forward.85} parent=0 // pred_region
    _
  $region5: #{spade_resnet_forward.85} parent=0 // pred_fallthru
    _
  // Predicated region
  $region6: #{spade_resnet_forward.85} parent=0 // pred_check
    _
  $region7: #{spade_resnet_forward.85} parent=0 // pred_check_branch
    %11 = sbr.rel (0) target = $region9
  $region8: #{spade_resnet_forward.85} parent=0 // pred_region
    _
  $region9: #{spade_resnet_forward.85} parent=0 // pred_fallthru
    _
  // Predicated region
  $region10: #{spade_resnet_forward.85} parent=0 // pred_check
    _
  $region11: #{spade_resnet_forward.85} parent=0 // pred_check_branch
    %13 = sbr.rel (0) target = $region13
  $region12: #{spade_resnet_forward.85} parent=0 // pred_region
    _
  $region13: #{spade_resnet_forward.85} parent=0 // pred_fallthru
    _
  %v15 = vld [vmem:[%s0] sm:$0xf]
  %v16 = vld [vmem:[%s0 + $0x4] sm:$0xf]
  %v17 = vld [vmem:[%s0 + $0x8] sm:$0xf]
  %v18 = vld [vmem:[%s0 + $0xc] sm:$0xf]
  %v19 = vld [vmem:[%s0 + $0x10] sm:$0xf]
  %v20 = vld [vmem:[%s0 + $0x14] sm:$0xf]
  %v21 = vld [vmem:[%s0 + $0x18] sm:$0xf]
  %v22 = vld [vmem:[%s0 + $0x1c] sm:$0xf]
  %v23 = vld [vmem:[%s0 + $0x20] sm:$0xf]
  %v24 = vld [vmem:[%s0 + $0x24] sm:$0xf]
  %v25 = vld [vmem:[%s0 + $0x28] sm:$0xf]
  %v26 = vld [vmem:[%s0 + $0x2c] sm:$0xf]
  %v27 = vld [vmem:[%s0 + $0x30] sm:$0xf]
  %v28 = vld [vmem:[%s0 + $0x34] sm:$0xf]
  %v29 = vld [vmem:[%s0 + $0x38] sm:$0xf]
  %v30 = vld [vmem:[%s0 + $0x3c] sm:$0xf]
  %v31 = vld [vmem:[%s1] sm:$0xf]
  %v32 = vld [vmem:[%s1 + $0x4] sm:$0xf]
  %v33 = vld [vmem:[%s2] sm:$0x1]
  %v35 = vlaneseq
  %v36 = vshrl.u32 %v35, 7
  %v37 = vsub.s32 0, %v36
  %v38 = vrot.slane %v33, %v37
  %v56 = vunpack.c.l.b16 %v15
  %v57 = vunpack.c.l.b16 %v16
  %v58 = vunpack.c.l.b16 %v17
  %v59 = vunpack.c.l.b16 %v18
  %v60 = vunpack.c.l.b16 %v19
  %v61 = vunpack.c.l.b16 %v20
  %v62 = vunpack.c.l.b16 %v21
  %v63 = vunpack.c.l.b16 %v22
  %v64 = vunpack.c.l.b16 %v23
  %v65 = vunpack.c.l.b16 %v24
  %v66 = vunpack.c.l.b16 %v25
  %v67 = vunpack.c.l.b16 %v26
  %v68 = vunpack.c.l.b16 %v27
  %v69 = vunpack.c.l.b16 %v28
  %v70 = vunpack.c.l.b16 %v29
  %v71 = vunpack.c.l.b16 %v30
  %v72 = vpack.c.b16 %v57, %v56
  %v73 = vpack.c.b16 %v59, %v58
  %v74 = vpack.c.b16 %v61, %v60
  %v75 = vpack.c.b16 %v63, %v62
  %v76 = vpack.c.b16 %v65, %v64
  %v77 = vpack.c.b16 %v67, %v66
  %v78 = vpack.c.b16 %v69, %v68
  %v79 = vpack.c.b16 %v71, %v70
  %v82 = vunpack.c.l.b16 %v31
  %v83 = vunpack.c.l.b16 %v32
  %v84 = vpack.c.b16 %v83, %v82
  %vm86 = vcmask 130048
  %v88 = vsel %vm86, %v72, 0
  %v91 = vsel %vm86, %v73, 0
  %v94 = vsel %vm86, %v74, 0
  %v97 = vsel %vm86, %v75, 0
  %v100 = vsel %vm86, %v76, 0
  %v103 = vsel %vm86, %v77, 0
  %v106 = vsel %vm86, %v78, 0
  %v109 = vsel %vm86, %v79, 0
  %111 = vmatprep.subr.bf16.mxu0 0
  %112 = vmatpush1.bf16.msra.mxu0 0
  %113 = vmatprep.subr.bf16.mxu0 0
  %114 = vmatpush1.bf16.msra.mxu0 0
  %115 = vmatprep.subr.bf16.mxu0 0
  %116 = vmatpush1.bf16.msra.mxu0 0
  %117 = vmatprep.subr.bf16.mxu0 0
  %118 = vmatpush1.bf16.msra.mxu0 0
  %119 = vmatprep.subr.bf16.mxu0 0
  %120 = vmatpush1.bf16.msra.mxu0 0
  %121 = vmatprep.subr.bf16.mxu0 0
  %122 = vmatpush1.bf16.msra.mxu0 0
  %123 = vmatprep.subr.bf16.mxu0 0
  %124 = vmatpush1.bf16.msra.mxu0 0
  %125 = vmatprep.subr.bf16.mxu0 0
  %126 = vmatpush1.bf16.msra.mxu0 %v84
  %127 = vmatprep.subr.bf16.mxu0 0
  %128 = vmatpush2.bf16.msra.mxu0 0
  %129 = vmatprep.subr.bf16.mxu0 0
  %130 = vmatpush2.bf16.msra.mxu0 0
  %131 = vmatprep.subr.bf16.mxu0 0
  %132 = vmatpush2.bf16.msra.mxu0 0
  %133 = vmatprep.subr.bf16.mxu0 0
  %134 = vmatpush2.bf16.msra.mxu0 0
  %135 = vmatprep.subr.bf16.mxu0 0
  %136 = vmatpush2.bf16.msra.mxu0 0
  %137 = vmatprep.subr.bf16.mxu0 0
  %138 = vmatpush2.bf16.msra.mxu0 0
  %139 = vmatprep.subr.bf16.mxu0 0
  %140 = vmatpush2.bf16.msra.mxu0 0
  %141 = vmatprep.subr.bf16.mxu0 0
  %142 = vmatpush2.bf16.msra.mxu0 0
  %143 = vmatprep.mubr.bf16.mxu0 0
  %144 = vmatmul.mubr.bf16.gmra.mxu0 %v88
  %v145 = vpop.f32.mrf.mxu0
  %v146 = vadd.f32 %v38, %v145
  %v147 = vpop.f32.mrf.mxu0
  %v148 = vpop.f32.mrf.mxu0
  %v149 = vadd.f32 %v38, %v148
  %v150 = vpop.f32.mrf.mxu0
  %151 = vmatprep.mubr.bf16.mxu0 0
  %152 = vmatmul.mubr.bf16.gmra.mxu0 %v91
  %v153 = vpop.f32.mrf.mxu0
  %v154 = vadd.f32 %v38, %v153
  %v155 = vpop.f32.mrf.mxu0
  %v156 = vpop.f32.mrf.mxu0
  %v157 = vadd.f32 %v38, %v156
  %v158 = vpop.f32.mrf.mxu0
  %159 = vmatprep.mubr.bf16.mxu0 0
  %160 = vmatmul.mubr.bf16.gmra.mxu0 %v94
  %v161 = vpop.f32.mrf.mxu0
  %v162 = vadd.f32 %v38, %v161
  %v163 = vpop.f32.mrf.mxu0
  %v164 = vpop.f32.mrf.mxu0
  %v165 = vadd.f32 %v38, %v164
  %v166 = vpop.f32.mrf.mxu0
  %167 = vmatprep.mubr.bf16.mxu0 0
  %168 = vmatmul.mubr.bf16.gmra.mxu0 %v97
  %v169 = vpop.f32.mrf.mxu0
  %v170 = vadd.f32 %v38, %v169
  %v171 = vpop.f32.mrf.mxu0
  %v172 = vpop.f32.mrf.mxu0
  %v173 = vadd.f32 %v38, %v172
  %v174 = vpop.f32.mrf.mxu0
  %175 = vmatprep.mubr.bf16.mxu0 0
  %176 = vmatmul.mubr.bf16.gmra.mxu0 %v100
  %v177 = vpop.f32.mrf.mxu0
  %v178 = vadd.f32 %v38, %v177
  %v179 = vpop.f32.mrf.mxu0
  %v180 = vpop.f32.mrf.mxu0
  %v181 = vadd.f32 %v38, %v180
  %v182 = vpop.f32.mrf.mxu0
  %183 = vmatprep.mubr.bf16.mxu0 0
  %184 = vmatmul.mubr.bf16.gmra.mxu0 %v103
  %v185 = vpop.f32.mrf.mxu0
  %v186 = vadd.f32 %v38, %v185
  %v187 = vpop.f32.mrf.mxu0
  %v188 = vpop.f32.mrf.mxu0
  %v189 = vadd.f32 %v38, %v188
  %v190 = vpop.f32.mrf.mxu0
  %191 = vmatprep.mubr.bf16.mxu0 0
  %192 = vmatmul.mubr.bf16.gmra.mxu0 %v106
  %v193 = vpop.f32.mrf.mxu0
  %v194 = vadd.f32 %v38, %v193
  %v195 = vpop.f32.mrf.mxu0
  %v196 = vpop.f32.mrf.mxu0
  %v197 = vadd.f32 %v38, %v196
  %v198 = vpop.f32.mrf.mxu0
  %199 = vmatprep.mubr.bf16.mxu0 0
  %200 = vmatmul.mubr.bf16.gmra.mxu0 %v109
  %v201 = vpop.f32.mrf.mxu0
  %v202 = vadd.f32 %v38, %v201
  %v203 = vpop.f32.mrf.mxu0
  %v204 = vpop.f32.mrf.mxu0
  %v205 = vadd.f32 %v38, %v204
  %v206 = vpop.f32.mrf.mxu0
  %207 = vdwg.mxu0
  %vm208 = vcmask 64512
  %209 = vst.msk [vmem:[%s3] sm:$0xff] %vm208, %v146
  %210 = vst.msk [vmem:[%s3 + $0x8] sm:$0xff] %vm208, %v149
  %211 = vst.msk [vmem:[%s3 + $0x10] sm:$0xff] %vm208, %v154
  %212 = vst.msk [vmem:[%s3 + $0x18] sm:$0xff] %vm208, %v157
  %213 = vst.msk [vmem:[%s3 + $0x20] sm:$0xff] %vm208, %v162
  %214 = vst.msk [vmem:[%s3 + $0x28] sm:$0xff] %vm208, %v165
  %215 = vst.msk [vmem:[%s3 + $0x30] sm:$0xff] %vm208, %v170
  %216 = vst.msk [vmem:[%s3 + $0x38] sm:$0xff] %vm208, %v173
  %217 = vst.msk [vmem:[%s3 + $0x40] sm:$0xff] %vm208, %v178
  %218 = vst.msk [vmem:[%s3 + $0x48] sm:$0xff] %vm208, %v181
  %219 = vst.msk [vmem:[%s3 + $0x50] sm:$0xff] %vm208, %v186
  %220 = vst.msk [vmem:[%s3 + $0x58] sm:$0xff] %vm208, %v189
  %221 = vst.msk [vmem:[%s3 + $0x60] sm:$0xff] %vm208, %v194
  %222 = vst.msk [vmem:[%s3 + $0x68] sm:$0xff] %vm208, %v197
  %223 = vst.msk [vmem:[%s3 + $0x70] sm:$0xff] %vm208, %v202
  %224 = vst.msk [vmem:[%s3 + $0x78] sm:$0xff] %vm208, %v205
  // Predicated region
  $region14: #{spade_resnet_forward.85} parent=0 // pred_check
    _
  $region15: #{spade_resnet_forward.85} parent=0 // pred_check_branch
    %226 = sbr.rel (0) target = $region17
  $region16: #{spade_resnet_forward.85} parent=0 // pred_region
    _
  $region17: #{spade_resnet_forward.85} parent=0 // pred_fallthru
    _
  // Predicated region
  $region18: #{spade_resnet_forward.85} parent=0 // pred_check
    _
  $region19: #{spade_resnet_forward.85} parent=0 // pred_check_branch
    %228 = sbr.rel (0) target = $region21
  $region20: #{spade_resnet_forward.85} parent=0 // pred_region
    _
  $region21: #{spade_resnet_forward.85} parent=0 // pred_fallthru
    _

// kernel: spade_resnet_forward.91
$region0: #{spade_resnet_forward.91}
  #allocation0 [shape = 'u32[]', space=smem, size = 0x4, offset = 0x4, fixed_abs, tag = 'smem constant byte address 0x4 - core index']
  #allocation1 [shape = 'u32[144,128]{1,0:T(1,128)}', space=vmem, size = 0x12000, scoped, tag = 'internal scratch']
  %s0 = inlined_call_operand.vmem [shape: bf16[512,400], index: 0, kind: input, shape index: {}]
  %s1 = inlined_call_operand.vmem [shape: bf16[400,3], index: 1, kind: input, shape index: {}]
  %s2 = inlined_call_operand.vmem [shape: f32[1,3], index: 2, kind: input, shape index: {}]
  %s3 = inlined_call_operand.vmem [shape: f32[512,3], index: 3, kind: output, shape index: {}]
  %s4 = sld [smem:[#allocation0]]
  $region22: #{spade_resnet_forward.91} parent=0
    _
  %s6 = ssub.s32 1, %s4
  %s7 = scalar_select 0, %s6, %s4
  // Predicated region
  $region2: #{spade_resnet_forward.91} parent=0 // pred_check
    _
  $region3: #{spade_resnet_forward.91} parent=0 // pred_check_branch
    %9 = sbr.rel (0) target = $region5
  $region4: #{spade_resnet_forward.91} parent=0 // pred_region
    _
  $region5: #{spade_resnet_forward.91} parent=0 // pred_fallthru
    _
  // Predicated region
  $region6: #{spade_resnet_forward.91} parent=0 // pred_check
    _
  $region7: #{spade_resnet_forward.91} parent=0 // pred_check_branch
    %11 = sbr.rel (0) target = $region9
  $region8: #{spade_resnet_forward.91} parent=0 // pred_region
    _
  $region9: #{spade_resnet_forward.91} parent=0 // pred_fallthru
    _
  // Predicated region
  $region10: #{spade_resnet_forward.91} parent=0 // pred_check
    _
  $region11: #{spade_resnet_forward.91} parent=0 // pred_check_branch
    %13 = sbr.rel (0) target = $region13
  $region12: #{spade_resnet_forward.91} parent=0 // pred_region
    _
  $region13: #{spade_resnet_forward.91} parent=0 // pred_fallthru
    _
  %v15 = vld [vmem:[%s0] sm:$0xff]
  %v16 = vld [vmem:[%s0 + $0x8] sm:$0xff]
  %v17 = vld [vmem:[%s0 + $0x10] sm:$0xff]
  %v18 = vld [vmem:[%s0 + $0x18] sm:$0xff]
  %v19 = vld [vmem:[%s0 + $0x20] sm:$0xff]
  %v20 = vld [vmem:[%s0 + $0x28] sm:$0xff]
  %v21 = vld [vmem:[%s0 + $0x30] sm:$0xff]
  %v22 = vld [vmem:[%s0 + $0x38] sm:$0xff]
  %v23 = vld [vmem:[%s0 + $0x40] sm:$0xff]
  %v24 = vld [vmem:[%s0 + $0x48] sm:$0xff]
  %v25 = vld [vmem:[%s0 + $0x50] sm:$0xff]
  %v26 = vld [vmem:[%s0 + $0x58] sm:$0xff]
  %v27 = vld [vmem:[%s0 + $0x60] sm:$0xff]
  %v28 = vld [vmem:[%s0 + $0x68] sm:$0xff]
  %v29 = vld [vmem:[%s0 + $0x70] sm:$0xff]
  %v30 = vld [vmem:[%s0 + $0x78] sm:$0xff]
  %v31 = vld [vmem:[%s0 + $0x80] sm:$0xff]
  %v32 = vld [vmem:[%s0 + $0x88] sm:$0xff]
  %v33 = vld [vmem:[%s0 + $0x90] sm:$0xff]
  %v34 = vld [vmem:[%s0 + $0x98] sm:$0xff]
  %v35 = vld [vmem:[%s0 + $0xa0] sm:$0xff]
  %v36 = vld [vmem:[%s0 + $0xa8] sm:$0xff]
  %v37 = vld [vmem:[%s0 + $0xb0] sm:$0xff]
  %v38 = vld [vmem:[%s0 + $0xb8] sm:$0xff]
  %v39 = vld [vmem:[%s0 + $0xc0] sm:$0xff]
  %v40 = vld [vmem:[%s0 + $0xc8] sm:$0xff]
  %v41 = vld [vmem:[%s0 + $0xd0] sm:$0xff]
  %v42 = vld [vmem:[%s0 + $0xd8] sm:$0xff]
  %v43 = vld [vmem:[%s0 + $0xe0] sm:$0xff]
  %v44 = vld [vmem:[%s0 + $0xe8] sm:$0xff]
  %v45 = vld [vmem:[%s0 + $0xf0] sm:$0xff]
  %v46 = vld [vmem:[%s0 + $0xf8] sm:$0xff]
  %v47 = vld [vmem:[%s0 + $0x100] sm:$0xff]
  %v48 = vld [vmem:[%s0 + $0x108] sm:$0xff]
  %v49 = vld [vmem:[%s0 + $0x110] sm:$0xff]
  %v50 = vld [vmem:[%s0 + $0x118] sm:$0xff]
  %v51 = vld [vmem:[%s0 + $0x120] sm:$0xff]
  %v52 = vld [vmem:[%s0 + $0x128] sm:$0xff]
  %v53 = vld [vmem:[%s0 + $0x130] sm:$0xff]
  %v54 = vld [vmem:[%s0 + $0x138] sm:$0xff]
  %v55 = vld [vmem:[%s0 + $0x140] sm:$0xff]
  %v56 = vld [vmem:[%s0 + $0x148] sm:$0xff]
  %v57 = vld [vmem:[%s0 + $0x150] sm:$0xff]
  %v58 = vld [vmem:[%s0 + $0x158] sm:$0xff]
  %v59 = vld [vmem:[%s0 + $0x160] sm:$0xff]
  %v60 = vld [vmem:[%s0 + $0x168] sm:$0xff]
  %v61 = vld [vmem:[%s0 + $0x170] sm:$0xff]
  %v62 = vld [vmem:[%s0 + $0x178] sm:$0xff]
  %v63 = vld [vmem:[%s0 + $0x180] sm:$0xff]
  %v64 = vld [vmem:[%s0 + $0x188] sm:$0xff]
  %v65 = vld [vmem:[%s0 + $0x190] sm:$0xff]
  %v66 = vld [vmem:[%s0 + $0x198] sm:$0xff]
  %v67 = vld [vmem:[%s0 + $0x1a0] sm:$0xff]
  %v68 = vld [vmem:[%s0 + $0x1a8] sm:$0xff]
  %v69 = vld [vmem:[%s0 + $0x1b0] sm:$0xff]
  %v70 = vld [vmem:[%s0 + $0x1b8] sm:$0xff]
  %v71 = vld [vmem:[%s0 + $0x1c0] sm:$0xff]
  %v72 = vld [vmem:[%s0 + $0x1c8] sm:$0xff]
  %v73 = vld [vmem:[%s0 + $0x1d0] sm:$0xff]
  %v74 = vld [vmem:[%s0 + $0x1d8] sm:$0xff]
  %v75 = vld [vmem:[%s0 + $0x1e0] sm:$0xff]
  %v76 = vld [vmem:[%s0 + $0x1e8] sm:$0xff]
  %v77 = vld [vmem:[%s0 + $0x1f0] sm:$0xff]
  %v78 = vld [vmem:[%s0 + $0x1f8] sm:$0xff]
  %v79 = vld [vmem:[%s0 + $0x200] sm:$0xff]
  %v80 = vld [vmem:[%s0 + $0x208] sm:$0xff]
  %v81 = vld [vmem:[%s0 + $0x210] sm:$0xff]
  %v82 = vld [vmem:[%s0 + $0x218] sm:$0xff]
  %v83 = vld [vmem:[%s0 + $0x220] sm:$0xff]
  %v84 = vld [vmem:[%s0 + $0x228] sm:$0xff]
  %v85 = vld [vmem:[%s0 + $0x230] sm:$0xff]
  %v86 = vld [vmem:[%s0 + $0x238] sm:$0xff]
  %v87 = vld [vmem:[%s0 + $0x240] sm:$0xff]
  %v88 = vld [vmem:[%s0 + $0x248] sm:$0xff]
  %v89 = vld [vmem:[%s0 + $0x250] sm:$0xff]
  %v90 = vld [vmem:[%s0 + $0x258] sm:$0xff]
  %v91 = vld [vmem:[%s0 + $0x260] sm:$0xff]
  %v92 = vld [vmem:[%s0 + $0x268] sm:$0xff]
  %v93 = vld [vmem:[%s0 + $0x270] sm:$0xff]
  %v94 = vld [vmem:[%s0 + $0x278] sm:$0xff]
  %v95 = vld [vmem:[%s0 + $0x280] sm:$0xff]
  %v96 = vld [vmem:[%s0 + $0x288] sm:$0xff]
  %v97 = vld [vmem:[%s0 + $0x290] sm:$0xff]
  %v98 = vld [vmem:[%s0 + $0x298] sm:$0xff]
  %v99 = vld [vmem:[%s0 + $0x2a0] sm:$0xff]
  %v100 = vld [vmem:[%s0 + $0x2a8] sm:$0xff]
  %v101 = vld [vmem:[%s0 + $0x2b0] sm:$0xff]
  %v102 = vld [vmem:[%s0 + $0x2b8] sm:$0xff]
  %v103 = vld [vmem:[%s0 + $0x2c0] sm:$0xff]
  %v104 = vld [vmem:[%s0 + $0x2c8] sm:$0xff]
  %v105 = vld [vmem:[%s0 + $0x2d0] sm:$0xff]
  %v106 = vld [vmem:[%s0 + $0x2d8] sm:$0xff]
  %v107 = vld [vmem:[%s0 + $0x2e0] sm:$0xff]
  %v108 = vld [vmem:[%s0 + $0x2e8] sm:$0xff]
  %v109 = vld [vmem:[%s0 + $0x2f0] sm:$0xff]
  %v110 = vld [vmem:[%s0 + $0x2f8] sm:$0xff]
  %v111 = vld [vmem:[%s0 + $0x300] sm:$0xff]
  %v112 = vld [vmem:[%s0 + $0x308] sm:$0xff]
  %v113 = vld [vmem:[%s0 + $0x310] sm:$0xff]
  %v114 = vld [vmem:[%s0 + $0x318] sm:$0xff]
  %v115 = vld [vmem:[%s0 + $0x320] sm:$0xff]
  %v116 = vld [vmem:[%s0 + $0x328] sm:$0xff]
  %v117 = vld [vmem:[%s0 + $0x330] sm:$0xff]
  %v118 = vld [vmem:[%s0 + $0x338] sm:$0xff]
  %v119 = vld [vmem:[%s0 + $0x340] sm:$0xff]
  %v120 = vld [vmem:[%s0 + $0x348] sm:$0xff]
  %v121 = vld [vmem:[%s0 + $0x350] sm:$0xff]
  %v122 = vld [vmem:[%s0 + $0x358] sm:$0xff]
  %v123 = vld [vmem:[%s0 + $0x360] sm:$0xff]
  %v124 = vld [vmem:[%s0 + $0x368] sm:$0xff]
  %v125 = vld [vmem:[%s0 + $0x370] sm:$0xff]
  %v126 = vld [vmem:[%s0 + $0x378] sm:$0xff]
  %v127 = vld [vmem:[%s0 + $0x380] sm:$0xff]
  %v128 = vld [vmem:[%s0 + $0x388] sm:$0xff]
  %v129 = vld [vmem:[%s0 + $0x390] sm:$0xff]
  %v130 = vld [vmem:[%s0 + $0x398] sm:$0xff]
  %v131 = vld [vmem:[%s0 + $0x3a0] sm:$0xff]
  %v132 = vld [vmem:[%s0 + $0x3a8] sm:$0xff]
  %v133 = vld [vmem:[%s0 + $0x3b0] sm:$0xff]
  %v134 = vld [vmem:[%s0 + $0x3b8] sm:$0xff]
  %v135 = vld [vmem:[%s0 + $0x3c0] sm:$0xff]
  %v136 = vld [vmem:[%s0 + $0x3c8] sm:$0xff]
  %v137 = vld [vmem:[%s0 + $0x3d0] sm:$0xff]
  %v138 = vld [vmem:[%s0 + $0x3d8] sm:$0xff]
  %v139 = vld [vmem:[%s0 + $0x3e0] sm:$0xff]
  %v140 = vld [vmem:[%s0 + $0x3e8] sm:$0xff]
  %v141 = vld [vmem:[%s0 + $0x3f0] sm:$0xff]
  %v142 = vld [vmem:[%s0 + $0x3f8] sm:$0xff]
  %v143 = vld [vmem:[%s1] sm:$0xf]
  %v144 = vld [vmem:[%s1 + $0x4] sm:$0xf]
  %v145 = vld [vmem:[%s1 + $0x8] sm:$0xf]
  %v146 = vld [vmem:[%s1 + $0xc] sm:$0xf]
  %v147 = vld [vmem:[%s1 + $0x10] sm:$0xf]
  %v148 = vld [vmem:[%s1 + $0x14] sm:$0xf]
  %v149 = vld [vmem:[%s1 + $0x18] sm:$0xf]
  %v150 = vld [vmem:[%s1 + $0x1c] sm:$0xf]
  %v151 = vld [vmem:[%s1 + $0x20] sm:$0xf]
  %v152 = vld [vmem:[%s1 + $0x24] sm:$0xf]
  %v153 = vld [vmem:[%s1 + $0x28] sm:$0xf]
  %v154 = vld [vmem:[%s1 + $0x2c] sm:$0xf]
  %v155 = vld [vmem:[%s1 + $0x30] sm:$0xf]
  %v156 = vld [vmem:[%s1 + $0x34] sm:$0xf]
  %v157 = vld [vmem:[%s1 + $0x38] sm:$0xf]
  %v158 = vld [vmem:[%s1 + $0x3c] sm:$0xf]
  %v159 = vld [vmem:[%s1 + $0x40] sm:$0xf]
  %v160 = vld [vmem:[%s1 + $0x44] sm:$0xf]
  %v161 = vld [vmem:[%s1 + $0x48] sm:$0xf]
  %v162 = vld [vmem:[%s1 + $0x4c] sm:$0xf]
  %v163 = vld [vmem:[%s1 + $0x50] sm:$0xf]
  %v164 = vld [vmem:[%s1 + $0x54] sm:$0xf]
  %v165 = vld [vmem:[%s1 + $0x58] sm:$0xf]
  %v166 = vld [vmem:[%s1 + $0x5c] sm:$0xf]
  %v167 = vld [vmem:[%s1 + $0x60] sm:$0xf]
  %v168 = vld [vmem:[%s1 + $0x64] sm:$0xf]
  %v169 = vld [vmem:[%s1 + $0x68] sm:$0xf]
  %v170 = vld [vmem:[%s1 + $0x6c] sm:$0xf]
  %v171 = vld [vmem:[%s1 + $0x70] sm:$0xf]
  %v172 = vld [vmem:[%s1 + $0x74] sm:$0xf]
  %v173 = vld [vmem:[%s1 + $0x78] sm:$0xf]
  %v174 = vld [vmem:[%s1 + $0x7c] sm:$0xf]
  %v175 = vld [vmem:[%s1 + $0x80] sm:$0xf]
  %v176 = vld [vmem:[%s1 + $0x84] sm:$0xf]
  %v177 = vld [vmem:[%s1 + $0x88] sm:$0xf]
  %v178 = vld [vmem:[%s1 + $0x8c] sm:$0xf]
  %v179 = vld [vmem:[%s1 + $0x90] sm:$0xf]
  %v180 = vld [vmem:[%s1 + $0x94] sm:$0xf]
  %v181 = vld [vmem:[%s1 + $0x98] sm:$0xf]
  %v182 = vld [vmem:[%s1 + $0x9c] sm:$0xf]
  %v183 = vld [vmem:[%s1 + $0xa0] sm:$0xf]
  %v184 = vld [vmem:[%s1 + $0xa4] sm:$0xf]
  %v185 = vld [vmem:[%s1 + $0xa8] sm:$0xf]
  %v186 = vld [vmem:[%s1 + $0xac] sm:$0xf]
  %v187 = vld [vmem:[%s1 + $0xb0] sm:$0xf]
  %v188 = vld [vmem:[%s1 + $0xb4] sm:$0xf]
  %v189 = vld [vmem:[%s1 + $0xb8] sm:$0xf]
  %v190 = vld [vmem:[%s1 + $0xbc] sm:$0xf]
  %v191 = vld [vmem:[%s1 + $0xc0] sm:$0xf]
  %v192 = vld [vmem:[%s1 + $0xc4] sm:$0xf]
  %v193 = vld [vmem:[%s2] sm:$0x1]
  %v195 = vlaneseq
  %v196 = vshrl.u32 %v195, 7
  %v197 = vsub.s32 0, %v196
  %v198 = vrot.slane %v193, %v197
  %v328 = vunpack.c.l.b16 %v15
  %v329 = vunpack.c.h.b16 %v15
  %v330 = vunpack.c.l.b16 %v16
  %v331 = vunpack.c.h.b16 %v16
  %v332 = vunpack.c.l.b16 %v17
  %v333 = vunpack.c.h.b16 %v17
  %v334 = vunpack.c.l.b16 %v18
  %v335 = vunpack.c.h.b16 %v18
  %v336 = vunpack.c.l.b16 %v19
  %v337 = vunpack.c.h.b16 %v19
  %v338 = vunpack.c.l.b16 %v20
  %v339 = vunpack.c.h.b16 %v20
  %v340 = vunpack.c.l.b16 %v21
  %v341 = vunpack.c.h.b16 %v21
  %v342 = vunpack.c.l.b16 %v22
  %v343 = vunpack.c.h.b16 %v22
  %v344 = vunpack.c.l.b16 %v23
  %v345 = vunpack.c.h.b16 %v23
  %v346 = vunpack.c.l.b16 %v24
  %v347 = vunpack.c.h.b16 %v24
  %v348 = vunpack.c.l.b16 %v25
  %v349 = vunpack.c.h.b16 %v25
  %v350 = vunpack.c.l.b16 %v26
  %v351 = vunpack.c.h.b16 %v26
  %v352 = vunpack.c.l.b16 %v27
  %v353 = vunpack.c.h.b16 %v27
  %v354 = vunpack.c.l.b16 %v28
  %v355 = vunpack.c.h.b16 %v28
  %v356 = vunpack.c.l.b16 %v29
  %v357 = vunpack.c.h.b16 %v29
  %v358 = vunpack.c.l.b16 %v30
  %v359 = vunpack.c.h.b16 %v30
  %v360 = vunpack.c.l.b16 %v31
  %v361 = vunpack.c.h.b16 %v31
  %v362 = vunpack.c.l.b16 %v32
  %v363 = vunpack.c.h.b16 %v32
  %v364 = vunpack.c.l.b16 %v33
  %v365 = vunpack.c.h.b16 %v33
  %v366 = vunpack.c.l.b16 %v34
  %v367 = vunpack.c.h.b16 %v34
  %v368 = vunpack.c.l.b16 %v35
  %v369 = vunpack.c.h.b16 %v35
  %v370 = vunpack.c.l.b16 %v36
  %v371 = vunpack.c.h.b16 %v36
  %v372 = vunpack.c.l.b16 %v37
  %v373 = vunpack.c.h.b16 %v37
  %v374 = vunpack.c.l.b16 %v38
  %v375 = vunpack.c.h.b16 %v38
  %v376 = vunpack.c.l.b16 %v39
  %v377 = vunpack.c.h.b16 %v39
  %v378 = vunpack.c.l.b16 %v40
  %v379 = vunpack.c.h.b16 %v40
  %v380 = vunpack.c.l.b16 %v41
  %v381 = vunpack.c.h.b16 %v41
  %v382 = vunpack.c.l.b16 %v42
  %v383 = vunpack.c.h.b16 %v42
  %v384 = vunpack.c.l.b16 %v43
  %v385 = vunpack.c.h.b16 %v43
  %v386 = vunpack.c.l.b16 %v44
  %v387 = vunpack.c.h.b16 %v44
  %v388 = vunpack.c.l.b16 %v45
  %v389 = vunpack.c.h.b16 %v45
  %v390 = vunpack.c.l.b16 %v46
  %v391 = vunpack.c.h.b16 %v46
  %v392 = vunpack.c.l.b16 %v47
  %v393 = vunpack.c.h.b16 %v47
  %v394 = vunpack.c.l.b16 %v48
  %v395 = vunpack.c.h.b16 %v48
  %v396 = vunpack.c.l.b16 %v49
  %v397 = vunpack.c.h.b16 %v49
  %v398 = vunpack.c.l.b16 %v50
  %v399 = vunpack.c.h.b16 %v50
  %v400 = vunpack.c.l.b16 %v51
  %v401 = vunpack.c.h.b16 %v51
  %v402 = vunpack.c.l.b16 %v52
  %v403 = vunpack.c.h.b16 %v52
  %v404 = vunpack.c.l.b16 %v53
  %v405 = vunpack.c.h.b16 %v53
  %v406 = vunpack.c.l.b16 %v54
  %v407 = vunpack.c.h.b16 %v54
  %v408 = vunpack.c.l.b16 %v55
  %v409 = vunpack.c.h.b16 %v55
  %v410 = vunpack.c.l.b16 %v56
  %v411 = vunpack.c.h.b16 %v56
  %v412 = vunpack.c.l.b16 %v57
  %v413 = vunpack.c.h.b16 %v57
  %v414 = vunpack.c.l.b16 %v58
  %v415 = vunpack.c.h.b16 %v58
  %v416 = vunpack.c.l.b16 %v59
  %v417 = vunpack.c.h.b16 %v59
  %v418 = vunpack.c.l.b16 %v60
  %v419 = vunpack.c.h.b16 %v60
  %v420 = vunpack.c.l.b16 %v61
  %v421 = vunpack.c.h.b16 %v61
  %v422 = vunpack.c.l.b16 %v62
  %v423 = vunpack.c.h.b16 %v62
  %v424 = vunpack.c.l.b16 %v63
  %v425 = vunpack.c.h.b16 %v63
  %v426 = vunpack.c.l.b16 %v64
  %v427 = vunpack.c.h.b16 %v64
  %v428 = vunpack.c.l.b16 %v65
  %v429 = vunpack.c.h.b16 %v65
  %v430 = vunpack.c.l.b16 %v66
  %v431 = vunpack.c.h.b16 %v66
  %v432 = vunpack.c.l.b16 %v67
  %v433 = vunpack.c.h.b16 %v67
  %v434 = vunpack.c.l.b16 %v68
  %v435 = vunpack.c.h.b16 %v68
  %v436 = vunpack.c.l.b16 %v69
  %v437 = vunpack.c.h.b16 %v69
  %v438 = vunpack.c.l.b16 %v70
  %v439 = vunpack.c.h.b16 %v70
  %v440 = vunpack.c.l.b16 %v71
  %v441 = vunpack.c.h.b16 %v71
  %v442 = vunpack.c.l.b16 %v72
  %v443 = vunpack.c.h.b16 %v72
  %v444 = vunpack.c.l.b16 %v73
  %v445 = vunpack.c.h.b16 %v73
  %v446 = vunpack.c.l.b16 %v74
  %v447 = vunpack.c.h.b16 %v74
  %v448 = vunpack.c.l.b16 %v75
  %v449 = vunpack.c.h.b16 %v75
  %v450 = vunpack.c.l.b16 %v76
  %v451 = vunpack.c.h.b16 %v76
  %v452 = vunpack.c.l.b16 %v77
  %v453 = vunpack.c.h.b16 %v77
  %v454 = vunpack.c.l.b16 %v78
  %v455 = vunpack.c.h.b16 %v78
  %v456 = vunpack.c.l.b16 %v79
  %v457 = vunpack.c.h.b16 %v79
  %v458 = vunpack.c.l.b16 %v80
  %v459 = vunpack.c.h.b16 %v80
  %v460 = vunpack.c.l.b16 %v81
  %v461 = vunpack.c.h.b16 %v81
  %v462 = vunpack.c.l.b16 %v82
  %v463 = vunpack.c.h.b16 %v82
  %v464 = vunpack.c.l.b16 %v83
  %v465 = vunpack.c.h.b16 %v83
  %v466 = vunpack.c.l.b16 %v84
  %v467 = vunpack.c.h.b16 %v84
  %v468 = vunpack.c.l.b16 %v85
  %v469 = vunpack.c.h.b16 %v85
  %v470 = vunpack.c.l.b16 %v86
  %v471 = vunpack.c.h.b16 %v86
  %v472 = vunpack.c.l.b16 %v87
  %v473 = vunpack.c.h.b16 %v87
  %v474 = vunpack.c.l.b16 %v88
  %v475 = vunpack.c.h.b16 %v88
  %v476 = vunpack.c.l.b16 %v89
  %v477 = vunpack.c.h.b16 %v89
  %v478 = vunpack.c.l.b16 %v90
  %v479 = vunpack.c.h.b16 %v90
  %v480 = vunpack.c.l.b16 %v91
  %v481 = vunpack.c.h.b16 %v91
  %v482 = vunpack.c.l.b16 %v92
  %v483 = vunpack.c.h.b16 %v92
  %v484 = vunpack.c.l.b16 %v93
  %v485 = vunpack.c.h.b16 %v93
  %v486 = vunpack.c.l.b16 %v94
  %v487 = vunpack.c.h.b16 %v94
  %v488 = vunpack.c.l.b16 %v95
  %v489 = vunpack.c.h.b16 %v95
  %v490 = vunpack.c.l.b16 %v96
  %v491 = vunpack.c.h.b16 %v96
  %v492 = vunpack.c.l.b16 %v97
  %v493 = vunpack.c.h.b16 %v97
  %v494 = vunpack.c.l.b16 %v98
  %v495 = vunpack.c.h.b16 %v98
  %v496 = vunpack.c.l.b16 %v99
  %v497 = vunpack.c.h.b16 %v99
  %v498 = vunpack.c.l.b16 %v100
  %v499 = vunpack.c.h.b16 %v100
  %v500 = vunpack.c.l.b16 %v101
  %v501 = vunpack.c.h.b16 %v101
  %v502 = vunpack.c.l.b16 %v102
  %v503 = vunpack.c.h.b16 %v102
  %v504 = vunpack.c.l.b16 %v103
  %v505 = vunpack.c.h.b16 %v103
  %v506 = vunpack.c.l.b16 %v104
  %v507 = vunpack.c.h.b16 %v104
  %v508 = vunpack.c.l.b16 %v105
  %v509 = vunpack.c.h.b16 %v105
  %v510 = vunpack.c.l.b16 %v106
  %v511 = vunpack.c.h.b16 %v106
  %v512 = vunpack.c.l.b16 %v107
  %v513 = vunpack.c.h.b16 %v107
  %v514 = vunpack.c.l.b16 %v108
  %v515 = vunpack.c.h.b16 %v108
  %v516 = vunpack.c.l.b16 %v109
  %v517 = vunpack.c.h.b16 %v109
  %v518 = vunpack.c.l.b16 %v110
  %v519 = vunpack.c.h.b16 %v110
  %v520 = vunpack.c.l.b16 %v111
  %v521 = vunpack.c.h.b16 %v111
  %v522 = vunpack.c.l.b16 %v112
  %v523 = vunpack.c.h.b16 %v112
  %v524 = vunpack.c.l.b16 %v113
  %v525 = vunpack.c.h.b16 %v113
  %v526 = vunpack.c.l.b16 %v114
  %v527 = vunpack.c.h.b16 %v114
  %v528 = vunpack.c.l.b16 %v115
  %v529 = vunpack.c.h.b16 %v115
  %v530 = vunpack.c.l.b16 %v116
  %v531 = vunpack.c.h.b16 %v116
  %v532 = vunpack.c.l.b16 %v117
  %v533 = vunpack.c.h.b16 %v117
  %v534 = vunpack.c.l.b16 %v118
  %v535 = vunpack.c.h.b16 %v118
  %v536 = vunpack.c.l.b16 %v119
  %v537 = vunpack.c.h.b16 %v119
  %v538 = vunpack.c.l.b16 %v120
  %v539 = vunpack.c.h.b16 %v120
  %v540 = vunpack.c.l.b16 %v121
  %v541 = vunpack.c.h.b16 %v121
  %v542 = vunpack.c.l.b16 %v122
  %v543 = vunpack.c.h.b16 %v122
  %v544 = vunpack.c.l.b16 %v123
  %v545 = vunpack.c.h.b16 %v123
  %v546 = vunpack.c.l.b16 %v124
  %v547 = vunpack.c.h.b16 %v124
  %v548 = vunpack.c.l.b16 %v125
  %v549 = vunpack.c.h.b16 %v125
  %v550 = vunpack.c.l.b16 %v126
  %v551 = vunpack.c.h.b16 %v126
  %v552 = vunpack.c.l.b16 %v127
  %v553 = vunpack.c.h.b16 %v127
  %v554 = vunpack.c.l.b16 %v128
  %v555 = vunpack.c.h.b16 %v128
  %v556 = vunpack.c.l.b16 %v129
  %v557 = vunpack.c.h.b16 %v129
  %v558 = vunpack.c.l.b16 %v130
  %v559 = vunpack.c.h.b16 %v130
  %v560 = vunpack.c.l.b16 %v131
  %v561 = vunpack.c.h.b16 %v131
  %v562 = vunpack.c.l.b16 %v132
  %v563 = vunpack.c.h.b16 %v132
  %v564 = vunpack.c.l.b16 %v133
  %v565 = vunpack.c.h.b16 %v133
  %v566 = vunpack.c.l.b16 %v134
  %v567 = vunpack.c.h.b16 %v134
  %v568 = vunpack.c.l.b16 %v135
  %v569 = vunpack.c.h.b16 %v135
  %v570 = vunpack.c.l.b16 %v136
  %v571 = vunpack.c.h.b16 %v136
  %v572 = vunpack.c.l.b16 %v137
  %v573 = vunpack.c.h.b16 %v137
  %v574 = vunpack.c.l.b16 %v138
  %v575 = vunpack.c.h.b16 %v138
  %v576 = vunpack.c.l.b16 %v139
  %v577 = vunpack.c.h.b16 %v139
  %v578 = vunpack.c.l.b16 %v140
  %v579 = vunpack.c.h.b16 %v140
  %v580 = vunpack.c.l.b16 %v141
  %v581 = vunpack.c.h.b16 %v141
  %v582 = vunpack.c.l.b16 %v142
  %v583 = vunpack.c.h.b16 %v142
  %v584 = vpack.c.b16 %v332, %v328
  %v585 = vpack.c.b16 %v333, %v329
  %v586 = vpack.c.b16 %v334, %v330
  %v587 = vpack.c.b16 %v335, %v331
  %v588 = vpack.c.b16 %v340, %v336
  %v589 = vpack.c.b16 %v341, %v337
  %v590 = vpack.c.b16 %v342, %v338
  %v591 = vpack.c.b16 %v343, %v339
  %v592 = vpack.c.b16 %v348, %v344
  %v593 = vpack.c.b16 %v349, %v345
  %v594 = vpack.c.b16 %v350, %v346
  %v595 = vpack.c.b16 %v351, %v347
  %v596 = vpack.c.b16 %v356, %v352
  %v597 = vpack.c.b16 %v357, %v353
  %v598 = vpack.c.b16 %v358, %v354
  %v599 = vpack.c.b16 %v359, %v355
  %v600 = vpack.c.b16 %v364, %v360
  %v601 = vpack.c.b16 %v365, %v361
  %v602 = vpack.c.b16 %v366, %v362
  %v603 = vpack.c.b16 %v367, %v363
  %v604 = vpack.c.b16 %v372, %v368
  %v605 = vpack.c.b16 %v373, %v369
  %v606 = vpack.c.b16 %v374, %v370
  %v607 = vpack.c.b16 %v375, %v371
  %v608 = vpack.c.b16 %v380, %v376
  %v609 = vpack.c.b16 %v381, %v377
  %v610 = vpack.c.b16 %v382, %v378
  %v611 = vpack.c.b16 %v383, %v379
  %v612 = vpack.c.b16 %v388, %v384
  %v613 = vpack.c.b16 %v389, %v385
  %v614 = vpack.c.b16 %v390, %v386
  %v615 = vpack.c.b16 %v391, %v387
  %v616 = vpack.c.b16 %v396, %v392
  %v617 = vpack.c.b16 %v397, %v393
  %v618 = vpack.c.b16 %v398, %v394
  %v619 = vpack.c.b16 %v399, %v395
  %v620 = vpack.c.b16 %v404, %v400
  %v621 = vpack.c.b16 %v405, %v401
  %v622 = vpack.c.b16 %v406, %v402
  %v623 = vpack.c.b16 %v407, %v403
  %v624 = vpack.c.b16 %v412, %v408
  %v625 = vpack.c.b16 %v413, %v409
  %v626 = vpack.c.b16 %v414, %v410
  %v627 = vpack.c.b16 %v415, %v411
  %v628 = vpack.c.b16 %v420, %v416
  %v629 = vpack.c.b16 %v421, %v417
  %v630 = vpack.c.b16 %v422, %v418
  %v631 = vpack.c.b16 %v423, %v419
  %v632 = vpack.c.b16 %v428, %v424
  %v633 = vpack.c.b16 %v429, %v425
  %v634 = vpack.c.b16 %v430, %v426
  %v635 = vpack.c.b16 %v431, %v427
  %v636 = vpack.c.b16 %v436, %v432
  %v637 = vpack.c.b16 %v437, %v433
  %v638 = vpack.c.b16 %v438, %v434
  %v639 = vpack.c.b16 %v439, %v435
  %v640 = vpack.c.b16 %v444, %v440
  %v641 = vpack.c.b16 %v445, %v441
  %v642 = vpack.c.b16 %v446, %v442
  %v643 = vpack.c.b16 %v447, %v443
  %v644 = vpack.c.b16 %v452, %v448
  %v645 = vpack.c.b16 %v453, %v449
  %v646 = vpack.c.b16 %v454, %v450
  %v647 = vpack.c.b16 %v455, %v451
  %v648 = vpack.c.b16 %v460, %v456
  %v649 = vpack.c.b16 %v461, %v457
  %v650 = vpack.c.b16 %v462, %v458
  %v651 = vpack.c.b16 %v463, %v459
  %v652 = vpack.c.b16 %v468, %v464
  %v653 = vpack.c.b16 %v469, %v465
  %v654 = vpack.c.b16 %v470, %v466
  %v655 = vpack.c.b16 %v471, %v467
  %v656 = vpack.c.b16 %v476, %v472
  %v657 = vpack.c.b16 %v477, %v473
  %v658 = vpack.c.b16 %v478, %v474
  %v659 = vpack.c.b16 %v479, %v475
  %v660 = vpack.c.b16 %v484, %v480
  %v661 = vpack.c.b16 %v485, %v481
  %v662 = vpack.c.b16 %v486, %v482
  %v663 = vpack.c.b16 %v487, %v483
  %v664 = vpack.c.b16 %v492, %v488
  %v665 = vpack.c.b16 %v493, %v489
  %v666 = vpack.c.b16 %v494, %v490
  %v667 = vpack.c.b16 %v495, %v491
  %v668 = vpack.c.b16 %v500, %v496
  %v669 = vpack.c.b16 %v501, %v497
  %v670 = vpack.c.b16 %v502, %v498
  %v671 = vpack.c.b16 %v503, %v499
  %v672 = vpack.c.b16 %v508, %v504
  %v673 = vpack.c.b16 %v509, %v505
  %v674 = vpack.c.b16 %v510, %v506
  %v675 = vpack.c.b16 %v511, %v507
  %v676 = vpack.c.b16 %v516, %v512
  %v677 = vpack.c.b16 %v517, %v513
  %v678 = vpack.c.b16 %v518, %v514
  %v679 = vpack.c.b16 %v519, %v515
  %v680 = vpack.c.b16 %v524, %v520
  %v681 = vpack.c.b16 %v525, %v521
  %v682 = vpack.c.b16 %v526, %v522
  %v683 = vpack.c.b16 %v527, %v523
  %v684 = vpack.c.b16 %v532, %v528
  %v685 = vpack.c.b16 %v533, %v529
  %v686 = vpack.c.b16 %v534, %v530
  %v687 = vpack.c.b16 %v535, %v531
  %v688 = vpack.c.b16 %v540, %v536
  %v689 = vpack.c.b16 %v541, %v537
  %v690 = vpack.c.b16 %v542, %v538
  %v691 = vpack.c.b16 %v543, %v539
  %v692 = vpack.c.b16 %v548, %v544
  %v693 = vpack.c.b16 %v549, %v545
  %v694 = vpack.c.b16 %v550, %v546
  %v695 = vpack.c.b16 %v551, %v547
  %v696 = vpack.c.b16 %v556, %v552
  %v697 = vpack.c.b16 %v557, %v553
  %v698 = vpack.c.b16 %v558, %v554
  %v699 = vpack.c.b16 %v559, %v555
  %v700 = vpack.c.b16 %v564, %v560
  %v701 = vpack.c.b16 %v565, %v561
  %v702 = vpack.c.b16 %v566, %v562
  %v703 = vpack.c.b16 %v567, %v563
  %v704 = vpack.c.b16 %v572, %v568
  %v705 = vpack.c.b16 %v573, %v569
  %v706 = vpack.c.b16 %v574, %v570
  %v707 = vpack.c.b16 %v575, %v571
  %v708 = vpack.c.b16 %v580, %v576
  %v709 = vpack.c.b16 %v581, %v577
  %v710 = vpack.c.b16 %v582, %v578
  %v711 = vpack.c.b16 %v583, %v579
  %v858 = vunpack.c.l.b16 %v143
  %v859 = vunpack.c.l.b16 %v144
  %v860 = vunpack.c.l.b16 %v145
  %v861 = vunpack.c.l.b16 %v146
  %v862 = vunpack.c.l.b16 %v147
  %v863 = vunpack.c.l.b16 %v148
  %v864 = vunpack.c.l.b16 %v149
  %v865 = vunpack.c.l.b16 %v150
  %v866 = vunpack.c.l.b16 %v151
  %v867 = vunpack.c.l.b16 %v152
  %v868 = vunpack.c.l.b16 %v153
  %v869 = vunpack.c.l.b16 %v154
  %v870 = vunpack.c.l.b16 %v155
  %v871 = vunpack.c.l.b16 %v156
  %v872 = vunpack.c.l.b16 %v157
  %v873 = vunpack.c.l.b16 %v158
  %v874 = vunpack.c.l.b16 %v159
  %v875 = vunpack.c.l.b16 %v160
  %v876 = vunpack.c.l.b16 %v161
  %v877 = vunpack.c.l.b16 %v162
  %v878 = vunpack.c.l.b16 %v163
  %v879 = vunpack.c.l.b16 %v164
  %v880 = vunpack.c.l.b16 %v165
  %v881 = vunpack.c.l.b16 %v166
  %v882 = vunpack.c.l.b16 %v167
  %v883 = vunpack.c.l.b16 %v168
  %v884 = vunpack.c.l.b16 %v169
  %v885 = vunpack.c.l.b16 %v170
  %v886 = vunpack.c.l.b16 %v171
  %v887 = vunpack.c.l.b16 %v172
  %v888 = vunpack.c.l.b16 %v173
  %v889 = vunpack.c.l.b16 %v174
  %v890 = vunpack.c.l.b16 %v175
  %v891 = vunpack.c.l.b16 %v176
  %v892 = vunpack.c.l.b16 %v177
  %v893 = vunpack.c.l.b16 %v178
  %v894 = vunpack.c.l.b16 %v179
  %v895 = vunpack.c.l.b16 %v180
  %v896 = vunpack.c.l.b16 %v181
  %v897 = vunpack.c.l.b16 %v182
  %v898 = vunpack.c.l.b16 %v183
  %v899 = vunpack.c.l.b16 %v184
  %v900 = vunpack.c.l.b16 %v185
  %v901 = vunpack.c.l.b16 %v186
  %v902 = vunpack.c.l.b16 %v187
  %v903 = vunpack.c.l.b16 %v188
  %v904 = vunpack.c.l.b16 %v189
  %v905 = vunpack.c.l.b16 %v190
  %v906 = vunpack.c.l.b16 %v191
  %v907 = vunpack.c.l.b16 %v192
  %v908 = vpack.c.b16 %v859, %v858
  %v909 = vpack.c.b16 %v861, %v860
  %v910 = vpack.c.b16 %v863, %v862
  %v911 = vpack.c.b16 %v865, %v864
  %v912 = vpack.c.b16 %v867, %v866
  %v913 = vpack.c.b16 %v869, %v868
  %v914 = vpack.c.b16 %v871, %v870
  %v915 = vpack.c.b16 %v873, %v872
  %v916 = vpack.c.b16 %v875, %v874
  %v917 = vpack.c.b16 %v877, %v876
  %v918 = vpack.c.b16 %v879, %v878
  %v919 = vpack.c.b16 %v881, %v880
  %v920 = vpack.c.b16 %v883, %v882
  %v921 = vpack.c.b16 %v885, %v884
  %v922 = vpack.c.b16 %v887, %v886
  %v923 = vpack.c.b16 %v889, %v888
  %v924 = vpack.c.b16 %v891, %v890
  %v925 = vpack.c.b16 %v893, %v892
  %v926 = vpack.c.b16 %v895, %v894
  %v927 = vpack.c.b16 %v897, %v896
  %v928 = vpack.c.b16 %v899, %v898
  %v929 = vpack.c.b16 %v901, %v900
  %v930 = vpack.c.b16 %v903, %v902
  %v931 = vpack.c.b16 %v905, %v904
  %v932 = vpack.c.b16 %v907, %v906
  %vm958 = vcmask 130048
  %v960 = vsel %vm958, %v587, 0
  %v963 = vsel %vm958, %v591, 0
  %v966 = vsel %vm958, %v595, 0
  %v969 = vsel %vm958, %v599, 0
  %v972 = vsel %vm958, %v603, 0
  %v975 = vsel %vm958, %v607, 0
  %v978 = vsel %vm958, %v611, 0
  %v981 = vsel %vm958, %v615, 0
  %v984 = vsel %vm958, %v619, 0
  %v987 = vsel %vm958, %v623, 0
  %v990 = vsel %vm958, %v627, 0
  %v993 = vsel %vm958, %v631, 0
  %v996 = vsel %vm958, %v635, 0
  %v999 = vsel %vm958, %v639, 0
  %v1002 = vsel %vm958, %v643, 0
  %v1005 = vsel %vm958, %v647, 0
  %v1008 = vsel %vm958, %v651, 0
  %v1011 = vsel %vm958, %v655, 0
  %v1014 = vsel %vm958, %v659, 0
  %v1017 = vsel %vm958, %v663, 0
  %v1020 = vsel %vm958, %v667, 0
  %v1023 = vsel %vm958, %v671, 0
  %v1026 = vsel %vm958, %v675, 0
  %v1029 = vsel %vm958, %v679, 0
  %v1032 = vsel %vm958, %v683, 0
  %v1035 = vsel %vm958, %v687, 0
  %v1038 = vsel %vm958, %v691, 0
  %v1041 = vsel %vm958, %v695, 0
  %v1044 = vsel %vm958, %v699, 0
  %v1047 = vsel %vm958, %v703, 0
  %v1050 = vsel %vm958, %v707, 0
  %v1053 = vsel %vm958, %v711, 0
  %1055 = vmatprep.subr.bf16.mxu0 0
  %1056 = vmatpush1.bf16.msra.mxu0 %v915
  %1057 = vmatprep.subr.bf16.mxu0 0
  %1058 = vmatpush1.bf16.msra.mxu0 %v914
  %1059 = vmatprep.subr.bf16.mxu0 0
  %1060 = vmatpush1.bf16.msra.mxu0 %v913
  %1061 = vmatprep.subr.bf16.mxu0 0
  %1062 = vmatpush1.bf16.msra.mxu0 %v912
  %1063 = vmatprep.subr.bf16.mxu0 0
  %1064 = vmatpush1.bf16.msra.mxu0 %v911
  %1065 = vmatprep.subr.bf16.mxu0 0
  %1066 = vmatpush1.bf16.msra.mxu0 %v910
  %1067 = vmatprep.subr.bf16.mxu0 0
  %1068 = vmatpush1.bf16.msra.mxu0 %v909
  %1069 = vmatprep.subr.bf16.mxu0 0
  %1070 = vmatpush1.bf16.msra.mxu0 %v908
  %1071 = vmatprep.subr.bf16.mxu0 0
  %1072 = vmatpush2.bf16.msra.mxu0 %v923
  %1073 = vmatprep.subr.bf16.mxu0 0
  %1074 = vmatpush2.bf16.msra.mxu0 %v922
  %1075 = vmatprep.subr.bf16.mxu0 0
  %1076 = vmatpush2.bf16.msra.mxu0 %v921
  %1077 = vmatprep.subr.bf16.mxu0 0
  %1078 = vmatpush2.bf16.msra.mxu0 %v920
  %1079 = vmatprep.subr.bf16.mxu0 0
  %1080 = vmatpush2.bf16.msra.mxu0 %v919
  %1081 = vmatprep.subr.bf16.mxu0 0
  %1082 = vmatpush2.bf16.msra.mxu0 %v918
  %1083 = vmatprep.subr.bf16.mxu0 0
  %1084 = vmatpush2.bf16.msra.mxu0 %v917
  %1085 = vmatprep.subr.bf16.mxu0 0
  %1086 = vmatpush2.bf16.msra.mxu0 %v916
  %1087 = vmatprep.mubr.bf16.mxu0 %v585
  %1088 = vmatmul.mubr.bf16.gmra.mxu0 %v584
  %v1089 = vpop.f32.mrf.mxu0
  %v1090 = vadd.f32 %v198, %v1089
  %v1091 = vpop.f32.mrf.mxu0
  %v1092 = vpop.f32.mrf.mxu0
  %v1093 = vadd.f32 %v198, %v1092
  %v1094 = vpop.f32.mrf.mxu0
  %1095 = vmatprep.mubr.bf16.mxu0 %v589
  %1096 = vmatmul.mubr.bf16.gmra.mxu0 %v588
  %v1097 = vpop.f32.mrf.mxu0
  %v1098 = vadd.f32 %v198, %v1097
  %v1099 = vpop.f32.mrf.mxu0
  %v1100 = vpop.f32.mrf.mxu0
  %v1101 = vadd.f32 %v198, %v1100
  %v1102 = vpop.f32.mrf.mxu0
  %1103 = vmatprep.mubr.bf16.mxu0 %v593
  %1104 = vmatmul.mubr.bf16.gmra.mxu0 %v592
  %v1105 = vpop.f32.mrf.mxu0
  %v1106 = vadd.f32 %v198, %v1105
  %v1107 = vpop.f32.mrf.mxu0
  %v1108 = vpop.f32.mrf.mxu0
  %v1109 = vadd.f32 %v198, %v1108
  %v1110 = vpop.f32.mrf.mxu0
  %1111 = vmatprep.mubr.bf16.mxu0 %v597
  %1112 = vmatmul.mubr.bf16.gmra.mxu0 %v596
  %v1113 = vpop.f32.mrf.mxu0
  %v1114 = vadd.f32 %v198, %v1113
  %v1115 = vpop.f32.mrf.mxu0
  %v1116 = vpop.f32.mrf.mxu0
  %v1117 = vadd.f32 %v198, %v1116
  %v1118 = vpop.f32.mrf.mxu0
  %1119 = vmatprep.mubr.bf16.mxu0 %v601
  %1120 = vmatmul.mubr.bf16.gmra.mxu0 %v600
  %v1121 = vpop.f32.mrf.mxu0
  %v1122 = vadd.f32 %v198, %v1121
  %v1123 = vpop.f32.mrf.mxu0
  %v1124 = vpop.f32.mrf.mxu0
  %v1125 = vadd.f32 %v198, %v1124
  %v1126 = vpop.f32.mrf.mxu0
  %1127 = vmatprep.mubr.bf16.mxu0 %v605
  %1128 = vmatmul.mubr.bf16.gmra.mxu0 %v604
  %v1129 = vpop.f32.mrf.mxu0
  %v1130 = vadd.f32 %v198, %v1129
  %v1131 = vpop.f32.mrf.mxu0
  %v1132 = vpop.f32.mrf.mxu0
  %v1133 = vadd.f32 %v198, %v1132
  %v1134 = vpop.f32.mrf.mxu0
  %1135 = vmatprep.mubr.bf16.mxu0 %v609
  %1136 = vmatmul.mubr.bf16.gmra.mxu0 %v608
  %v1137 = vpop.f32.mrf.mxu0
  %v1138 = vadd.f32 %v198, %v1137
  %v1139 = vpop.f32.mrf.mxu0
  %v1140 = vpop.f32.mrf.mxu0
  %v1141 = vadd.f32 %v198, %v1140
  %v1142 = vpop.f32.mrf.mxu0
  %1143 = vmatprep.mubr.bf16.mxu0 %v613
  %1144 = vmatmul.mubr.bf16.gmra.mxu0 %v612
  %v1145 = vpop.f32.mrf.mxu0
  %v1146 = vadd.f32 %v198, %v1145
  %v1147 = vpop.f32.mrf.mxu0
  %v1148 = vpop.f32.mrf.mxu0
  %v1149 = vadd.f32 %v198, %v1148
  %v1150 = vpop.f32.mrf.mxu0
  %1151 = vmatprep.mubr.bf16.mxu0 %v617
  %1152 = vmatmul.mubr.bf16.gmra.mxu0 %v616
  %v1153 = vpop.f32.mrf.mxu0
  %v1154 = vadd.f32 %v198, %v1153
  %v1155 = vpop.f32.mrf.mxu0
  %v1156 = vpop.f32.mrf.mxu0
  %v1157 = vadd.f32 %v198, %v1156
  %v1158 = vpop.f32.mrf.mxu0
  %1159 = vmatprep.mubr.bf16.mxu0 %v621
  %1160 = vmatmul.mubr.bf16.gmra.mxu0 %v620
  %v1161 = vpop.f32.mrf.mxu0
  %v1162 = vadd.f32 %v198, %v1161
  %v1163 = vpop.f32.mrf.mxu0
  %v1164 = vpop.f32.mrf.mxu0
  %v1165 = vadd.f32 %v198, %v1164
  %v1166 = vpop.f32.mrf.mxu0
  %1167 = vmatprep.mubr.bf16.mxu0 %v625
  %1168 = vmatmul.mubr.bf16.gmra.mxu0 %v624
  %v1169 = vpop.f32.mrf.mxu0
  %v1170 = vadd.f32 %v198, %v1169
  %v1171 = vpop.f32.mrf.mxu0
  %v1172 = vpop.f32.mrf.mxu0
  %v1173 = vadd.f32 %v198, %v1172
  %v1174 = vpop.f32.mrf.mxu0
  %1175 = vmatprep.mubr.bf16.mxu0 %v629
  %1176 = vmatmul.mubr.bf16.gmra.mxu0 %v628
  %v1177 = vpop.f32.mrf.mxu0
  %v1178 = vadd.f32 %v198, %v1177
  %v1179 = vpop.f32.mrf.mxu0
  %v1180 = vpop.f32.mrf.mxu0
  %v1181 = vadd.f32 %v198, %v1180
  %v1182 = vpop.f32.mrf.mxu0
  %1183 = vmatprep.mubr.bf16.mxu0 %v633
  %1184 = vmatmul.mubr.bf16.gmra.mxu0 %v632
  %v1185 = vpop.f32.mrf.mxu0
  %v1186 = vadd.f32 %v198, %v1185
  %v1187 = vpop.f32.mrf.mxu0
  %v1188 = vpop.f32.mrf.mxu0
  %v1189 = vadd.f32 %v198, %v1188
  %v1190 = vpop.f32.mrf.mxu0
  %1191 = vmatprep.mubr.bf16.mxu0 %v637
  %1192 = vmatmul.mubr.bf16.gmra.mxu0 %v636
  %v1193 = vpop.f32.mrf.mxu0
  %v1194 = vadd.f32 %v198, %v1193
  %v1195 = vpop.f32.mrf.mxu0
  %v1196 = vpop.f32.mrf.mxu0
  %v1197 = vadd.f32 %v198, %v1196
  %v1198 = vpop.f32.mrf.mxu0
  %1199 = vmatprep.mubr.bf16.mxu0 %v641
  %1200 = vmatmul.mubr.bf16.gmra.mxu0 %v640
  %v1201 = vpop.f32.mrf.mxu0
  %v1202 = vadd.f32 %v198, %v1201
  %v1203 = vpop.f32.mrf.mxu0
  %v1204 = vpop.f32.mrf.mxu0
  %v1205 = vadd.f32 %v198, %v1204
  %v1206 = vpop.f32.mrf.mxu0
  %1207 = vmatprep.mubr.bf16.mxu0 %v645
  %1208 = vmatmul.mubr.bf16.gmra.mxu0 %v644
  %v1209 = vpop.f32.mrf.mxu0
  %v1210 = vadd.f32 %v198, %v1209
  %v1211 = vpop.f32.mrf.mxu0
  %v1212 = vpop.f32.mrf.mxu0
  %v1213 = vadd.f32 %v198, %v1212
  %v1214 = vpop.f32.mrf.mxu0
  %1215 = vmatprep.mubr.bf16.mxu0 %v649
  %1216 = vmatmul.mubr.bf16.gmra.mxu0 %v648
  %v1217 = vpop.f32.mrf.mxu0
  %v1218 = vadd.f32 %v198, %v1217
  %v1219 = vpop.f32.mrf.mxu0
  %v1220 = vpop.f32.mrf.mxu0
  %v1221 = vadd.f32 %v198, %v1220
  %v1222 = vpop.f32.mrf.mxu0
  %1223 = vmatprep.mubr.bf16.mxu0 %v653
  %1224 = vmatmul.mubr.bf16.gmra.mxu0 %v652
  %v1225 = vpop.f32.mrf.mxu0
  %v1226 = vadd.f32 %v198, %v1225
  %v1227 = vpop.f32.mrf.mxu0
  %v1228 = vpop.f32.mrf.mxu0
  %v1229 = vadd.f32 %v198, %v1228
  %v1230 = vpop.f32.mrf.mxu0
  %1231 = vmatprep.mubr.bf16.mxu0 %v657
  %1232 = vmatmul.mubr.bf16.gmra.mxu0 %v656
  %v1233 = vpop.f32.mrf.mxu0
  %v1234 = vadd.f32 %v198, %v1233
  %v1235 = vpop.f32.mrf.mxu0
  %v1236 = vpop.f32.mrf.mxu0
  %v1237 = vadd.f32 %v198, %v1236
  %v1238 = vpop.f32.mrf.mxu0
  %1239 = vmatprep.mubr.bf16.mxu0 %v661
  %1240 = vmatmul.mubr.bf16.gmra.mxu0 %v660
  %v1241 = vpop.f32.mrf.mxu0
  %v1242 = vadd.f32 %v198, %v1241
  %v1243 = vpop.f32.mrf.mxu0
  %v1244 = vpop.f32.mrf.mxu0
  %v1245 = vadd.f32 %v198, %v1244
  %v1246 = vpop.f32.mrf.mxu0
  %1247 = vmatprep.mubr.bf16.mxu0 %v665
  %1248 = vmatmul.mubr.bf16.gmra.mxu0 %v664
  %v1249 = vpop.f32.mrf.mxu0
  %v1250 = vadd.f32 %v198, %v1249
  %v1251 = vpop.f32.mrf.mxu0
  %v1252 = vpop.f32.mrf.mxu0
  %v1253 = vadd.f32 %v198, %v1252
  %v1254 = vpop.f32.mrf.mxu0
  %1255 = vmatprep.mubr.bf16.mxu0 %v669
  %1256 = vmatmul.mubr.bf16.gmra.mxu0 %v668
  %v1257 = vpop.f32.mrf.mxu0
  %v1258 = vadd.f32 %v198, %v1257
  %v1259 = vpop.f32.mrf.mxu0
  %v1260 = vpop.f32.mrf.mxu0
  %v1261 = vadd.f32 %v198, %v1260
  %v1262 = vpop.f32.mrf.mxu0
  %1263 = vmatprep.mubr.bf16.mxu0 %v673
  %1264 = vmatmul.mubr.bf16.gmra.mxu0 %v672
  %v1265 = vpop.f32.mrf.mxu0
  %v1266 = vadd.f32 %v198, %v1265
  %v1267 = vpop.f32.mrf.mxu0
  %v1268 = vpop.f32.mrf.mxu0
  %v1269 = vadd.f32 %v198, %v1268
  %v1270 = vpop.f32.mrf.mxu0
  %1271 = vmatprep.mubr.bf16.mxu0 %v677
  %1272 = vmatmul.mubr.bf16.gmra.mxu0 %v676
  %v1273 = vpop.f32.mrf.mxu0
  %v1274 = vadd.f32 %v198, %v1273
  %v1275 = vpop.f32.mrf.mxu0
  %v1276 = vpop.f32.mrf.mxu0
  %v1277 = vadd.f32 %v198, %v1276
  %v1278 = vpop.f32.mrf.mxu0
  %1279 = vmatprep.mubr.bf16.mxu0 %v681
  %1280 = vmatmul.mubr.bf16.gmra.mxu0 %v680
  %v1281 = vpop.f32.mrf.mxu0
  %v1282 = vadd.f32 %v198, %v1281
  %v1283 = vpop.f32.mrf.mxu0
  %v1284 = vpop.f32.mrf.mxu0
  %v1285 = vadd.f32 %v198, %v1284
  %v1286 = vpop.f32.mrf.mxu0
  %1287 = vmatprep.mubr.bf16.mxu0 %v685
  %1288 = vmatmul.mubr.bf16.gmra.mxu0 %v684
  %v1289 = vpop.f32.mrf.mxu0
  %v1290 = vadd.f32 %v198, %v1289
  %v1291 = vpop.f32.mrf.mxu0
  %v1292 = vpop.f32.mrf.mxu0
  %v1293 = vadd.f32 %v198, %v1292
  %v1294 = vpop.f32.mrf.mxu0
  %1295 = vmatprep.mubr.bf16.mxu0 %v689
  %1296 = vmatmul.mubr.bf16.gmra.mxu0 %v688
  %v1297 = vpop.f32.mrf.mxu0
  %v1298 = vadd.f32 %v198, %v1297
  %v1299 = vpop.f32.mrf.mxu0
  %v1300 = vpop.f32.mrf.mxu0
  %v1301 = vadd.f32 %v198, %v1300
  %v1302 = vpop.f32.mrf.mxu0
  %1303 = vmatprep.mubr.bf16.mxu0 %v693
  %1304 = vmatmul.mubr.bf16.gmra.mxu0 %v692
  %v1305 = vpop.f32.mrf.mxu0
  %v1306 = vadd.f32 %v198, %v1305
  %v1307 = vpop.f32.mrf.mxu0
  %v1308 = vpop.f32.mrf.mxu0
  %v1309 = vadd.f32 %v198, %v1308
  %v1310 = vpop.f32.mrf.mxu0
  %1311 = vmatprep.mubr.bf16.mxu0 %v697
  %1312 = vmatmul.mubr.bf16.gmra.mxu0 %v696
  %v1313 = vpop.f32.mrf.mxu0
  %v1314 = vadd.f32 %v198, %v1313
  %v1315 = vpop.f32.mrf.mxu0
  %v1316 = vpop.f32.mrf.mxu0
  %v1317 = vadd.f32 %v198, %v1316
  %v1318 = vpop.f32.mrf.mxu0
  %1319 = vmatprep.mubr.bf16.mxu0 %v701
  %1320 = vmatmul.mubr.bf16.gmra.mxu0 %v700
  %v1321 = vpop.f32.mrf.mxu0
  %v1322 = vadd.f32 %v198, %v1321
  %v1323 = vpop.f32.mrf.mxu0
  %v1324 = vpop.f32.mrf.mxu0
  %v1325 = vadd.f32 %v198, %v1324
  %v1326 = vpop.f32.mrf.mxu0
  %1327 = vmatprep.mubr.bf16.mxu0 %v705
  %1328 = vmatmul.mubr.bf16.gmra.mxu0 %v704
  %v1329 = vpop.f32.mrf.mxu0
  %v1330 = vadd.f32 %v198, %v1329
  %v1331 = vpop.f32.mrf.mxu0
  %v1332 = vpop.f32.mrf.mxu0
  %v1333 = vadd.f32 %v198, %v1332
  %v1334 = vpop.f32.mrf.mxu0
  %1335 = vmatprep.mubr.bf16.mxu0 %v709
  %1336 = vmatmul.mubr.bf16.gmra.mxu0 %v708
  %v1337 = vpop.f32.mrf.mxu0
  %v1338 = vadd.f32 %v198, %v1337
  %v1339 = vpop.f32.mrf.mxu0
  %v1340 = vpop.f32.mrf.mxu0
  %v1341 = vadd.f32 %v198, %v1340
  %v1342 = vpop.f32.mrf.mxu0
  %1343 = vdwg.mxu0
  %1344 = vmatprep.subr.bf16.mxu0 0
  %1345 = vmatpush1.bf16.msra.mxu0 %v931
  %1346 = vmatprep.subr.bf16.mxu0 0
  %1347 = vmatpush1.bf16.msra.mxu0 %v930
  %1348 = vmatprep.subr.bf16.mxu0 0
  %1349 = vmatpush1.bf16.msra.mxu0 %v929
  %1350 = vmatprep.subr.bf16.mxu0 0
  %1351 = vmatpush1.bf16.msra.mxu0 %v928
  %1352 = vmatprep.subr.bf16.mxu0 0
  %1353 = vmatpush1.bf16.msra.mxu0 %v927
  %1354 = vmatprep.subr.bf16.mxu0 0
  %1355 = vmatpush1.bf16.msra.mxu0 %v926
  %1356 = vmatprep.subr.bf16.mxu0 0
  %1357 = vmatpush1.bf16.msra.mxu0 %v925
  %1358 = vmatprep.subr.bf16.mxu0 0
  %1359 = vmatpush1.bf16.msra.mxu0 %v924
  %1360 = vmatprep.subr.bf16.mxu0 0
  %1361 = vmatpush2.bf16.msra.mxu0 0
  %1362 = vmatprep.subr.bf16.mxu0 0
  %1363 = vmatpush2.bf16.msra.mxu0 0
  %1364 = vmatprep.subr.bf16.mxu0 0
  %1365 = vmatpush2.bf16.msra.mxu0 0
  %1366 = vmatprep.subr.bf16.mxu0 0
  %1367 = vmatpush2.bf16.msra.mxu0 0
  %1368 = vmatprep.subr.bf16.mxu0 0
  %1369 = vmatpush2.bf16.msra.mxu0 0
  %1370 = vmatprep.subr.bf16.mxu0 0
  %1371 = vmatpush2.bf16.msra.mxu0 0
  %1372 = vmatprep.subr.bf16.mxu0 0
  %1373 = vmatpush2.bf16.msra.mxu0 0
  %1374 = vmatprep.subr.bf16.mxu0 0
  %1375 = vmatpush2.bf16.msra.mxu0 %v932
  %1376 = vmatprep.mubr.bf16.mxu0 %v960
  %1377 = vmatmul.mubr.bf16.gmra.mxu0 %v586
  %v1378 = vpop.f32.mrf.mxu0
  %v1379 = vadd.f32 %v1090, %v1378
  %v1380 = vpop.f32.mrf.mxu0
  %v1381 = vpop.f32.mrf.mxu0
  %v1382 = vadd.f32 %v1093, %v1381
  %v1383 = vpop.f32.mrf.mxu0
  %1384 = vmatprep.mubr.bf16.mxu0 %v963
  %1385 = vmatmul.mubr.bf16.gmra.mxu0 %v590
  %v1386 = vpop.f32.mrf.mxu0
  %v1387 = vadd.f32 %v1098, %v1386
  %v1388 = vpop.f32.mrf.mxu0
  %v1389 = vpop.f32.mrf.mxu0
  %v1390 = vadd.f32 %v1101, %v1389
  %v1391 = vpop.f32.mrf.mxu0
  %1392 = vmatprep.mubr.bf16.mxu0 %v966
  %1393 = vmatmul.mubr.bf16.gmra.mxu0 %v594
  %v1394 = vpop.f32.mrf.mxu0
  %v1395 = vadd.f32 %v1106, %v1394
  %v1396 = vpop.f32.mrf.mxu0
  %v1397 = vpop.f32.mrf.mxu0
  %v1398 = vadd.f32 %v1109, %v1397
  %v1399 = vpop.f32.mrf.mxu0
  %1400 = vmatprep.mubr.bf16.mxu0 %v969
  %1401 = vmatmul.mubr.bf16.gmra.mxu0 %v598
  %v1402 = vpop.f32.mrf.mxu0
  %v1403 = vadd.f32 %v1114, %v1402
  %v1404 = vpop.f32.mrf.mxu0
  %v1405 = vpop.f32.mrf.mxu0
  %v1406 = vadd.f32 %v1117, %v1405
  %v1407 = vpop.f32.mrf.mxu0
  %1408 = vmatprep.mubr.bf16.mxu0 %v972
  %1409 = vmatmul.mubr.bf16.gmra.mxu0 %v602
  %v1410 = vpop.f32.mrf.mxu0
  %v1411 = vadd.f32 %v1122, %v1410
  %v1412 = vpop.f32.mrf.mxu0
  %v1413 = vpop.f32.mrf.mxu0
  %v1414 = vadd.f32 %v1125, %v1413
  %v1415 = vpop.f32.mrf.mxu0
  %1416 = vmatprep.mubr.bf16.mxu0 %v975
  %1417 = vmatmul.mubr.bf16.gmra.mxu0 %v606
  %v1418 = vpop.f32.mrf.mxu0
  %v1419 = vadd.f32 %v1130, %v1418
  %v1420 = vpop.f32.mrf.mxu0
  %v1421 = vpop.f32.mrf.mxu0
  %v1422 = vadd.f32 %v1133, %v1421
  %v1423 = vpop.f32.mrf.mxu0
  %1424 = vmatprep.mubr.bf16.mxu0 %v978
  %1425 = vmatmul.mubr.bf16.gmra.mxu0 %v610
  %v1426 = vpop.f32.mrf.mxu0
  %v1427 = vadd.f32 %v1138, %v1426
  %v1428 = vpop.f32.mrf.mxu0
  %v1429 = vpop.f32.mrf.mxu0
  %v1430 = vadd.f32 %v1141, %v1429
  %v1431 = vpop.f32.mrf.mxu0
  %1432 = vmatprep.mubr.bf16.mxu0 %v981
  %1433 = vmatmul.mubr.bf16.gmra.mxu0 %v614
  %v1434 = vpop.f32.mrf.mxu0
  %v1435 = vadd.f32 %v1146, %v1434
  %v1436 = vpop.f32.mrf.mxu0
  %v1437 = vpop.f32.mrf.mxu0
  %v1438 = vadd.f32 %v1149, %v1437
  %v1439 = vpop.f32.mrf.mxu0
  %1440 = vmatprep.mubr.bf16.mxu0 %v984
  %1441 = vmatmul.mubr.bf16.gmra.mxu0 %v618
  %v1442 = vpop.f32.mrf.mxu0
  %v1443 = vadd.f32 %v1154, %v1442
  %v1444 = vpop.f32.mrf.mxu0
  %v1445 = vpop.f32.mrf.mxu0
  %v1446 = vadd.f32 %v1157, %v1445
  %v1447 = vpop.f32.mrf.mxu0
  %1448 = vmatprep.mubr.bf16.mxu0 %v987
  %1449 = vmatmul.mubr.bf16.gmra.mxu0 %v622
  %v1450 = vpop.f32.mrf.mxu0
  %v1451 = vadd.f32 %v1162, %v1450
  %v1452 = vpop.f32.mrf.mxu0
  %v1453 = vpop.f32.mrf.mxu0
  %v1454 = vadd.f32 %v1165, %v1453
  %v1455 = vpop.f32.mrf.mxu0
  %1456 = vmatprep.mubr.bf16.mxu0 %v990
  %1457 = vmatmul.mubr.bf16.gmra.mxu0 %v626
  %v1458 = vpop.f32.mrf.mxu0
  %v1459 = vadd.f32 %v1170, %v1458
  %v1460 = vpop.f32.mrf.mxu0
  %v1461 = vpop.f32.mrf.mxu0
  %v1462 = vadd.f32 %v1173, %v1461
  %v1463 = vpop.f32.mrf.mxu0
  %1464 = vmatprep.mubr.bf16.mxu0 %v993
  %1465 = vmatmul.mubr.bf16.gmra.mxu0 %v630
  %v1466 = vpop.f32.mrf.mxu0
  %v1467 = vadd.f32 %v1178, %v1466
  %v1468 = vpop.f32.mrf.mxu0
  %v1469 = vpop.f32.mrf.mxu0
  %v1470 = vadd.f32 %v1181, %v1469
  %v1471 = vpop.f32.mrf.mxu0
  %1472 = vmatprep.mubr.bf16.mxu0 %v996
  %1473 = vmatmul.mubr.bf16.gmra.mxu0 %v634
  %v1474 = vpop.f32.mrf.mxu0
  %v1475 = vadd.f32 %v1186, %v1474
  %v1476 = vpop.f32.mrf.mxu0
  %v1477 = vpop.f32.mrf.mxu0
  %v1478 = vadd.f32 %v1189, %v1477
  %v1479 = vpop.f32.mrf.mxu0
  %1480 = vmatprep.mubr.bf16.mxu0 %v999
  %1481 = vmatmul.mubr.bf16.gmra.mxu0 %v638
  %v1482 = vpop.f32.mrf.mxu0
  %v1483 = vadd.f32 %v1194, %v1482
  %v1484 = vpop.f32.mrf.mxu0
  %v1485 = vpop.f32.mrf.mxu0
  %v1486 = vadd.f32 %v1197, %v1485
  %v1487 = vpop.f32.mrf.mxu0
  %1488 = vmatprep.mubr.bf16.mxu0 %v1002
  %1489 = vmatmul.mubr.bf16.gmra.mxu0 %v642
  %v1490 = vpop.f32.mrf.mxu0
  %v1491 = vadd.f32 %v1202, %v1490
  %v1492 = vpop.f32.mrf.mxu0
  %v1493 = vpop.f32.mrf.mxu0
  %v1494 = vadd.f32 %v1205, %v1493
  %v1495 = vpop.f32.mrf.mxu0
  %1496 = vmatprep.mubr.bf16.mxu0 %v1005
  %1497 = vmatmul.mubr.bf16.gmra.mxu0 %v646
  %v1498 = vpop.f32.mrf.mxu0
  %v1499 = vadd.f32 %v1210, %v1498
  %v1500 = vpop.f32.mrf.mxu0
  %v1501 = vpop.f32.mrf.mxu0
  %v1502 = vadd.f32 %v1213, %v1501
  %v1503 = vpop.f32.mrf.mxu0
  %1504 = vmatprep.mubr.bf16.mxu0 %v1008
  %1505 = vmatmul.mubr.bf16.gmra.mxu0 %v650
  %v1506 = vpop.f32.mrf.mxu0
  %v1507 = vadd.f32 %v1218, %v1506
  %v1508 = vpop.f32.mrf.mxu0
  %v1509 = vpop.f32.mrf.mxu0
  %v1510 = vadd.f32 %v1221, %v1509
  %v1511 = vpop.f32.mrf.mxu0
  %1512 = vmatprep.mubr.bf16.mxu0 %v1011
  %1513 = vmatmul.mubr.bf16.gmra.mxu0 %v654
  %v1514 = vpop.f32.mrf.mxu0
  %v1515 = vadd.f32 %v1226, %v1514
  %v1516 = vpop.f32.mrf.mxu0
  %v1517 = vpop.f32.mrf.mxu0
  %v1518 = vadd.f32 %v1229, %v1517
  %v1519 = vpop.f32.mrf.mxu0
  %1520 = vmatprep.mubr.bf16.mxu0 %v1014
  %1521 = vmatmul.mubr.bf16.gmra.mxu0 %v658
  %v1522 = vpop.f32.mrf.mxu0
  %v1523 = vadd.f32 %v1234, %v1522
  %v1524 = vpop.f32.mrf.mxu0
  %v1525 = vpop.f32.mrf.mxu0
  %v1526 = vadd.f32 %v1237, %v1525
  %v1527 = vpop.f32.mrf.mxu0
  %1528 = vmatprep.mubr.bf16.mxu0 %v1017
  %1529 = vmatmul.mubr.bf16.gmra.mxu0 %v662
  %v1530 = vpop.f32.mrf.mxu0
  %v1531 = vadd.f32 %v1242, %v1530
  %v1532 = vpop.f32.mrf.mxu0
  %v1533 = vpop.f32.mrf.mxu0
  %v1534 = vadd.f32 %v1245, %v1533
  %v1535 = vpop.f32.mrf.mxu0
  %1536 = vmatprep.mubr.bf16.mxu0 %v1020
  %1537 = vmatmul.mubr.bf16.gmra.mxu0 %v666
  %v1538 = vpop.f32.mrf.mxu0
  %v1539 = vadd.f32 %v1250, %v1538
  %v1540 = vpop.f32.mrf.mxu0
  %v1541 = vpop.f32.mrf.mxu0
  %v1542 = vadd.f32 %v1253, %v1541
  %v1543 = vpop.f32.mrf.mxu0
  %1544 = vmatprep.mubr.bf16.mxu0 %v1023
  %1545 = vmatmul.mubr.bf16.gmra.mxu0 %v670
  %v1546 = vpop.f32.mrf.mxu0
  %v1547 = vadd.f32 %v1258, %v1546
  %v1548 = vpop.f32.mrf.mxu0
  %v1549 = vpop.f32.mrf.mxu0
  %v1550 = vadd.f32 %v1261, %v1549
  %v1551 = vpop.f32.mrf.mxu0
  %1552 = vmatprep.mubr.bf16.mxu0 %v1026
  %1553 = vmatmul.mubr.bf16.gmra.mxu0 %v674
  %v1554 = vpop.f32.mrf.mxu0
  %v1555 = vadd.f32 %v1266, %v1554
  %v1556 = vpop.f32.mrf.mxu0
  %v1557 = vpop.f32.mrf.mxu0
  %v1558 = vadd.f32 %v1269, %v1557
  %v1559 = vpop.f32.mrf.mxu0
  %1560 = vmatprep.mubr.bf16.mxu0 %v1029
  %1561 = vmatmul.mubr.bf16.gmra.mxu0 %v678
  %v1562 = vpop.f32.mrf.mxu0
  %v1563 = vadd.f32 %v1274, %v1562
  %v1564 = vpop.f32.mrf.mxu0
  %v1565 = vpop.f32.mrf.mxu0
  %v1566 = vadd.f32 %v1277, %v1565
  %v1567 = vpop.f32.mrf.mxu0
  %1568 = vmatprep.mubr.bf16.mxu0 %v1032
  %1569 = vmatmul.mubr.bf16.gmra.mxu0 %v682
  %v1570 = vpop.f32.mrf.mxu0
  %v1571 = vadd.f32 %v1282, %v1570
  %v1572 = vpop.f32.mrf.mxu0
  %v1573 = vpop.f32.mrf.mxu0
  %v1574 = vadd.f32 %v1285, %v1573
  %v1575 = vpop.f32.mrf.mxu0
  %1576 = vmatprep.mubr.bf16.mxu0 %v1035
  %1577 = vmatmul.mubr.bf16.gmra.mxu0 %v686
  %v1578 = vpop.f32.mrf.mxu0
  %v1579 = vadd.f32 %v1290, %v1578
  %v1580 = vpop.f32.mrf.mxu0
  %v1581 = vpop.f32.mrf.mxu0
  %v1582 = vadd.f32 %v1293, %v1581
  %v1583 = vpop.f32.mrf.mxu0
  %1584 = vmatprep.mubr.bf16.mxu0 %v1038
  %1585 = vmatmul.mubr.bf16.gmra.mxu0 %v690
  %v1586 = vpop.f32.mrf.mxu0
  %v1587 = vadd.f32 %v1298, %v1586
  %v1588 = vpop.f32.mrf.mxu0
  %v1589 = vpop.f32.mrf.mxu0
  %v1590 = vadd.f32 %v1301, %v1589
  %v1591 = vpop.f32.mrf.mxu0
  %1592 = vmatprep.mubr.bf16.mxu0 %v1041
  %1593 = vmatmul.mubr.bf16.gmra.mxu0 %v694
  %v1594 = vpop.f32.mrf.mxu0
  %v1595 = vadd.f32 %v1306, %v1594
  %v1596 = vpop.f32.mrf.mxu0
  %v1597 = vpop.f32.mrf.mxu0
  %v1598 = vadd.f32 %v1309, %v1597
  %v1599 = vpop.f32.mrf.mxu0
  %1600 = vmatprep.mubr.bf16.mxu0 %v1044
  %1601 = vmatmul.mubr.bf16.gmra.mxu0 %v698
  %v1602 = vpop.f32.mrf.mxu0
  %v1603 = vadd.f32 %v1314, %v1602
  %v1604 = vpop.f32.mrf.mxu0
  %v1605 = vpop.f32.mrf.mxu0
  %v1606 = vadd.f32 %v1317, %v1605
  %v1607 = vpop.f32.mrf.mxu0
  %1608 = vmatprep.mubr.bf16.mxu0 %v1047
  %1609 = vmatmul.mubr.bf16.gmra.mxu0 %v702
  %v1610 = vpop.f32.mrf.mxu0
  %v1611 = vadd.f32 %v1322, %v1610
  %v1612 = vpop.f32.mrf.mxu0
  %v1613 = vpop.f32.mrf.mxu0
  %v1614 = vadd.f32 %v1325, %v1613
  %v1615 = vpop.f32.mrf.mxu0
  %1616 = vmatprep.mubr.bf16.mxu0 %v1050
  %1617 = vmatmul.mubr.bf16.gmra.mxu0 %v706
  %v1618 = vpop.f32.mrf.mxu0
  %v1619 = vadd.f32 %v1330, %v1618
  %v1620 = vpop.f32.mrf.mxu0
  %v1621 = vpop.f32.mrf.mxu0
  %v1622 = vadd.f32 %v1333, %v1621
  %v1623 = vpop.f32.mrf.mxu0
  %1624 = vmatprep.mubr.bf16.mxu0 %v1053
  %1625 = vmatmul.mubr.bf16.gmra.mxu0 %v710
  %v1626 = vpop.f32.mrf.mxu0
  %v1627 = vadd.f32 %v1338, %v1626
  %v1628 = vpop.f32.mrf.mxu0
  %v1629 = vpop.f32.mrf.mxu0
  %v1630 = vadd.f32 %v1341, %v1629
  %v1631 = vpop.f32.mrf.mxu0
  %1632 = vdwg.mxu0
  %v1633 = vtanh.pop %v1379
  %v1634 = vtanh.pop %v1382
  %v1635 = vtanh.pop %v1387
  %v1636 = vtanh.pop %v1390
  %v1637 = vtanh.pop %v1395
  %v1638 = vtanh.pop %v1398
  %v1639 = vtanh.pop %v1403
  %v1640 = vtanh.pop %v1406
  %v1641 = vtanh.pop %v1411
  %v1642 = vtanh.pop %v1414
  %v1643 = vtanh.pop %v1419
  %v1644 = vtanh.pop %v1422
  %v1645 = vtanh.pop %v1427
  %v1646 = vtanh.pop %v1430
  %v1647 = vtanh.pop %v1435
  %v1648 = vtanh.pop %v1438
  %v1649 = vtanh.pop %v1443
  %v1650 = vtanh.pop %v1446
  %v1651 = vtanh.pop %v1451
  %v1652 = vtanh.pop %v1454
  %v1653 = vtanh.pop %v1459
  %v1654 = vtanh.pop %v1462
  %v1655 = vtanh.pop %v1467
  %v1656 = vtanh.pop %v1470
  %v1657 = vtanh.pop %v1475
  %v1658 = vtanh.pop %v1478
  %v1659 = vtanh.pop %v1483
  %v1660 = vtanh.pop %v1486
  %v1661 = vtanh.pop %v1491
  %v1662 = vtanh.pop %v1494
  %v1663 = vtanh.pop %v1499
  %v1664 = vtanh.pop %v1502
  %v1665 = vtanh.pop %v1507
  %v1666 = vtanh.pop %v1510
  %v1667 = vtanh.pop %v1515
  %v1668 = vtanh.pop %v1518
  %v1669 = vtanh.pop %v1523
  %v1670 = vtanh.pop %v1526
  %v1671 = vtanh.pop %v1531
  %v1672 = vtanh.pop %v1534
  %v1673 = vtanh.pop %v1539
  %v1674 = vtanh.pop %v1542
  %v1675 = vtanh.pop %v1547
  %v1676 = vtanh.pop %v1550
  %v1677 = vtanh.pop %v1555
  %v1678 = vtanh.pop %v1558
  %v1679 = vtanh.pop %v1563
  %v1680 = vtanh.pop %v1566
  %v1681 = vtanh.pop %v1571
  %v1682 = vtanh.pop %v1574
  %v1683 = vtanh.pop %v1579
  %v1684 = vtanh.pop %v1582
  %v1685 = vtanh.pop %v1587
  %v1686 = vtanh.pop %v1590
  %v1687 = vtanh.pop %v1595
  %v1688 = vtanh.pop %v1598
  %v1689 = vtanh.pop %v1603
  %v1690 = vtanh.pop %v1606
  %v1691 = vtanh.pop %v1611
  %v1692 = vtanh.pop %v1614
  %v1693 = vtanh.pop %v1619
  %v1694 = vtanh.pop %v1622
  %v1695 = vtanh.pop %v1627
  %v1696 = vtanh.pop %v1630
  %vm1697 = vcmask 23552
  %1698 = vst.msk [vmem:[%s3] sm:$0xff] %vm1697, %v1633
  %1699 = vst.msk [vmem:[%s3 + $0x8] sm:$0xff] %vm1697, %v1634
  %1700 = vst.msk [vmem:[%s3 + $0x10] sm:$0xff] %vm1697, %v1635
  %1701 = vst.msk [vmem:[%s3 + $0x18] sm:$0xff] %vm1697, %v1636
  %1702 = vst.msk [vmem:[%s3 + $0x20] sm:$0xff] %vm1697, %v1637
  %1703 = vst.msk [vmem:[%s3 + $0x28] sm:$0xff] %vm1697, %v1638
  %1704 = vst.msk [vmem:[%s3 + $0x30] sm:$0xff] %vm1697, %v1639
  %1705 = vst.msk [vmem:[%s3 + $0x38] sm:$0xff] %vm1697, %v1640
  %1706 = vst.msk [vmem:[%s3 + $0x40] sm:$0xff] %vm1697, %v1641
  %1707 = vst.msk [vmem:[%s3 + $0x48] sm:$0xff] %vm1697, %v1642
  %1708 = vst.msk [vmem:[%s3 + $0x50] sm:$0xff] %vm1697, %v1643
  %1709 = vst.msk [vmem:[%s3 + $0x58] sm:$0xff] %vm1697, %v1644
  %1710 = vst.msk [vmem:[%s3 + $0x60] sm:$0xff] %vm1697, %v1645
  %1711 = vst.msk [vmem:[%s3 + $0x68] sm:$0xff] %vm1697, %v1646
  %1712 = vst.msk [vmem:[%s3 + $0x70] sm:$0xff] %vm1697, %v1647
  %1713 = vst.msk [vmem:[%s3 + $0x78] sm:$0xff] %vm1697, %v1648
  %1714 = vst.msk [vmem:[%s3 + $0x80] sm:$0xff] %vm1697, %v1649
  %1715 = vst.msk [vmem:[%s3 + $0x88] sm:$0xff] %vm1697, %v1650
  %1716 = vst.msk [vmem:[%s3 + $0x90] sm:$0xff] %vm1697, %v1651
  %1717 = vst.msk [vmem:[%s3 + $0x98] sm:$0xff] %vm1697, %v1652
  %1718 = vst.msk [vmem:[%s3 + $0xa0] sm:$0xff] %vm1697, %v1653
  %1719 = vst.msk [vmem:[%s3 + $0xa8] sm:$0xff] %vm1697, %v1654
  %1720 = vst.msk [vmem:[%s3 + $0xb0] sm:$0xff] %vm1697, %v1655
  %1721 = vst.msk [vmem:[%s3 + $0xb8] sm:$0xff] %vm1697, %v1656
  %1722 = vst.msk [vmem:[%s3 + $0xc0] sm:$0xff] %vm1697, %v1657
  %1723 = vst.msk [vmem:[%s3 + $0xc8] sm:$0xff] %vm1697, %v1658
  %1724 = vst.msk [vmem:[%s3 + $0xd0] sm:$0xff] %vm1697, %v1659
  %1725 = vst.msk [vmem:[%s3 + $0xd8] sm:$0xff] %vm1697, %v1660
  %1726 = vst.msk [vmem:[%s3 + $0xe0] sm:$0xff] %vm1697, %v1661
  %1727 = vst.msk [vmem:[%s3 + $0xe8] sm:$0xff] %vm1697, %v1662
  %1728 = vst.msk [vmem:[%s3 + $0xf0] sm:$0xff] %vm1697, %v1663
  %1729 = vst.msk [vmem:[%s3 + $0xf8] sm:$0xff] %vm1697, %v1664
  %1730 = vst.msk [vmem:[%s3 + $0x100] sm:$0xff] %vm1697, %v1665
  %1731 = vst.msk [vmem:[%s3 + $0x108] sm:$0xff] %vm1697, %v1666
  %1732 = vst.msk [vmem:[%s3 + $0x110] sm:$0xff] %vm1697, %v1667
  %1733 = vst.msk [vmem:[%s3 + $0x118] sm:$0xff] %vm1697, %v1668
  %1734 = vst.msk [vmem:[%s3 + $0x120] sm:$0xff] %vm1697, %v1669
  %1735 = vst.msk [vmem:[%s3 + $0x128] sm:$0xff] %vm1697, %v1670
  %1736 = vst.msk [vmem:[%s3 + $0x130] sm:$0xff] %vm1697, %v1671
  %1737 = vst.msk [vmem:[%s3 + $0x138] sm:$0xff] %vm1697, %v1672
  %1738 = vst.msk [vmem:[%s3 + $0x140] sm:$0xff] %vm1697, %v1673
  %1739 = vst.msk [vmem:[%s3 + $0x148] sm:$0xff] %vm1697, %v1674
  %1740 = vst.msk [vmem:[%s3 + $0x150] sm:$0xff] %vm1697, %v1675
  %1741 = vst.msk [vmem:[%s3 + $0x158] sm:$0xff] %vm1697, %v1676
  %1742 = vst.msk [vmem:[%s3 + $0x160] sm:$0xff] %vm1697, %v1677
  %1743 = vst.msk [vmem:[%s3 + $0x168] sm:$0xff] %vm1697, %v1678
  %1744 = vst.msk [vmem:[%s3 + $0x170] sm:$0xff] %vm1697, %v1679
  %1745 = vst.msk [vmem:[%s3 + $0x178] sm:$0xff] %vm1697, %v1680
  %1746 = vst.msk [vmem:[%s3 + $0x180] sm:$0xff] %vm1697, %v1681
  %1747 = vst.msk [vmem:[%s3 + $0x188] sm:$0xff] %vm1697, %v1682
  %1748 = vst.msk [vmem:[%s3 + $0x190] sm:$0xff] %vm1697, %v1683
  %1749 = vst.msk [vmem:[%s3 + $0x198] sm:$0xff] %vm1697, %v1684
  %1750 = vst.msk [vmem:[%s3 + $0x1a0] sm:$0xff] %vm1697, %v1685
  %1751 = vst.msk [vmem:[%s3 + $0x1a8] sm:$0xff] %vm1697, %v1686
  %1752 = vst.msk [vmem:[%s3 + $0x1b0] sm:$0xff] %vm1697, %v1687
  %1753 = vst.msk [vmem:[%s3 + $0x1b8] sm:$0xff] %vm1697, %v1688
  %1754 = vst.msk [vmem:[%s3 + $0x1c0] sm:$0xff] %vm1697, %v1689
  %1755 = vst.msk [vmem:[%s3 + $0x1c8] sm:$0xff] %vm1697, %v1690
  %1756 = vst.msk [vmem:[%s3 + $0x1d0] sm:$0xff] %vm1697, %v1691
  %1757 = vst.msk [vmem:[%s3 + $0x1d8] sm:$0xff] %vm1697, %v1692
  %1758 = vst.msk [vmem:[%s3 + $0x1e0] sm:$0xff] %vm1697, %v1693
  %1759 = vst.msk [vmem:[%s3 + $0x1e8] sm:$0xff] %vm1697, %v1694
  %1760 = vst.msk [vmem:[%s3 + $0x1f0] sm:$0xff] %vm1697, %v1695
  %1761 = vst.msk [vmem:[%s3 + $0x1f8] sm:$0xff] %vm1697, %v1696
  // Predicated region
  $region14: #{spade_resnet_forward.91} parent=0 // pred_check
    _
  $region15: #{spade_resnet_forward.91} parent=0 // pred_check_branch
    %1763 = sbr.rel (0) target = $region17
  $region16: #{spade_resnet_forward.91} parent=0 // pred_region
    _
  $region17: #{spade_resnet_forward.91} parent=0 // pred_fallthru
    _
  // Predicated region
  $region18: #{spade_resnet_forward.91} parent=0 // pred_check
    _
  $region19: #{spade_resnet_forward.91} parent=0 // pred_check_branch
    %1765 = sbr.rel (0) target = $region21
  $region20: #{spade_resnet_forward.91} parent=0 // pred_region
    _
  $region21: #{spade_resnet_forward.91} parent=0 // pred_fallthru
    _

</llo_original>
